<compile_context>
chip_gen: v7x
topology: tpu7x:2x2x1
jax: 0.10.0
libtpu: 0.0.40
codegen_flags: <defaults>
</compile_context>

<pallas_src>
import functools

import jax
import jax.numpy as jnp
from jax.experimental import pallas as pl
from jax.experimental.pallas import tpu as pltpu

EPS = 1e-5


def _fused_kernel(x_ref, w_ref, gb_ref, o_ref, xr_ref, *, inv_m):
    # x_ref : (Cin, M)  f32  -- full activation, constant block, fetched once
    # w_ref : (Tco, Cin) f32 -- this grid step's slice of the conv weight
    # gb_ref: (Tco, 2)  f32  -- [:, 0] = gamma, [:, 1] = beta for these channels
    # o_ref : (Tco, M)  f32  -- this grid step's output channels
    # xr_ref: (Cin, M)  bf16 -- scratch: relu(X) cast once, reused by every step

    # relu24 + bf16 cast, hoisted: done only on the first grid step ("arbitrary"
    # semantics guarantee sequential execution on one core, so the scratch persists).
    @pl.when(pl.program_id(0) == 0)
    def _():
        xr_ref[...] = jnp.maximum(x_ref[...], 0.0).astype(jnp.bfloat16)

    # conv2d33: 1x1 conv, stride 1, no bias == matmul on the MXU (bf16 in, f32 acc).
    w = w_ref[...].astype(jnp.bfloat16)
    y = jnp.dot(w, xr_ref[...], preferred_element_type=jnp.float32)   # (Tco, M) f32

    # batchnorm2d21: training-mode per-channel batch stats over M = N*H*W,
    # single elementwise pass (y and y*y), biased variance = E[y^2] - mu^2.
    s1 = jnp.sum(y, axis=1, keepdims=True)                            # (Tco, 1)
    s2 = jnp.sum(y * y, axis=1, keepdims=True)                        # (Tco, 1)
    mu = s1 * inv_m
    var = s2 * inv_m - mu * mu

    gb = gb_ref[...]
    gamma = gb[:, 0:1]
    beta = gb[:, 1:2]
    scale = gamma * jax.lax.rsqrt(var + EPS)

    # fused normalize + affine + relu25, no centered temp materialized
    o_ref[...] = jnp.maximum((y - mu) * scale + beta, 0.0)


def _pick_cout_tile(cout):
    # Prefer an exact divisor of Cout that is a multiple of 8, as large as possible
    # up to 256 (for Cout=696 this picks 232 -> a 3-step grid).
    for t in range(256, 7, -8):
        if cout % t == 0:
            return t
    return min(cout, 256)  # partial last tile: Pallas masks the store


def fused_relu_conv1x1_bn_relu(x_nchw, w_conv, gamma, beta):
    """x_nchw: (N, C, H, W); w_conv: (Cout, Cin, 1, 1); gamma/beta: (Cout,)."""
    N, C, H, W = x_nchw.shape
    Cout = w_conv.shape[0]
    M = N * H * W

    if N == 1:
        x2d = x_nchw.reshape(C, M)                       # free view, no HBM copy
    else:
        # TODO(synk): general N pays one transpose; the module runs with N == 1.
        x2d = jnp.transpose(x_nchw, (1, 0, 2, 3)).reshape(C, M)
    x2d = x2d.astype(jnp.float32)
    w2d = w_conv[:, :, 0, 0].astype(jnp.float32)         # (Cout, Cin), no transpose
    gb = jnp.stack(
        [gamma.astype(jnp.float32), beta.astype(jnp.float32)], axis=1
    )                                                    # (Cout, 2) merged BN params

    tco = _pick_cout_tile(Cout)
    grid = (pl.cdiv(Cout, tco),)

    out2d = pl.pallas_call(
        functools.partial(_fused_kernel, inv_m=1.0 / M),
        out_shape=jax.ShapeDtypeStruct((Cout, M), jnp.float32),
        grid_spec=pltpu.PrefetchScalarGridSpec(
            num_scalar_prefetch=0,
            grid=grid,
            in_specs=[
                # X: resident, DMA'd once; constant index => one buffer is enough.
                pl.BlockSpec((C, M), lambda i: (0, 0),
                             pipeline_mode=pl.Buffered(1)),
                pl.BlockSpec((tco, C), lambda i: (i, 0)),   # W: streamed per step
                pl.BlockSpec((tco, 2), lambda i: (i, 0)),   # gamma/beta merged
            ],
            out_specs=pl.BlockSpec((tco, M), lambda i: (i, 0)),
            scratch_shapes=[pltpu.VMEM((C, M), jnp.bfloat16)],  # relu(X) bf16, hoisted
        ),
        compiler_params=pltpu.CompilerParams(
            # "arbitrary": sequential steps on one core -> scratch hoist is valid,
            # no v7x 2/1 split imbalance, no duplicate X fetch per core.
            dimension_semantics=("arbitrary",),
            vmem_limit_bytes=32 * 1024 * 1024,
        ),
    )(x2d, w2d, gb)

    if N == 1:
        return out2d.reshape(1, Cout, H, W)              # free reshape, no transpose
    return jnp.transpose(out2d.reshape(Cout, N, H, W), (1, 0, 2, 3))


def _reference(x_nchw, w_conv, gamma, beta):
    """Pure-JAX f32 reference matching PyTorch semantics (training-mode BN)."""
    x = jnp.maximum(x_nchw, 0.0)
    y = jnp.einsum("nchw,oc->nohw", x, w_conv[:, :, 0, 0])
    mu = jnp.mean(y, axis=(0, 2, 3), keepdims=True)
    var = jnp.mean((y - mu) ** 2, axis=(0, 2, 3), keepdims=True)
    yn = (y - mu) / jnp.sqrt(var + EPS)
    yn = yn * gamma[None, :, None, None] + beta[None, :, None, None]
    return jnp.maximum(yn, 0.0)


if __name__ == "__main__":
    # Shapes implied by the module: Conv2d(696, 696, 1x1) on (1, 696, 28, 28).
    N, C, H, W = 1, 696, 28, 28
    Cout = 696

    key = jax.random.PRNGKey(0)
    kx, kw, kg, kb = jax.random.split(key, 4)

    x = jax.random.normal(kx, (N, C, H, W), dtype=jnp.float32)
    w_conv = jax.random.normal(kw, (Cout, C, 1, 1), dtype=jnp.float32) * 0.05
    gamma = 1.0 + 0.1 * jax.random.normal(kg, (Cout,), dtype=jnp.float32)
    beta = 0.1 * jax.random.normal(kb, (Cout,), dtype=jnp.float32)

    out = fused_relu_conv1x1_bn_relu(x, w_conv, gamma, beta)
    out = jax.block_until_ready(out)

    ref = jax.block_until_ready(_reference(x, w_conv, gamma, beta))
    assert out.shape == (N, Cout, H, W)
    # bf16 MXU operands (f32 accumulation) introduce ~1e-3-scale quantization vs the
    # f32 reference; 2e-2 tolerance gives ample margin.
    assert jnp.allclose(out, ref, atol=2e-2, rtol=2e-2), (
        float(jnp.max(jnp.abs(out - ref)))
    )

    print("KERNEL_OK")
</pallas_src>

<mosaic_0001>
module attributes {stable_mosaic.version = 11 : i64} {
  func.func @_fused_kernel(%arg0: i32, %arg1: memref<696x784xf32, #tpu.memory_space<vmem>>, %arg2: memref<232x696xf32, #tpu.memory_space<vmem>>, %arg3: memref<232x2xf32, #tpu.memory_space<vmem>>, %arg4: memref<232x784xf32, #tpu.memory_space<vmem>>, %arg5: memref<696x784xbf16, #tpu.memory_space<vmem>>) attributes {dimension_semantics = [#tpu.dimension_semantics<arbitrary>], iteration_bounds = array<i64: 3>, scalar_prefetch = 0 : i64, scratch_operands = 1 : i64, tpu.core_type = #tpu.core_type<tc>, window_params = [{pipeline_mode = #tpu.pipeline_mode<synchronous>, transform_indices = @transform_0, window_bounds = array<i64: 696, 784>}, {transform_indices = @transform_1, window_bounds = array<i64: 232, 696>}, {transform_indices = @transform_2, window_bounds = array<i64: 232, 2>}, {transform_indices = @transform_3, window_bounds = array<i64: 232, 784>}]} {
    %c0_i32 = arith.constant 0 : i32
    %0 = arith.cmpi eq, %arg0, %c0_i32 : i32
    %1 = arith.extui %0 : i1 to i32
    %c0_i32_0 = arith.constant 0 : i32
    %2 = arith.cmpi ne, %1, %c0_i32_0 : i32
    scf.if %2 {
      %c0_14 = arith.constant 0 : index
      %c0_15 = arith.constant 0 : index
      %34 = vector.load %arg1[%c0_14, %c0_15] : memref<696x784xf32, #tpu.memory_space<vmem>>, vector<696x784xf32>
      %cst_16 = arith.constant 0.000000e+00 : f32
      %35 = vector.broadcast %cst_16 : f32 to vector<696x784xf32>
      %36 = arith.maximumf %34, %35 : vector<696x784xf32>
      %37 = arith.truncf %36 : vector<696x784xf32> to vector<696x784xbf16>
      %c0_17 = arith.constant 0 : index
      %c0_18 = arith.constant 0 : index
      %38 = vector.load %arg5[%c0_17, %c0_18] : memref<696x784xbf16, #tpu.memory_space<vmem>>, vector<696x784xbf16>
      tpu.vector_store %arg5[%c0_17, %c0_18], %37 {strides = array<i32>} : memref<696x784xbf16, #tpu.memory_space<vmem>>, vector<696x784xbf16>,
    } else {
    }
    %c0 = arith.constant 0 : index
    %c0_1 = arith.constant 0 : index
    %3 = vector.load %arg2[%c0, %c0_1] : memref<232x696xf32, #tpu.memory_space<vmem>>, vector<232x696xf32>
    %4 = arith.truncf %3 : vector<232x696xf32> to vector<232x696xbf16>
    %c0_2 = arith.constant 0 : index
    %c0_3 = arith.constant 0 : index
    %5 = vector.load %arg5[%c0_2, %c0_3] : memref<696x784xbf16, #tpu.memory_space<vmem>>, vector<696x784xbf16>
    %cst = arith.constant dense<0.000000e+00> : vector<232x784xf32>
    %6 = tpu.matmul %4, %5, %cst {dimension_numbers = #tpu.dot_dimension_numbers<[1], [0], [0], [1], [0, 0, 1, 1], [], []>} : vector<232x696xbf16>, vector<696x784xbf16>, vector<232x784xf32> -> vector<232x784xf32>
    %cst_4 = arith.constant dense<0.000000e+00> : vector<232xf32>
    %7 = vector.multi_reduction <add>, %6, %cst_4 [1] : vector<232x784xf32> to vector<232xf32>
    %8 = vector.shape_cast %7 : vector<232xf32> to vector<232x1xf32>
    %9 = arith.mulf %6, %6 : vector<232x784xf32>
    %cst_5 = arith.constant dense<0.000000e+00> : vector<232xf32>
    %10 = vector.multi_reduction <add>, %9, %cst_5 [1] : vector<232x784xf32> to vector<232xf32>
    %11 = vector.shape_cast %10 : vector<232xf32> to vector<232x1xf32>
    %cst_6 = arith.constant 0.00127551018 : f32
    %12 = vector.broadcast %cst_6 : f32 to vector<232x1xf32>
    %13 = arith.mulf %8, %12 : vector<232x1xf32>
    %cst_7 = arith.constant 0.00127551018 : f32
    %14 = vector.broadcast %cst_7 : f32 to vector<232x1xf32>
    %15 = arith.mulf %11, %14 : vector<232x1xf32>
    %16 = arith.mulf %13, %13 : vector<232x1xf32>
    %17 = arith.subf %15, %16 : vector<232x1xf32>
    %c0_8 = arith.constant 0 : index
    %c0_9 = arith.constant 0 : index
    %18 = vector.load %arg3[%c0_8, %c0_9] : memref<232x2xf32, #tpu.memory_space<vmem>>, vector<232x2xf32>
    %19 = vector.extract_strided_slice %18 {offsets = [0, 0], sizes = [232, 1], strides = [1, 1]} : vector<232x2xf32> to vector<232x1xf32>
    %20 = vector.extract_strided_slice %18 {offsets = [0, 1], sizes = [232, 1], strides = [1, 1]} : vector<232x2xf32> to vector<232x1xf32>
    %cst_10 = arith.constant 9.99999974E-6 : f32
    %21 = vector.broadcast %cst_10 : f32 to vector<232x1xf32>
    %22 = arith.addf %17, %21 : vector<232x1xf32>
    %23 = math.rsqrt %22 : vector<232x1xf32>
    %24 = arith.mulf %19, %23 : vector<232x1xf32>
    %25 = vector.broadcast %13 : vector<232x1xf32> to vector<232x784xf32>
    %26 = arith.subf %6, %25 : vector<232x784xf32>
    %27 = vector.broadcast %24 : vector<232x1xf32> to vector<232x784xf32>
    %28 = arith.mulf %26, %27 : vector<232x784xf32>
    %29 = vector.broadcast %20 : vector<232x1xf32> to vector<232x784xf32>
    %30 = arith.addf %28, %29 : vector<232x784xf32>
    %cst_11 = arith.constant 0.000000e+00 : f32
    %31 = vector.broadcast %cst_11 : f32 to vector<232x784xf32>
    %32 = arith.maximumf %30, %31 : vector<232x784xf32>
    %c0_12 = arith.constant 0 : index
    %c0_13 = arith.constant 0 : index
    %33 = vector.load %arg4[%c0_12, %c0_13] : memref<232x784xf32, #tpu.memory_space<vmem>>, vector<232x784xf32>
    tpu.vector_store %arg4[%c0_12, %c0_13], %32 {strides = array<i32>} : memref<232x784xf32, #tpu.memory_space<vmem>>, vector<232x784xf32>,
    return
  }
  func.func @transform_0(%arg0: i32) -> (i32, i32) {
    %c0_i32 = arith.constant 0 : i32
    %c0_i32_0 = arith.constant 0 : i32
    %c0_i32_1 = arith.constant 0 : i32
    return %c0_i32, %c0_i32_0 : i32, i32
  }
  func.func @transform_1(%arg0: i32) -> (i32, i32) {
    %c0_i32 = arith.constant 0 : i32
    %c0_i32_0 = arith.constant 0 : i32
    return %arg0, %c0_i32 : i32, i32
  }
  func.func @transform_2(%arg0: i32) -> (i32, i32) {
    %c0_i32 = arith.constant 0 : i32
    %c0_i32_0 = arith.constant 0 : i32
    return %arg0, %c0_i32 : i32, i32
  }
  func.func @transform_3(%arg0: i32) -> (i32, i32) {
    %c0_i32 = arith.constant 0 : i32
    %c0_i32_0 = arith.constant 0 : i32
    return %arg0, %c0_i32 : i32, i32
  }
}

</mosaic_0001>

<llo_original>
// kernel: tpu_custom_call.1
$region0: #{tpu_custom_call.1}
  #allocation0 [shape = 'u32[]', space=smem, size = 0x4, offset = 0x4, fixed_abs, tag = 'smem constant byte address 0x4 - core index']
  #allocation1 [shape = 'u32[144,128]{1,0:T(1,128)}', space=vmem, size = 0x12000, scoped, tag = 'internal scratch']
  #allocation2 [shape = 'bf16[696,784]{1,0:T(8,128)(2,1)}', space=vmem, size = 0x130800, scoped, tag = 'scratch operand']
  %s0 = inlined_call_operand.vmem [shape: f32[696,784], index: 0, kind: input, shape index: {}]
  %s1 = inlined_call_operand.vmem [shape: f32[696,696], index: 1, kind: input, shape index: {}]
  %s2 = inlined_call_operand.vmem [shape: f32[696,2], index: 2, kind: input, shape index: {}]
  %s3 = inlined_call_operand.vmem [shape: f32[696,784], index: 3, kind: output, shape index: {}]
  %s4 = sld [smem:[#allocation0]]
  $region49: #{tpu_custom_call.1} parent=0
    _
  %s6 = ssub.s32 1, %s4
  %s7 = scalar_select 0, %s6, %s4
  loop: start=0, step=1, limit=5
  $region2: #{tpu_custom_call.1} parent=0 // loop_pre_header
    _
  $region3: #{tpu_custom_call.1} parent=0 // loop_header
    %s9 = sphi 0, %s13
    %p10 = scmp.ge.s32.totalorder %s9, 5
    %s17 = sphi 0, %s17
    %s19 = sphi 0, %s17
    %s20 = sphi 0, %s19
    %s34 = sphi 0, %s20
    %s40 = sphi 0, %s42
    %s43 = sphi 0, %s40
    %s44 = sphi 0, %s43
    %s60 = sphi 0, %s44
    %s66 = sphi 0, %s68
    %s69 = sphi 0, %s66
    %s70 = sphi 0, %s69
    %s86 = sphi 0, %s70
    %s92 = sphi 0, %s94
    %s95 = sphi 0, %s92
    %s96 = sphi 0, %s95
    %s112 = sphi 0, %s96
  $region4: #{tpu_custom_call.1} parent=0 // loop_header_branch
    %12 = sbr.rel (%p10) target = $region8
  $region5: #{tpu_custom_call.1} parent=0 // loop_body
    %s14 = ssub.s32 %s9, 1
    %s15 = ssub.s32 %s9, 2
    %s16 = sadd.s32 %s9, 1
    %s18 = sadd.s32 %s17, 1
    %p21 = scmp.eq.s32.totalorder %s9, 2
    %p22 = scmp.ne.s32.totalorder %s17, %s19
    %p23 = scmp.eq.s32.totalorder %s9, 0
    %p24 = por %p22, %p23
    %p25 = scmp.ne.s32.totalorder %s17, %s19
    %p26 = scmp.eq.s32.totalorder %s14, 2
    %p27 = por %p25, %p26
    %p28 = scmp.ne.s32.totalorder %s19, %s20
    %p29 = scmp.eq.s32.totalorder %s14, 0
    %p30 = por %p28, %p29
    %p31 = scmp.ne.s32.totalorder %s19, %s20
    %p32 = scmp.eq.s32.totalorder %s15, 2
    %p33 = por %p31, %p32
    %p35 = scmp.ne.s32.totalorder %s20, %s34
    %p36 = scmp.eq.s32.totalorder %s15, 0
    %p37 = por %p35, %p36
    %s38 = ssub.s32 %s9, %s16
    %p39 = scmp.eq.s32.totalorder %s38, 0
    %s41 = sadd.s32 %s40, 1
    %s42 = scalar_select %p39, %s40, %s41
    %p45 = pneg %p39
    %p46 = scmp.eq.s32.totalorder %s9, 2
    %p47 = por %p45, %p46
    %p48 = scmp.ne.s32.totalorder %s40, %s43
    %p49 = scmp.eq.s32.totalorder %s9, 0
    %p50 = por %p48, %p49
    %p51 = scmp.ne.s32.totalorder %s40, %s43
    %p52 = scmp.eq.s32.totalorder %s14, 2
    %p53 = por %p51, %p52
    %p54 = scmp.ne.s32.totalorder %s43, %s44
    %p55 = scmp.eq.s32.totalorder %s14, 0
    %p56 = por %p54, %p55
    %p57 = scmp.ne.s32.totalorder %s43, %s44
    %p58 = scmp.eq.s32.totalorder %s15, 2
    %p59 = por %p57, %p58
    %p61 = scmp.ne.s32.totalorder %s44, %s60
    %p62 = scmp.eq.s32.totalorder %s15, 0
    %p63 = por %p61, %p62
    %s64 = ssub.s32 %s9, %s16
    %p65 = scmp.eq.s32.totalorder %s64, 0
    %s67 = sadd.s32 %s66, 1
    %s68 = scalar_select %p65, %s66, %s67
    %p71 = pneg %p65
    %p72 = scmp.eq.s32.totalorder %s9, 2
    %p73 = por %p71, %p72
    %p74 = scmp.ne.s32.totalorder %s66, %s69
    %p75 = scmp.eq.s32.totalorder %s9, 0
    %p76 = por %p74, %p75
    %p77 = scmp.ne.s32.totalorder %s66, %s69
    %p78 = scmp.eq.s32.totalorder %s14, 2
    %p79 = por %p77, %p78
    %p80 = scmp.ne.s32.totalorder %s69, %s70
    %p81 = scmp.eq.s32.totalorder %s14, 0
    %p82 = por %p80, %p81
    %p83 = scmp.ne.s32.totalorder %s69, %s70
    %p84 = scmp.eq.s32.totalorder %s15, 2
    %p85 = por %p83, %p84
    %p87 = scmp.ne.s32.totalorder %s70, %s86
    %p88 = scmp.eq.s32.totalorder %s15, 0
    %p89 = por %p87, %p88
    %s90 = ssub.s32 %s9, %s16
    %p91 = scmp.eq.s32.totalorder %s90, 0
    %s93 = sadd.s32 %s92, 1
    %s94 = scalar_select %p91, %s92, %s93
    %p97 = pneg %p91
    %p98 = scmp.eq.s32.totalorder %s9, 2
    %p99 = por %p97, %p98
    %p100 = scmp.ne.s32.totalorder %s92, %s95
    %p101 = scmp.eq.s32.totalorder %s9, 0
    %p102 = por %p100, %p101
    %p103 = scmp.ne.s32.totalorder %s92, %s95
    %p104 = scmp.eq.s32.totalorder %s14, 2
    %p105 = por %p103, %p104
    %p106 = scmp.ne.s32.totalorder %s95, %s96
    %p107 = scmp.eq.s32.totalorder %s14, 0
    %p108 = por %p106, %p107
    %p109 = scmp.ne.s32.totalorder %s95, %s96
    %p110 = scmp.eq.s32.totalorder %s15, 2
    %p111 = por %p109, %p110
    %p113 = scmp.ne.s32.totalorder %s96, %s112
    %p114 = scmp.eq.s32.totalorder %s15, 0
    %p115 = por %p113, %p114
    %p116 = scmp.le.s32.totalorder 1, %s9
    %p117 = scmp.lt.s32.totalorder %s9, 4
    %p118 = pnand %p116, %p117
    %p119 = pneg %p118
    // Predicated region
    $region9: #{tpu_custom_call.1} parent=5 // pred_check
      _
    $region10: #{tpu_custom_call.1} parent=5 // pred_check_branch
      %121 = sbr.rel (%p118) target = $region12
    $region11: #{tpu_custom_call.1} parent=5 // pred_region
      %s122 = ssub.s32 %s9, 1
      // Predicated region
      $region13: #{tpu_custom_call.1} parent=11 // pred_check
        %p123 = pneg %p30
      $region14: #{tpu_custom_call.1} parent=11 // pred_check_branch
        %125 = sbr.rel (%p123) target = $region16
      $region15: #{tpu_custom_call.1} parent=11 // pred_region
        _
      $region16: #{tpu_custom_call.1} parent=11 // pred_fallthru
        _
    $region12: #{tpu_custom_call.1} parent=5 // pred_fallthru
      _
    %p126 = scmp.lt.s32.totalorder %s9, 3
    // Predicated region
    $region17: #{tpu_custom_call.1} parent=5 // pred_check
      %p127 = pneg %p126
    $region18: #{tpu_custom_call.1} parent=5 // pred_check_branch
      %129 = sbr.rel (%p127) target = $region20
    $region19: #{tpu_custom_call.1} parent=5 // pred_region
      // Predicated region
      $region21: #{tpu_custom_call.1} parent=19 // pred_check
        %p130 = pneg %p50
      $region22: #{tpu_custom_call.1} parent=19 // pred_check_branch
        %132 = sbr.rel (%p130) target = $region24
      $region23: #{tpu_custom_call.1} parent=19 // pred_region
        %s133 = smul.u32 29, %s9
        %p134 = scmp.lt.s32.totalorder %s133, 86
        %s135 = scalar_select %p134, %s133, 86
        %s136 = smul.addr %s135, 6
        %s137 = smul.addr %s136, 8
        %s138 = scalar_lea.vmem %s1, %s137
        %s139 = smul.u32 29, %s9
      $region24: #{tpu_custom_call.1} parent=19 // pred_fallthru
        _
      // Predicated region
      $region25: #{tpu_custom_call.1} parent=19 // pred_check
        %p140 = pneg %p76
      $region26: #{tpu_custom_call.1} parent=19 // pred_check_branch
        %142 = sbr.rel (%p140) target = $region28
      $region27: #{tpu_custom_call.1} parent=19 // pred_region
        %s143 = smul.u32 29, %s9
        %p144 = scmp.lt.s32.totalorder %s143, 86
        %s145 = scalar_select %p144, %s143, 86
        %s146 = smul.addr %s145, 8
        %s147 = scalar_lea.vmem %s2, %s146
        %s148 = smul.u32 29, %s9
      $region28: #{tpu_custom_call.1} parent=19 // pred_fallthru
        _
    $region20: #{tpu_custom_call.1} parent=5 // pred_fallthru
      _
    %p149 = scmp.le.s32.totalorder 1, %s9
    %p150 = scmp.lt.s32.totalorder %s9, 4
    %p151 = pnand %p149, %p150
    %p152 = pneg %p151
    // Predicated region
    $region29: #{tpu_custom_call.1} parent=5 // pred_check
      _
    $region30: #{tpu_custom_call.1} parent=5 // pred_check_branch
      %154 = sbr.rel (%p151) target = $region32
    $region31: #{tpu_custom_call.1} parent=5 // pred_region
      %s155 = ssub.s32 %s9, 1
      %p156 = pneg %p30
      %p157 = pneg %p27
      %s158 = smul.u32 29, %s14
      %p159 = scmp.lt.s32.totalorder %s158, 86
      %s160 = scalar_select %p159, %s158, 86
      %s161 = smul.addr %s160, 6
      %s162 = smul.addr %s161, 8
      %s163 = scalar_lea.vmem %s1, %s162
      %p164 = pneg %p56
      %p165 = pneg %p53
      %s166 = smul.u32 29, %s14
      %p167 = scmp.lt.s32.totalorder %s166, 86
      %s168 = scalar_select %p167, %s166, 86
      %s169 = smul.addr %s168, 8
      %s170 = scalar_lea.vmem %s2, %s169
      %p171 = pneg %p82
      %p172 = pneg %p79
      %p173 = pneg %p108
      %p174 = pneg %p105
      %s175 = smul.u32 29, %s14
      %p176 = scmp.lt.s32.totalorder %s175, 86
      %s177 = scalar_select %p176, %s175, 86
      %s178 = smul.addr %s177, 7
      %s179 = smul.addr %s178, 8
      %s180 = scalar_lea.vmem %s3, %s179
      %s181 = smul.u32 29, %s14
      %p182 = scmp.lt.s32.totalorder %s181, 86
      %s183 = scalar_select %p182, %s181, 86
      %s184 = smul.addr %s183, 6
      %s185 = smul.addr %s184, 8
      %s186 = scalar_lea.vmem %s1, %s185
      %s187 = smul.u32 29, %s14
      %s188 = smul.u32 29, %s14
      %p189 = scmp.lt.s32.totalorder %s188, 86
      %s190 = scalar_select %p189, %s188, 86
      %s191 = smul.addr %s190, 8
      %s192 = scalar_lea.vmem %s2, %s191
      %s193 = smul.u32 29, %s14
      %s194 = smul.u32 29, %s14
      %p195 = scmp.lt.s32.totalorder %s194, 86
      %s196 = scalar_select %p195, %s194, 86
      %s197 = smul.addr %s196, 7
      %s198 = smul.addr %s197, 8
      %s199 = scalar_lea.vmem %s3, %s198
      %s200 = smul.u32 29, %s14
      %p202 = scmp.eq.s32.totalorder %s14, 0
      // Predicated region
      $region33: #{tpu_custom_call.1} parent=31 // pred_check
        %p203 = pneg %p202
      $region34: #{tpu_custom_call.1} parent=31 // pred_check_branch
        %205 = sbr.rel (%p203) target = $region36
      $region35: #{tpu_custom_call.1} parent=31 // pred_region
        %v206 = vld [vmem:[%s0] sm:$0xff]
        %v207 = vld [vmem:[%s0 + $0x8] sm:$0xff]
        %v208 = vld [vmem:[%s0 + $0x10] sm:$0xff]
        %v209 = vld [vmem:[%s0 + $0x18] sm:$0xff]
        %v210 = vld [vmem:[%s0 + $0x20] sm:$0xff]
        %v211 = vld [vmem:[%s0 + $0x28] sm:$0xff]
        %v212 = vld [vmem:[%s0 + $0x30] sm:$0xff]
        %v213 = vld [vmem:[%s0 + $0x38] sm:$0xff]
        %v214 = vld [vmem:[%s0 + $0x40] sm:$0xff]
        %v215 = vld [vmem:[%s0 + $0x48] sm:$0xff]
        %v216 = vld [vmem:[%s0 + $0x50] sm:$0xff]
        %v217 = vld [vmem:[%s0 + $0x58] sm:$0xff]
        %v218 = vld [vmem:[%s0 + $0x60] sm:$0xff]
        %v219 = vld [vmem:[%s0 + $0x68] sm:$0xff]
        %v220 = vld [vmem:[%s0 + $0x70] sm:$0xff]
        %v221 = vld [vmem:[%s0 + $0x78] sm:$0xff]
        %v222 = vld [vmem:[%s0 + $0x80] sm:$0xff]
        %v223 = vld [vmem:[%s0 + $0x88] sm:$0xff]
        %v224 = vld [vmem:[%s0 + $0x90] sm:$0xff]
        %v225 = vld [vmem:[%s0 + $0x98] sm:$0xff]
        %v226 = vld [vmem:[%s0 + $0xa0] sm:$0xff]
        %v227 = vld [vmem:[%s0 + $0xa8] sm:$0xff]
        %v228 = vld [vmem:[%s0 + $0xb0] sm:$0xff]
        %v229 = vld [vmem:[%s0 + $0xb8] sm:$0xff]
        %v230 = vld [vmem:[%s0 + $0xc0] sm:$0xff]
        %v231 = vld [vmem:[%s0 + $0xc8] sm:$0xff]
        %v232 = vld [vmem:[%s0 + $0xd0] sm:$0xff]
        %v233 = vld [vmem:[%s0 + $0xd8] sm:$0xff]
        %v234 = vld [vmem:[%s0 + $0xe0] sm:$0xff]
        %v235 = vld [vmem:[%s0 + $0xe8] sm:$0xff]
        %v236 = vld [vmem:[%s0 + $0xf0] sm:$0xff]
        %v237 = vld [vmem:[%s0 + $0xf8] sm:$0xff]
        %v238 = vld [vmem:[%s0 + $0x100] sm:$0xff]
        %v239 = vld [vmem:[%s0 + $0x108] sm:$0xff]
        %v240 = vld [vmem:[%s0 + $0x110] sm:$0xff]
        %v241 = vld [vmem:[%s0 + $0x118] sm:$0xff]
        %v242 = vld [vmem:[%s0 + $0x120] sm:$0xff]
        %v243 = vld [vmem:[%s0 + $0x128] sm:$0xff]
        %v244 = vld [vmem:[%s0 + $0x130] sm:$0xff]
        %v245 = vld [vmem:[%s0 + $0x138] sm:$0xff]
        %v246 = vld [vmem:[%s0 + $0x140] sm:$0xff]
        %v247 = vld [vmem:[%s0 + $0x148] sm:$0xff]
        %v248 = vld [vmem:[%s0 + $0x150] sm:$0xff]
        %v249 = vld [vmem:[%s0 + $0x158] sm:$0xff]
        %v250 = vld [vmem:[%s0 + $0x160] sm:$0xff]
        %v251 = vld [vmem:[%s0 + $0x168] sm:$0xff]
        %v252 = vld [vmem:[%s0 + $0x170] sm:$0xff]
        %v253 = vld [vmem:[%s0 + $0x178] sm:$0xff]
        %v254 = vld [vmem:[%s0 + $0x180] sm:$0xff]
        %v255 = vld [vmem:[%s0 + $0x188] sm:$0xff]
        %v256 = vld [vmem:[%s0 + $0x190] sm:$0xff]
        %v257 = vld [vmem:[%s0 + $0x198] sm:$0xff]
        %v258 = vld [vmem:[%s0 + $0x1a0] sm:$0xff]
        %v259 = vld [vmem:[%s0 + $0x1a8] sm:$0xff]
        %v260 = vld [vmem:[%s0 + $0x1b0] sm:$0xff]
        %v261 = vld [vmem:[%s0 + $0x1b8] sm:$0xff]
        %v262 = vld [vmem:[%s0 + $0x1c0] sm:$0xff]
        %v263 = vld [vmem:[%s0 + $0x1c8] sm:$0xff]
        %v264 = vld [vmem:[%s0 + $0x1d0] sm:$0xff]
        %v265 = vld [vmem:[%s0 + $0x1d8] sm:$0xff]
        %v266 = vld [vmem:[%s0 + $0x1e0] sm:$0xff]
        %v267 = vld [vmem:[%s0 + $0x1e8] sm:$0xff]
        %v268 = vld [vmem:[%s0 + $0x1f0] sm:$0xff]
        %v269 = vld [vmem:[%s0 + $0x1f8] sm:$0xff]
        %v270 = vld [vmem:[%s0 + $0x200] sm:$0xff]
        %v271 = vld [vmem:[%s0 + $0x208] sm:$0xff]
        %v272 = vld [vmem:[%s0 + $0x210] sm:$0xff]
        %v273 = vld [vmem:[%s0 + $0x218] sm:$0xff]
        %v274 = vld [vmem:[%s0 + $0x220] sm:$0xff]
        %v275 = vld [vmem:[%s0 + $0x228] sm:$0xff]
        %v276 = vld [vmem:[%s0 + $0x230] sm:$0xff]
        %v277 = vld [vmem:[%s0 + $0x238] sm:$0xff]
        %v278 = vld [vmem:[%s0 + $0x240] sm:$0xff]
        %v279 = vld [vmem:[%s0 + $0x248] sm:$0xff]
        %v280 = vld [vmem:[%s0 + $0x250] sm:$0xff]
        %v281 = vld [vmem:[%s0 + $0x258] sm:$0xff]
        %v282 = vld [vmem:[%s0 + $0x260] sm:$0xff]
        %v283 = vld [vmem:[%s0 + $0x268] sm:$0xff]
        %v284 = vld [vmem:[%s0 + $0x270] sm:$0xff]
        %v285 = vld [vmem:[%s0 + $0x278] sm:$0xff]
        %v286 = vld [vmem:[%s0 + $0x280] sm:$0xff]
        %v287 = vld [vmem:[%s0 + $0x288] sm:$0xff]
        %v288 = vld [vmem:[%s0 + $0x290] sm:$0xff]
        %v289 = vld [vmem:[%s0 + $0x298] sm:$0xff]
        %v290 = vld [vmem:[%s0 + $0x2a0] sm:$0xff]
        %v291 = vld [vmem:[%s0 + $0x2a8] sm:$0xff]
        %v292 = vld [vmem:[%s0 + $0x2b0] sm:$0xff]
        %v293 = vld [vmem:[%s0 + $0x2b8] sm:$0xff]
        %v294 = vld [vmem:[%s0 + $0x2c0] sm:$0xff]
        %v295 = vld [vmem:[%s0 + $0x2c8] sm:$0xff]
        %v296 = vld [vmem:[%s0 + $0x2d0] sm:$0xff]
        %v297 = vld [vmem:[%s0 + $0x2d8] sm:$0xff]
        %v298 = vld [vmem:[%s0 + $0x2e0] sm:$0xff]
        %v299 = vld [vmem:[%s0 + $0x2e8] sm:$0xff]
        %v300 = vld [vmem:[%s0 + $0x2f0] sm:$0xff]
        %v301 = vld [vmem:[%s0 + $0x2f8] sm:$0xff]
        %v302 = vld [vmem:[%s0 + $0x300] sm:$0xff]
        %v303 = vld [vmem:[%s0 + $0x308] sm:$0xff]
        %v304 = vld [vmem:[%s0 + $0x310] sm:$0xff]
        %v305 = vld [vmem:[%s0 + $0x318] sm:$0xff]
        %v306 = vld [vmem:[%s0 + $0x320] sm:$0xff]
        %v307 = vld [vmem:[%s0 + $0x328] sm:$0xff]
        %v308 = vld [vmem:[%s0 + $0x330] sm:$0xff]
        %v309 = vld [vmem:[%s0 + $0x338] sm:$0xff]
        %v310 = vld [vmem:[%s0 + $0x340] sm:$0xff]
        %v311 = vld [vmem:[%s0 + $0x348] sm:$0xff]
        %v312 = vld [vmem:[%s0 + $0x350] sm:$0xff]
        %v313 = vld [vmem:[%s0 + $0x358] sm:$0xff]
        %v314 = vld [vmem:[%s0 + $0x360] sm:$0xff]
        %v315 = vld [vmem:[%s0 + $0x368] sm:$0xff]
        %v316 = vld [vmem:[%s0 + $0x370] sm:$0xff]
        %v317 = vld [vmem:[%s0 + $0x378] sm:$0xff]
        %v318 = vld [vmem:[%s0 + $0x380] sm:$0xff]
        %v319 = vld [vmem:[%s0 + $0x388] sm:$0xff]
        %v320 = vld [vmem:[%s0 + $0x390] sm:$0xff]
        %v321 = vld [vmem:[%s0 + $0x398] sm:$0xff]
        %v322 = vld [vmem:[%s0 + $0x3a0] sm:$0xff]
        %v323 = vld [vmem:[%s0 + $0x3a8] sm:$0xff]
        %v324 = vld [vmem:[%s0 + $0x3b0] sm:$0xff]
        %v325 = vld [vmem:[%s0 + $0x3b8] sm:$0xff]
        %v326 = vld [vmem:[%s0 + $0x3c0] sm:$0xff]
        %v327 = vld [vmem:[%s0 + $0x3c8] sm:$0xff]
        %v328 = vld [vmem:[%s0 + $0x3d0] sm:$0xff]
        %v329 = vld [vmem:[%s0 + $0x3d8] sm:$0xff]
        %v330 = vld [vmem:[%s0 + $0x3e0] sm:$0xff]
        %v331 = vld [vmem:[%s0 + $0x3e8] sm:$0xff]
        %v332 = vld [vmem:[%s0 + $0x3f0] sm:$0xff]
        %v333 = vld [vmem:[%s0 + $0x3f8] sm:$0xff]
        %v334 = vld [vmem:[%s0 + $0x400] sm:$0xff]
        %v335 = vld [vmem:[%s0 + $0x408] sm:$0xff]
        %v336 = vld [vmem:[%s0 + $0x410] sm:$0xff]
        %v337 = vld [vmem:[%s0 + $0x418] sm:$0xff]
        %v338 = vld [vmem:[%s0 + $0x420] sm:$0xff]
        %v339 = vld [vmem:[%s0 + $0x428] sm:$0xff]
        %v340 = vld [vmem:[%s0 + $0x430] sm:$0xff]
        %v341 = vld [vmem:[%s0 + $0x438] sm:$0xff]
        %v342 = vld [vmem:[%s0 + $0x440] sm:$0xff]
        %v343 = vld [vmem:[%s0 + $0x448] sm:$0xff]
        %v344 = vld [vmem:[%s0 + $0x450] sm:$0xff]
        %v345 = vld [vmem:[%s0 + $0x458] sm:$0xff]
        %v346 = vld [vmem:[%s0 + $0x460] sm:$0xff]
        %v347 = vld [vmem:[%s0 + $0x468] sm:$0xff]
        %v348 = vld [vmem:[%s0 + $0x470] sm:$0xff]
        %v349 = vld [vmem:[%s0 + $0x478] sm:$0xff]
        %v350 = vld [vmem:[%s0 + $0x480] sm:$0xff]
        %v351 = vld [vmem:[%s0 + $0x488] sm:$0xff]
        %v352 = vld [vmem:[%s0 + $0x490] sm:$0xff]
        %v353 = vld [vmem:[%s0 + $0x498] sm:$0xff]
        %v354 = vld [vmem:[%s0 + $0x4a0] sm:$0xff]
        %v355 = vld [vmem:[%s0 + $0x4a8] sm:$0xff]
        %v356 = vld [vmem:[%s0 + $0x4b0] sm:$0xff]
        %v357 = vld [vmem:[%s0 + $0x4b8] sm:$0xff]
        %v358 = vld [vmem:[%s0 + $0x4c0] sm:$0xff]
        %v359 = vld [vmem:[%s0 + $0x4c8] sm:$0xff]
        %v360 = vld [vmem:[%s0 + $0x4d0] sm:$0xff]
        %v361 = vld [vmem:[%s0 + $0x4d8] sm:$0xff]
        %v362 = vld [vmem:[%s0 + $0x4e0] sm:$0xff]
        %v363 = vld [vmem:[%s0 + $0x4e8] sm:$0xff]
        %v364 = vld [vmem:[%s0 + $0x4f0] sm:$0xff]
        %v365 = vld [vmem:[%s0 + $0x4f8] sm:$0xff]
        %v366 = vld [vmem:[%s0 + $0x500] sm:$0xff]
        %v367 = vld [vmem:[%s0 + $0x508] sm:$0xff]
        %v368 = vld [vmem:[%s0 + $0x510] sm:$0xff]
        %v369 = vld [vmem:[%s0 + $0x518] sm:$0xff]
        %v370 = vld [vmem:[%s0 + $0x520] sm:$0xff]
        %v371 = vld [vmem:[%s0 + $0x528] sm:$0xff]
        %v372 = vld [vmem:[%s0 + $0x530] sm:$0xff]
        %v373 = vld [vmem:[%s0 + $0x538] sm:$0xff]
        %v374 = vld [vmem:[%s0 + $0x540] sm:$0xff]
        %v375 = vld [vmem:[%s0 + $0x548] sm:$0xff]
        %v376 = vld [vmem:[%s0 + $0x550] sm:$0xff]
        %v377 = vld [vmem:[%s0 + $0x558] sm:$0xff]
        %v378 = vld [vmem:[%s0 + $0x560] sm:$0xff]
        %v379 = vld [vmem:[%s0 + $0x568] sm:$0xff]
        %v380 = vld [vmem:[%s0 + $0x570] sm:$0xff]
        %v381 = vld [vmem:[%s0 + $0x578] sm:$0xff]
        %v382 = vld [vmem:[%s0 + $0x580] sm:$0xff]
        %v383 = vld [vmem:[%s0 + $0x588] sm:$0xff]
        %v384 = vld [vmem:[%s0 + $0x590] sm:$0xff]
        %v385 = vld [vmem:[%s0 + $0x598] sm:$0xff]
        %v386 = vld [vmem:[%s0 + $0x5a0] sm:$0xff]
        %v387 = vld [vmem:[%s0 + $0x5a8] sm:$0xff]
        %v388 = vld [vmem:[%s0 + $0x5b0] sm:$0xff]
        %v389 = vld [vmem:[%s0 + $0x5b8] sm:$0xff]
        %v390 = vld [vmem:[%s0 + $0x5c0] sm:$0xff]
        %v391 = vld [vmem:[%s0 + $0x5c8] sm:$0xff]
        %v392 = vld [vmem:[%s0 + $0x5d0] sm:$0xff]
        %v393 = vld [vmem:[%s0 + $0x5d8] sm:$0xff]
        %v394 = vld [vmem:[%s0 + $0x5e0] sm:$0xff]
        %v395 = vld [vmem:[%s0 + $0x5e8] sm:$0xff]
        %v396 = vld [vmem:[%s0 + $0x5f0] sm:$0xff]
        %v397 = vld [vmem:[%s0 + $0x5f8] sm:$0xff]
        %v398 = vld [vmem:[%s0 + $0x600] sm:$0xff]
        %v399 = vld [vmem:[%s0 + $0x608] sm:$0xff]
        %v400 = vld [vmem:[%s0 + $0x610] sm:$0xff]
        %v401 = vld [vmem:[%s0 + $0x618] sm:$0xff]
        %v402 = vld [vmem:[%s0 + $0x620] sm:$0xff]
        %v403 = vld [vmem:[%s0 + $0x628] sm:$0xff]
        %v404 = vld [vmem:[%s0 + $0x630] sm:$0xff]
        %v405 = vld [vmem:[%s0 + $0x638] sm:$0xff]
        %v406 = vld [vmem:[%s0 + $0x640] sm:$0xff]
        %v407 = vld [vmem:[%s0 + $0x648] sm:$0xff]
        %v408 = vld [vmem:[%s0 + $0x650] sm:$0xff]
        %v409 = vld [vmem:[%s0 + $0x658] sm:$0xff]
        %v410 = vld [vmem:[%s0 + $0x660] sm:$0xff]
        %v411 = vld [vmem:[%s0 + $0x668] sm:$0xff]
        %v412 = vld [vmem:[%s0 + $0x670] sm:$0xff]
        %v413 = vld [vmem:[%s0 + $0x678] sm:$0xff]
        %v414 = vld [vmem:[%s0 + $0x680] sm:$0xff]
        %v415 = vld [vmem:[%s0 + $0x688] sm:$0xff]
        %v416 = vld [vmem:[%s0 + $0x690] sm:$0xff]
        %v417 = vld [vmem:[%s0 + $0x698] sm:$0xff]
        %v418 = vld [vmem:[%s0 + $0x6a0] sm:$0xff]
        %v419 = vld [vmem:[%s0 + $0x6a8] sm:$0xff]
        %v420 = vld [vmem:[%s0 + $0x6b0] sm:$0xff]
        %v421 = vld [vmem:[%s0 + $0x6b8] sm:$0xff]
        %v422 = vld [vmem:[%s0 + $0x6c0] sm:$0xff]
        %v423 = vld [vmem:[%s0 + $0x6c8] sm:$0xff]
        %v424 = vld [vmem:[%s0 + $0x6d0] sm:$0xff]
        %v425 = vld [vmem:[%s0 + $0x6d8] sm:$0xff]
        %v426 = vld [vmem:[%s0 + $0x6e0] sm:$0xff]
        %v427 = vld [vmem:[%s0 + $0x6e8] sm:$0xff]
        %v428 = vld [vmem:[%s0 + $0x6f0] sm:$0xff]
        %v429 = vld [vmem:[%s0 + $0x6f8] sm:$0xff]
        %v430 = vld [vmem:[%s0 + $0x700] sm:$0xff]
        %v431 = vld [vmem:[%s0 + $0x708] sm:$0xff]
        %v432 = vld [vmem:[%s0 + $0x710] sm:$0xff]
        %v433 = vld [vmem:[%s0 + $0x718] sm:$0xff]
        %v434 = vld [vmem:[%s0 + $0x720] sm:$0xff]
        %v435 = vld [vmem:[%s0 + $0x728] sm:$0xff]
        %v436 = vld [vmem:[%s0 + $0x730] sm:$0xff]
        %v437 = vld [vmem:[%s0 + $0x738] sm:$0xff]
        %v438 = vld [vmem:[%s0 + $0x740] sm:$0xff]
        %v439 = vld [vmem:[%s0 + $0x748] sm:$0xff]
        %v440 = vld [vmem:[%s0 + $0x750] sm:$0xff]
        %v441 = vld [vmem:[%s0 + $0x758] sm:$0xff]
        %v442 = vld [vmem:[%s0 + $0x760] sm:$0xff]
        %v443 = vld [vmem:[%s0 + $0x768] sm:$0xff]
        %v444 = vld [vmem:[%s0 + $0x770] sm:$0xff]
        %v445 = vld [vmem:[%s0 + $0x778] sm:$0xff]
        %v446 = vld [vmem:[%s0 + $0x780] sm:$0xff]
        %v447 = vld [vmem:[%s0 + $0x788] sm:$0xff]
        %v448 = vld [vmem:[%s0 + $0x790] sm:$0xff]
        %v449 = vld [vmem:[%s0 + $0x798] sm:$0xff]
        %v450 = vld [vmem:[%s0 + $0x7a0] sm:$0xff]
        %v451 = vld [vmem:[%s0 + $0x7a8] sm:$0xff]
        %v452 = vld [vmem:[%s0 + $0x7b0] sm:$0xff]
        %v453 = vld [vmem:[%s0 + $0x7b8] sm:$0xff]
        %v454 = vld [vmem:[%s0 + $0x7c0] sm:$0xff]
        %v455 = vld [vmem:[%s0 + $0x7c8] sm:$0xff]
        %v456 = vld [vmem:[%s0 + $0x7d0] sm:$0xff]
        %v457 = vld [vmem:[%s0 + $0x7d8] sm:$0xff]
        %v458 = vld [vmem:[%s0 + $0x7e0] sm:$0xff]
        %v459 = vld [vmem:[%s0 + $0x7e8] sm:$0xff]
        %v460 = vld [vmem:[%s0 + $0x7f0] sm:$0xff]
        %v461 = vld [vmem:[%s0 + $0x7f8] sm:$0xff]
        %v462 = vld [vmem:[%s0 + $0x800] sm:$0xff]
        %v463 = vld [vmem:[%s0 + $0x808] sm:$0xff]
        %v464 = vld [vmem:[%s0 + $0x810] sm:$0xff]
        %v465 = vld [vmem:[%s0 + $0x818] sm:$0xff]
        %v466 = vld [vmem:[%s0 + $0x820] sm:$0xff]
        %v467 = vld [vmem:[%s0 + $0x828] sm:$0xff]
        %v468 = vld [vmem:[%s0 + $0x830] sm:$0xff]
        %v469 = vld [vmem:[%s0 + $0x838] sm:$0xff]
        %v470 = vld [vmem:[%s0 + $0x840] sm:$0xff]
        %v471 = vld [vmem:[%s0 + $0x848] sm:$0xff]
        %v472 = vld [vmem:[%s0 + $0x850] sm:$0xff]
        %v473 = vld [vmem:[%s0 + $0x858] sm:$0xff]
        %v474 = vld [vmem:[%s0 + $0x860] sm:$0xff]
        %v475 = vld [vmem:[%s0 + $0x868] sm:$0xff]
        %v476 = vld [vmem:[%s0 + $0x870] sm:$0xff]
        %v477 = vld [vmem:[%s0 + $0x878] sm:$0xff]
        %v478 = vld [vmem:[%s0 + $0x880] sm:$0xff]
        %v479 = vld [vmem:[%s0 + $0x888] sm:$0xff]
        %v480 = vld [vmem:[%s0 + $0x890] sm:$0xff]
        %v481 = vld [vmem:[%s0 + $0x898] sm:$0xff]
        %v482 = vld [vmem:[%s0 + $0x8a0] sm:$0xff]
        %v483 = vld [vmem:[%s0 + $0x8a8] sm:$0xff]
        %v484 = vld [vmem:[%s0 + $0x8b0] sm:$0xff]
        %v485 = vld [vmem:[%s0 + $0x8b8] sm:$0xff]
        %v486 = vld [vmem:[%s0 + $0x8c0] sm:$0xff]
        %v487 = vld [vmem:[%s0 + $0x8c8] sm:$0xff]
        %v488 = vld [vmem:[%s0 + $0x8d0] sm:$0xff]
        %v489 = vld [vmem:[%s0 + $0x8d8] sm:$0xff]
        %v490 = vld [vmem:[%s0 + $0x8e0] sm:$0xff]
        %v491 = vld [vmem:[%s0 + $0x8e8] sm:$0xff]
        %v492 = vld [vmem:[%s0 + $0x8f0] sm:$0xff]
        %v493 = vld [vmem:[%s0 + $0x8f8] sm:$0xff]
        %v494 = vld [vmem:[%s0 + $0x900] sm:$0xff]
        %v495 = vld [vmem:[%s0 + $0x908] sm:$0xff]
        %v496 = vld [vmem:[%s0 + $0x910] sm:$0xff]
        %v497 = vld [vmem:[%s0 + $0x918] sm:$0xff]
        %v498 = vld [vmem:[%s0 + $0x920] sm:$0xff]
        %v499 = vld [vmem:[%s0 + $0x928] sm:$0xff]
        %v500 = vld [vmem:[%s0 + $0x930] sm:$0xff]
        %v501 = vld [vmem:[%s0 + $0x938] sm:$0xff]
        %v502 = vld [vmem:[%s0 + $0x940] sm:$0xff]
        %v503 = vld [vmem:[%s0 + $0x948] sm:$0xff]
        %v504 = vld [vmem:[%s0 + $0x950] sm:$0xff]
        %v505 = vld [vmem:[%s0 + $0x958] sm:$0xff]
        %v506 = vld [vmem:[%s0 + $0x960] sm:$0xff]
        %v507 = vld [vmem:[%s0 + $0x968] sm:$0xff]
        %v508 = vld [vmem:[%s0 + $0x970] sm:$0xff]
        %v509 = vld [vmem:[%s0 + $0x978] sm:$0xff]
        %v510 = vld [vmem:[%s0 + $0x980] sm:$0xff]
        %v511 = vld [vmem:[%s0 + $0x988] sm:$0xff]
        %v512 = vld [vmem:[%s0 + $0x990] sm:$0xff]
        %v513 = vld [vmem:[%s0 + $0x998] sm:$0xff]
        %v514 = vld [vmem:[%s0 + $0x9a0] sm:$0xff]
        %v515 = vld [vmem:[%s0 + $0x9a8] sm:$0xff]
        %v516 = vld [vmem:[%s0 + $0x9b0] sm:$0xff]
        %v517 = vld [vmem:[%s0 + $0x9b8] sm:$0xff]
        %v518 = vld [vmem:[%s0 + $0x9c0] sm:$0xff]
        %v519 = vld [vmem:[%s0 + $0x9c8] sm:$0xff]
        %v520 = vld [vmem:[%s0 + $0x9d0] sm:$0xff]
        %v521 = vld [vmem:[%s0 + $0x9d8] sm:$0xff]
        %v522 = vld [vmem:[%s0 + $0x9e0] sm:$0xff]
        %v523 = vld [vmem:[%s0 + $0x9e8] sm:$0xff]
        %v524 = vld [vmem:[%s0 + $0x9f0] sm:$0xff]
        %v525 = vld [vmem:[%s0 + $0x9f8] sm:$0xff]
        %v526 = vld [vmem:[%s0 + $0xa00] sm:$0xff]
        %v527 = vld [vmem:[%s0 + $0xa08] sm:$0xff]
        %v528 = vld [vmem:[%s0 + $0xa10] sm:$0xff]
        %v529 = vld [vmem:[%s0 + $0xa18] sm:$0xff]
        %v530 = vld [vmem:[%s0 + $0xa20] sm:$0xff]
        %v531 = vld [vmem:[%s0 + $0xa28] sm:$0xff]
        %v532 = vld [vmem:[%s0 + $0xa30] sm:$0xff]
        %v533 = vld [vmem:[%s0 + $0xa38] sm:$0xff]
        %v534 = vld [vmem:[%s0 + $0xa40] sm:$0xff]
        %v535 = vld [vmem:[%s0 + $0xa48] sm:$0xff]
        %v536 = vld [vmem:[%s0 + $0xa50] sm:$0xff]
        %v537 = vld [vmem:[%s0 + $0xa58] sm:$0xff]
        %v538 = vld [vmem:[%s0 + $0xa60] sm:$0xff]
        %v539 = vld [vmem:[%s0 + $0xa68] sm:$0xff]
        %v540 = vld [vmem:[%s0 + $0xa70] sm:$0xff]
        %v541 = vld [vmem:[%s0 + $0xa78] sm:$0xff]
        %v542 = vld [vmem:[%s0 + $0xa80] sm:$0xff]
        %v543 = vld [vmem:[%s0 + $0xa88] sm:$0xff]
        %v544 = vld [vmem:[%s0 + $0xa90] sm:$0xff]
        %v545 = vld [vmem:[%s0 + $0xa98] sm:$0xff]
        %v546 = vld [vmem:[%s0 + $0xaa0] sm:$0xff]
        %v547 = vld [vmem:[%s0 + $0xaa8] sm:$0xff]
        %v548 = vld [vmem:[%s0 + $0xab0] sm:$0xff]
        %v549 = vld [vmem:[%s0 + $0xab8] sm:$0xff]
        %v550 = vld [vmem:[%s0 + $0xac0] sm:$0xff]
        %v551 = vld [vmem:[%s0 + $0xac8] sm:$0xff]
        %v552 = vld [vmem:[%s0 + $0xad0] sm:$0xff]
        %v553 = vld [vmem:[%s0 + $0xad8] sm:$0xff]
        %v554 = vld [vmem:[%s0 + $0xae0] sm:$0xff]
        %v555 = vld [vmem:[%s0 + $0xae8] sm:$0xff]
        %v556 = vld [vmem:[%s0 + $0xaf0] sm:$0xff]
        %v557 = vld [vmem:[%s0 + $0xaf8] sm:$0xff]
        %v558 = vld [vmem:[%s0 + $0xb00] sm:$0xff]
        %v559 = vld [vmem:[%s0 + $0xb08] sm:$0xff]
        %v560 = vld [vmem:[%s0 + $0xb10] sm:$0xff]
        %v561 = vld [vmem:[%s0 + $0xb18] sm:$0xff]
        %v562 = vld [vmem:[%s0 + $0xb20] sm:$0xff]
        %v563 = vld [vmem:[%s0 + $0xb28] sm:$0xff]
        %v564 = vld [vmem:[%s0 + $0xb30] sm:$0xff]
        %v565 = vld [vmem:[%s0 + $0xb38] sm:$0xff]
        %v566 = vld [vmem:[%s0 + $0xb40] sm:$0xff]
        %v567 = vld [vmem:[%s0 + $0xb48] sm:$0xff]
        %v568 = vld [vmem:[%s0 + $0xb50] sm:$0xff]
        %v569 = vld [vmem:[%s0 + $0xb58] sm:$0xff]
        %v570 = vld [vmem:[%s0 + $0xb60] sm:$0xff]
        %v571 = vld [vmem:[%s0 + $0xb68] sm:$0xff]
        %v572 = vld [vmem:[%s0 + $0xb70] sm:$0xff]
        %v573 = vld [vmem:[%s0 + $0xb78] sm:$0xff]
        %v574 = vld [vmem:[%s0 + $0xb80] sm:$0xff]
        %v575 = vld [vmem:[%s0 + $0xb88] sm:$0xff]
        %v576 = vld [vmem:[%s0 + $0xb90] sm:$0xff]
        %v577 = vld [vmem:[%s0 + $0xb98] sm:$0xff]
        %v578 = vld [vmem:[%s0 + $0xba0] sm:$0xff]
        %v579 = vld [vmem:[%s0 + $0xba8] sm:$0xff]
        %v580 = vld [vmem:[%s0 + $0xbb0] sm:$0xff]
        %v581 = vld [vmem:[%s0 + $0xbb8] sm:$0xff]
        %v582 = vld [vmem:[%s0 + $0xbc0] sm:$0xff]
        %v583 = vld [vmem:[%s0 + $0xbc8] sm:$0xff]
        %v584 = vld [vmem:[%s0 + $0xbd0] sm:$0xff]
        %v585 = vld [vmem:[%s0 + $0xbd8] sm:$0xff]
        %v586 = vld [vmem:[%s0 + $0xbe0] sm:$0xff]
        %v587 = vld [vmem:[%s0 + $0xbe8] sm:$0xff]
        %v588 = vld [vmem:[%s0 + $0xbf0] sm:$0xff]
        %v589 = vld [vmem:[%s0 + $0xbf8] sm:$0xff]
        %v590 = vld [vmem:[%s0 + $0xc00] sm:$0xff]
        %v591 = vld [vmem:[%s0 + $0xc08] sm:$0xff]
        %v592 = vld [vmem:[%s0 + $0xc10] sm:$0xff]
        %v593 = vld [vmem:[%s0 + $0xc18] sm:$0xff]
        %v594 = vld [vmem:[%s0 + $0xc20] sm:$0xff]
        %v595 = vld [vmem:[%s0 + $0xc28] sm:$0xff]
        %v596 = vld [vmem:[%s0 + $0xc30] sm:$0xff]
        %v597 = vld [vmem:[%s0 + $0xc38] sm:$0xff]
        %v598 = vld [vmem:[%s0 + $0xc40] sm:$0xff]
        %v599 = vld [vmem:[%s0 + $0xc48] sm:$0xff]
        %v600 = vld [vmem:[%s0 + $0xc50] sm:$0xff]
        %v601 = vld [vmem:[%s0 + $0xc58] sm:$0xff]
        %v602 = vld [vmem:[%s0 + $0xc60] sm:$0xff]
        %v603 = vld [vmem:[%s0 + $0xc68] sm:$0xff]
        %v604 = vld [vmem:[%s0 + $0xc70] sm:$0xff]
        %v605 = vld [vmem:[%s0 + $0xc78] sm:$0xff]
        %v606 = vld [vmem:[%s0 + $0xc80] sm:$0xff]
        %v607 = vld [vmem:[%s0 + $0xc88] sm:$0xff]
        %v608 = vld [vmem:[%s0 + $0xc90] sm:$0xff]
        %v609 = vld [vmem:[%s0 + $0xc98] sm:$0xff]
        %v610 = vld [vmem:[%s0 + $0xca0] sm:$0xff]
        %v611 = vld [vmem:[%s0 + $0xca8] sm:$0xff]
        %v612 = vld [vmem:[%s0 + $0xcb0] sm:$0xff]
        %v613 = vld [vmem:[%s0 + $0xcb8] sm:$0xff]
        %v614 = vld [vmem:[%s0 + $0xcc0] sm:$0xff]
        %v615 = vld [vmem:[%s0 + $0xcc8] sm:$0xff]
        %v616 = vld [vmem:[%s0 + $0xcd0] sm:$0xff]
        %v617 = vld [vmem:[%s0 + $0xcd8] sm:$0xff]
        %v618 = vld [vmem:[%s0 + $0xce0] sm:$0xff]
        %v619 = vld [vmem:[%s0 + $0xce8] sm:$0xff]
        %v620 = vld [vmem:[%s0 + $0xcf0] sm:$0xff]
        %v621 = vld [vmem:[%s0 + $0xcf8] sm:$0xff]
        %v622 = vld [vmem:[%s0 + $0xd00] sm:$0xff]
        %v623 = vld [vmem:[%s0 + $0xd08] sm:$0xff]
        %v624 = vld [vmem:[%s0 + $0xd10] sm:$0xff]
        %v625 = vld [vmem:[%s0 + $0xd18] sm:$0xff]
        %v626 = vld [vmem:[%s0 + $0xd20] sm:$0xff]
        %v627 = vld [vmem:[%s0 + $0xd28] sm:$0xff]
        %v628 = vld [vmem:[%s0 + $0xd30] sm:$0xff]
        %v629 = vld [vmem:[%s0 + $0xd38] sm:$0xff]
        %v630 = vld [vmem:[%s0 + $0xd40] sm:$0xff]
        %v631 = vld [vmem:[%s0 + $0xd48] sm:$0xff]
        %v632 = vld [vmem:[%s0 + $0xd50] sm:$0xff]
        %v633 = vld [vmem:[%s0 + $0xd58] sm:$0xff]
        %v634 = vld [vmem:[%s0 + $0xd60] sm:$0xff]
        %v635 = vld [vmem:[%s0 + $0xd68] sm:$0xff]
        %v636 = vld [vmem:[%s0 + $0xd70] sm:$0xff]
        %v637 = vld [vmem:[%s0 + $0xd78] sm:$0xff]
        %v638 = vld [vmem:[%s0 + $0xd80] sm:$0xff]
        %v639 = vld [vmem:[%s0 + $0xd88] sm:$0xff]
        %v640 = vld [vmem:[%s0 + $0xd90] sm:$0xff]
        %v641 = vld [vmem:[%s0 + $0xd98] sm:$0xff]
        %v642 = vld [vmem:[%s0 + $0xda0] sm:$0xff]
        %v643 = vld [vmem:[%s0 + $0xda8] sm:$0xff]
        %v644 = vld [vmem:[%s0 + $0xdb0] sm:$0xff]
        %v645 = vld [vmem:[%s0 + $0xdb8] sm:$0xff]
        %v646 = vld [vmem:[%s0 + $0xdc0] sm:$0xff]
        %v647 = vld [vmem:[%s0 + $0xdc8] sm:$0xff]
        %v648 = vld [vmem:[%s0 + $0xdd0] sm:$0xff]
        %v649 = vld [vmem:[%s0 + $0xdd8] sm:$0xff]
        %v650 = vld [vmem:[%s0 + $0xde0] sm:$0xff]
        %v651 = vld [vmem:[%s0 + $0xde8] sm:$0xff]
        %v652 = vld [vmem:[%s0 + $0xdf0] sm:$0xff]
        %v653 = vld [vmem:[%s0 + $0xdf8] sm:$0xff]
        %v654 = vld [vmem:[%s0 + $0xe00] sm:$0xff]
        %v655 = vld [vmem:[%s0 + $0xe08] sm:$0xff]
        %v656 = vld [vmem:[%s0 + $0xe10] sm:$0xff]
        %v657 = vld [vmem:[%s0 + $0xe18] sm:$0xff]
        %v658 = vld [vmem:[%s0 + $0xe20] sm:$0xff]
        %v659 = vld [vmem:[%s0 + $0xe28] sm:$0xff]
        %v660 = vld [vmem:[%s0 + $0xe30] sm:$0xff]
        %v661 = vld [vmem:[%s0 + $0xe38] sm:$0xff]
        %v662 = vld [vmem:[%s0 + $0xe40] sm:$0xff]
        %v663 = vld [vmem:[%s0 + $0xe48] sm:$0xff]
        %v664 = vld [vmem:[%s0 + $0xe50] sm:$0xff]
        %v665 = vld [vmem:[%s0 + $0xe58] sm:$0xff]
        %v666 = vld [vmem:[%s0 + $0xe60] sm:$0xff]
        %v667 = vld [vmem:[%s0 + $0xe68] sm:$0xff]
        %v668 = vld [vmem:[%s0 + $0xe70] sm:$0xff]
        %v669 = vld [vmem:[%s0 + $0xe78] sm:$0xff]
        %v670 = vld [vmem:[%s0 + $0xe80] sm:$0xff]
        %v671 = vld [vmem:[%s0 + $0xe88] sm:$0xff]
        %v672 = vld [vmem:[%s0 + $0xe90] sm:$0xff]
        %v673 = vld [vmem:[%s0 + $0xe98] sm:$0xff]
        %v674 = vld [vmem:[%s0 + $0xea0] sm:$0xff]
        %v675 = vld [vmem:[%s0 + $0xea8] sm:$0xff]
        %v676 = vld [vmem:[%s0 + $0xeb0] sm:$0xff]
        %v677 = vld [vmem:[%s0 + $0xeb8] sm:$0xff]
        %v678 = vld [vmem:[%s0 + $0xec0] sm:$0xff]
        %v679 = vld [vmem:[%s0 + $0xec8] sm:$0xff]
        %v680 = vld [vmem:[%s0 + $0xed0] sm:$0xff]
        %v681 = vld [vmem:[%s0 + $0xed8] sm:$0xff]
        %v682 = vld [vmem:[%s0 + $0xee0] sm:$0xff]
        %v683 = vld [vmem:[%s0 + $0xee8] sm:$0xff]
        %v684 = vld [vmem:[%s0 + $0xef0] sm:$0xff]
        %v685 = vld [vmem:[%s0 + $0xef8] sm:$0xff]
        %v686 = vld [vmem:[%s0 + $0xf00] sm:$0xff]
        %v687 = vld [vmem:[%s0 + $0xf08] sm:$0xff]
        %v688 = vld [vmem:[%s0 + $0xf10] sm:$0xff]
        %v689 = vld [vmem:[%s0 + $0xf18] sm:$0xff]
        %v690 = vld [vmem:[%s0 + $0xf20] sm:$0xff]
        %v691 = vld [vmem:[%s0 + $0xf28] sm:$0xff]
        %v692 = vld [vmem:[%s0 + $0xf30] sm:$0xff]
        %v693 = vld [vmem:[%s0 + $0xf38] sm:$0xff]
        %v694 = vld [vmem:[%s0 + $0xf40] sm:$0xff]
        %v695 = vld [vmem:[%s0 + $0xf48] sm:$0xff]
        %v696 = vld [vmem:[%s0 + $0xf50] sm:$0xff]
        %v697 = vld [vmem:[%s0 + $0xf58] sm:$0xff]
        %v698 = vld [vmem:[%s0 + $0xf60] sm:$0xff]
        %v699 = vld [vmem:[%s0 + $0xf68] sm:$0xff]
        %v700 = vld [vmem:[%s0 + $0xf70] sm:$0xff]
        %v701 = vld [vmem:[%s0 + $0xf78] sm:$0xff]
        %v702 = vld [vmem:[%s0 + $0xf80] sm:$0xff]
        %v703 = vld [vmem:[%s0 + $0xf88] sm:$0xff]
        %v704 = vld [vmem:[%s0 + $0xf90] sm:$0xff]
        %v705 = vld [vmem:[%s0 + $0xf98] sm:$0xff]
        %v706 = vld [vmem:[%s0 + $0xfa0] sm:$0xff]
        %v707 = vld [vmem:[%s0 + $0xfa8] sm:$0xff]
        %v708 = vld [vmem:[%s0 + $0xfb0] sm:$0xff]
        %v709 = vld [vmem:[%s0 + $0xfb8] sm:$0xff]
        %v710 = vld [vmem:[%s0 + $0xfc0] sm:$0xff]
        %v711 = vld [vmem:[%s0 + $0xfc8] sm:$0xff]
        %v712 = vld [vmem:[%s0 + $0xfd0] sm:$0xff]
        %v713 = vld [vmem:[%s0 + $0xfd8] sm:$0xff]
        %v714 = vld [vmem:[%s0 + $0xfe0] sm:$0xff]
        %v715 = vld [vmem:[%s0 + $0xfe8] sm:$0xff]
        %v716 = vld [vmem:[%s0 + $0xff0] sm:$0xff]
        %v717 = vld [vmem:[%s0 + $0xff8] sm:$0xff]
        %v718 = vld [vmem:[%s0 + $0x1000] sm:$0xff]
        %v719 = vld [vmem:[%s0 + $0x1008] sm:$0xff]
        %v720 = vld [vmem:[%s0 + $0x1010] sm:$0xff]
        %v721 = vld [vmem:[%s0 + $0x1018] sm:$0xff]
        %v722 = vld [vmem:[%s0 + $0x1020] sm:$0xff]
        %v723 = vld [vmem:[%s0 + $0x1028] sm:$0xff]
        %v724 = vld [vmem:[%s0 + $0x1030] sm:$0xff]
        %v725 = vld [vmem:[%s0 + $0x1038] sm:$0xff]
        %v726 = vld [vmem:[%s0 + $0x1040] sm:$0xff]
        %v727 = vld [vmem:[%s0 + $0x1048] sm:$0xff]
        %v728 = vld [vmem:[%s0 + $0x1050] sm:$0xff]
        %v729 = vld [vmem:[%s0 + $0x1058] sm:$0xff]
        %v730 = vld [vmem:[%s0 + $0x1060] sm:$0xff]
        %v731 = vld [vmem:[%s0 + $0x1068] sm:$0xff]
        %v732 = vld [vmem:[%s0 + $0x1070] sm:$0xff]
        %v733 = vld [vmem:[%s0 + $0x1078] sm:$0xff]
        %v734 = vld [vmem:[%s0 + $0x1080] sm:$0xff]
        %v735 = vld [vmem:[%s0 + $0x1088] sm:$0xff]
        %v736 = vld [vmem:[%s0 + $0x1090] sm:$0xff]
        %v737 = vld [vmem:[%s0 + $0x1098] sm:$0xff]
        %v738 = vld [vmem:[%s0 + $0x10a0] sm:$0xff]
        %v739 = vld [vmem:[%s0 + $0x10a8] sm:$0xff]
        %v740 = vld [vmem:[%s0 + $0x10b0] sm:$0xff]
        %v741 = vld [vmem:[%s0 + $0x10b8] sm:$0xff]
        %v742 = vld [vmem:[%s0 + $0x10c0] sm:$0xff]
        %v743 = vld [vmem:[%s0 + $0x10c8] sm:$0xff]
        %v744 = vld [vmem:[%s0 + $0x10d0] sm:$0xff]
        %v745 = vld [vmem:[%s0 + $0x10d8] sm:$0xff]
        %v746 = vld [vmem:[%s0 + $0x10e0] sm:$0xff]
        %v747 = vld [vmem:[%s0 + $0x10e8] sm:$0xff]
        %v748 = vld [vmem:[%s0 + $0x10f0] sm:$0xff]
        %v749 = vld [vmem:[%s0 + $0x10f8] sm:$0xff]
        %v750 = vld [vmem:[%s0 + $0x1100] sm:$0xff]
        %v751 = vld [vmem:[%s0 + $0x1108] sm:$0xff]
        %v752 = vld [vmem:[%s0 + $0x1110] sm:$0xff]
        %v753 = vld [vmem:[%s0 + $0x1118] sm:$0xff]
        %v754 = vld [vmem:[%s0 + $0x1120] sm:$0xff]
        %v755 = vld [vmem:[%s0 + $0x1128] sm:$0xff]
        %v756 = vld [vmem:[%s0 + $0x1130] sm:$0xff]
        %v757 = vld [vmem:[%s0 + $0x1138] sm:$0xff]
        %v758 = vld [vmem:[%s0 + $0x1140] sm:$0xff]
        %v759 = vld [vmem:[%s0 + $0x1148] sm:$0xff]
        %v760 = vld [vmem:[%s0 + $0x1150] sm:$0xff]
        %v761 = vld [vmem:[%s0 + $0x1158] sm:$0xff]
        %v762 = vld [vmem:[%s0 + $0x1160] sm:$0xff]
        %v763 = vld [vmem:[%s0 + $0x1168] sm:$0xff]
        %v764 = vld [vmem:[%s0 + $0x1170] sm:$0xff]
        %v765 = vld [vmem:[%s0 + $0x1178] sm:$0xff]
        %v766 = vld [vmem:[%s0 + $0x1180] sm:$0xff]
        %v767 = vld [vmem:[%s0 + $0x1188] sm:$0xff]
        %v768 = vld [vmem:[%s0 + $0x1190] sm:$0xff]
        %v769 = vld [vmem:[%s0 + $0x1198] sm:$0xff]
        %v770 = vld [vmem:[%s0 + $0x11a0] sm:$0xff]
        %v771 = vld [vmem:[%s0 + $0x11a8] sm:$0xff]
        %v772 = vld [vmem:[%s0 + $0x11b0] sm:$0xff]
        %v773 = vld [vmem:[%s0 + $0x11b8] sm:$0xff]
        %v774 = vld [vmem:[%s0 + $0x11c0] sm:$0xff]
        %v775 = vld [vmem:[%s0 + $0x11c8] sm:$0xff]
        %v776 = vld [vmem:[%s0 + $0x11d0] sm:$0xff]
        %v777 = vld [vmem:[%s0 + $0x11d8] sm:$0xff]
        %v778 = vld [vmem:[%s0 + $0x11e0] sm:$0xff]
        %v779 = vld [vmem:[%s0 + $0x11e8] sm:$0xff]
        %v780 = vld [vmem:[%s0 + $0x11f0] sm:$0xff]
        %v781 = vld [vmem:[%s0 + $0x11f8] sm:$0xff]
        %v782 = vld [vmem:[%s0 + $0x1200] sm:$0xff]
        %v783 = vld [vmem:[%s0 + $0x1208] sm:$0xff]
        %v784 = vld [vmem:[%s0 + $0x1210] sm:$0xff]
        %v785 = vld [vmem:[%s0 + $0x1218] sm:$0xff]
        %v786 = vld [vmem:[%s0 + $0x1220] sm:$0xff]
        %v787 = vld [vmem:[%s0 + $0x1228] sm:$0xff]
        %v788 = vld [vmem:[%s0 + $0x1230] sm:$0xff]
        %v789 = vld [vmem:[%s0 + $0x1238] sm:$0xff]
        %v790 = vld [vmem:[%s0 + $0x1240] sm:$0xff]
        %v791 = vld [vmem:[%s0 + $0x1248] sm:$0xff]
        %v792 = vld [vmem:[%s0 + $0x1250] sm:$0xff]
        %v793 = vld [vmem:[%s0 + $0x1258] sm:$0xff]
        %v794 = vld [vmem:[%s0 + $0x1260] sm:$0xff]
        %v795 = vld [vmem:[%s0 + $0x1268] sm:$0xff]
        %v796 = vld [vmem:[%s0 + $0x1270] sm:$0xff]
        %v797 = vld [vmem:[%s0 + $0x1278] sm:$0xff]
        %v798 = vld [vmem:[%s0 + $0x1280] sm:$0xff]
        %v799 = vld [vmem:[%s0 + $0x1288] sm:$0xff]
        %v800 = vld [vmem:[%s0 + $0x1290] sm:$0xff]
        %v801 = vld [vmem:[%s0 + $0x1298] sm:$0xff]
        %v802 = vld [vmem:[%s0 + $0x12a0] sm:$0xff]
        %v803 = vld [vmem:[%s0 + $0x12a8] sm:$0xff]
        %v804 = vld [vmem:[%s0 + $0x12b0] sm:$0xff]
        %v805 = vld [vmem:[%s0 + $0x12b8] sm:$0xff]
        %v806 = vld [vmem:[%s0 + $0x12c0] sm:$0xff]
        %v807 = vld [vmem:[%s0 + $0x12c8] sm:$0xff]
        %v808 = vld [vmem:[%s0 + $0x12d0] sm:$0xff]
        %v809 = vld [vmem:[%s0 + $0x12d8] sm:$0xff]
        %v810 = vld [vmem:[%s0 + $0x12e0] sm:$0xff]
        %v811 = vld [vmem:[%s0 + $0x12e8] sm:$0xff]
        %v812 = vld [vmem:[%s0 + $0x12f0] sm:$0xff]
        %v813 = vld [vmem:[%s0 + $0x12f8] sm:$0xff]
        %v814 = vld [vmem:[%s0 + $0x1300] sm:$0xff]
        %v815 = vmax.f32 %v206, 0.0
        %v816 = vmax.f32 %v207, 0.0
        %v817 = vmax.f32 %v208, 0.0
        %v818 = vmax.f32 %v209, 0.0
        %v819 = vmax.f32 %v210, 0.0
        %v820 = vmax.f32 %v211, 0.0
        %v821 = vmax.f32 %v212, 0.0
        %v822 = vmax.f32 %v213, 0.0
        %v823 = vmax.f32 %v214, 0.0
        %v824 = vmax.f32 %v215, 0.0
        %v825 = vmax.f32 %v216, 0.0
        %v826 = vmax.f32 %v217, 0.0
        %v827 = vmax.f32 %v218, 0.0
        %v828 = vmax.f32 %v219, 0.0
        %v829 = vmax.f32 %v220, 0.0
        %v830 = vmax.f32 %v221, 0.0
        %v831 = vmax.f32 %v222, 0.0
        %v832 = vmax.f32 %v223, 0.0
        %v833 = vmax.f32 %v224, 0.0
        %v834 = vmax.f32 %v225, 0.0
        %v835 = vmax.f32 %v226, 0.0
        %v836 = vmax.f32 %v227, 0.0
        %v837 = vmax.f32 %v228, 0.0
        %v838 = vmax.f32 %v229, 0.0
        %v839 = vmax.f32 %v230, 0.0
        %v840 = vmax.f32 %v231, 0.0
        %v841 = vmax.f32 %v232, 0.0
        %v842 = vmax.f32 %v233, 0.0
        %v843 = vmax.f32 %v234, 0.0
        %v844 = vmax.f32 %v235, 0.0
        %v845 = vmax.f32 %v236, 0.0
        %v846 = vmax.f32 %v237, 0.0
        %v847 = vmax.f32 %v238, 0.0
        %v848 = vmax.f32 %v239, 0.0
        %v849 = vmax.f32 %v240, 0.0
        %v850 = vmax.f32 %v241, 0.0
        %v851 = vmax.f32 %v242, 0.0
        %v852 = vmax.f32 %v243, 0.0
        %v853 = vmax.f32 %v244, 0.0
        %v854 = vmax.f32 %v245, 0.0
        %v855 = vmax.f32 %v246, 0.0
        %v856 = vmax.f32 %v247, 0.0
        %v857 = vmax.f32 %v248, 0.0
        %v858 = vmax.f32 %v249, 0.0
        %v859 = vmax.f32 %v250, 0.0
        %v860 = vmax.f32 %v251, 0.0
        %v861 = vmax.f32 %v252, 0.0
        %v862 = vmax.f32 %v253, 0.0
        %v863 = vmax.f32 %v254, 0.0
        %v864 = vmax.f32 %v255, 0.0
        %v865 = vmax.f32 %v256, 0.0
        %v866 = vmax.f32 %v257, 0.0
        %v867 = vmax.f32 %v258, 0.0
        %v868 = vmax.f32 %v259, 0.0
        %v869 = vmax.f32 %v260, 0.0
        %v870 = vmax.f32 %v261, 0.0
        %v871 = vmax.f32 %v262, 0.0
        %v872 = vmax.f32 %v263, 0.0
        %v873 = vmax.f32 %v264, 0.0
        %v874 = vmax.f32 %v265, 0.0
        %v875 = vmax.f32 %v266, 0.0
        %v876 = vmax.f32 %v267, 0.0
        %v877 = vmax.f32 %v268, 0.0
        %v878 = vmax.f32 %v269, 0.0
        %v879 = vmax.f32 %v270, 0.0
        %v880 = vmax.f32 %v271, 0.0
        %v881 = vmax.f32 %v272, 0.0
        %v882 = vmax.f32 %v273, 0.0
        %v883 = vmax.f32 %v274, 0.0
        %v884 = vmax.f32 %v275, 0.0
        %v885 = vmax.f32 %v276, 0.0
        %v886 = vmax.f32 %v277, 0.0
        %v887 = vmax.f32 %v278, 0.0
        %v888 = vmax.f32 %v279, 0.0
        %v889 = vmax.f32 %v280, 0.0
        %v890 = vmax.f32 %v281, 0.0
        %v891 = vmax.f32 %v282, 0.0
        %v892 = vmax.f32 %v283, 0.0
        %v893 = vmax.f32 %v284, 0.0
        %v894 = vmax.f32 %v285, 0.0
        %v895 = vmax.f32 %v286, 0.0
        %v896 = vmax.f32 %v287, 0.0
        %v897 = vmax.f32 %v288, 0.0
        %v898 = vmax.f32 %v289, 0.0
        %v899 = vmax.f32 %v290, 0.0
        %v900 = vmax.f32 %v291, 0.0
        %v901 = vmax.f32 %v292, 0.0
        %v902 = vmax.f32 %v293, 0.0
        %v903 = vmax.f32 %v294, 0.0
        %v904 = vmax.f32 %v295, 0.0
        %v905 = vmax.f32 %v296, 0.0
        %v906 = vmax.f32 %v297, 0.0
        %v907 = vmax.f32 %v298, 0.0
        %v908 = vmax.f32 %v299, 0.0
        %v909 = vmax.f32 %v300, 0.0
        %v910 = vmax.f32 %v301, 0.0
        %v911 = vmax.f32 %v302, 0.0
        %v912 = vmax.f32 %v303, 0.0
        %v913 = vmax.f32 %v304, 0.0
        %v914 = vmax.f32 %v305, 0.0
        %v915 = vmax.f32 %v306, 0.0
        %v916 = vmax.f32 %v307, 0.0
        %v917 = vmax.f32 %v308, 0.0
        %v918 = vmax.f32 %v309, 0.0
        %v919 = vmax.f32 %v310, 0.0
        %v920 = vmax.f32 %v311, 0.0
        %v921 = vmax.f32 %v312, 0.0
        %v922 = vmax.f32 %v313, 0.0
        %v923 = vmax.f32 %v314, 0.0
        %v924 = vmax.f32 %v315, 0.0
        %v925 = vmax.f32 %v316, 0.0
        %v926 = vmax.f32 %v317, 0.0
        %v927 = vmax.f32 %v318, 0.0
        %v928 = vmax.f32 %v319, 0.0
        %v929 = vmax.f32 %v320, 0.0
        %v930 = vmax.f32 %v321, 0.0
        %v931 = vmax.f32 %v322, 0.0
        %v932 = vmax.f32 %v323, 0.0
        %v933 = vmax.f32 %v324, 0.0
        %v934 = vmax.f32 %v325, 0.0
        %v935 = vmax.f32 %v326, 0.0
        %v936 = vmax.f32 %v327, 0.0
        %v937 = vmax.f32 %v328, 0.0
        %v938 = vmax.f32 %v329, 0.0
        %v939 = vmax.f32 %v330, 0.0
        %v940 = vmax.f32 %v331, 0.0
        %v941 = vmax.f32 %v332, 0.0
        %v942 = vmax.f32 %v333, 0.0
        %v943 = vmax.f32 %v334, 0.0
        %v944 = vmax.f32 %v335, 0.0
        %v945 = vmax.f32 %v336, 0.0
        %v946 = vmax.f32 %v337, 0.0
        %v947 = vmax.f32 %v338, 0.0
        %v948 = vmax.f32 %v339, 0.0
        %v949 = vmax.f32 %v340, 0.0
        %v950 = vmax.f32 %v341, 0.0
        %v951 = vmax.f32 %v342, 0.0
        %v952 = vmax.f32 %v343, 0.0
        %v953 = vmax.f32 %v344, 0.0
        %v954 = vmax.f32 %v345, 0.0
        %v955 = vmax.f32 %v346, 0.0
        %v956 = vmax.f32 %v347, 0.0
        %v957 = vmax.f32 %v348, 0.0
        %v958 = vmax.f32 %v349, 0.0
        %v959 = vmax.f32 %v350, 0.0
        %v960 = vmax.f32 %v351, 0.0
        %v961 = vmax.f32 %v352, 0.0
        %v962 = vmax.f32 %v353, 0.0
        %v963 = vmax.f32 %v354, 0.0
        %v964 = vmax.f32 %v355, 0.0
        %v965 = vmax.f32 %v356, 0.0
        %v966 = vmax.f32 %v357, 0.0
        %v967 = vmax.f32 %v358, 0.0
        %v968 = vmax.f32 %v359, 0.0
        %v969 = vmax.f32 %v360, 0.0
        %v970 = vmax.f32 %v361, 0.0
        %v971 = vmax.f32 %v362, 0.0
        %v972 = vmax.f32 %v363, 0.0
        %v973 = vmax.f32 %v364, 0.0
        %v974 = vmax.f32 %v365, 0.0
        %v975 = vmax.f32 %v366, 0.0
        %v976 = vmax.f32 %v367, 0.0
        %v977 = vmax.f32 %v368, 0.0
        %v978 = vmax.f32 %v369, 0.0
        %v979 = vmax.f32 %v370, 0.0
        %v980 = vmax.f32 %v371, 0.0
        %v981 = vmax.f32 %v372, 0.0
        %v982 = vmax.f32 %v373, 0.0
        %v983 = vmax.f32 %v374, 0.0
        %v984 = vmax.f32 %v375, 0.0
        %v985 = vmax.f32 %v376, 0.0
        %v986 = vmax.f32 %v377, 0.0
        %v987 = vmax.f32 %v378, 0.0
        %v988 = vmax.f32 %v379, 0.0
        %v989 = vmax.f32 %v380, 0.0
        %v990 = vmax.f32 %v381, 0.0
        %v991 = vmax.f32 %v382, 0.0
        %v992 = vmax.f32 %v383, 0.0
        %v993 = vmax.f32 %v384, 0.0
        %v994 = vmax.f32 %v385, 0.0
        %v995 = vmax.f32 %v386, 0.0
        %v996 = vmax.f32 %v387, 0.0
        %v997 = vmax.f32 %v388, 0.0
        %v998 = vmax.f32 %v389, 0.0
        %v999 = vmax.f32 %v390, 0.0
        %v1000 = vmax.f32 %v391, 0.0
        %v1001 = vmax.f32 %v392, 0.0
        %v1002 = vmax.f32 %v393, 0.0
        %v1003 = vmax.f32 %v394, 0.0
        %v1004 = vmax.f32 %v395, 0.0
        %v1005 = vmax.f32 %v396, 0.0
        %v1006 = vmax.f32 %v397, 0.0
        %v1007 = vmax.f32 %v398, 0.0
        %v1008 = vmax.f32 %v399, 0.0
        %v1009 = vmax.f32 %v400, 0.0
        %v1010 = vmax.f32 %v401, 0.0
        %v1011 = vmax.f32 %v402, 0.0
        %v1012 = vmax.f32 %v403, 0.0
        %v1013 = vmax.f32 %v404, 0.0
        %v1014 = vmax.f32 %v405, 0.0
        %v1015 = vmax.f32 %v406, 0.0
        %v1016 = vmax.f32 %v407, 0.0
        %v1017 = vmax.f32 %v408, 0.0
        %v1018 = vmax.f32 %v409, 0.0
        %v1019 = vmax.f32 %v410, 0.0
        %v1020 = vmax.f32 %v411, 0.0
        %v1021 = vmax.f32 %v412, 0.0
        %v1022 = vmax.f32 %v413, 0.0
        %v1023 = vmax.f32 %v414, 0.0
        %v1024 = vmax.f32 %v415, 0.0
        %v1025 = vmax.f32 %v416, 0.0
        %v1026 = vmax.f32 %v417, 0.0
        %v1027 = vmax.f32 %v418, 0.0
        %v1028 = vmax.f32 %v419, 0.0
        %v1029 = vmax.f32 %v420, 0.0
        %v1030 = vmax.f32 %v421, 0.0
        %v1031 = vmax.f32 %v422, 0.0
        %v1032 = vmax.f32 %v423, 0.0
        %v1033 = vmax.f32 %v424, 0.0
        %v1034 = vmax.f32 %v425, 0.0
        %v1035 = vmax.f32 %v426, 0.0
        %v1036 = vmax.f32 %v427, 0.0
        %v1037 = vmax.f32 %v428, 0.0
        %v1038 = vmax.f32 %v429, 0.0
        %v1039 = vmax.f32 %v430, 0.0
        %v1040 = vmax.f32 %v431, 0.0
        %v1041 = vmax.f32 %v432, 0.0
        %v1042 = vmax.f32 %v433, 0.0
        %v1043 = vmax.f32 %v434, 0.0
        %v1044 = vmax.f32 %v435, 0.0
        %v1045 = vmax.f32 %v436, 0.0
        %v1046 = vmax.f32 %v437, 0.0
        %v1047 = vmax.f32 %v438, 0.0
        %v1048 = vmax.f32 %v439, 0.0
        %v1049 = vmax.f32 %v440, 0.0
        %v1050 = vmax.f32 %v441, 0.0
        %v1051 = vmax.f32 %v442, 0.0
        %v1052 = vmax.f32 %v443, 0.0
        %v1053 = vmax.f32 %v444, 0.0
        %v1054 = vmax.f32 %v445, 0.0
        %v1055 = vmax.f32 %v446, 0.0
        %v1056 = vmax.f32 %v447, 0.0
        %v1057 = vmax.f32 %v448, 0.0
        %v1058 = vmax.f32 %v449, 0.0
        %v1059 = vmax.f32 %v450, 0.0
        %v1060 = vmax.f32 %v451, 0.0
        %v1061 = vmax.f32 %v452, 0.0
        %v1062 = vmax.f32 %v453, 0.0
        %v1063 = vmax.f32 %v454, 0.0
        %v1064 = vmax.f32 %v455, 0.0
        %v1065 = vmax.f32 %v456, 0.0
        %v1066 = vmax.f32 %v457, 0.0
        %v1067 = vmax.f32 %v458, 0.0
        %v1068 = vmax.f32 %v459, 0.0
        %v1069 = vmax.f32 %v460, 0.0
        %v1070 = vmax.f32 %v461, 0.0
        %v1071 = vmax.f32 %v462, 0.0
        %v1072 = vmax.f32 %v463, 0.0
        %v1073 = vmax.f32 %v464, 0.0
        %v1074 = vmax.f32 %v465, 0.0
        %v1075 = vmax.f32 %v466, 0.0
        %v1076 = vmax.f32 %v467, 0.0
        %v1077 = vmax.f32 %v468, 0.0
        %v1078 = vmax.f32 %v469, 0.0
        %v1079 = vmax.f32 %v470, 0.0
        %v1080 = vmax.f32 %v471, 0.0
        %v1081 = vmax.f32 %v472, 0.0
        %v1082 = vmax.f32 %v473, 0.0
        %v1083 = vmax.f32 %v474, 0.0
        %v1084 = vmax.f32 %v475, 0.0
        %v1085 = vmax.f32 %v476, 0.0
        %v1086 = vmax.f32 %v477, 0.0
        %v1087 = vmax.f32 %v478, 0.0
        %v1088 = vmax.f32 %v479, 0.0
        %v1089 = vmax.f32 %v480, 0.0
        %v1090 = vmax.f32 %v481, 0.0
        %v1091 = vmax.f32 %v482, 0.0
        %v1092 = vmax.f32 %v483, 0.0
        %v1093 = vmax.f32 %v484, 0.0
        %v1094 = vmax.f32 %v485, 0.0
        %v1095 = vmax.f32 %v486, 0.0
        %v1096 = vmax.f32 %v487, 0.0
        %v1097 = vmax.f32 %v488, 0.0
        %v1098 = vmax.f32 %v489, 0.0
        %v1099 = vmax.f32 %v490, 0.0
        %v1100 = vmax.f32 %v491, 0.0
        %v1101 = vmax.f32 %v492, 0.0
        %v1102 = vmax.f32 %v493, 0.0
        %v1103 = vmax.f32 %v494, 0.0
        %v1104 = vmax.f32 %v495, 0.0
        %v1105 = vmax.f32 %v496, 0.0
        %v1106 = vmax.f32 %v497, 0.0
        %v1107 = vmax.f32 %v498, 0.0
        %v1108 = vmax.f32 %v499, 0.0
        %v1109 = vmax.f32 %v500, 0.0
        %v1110 = vmax.f32 %v501, 0.0
        %v1111 = vmax.f32 %v502, 0.0
        %v1112 = vmax.f32 %v503, 0.0
        %v1113 = vmax.f32 %v504, 0.0
        %v1114 = vmax.f32 %v505, 0.0
        %v1115 = vmax.f32 %v506, 0.0
        %v1116 = vmax.f32 %v507, 0.0
        %v1117 = vmax.f32 %v508, 0.0
        %v1118 = vmax.f32 %v509, 0.0
        %v1119 = vmax.f32 %v510, 0.0
        %v1120 = vmax.f32 %v511, 0.0
        %v1121 = vmax.f32 %v512, 0.0
        %v1122 = vmax.f32 %v513, 0.0
        %v1123 = vmax.f32 %v514, 0.0
        %v1124 = vmax.f32 %v515, 0.0
        %v1125 = vmax.f32 %v516, 0.0
        %v1126 = vmax.f32 %v517, 0.0
        %v1127 = vmax.f32 %v518, 0.0
        %v1128 = vmax.f32 %v519, 0.0
        %v1129 = vmax.f32 %v520, 0.0
        %v1130 = vmax.f32 %v521, 0.0
        %v1131 = vmax.f32 %v522, 0.0
        %v1132 = vmax.f32 %v523, 0.0
        %v1133 = vmax.f32 %v524, 0.0
        %v1134 = vmax.f32 %v525, 0.0
        %v1135 = vmax.f32 %v526, 0.0
        %v1136 = vmax.f32 %v527, 0.0
        %v1137 = vmax.f32 %v528, 0.0
        %v1138 = vmax.f32 %v529, 0.0
        %v1139 = vmax.f32 %v530, 0.0
        %v1140 = vmax.f32 %v531, 0.0
        %v1141 = vmax.f32 %v532, 0.0
        %v1142 = vmax.f32 %v533, 0.0
        %v1143 = vmax.f32 %v534, 0.0
        %v1144 = vmax.f32 %v535, 0.0
        %v1145 = vmax.f32 %v536, 0.0
        %v1146 = vmax.f32 %v537, 0.0
        %v1147 = vmax.f32 %v538, 0.0
        %v1148 = vmax.f32 %v539, 0.0
        %v1149 = vmax.f32 %v540, 0.0
        %v1150 = vmax.f32 %v541, 0.0
        %v1151 = vmax.f32 %v542, 0.0
        %v1152 = vmax.f32 %v543, 0.0
        %v1153 = vmax.f32 %v544, 0.0
        %v1154 = vmax.f32 %v545, 0.0
        %v1155 = vmax.f32 %v546, 0.0
        %v1156 = vmax.f32 %v547, 0.0
        %v1157 = vmax.f32 %v548, 0.0
        %v1158 = vmax.f32 %v549, 0.0
        %v1159 = vmax.f32 %v550, 0.0
        %v1160 = vmax.f32 %v551, 0.0
        %v1161 = vmax.f32 %v552, 0.0
        %v1162 = vmax.f32 %v553, 0.0
        %v1163 = vmax.f32 %v554, 0.0
        %v1164 = vmax.f32 %v555, 0.0
        %v1165 = vmax.f32 %v556, 0.0
        %v1166 = vmax.f32 %v557, 0.0
        %v1167 = vmax.f32 %v558, 0.0
        %v1168 = vmax.f32 %v559, 0.0
        %v1169 = vmax.f32 %v560, 0.0
        %v1170 = vmax.f32 %v561, 0.0
        %v1171 = vmax.f32 %v562, 0.0
        %v1172 = vmax.f32 %v563, 0.0
        %v1173 = vmax.f32 %v564, 0.0
        %v1174 = vmax.f32 %v565, 0.0
        %v1175 = vmax.f32 %v566, 0.0
        %v1176 = vmax.f32 %v567, 0.0
        %v1177 = vmax.f32 %v568, 0.0
        %v1178 = vmax.f32 %v569, 0.0
        %v1179 = vmax.f32 %v570, 0.0
        %v1180 = vmax.f32 %v571, 0.0
        %v1181 = vmax.f32 %v572, 0.0
        %v1182 = vmax.f32 %v573, 0.0
        %v1183 = vmax.f32 %v574, 0.0
        %v1184 = vmax.f32 %v575, 0.0
        %v1185 = vmax.f32 %v576, 0.0
        %v1186 = vmax.f32 %v577, 0.0
        %v1187 = vmax.f32 %v578, 0.0
        %v1188 = vmax.f32 %v579, 0.0
        %v1189 = vmax.f32 %v580, 0.0
        %v1190 = vmax.f32 %v581, 0.0
        %v1191 = vmax.f32 %v582, 0.0
        %v1192 = vmax.f32 %v583, 0.0
        %v1193 = vmax.f32 %v584, 0.0
        %v1194 = vmax.f32 %v585, 0.0
        %v1195 = vmax.f32 %v586, 0.0
        %v1196 = vmax.f32 %v587, 0.0
        %v1197 = vmax.f32 %v588, 0.0
        %v1198 = vmax.f32 %v589, 0.0
        %v1199 = vmax.f32 %v590, 0.0
        %v1200 = vmax.f32 %v591, 0.0
        %v1201 = vmax.f32 %v592, 0.0
        %v1202 = vmax.f32 %v593, 0.0
        %v1203 = vmax.f32 %v594, 0.0
        %v1204 = vmax.f32 %v595, 0.0
        %v1205 = vmax.f32 %v596, 0.0
        %v1206 = vmax.f32 %v597, 0.0
        %v1207 = vmax.f32 %v598, 0.0
        %v1208 = vmax.f32 %v599, 0.0
        %v1209 = vmax.f32 %v600, 0.0
        %v1210 = vmax.f32 %v601, 0.0
        %v1211 = vmax.f32 %v602, 0.0
        %v1212 = vmax.f32 %v603, 0.0
        %v1213 = vmax.f32 %v604, 0.0
        %v1214 = vmax.f32 %v605, 0.0
        %v1215 = vmax.f32 %v606, 0.0
        %v1216 = vmax.f32 %v607, 0.0
        %v1217 = vmax.f32 %v608, 0.0
        %v1218 = vmax.f32 %v609, 0.0
        %v1219 = vmax.f32 %v610, 0.0
        %v1220 = vmax.f32 %v611, 0.0
        %v1221 = vmax.f32 %v612, 0.0
        %v1222 = vmax.f32 %v613, 0.0
        %v1223 = vmax.f32 %v614, 0.0
        %v1224 = vmax.f32 %v615, 0.0
        %v1225 = vmax.f32 %v616, 0.0
        %v1226 = vmax.f32 %v617, 0.0
        %v1227 = vmax.f32 %v618, 0.0
        %v1228 = vmax.f32 %v619, 0.0
        %v1229 = vmax.f32 %v620, 0.0
        %v1230 = vmax.f32 %v621, 0.0
        %v1231 = vmax.f32 %v622, 0.0
        %v1232 = vmax.f32 %v623, 0.0
        %v1233 = vmax.f32 %v624, 0.0
        %v1234 = vmax.f32 %v625, 0.0
        %v1235 = vmax.f32 %v626, 0.0
        %v1236 = vmax.f32 %v627, 0.0
        %v1237 = vmax.f32 %v628, 0.0
        %v1238 = vmax.f32 %v629, 0.0
        %v1239 = vmax.f32 %v630, 0.0
        %v1240 = vmax.f32 %v631, 0.0
        %v1241 = vmax.f32 %v632, 0.0
        %v1242 = vmax.f32 %v633, 0.0
        %v1243 = vmax.f32 %v634, 0.0
        %v1244 = vmax.f32 %v635, 0.0
        %v1245 = vmax.f32 %v636, 0.0
        %v1246 = vmax.f32 %v637, 0.0
        %v1247 = vmax.f32 %v638, 0.0
        %v1248 = vmax.f32 %v639, 0.0
        %v1249 = vmax.f32 %v640, 0.0
        %v1250 = vmax.f32 %v641, 0.0
        %v1251 = vmax.f32 %v642, 0.0
        %v1252 = vmax.f32 %v643, 0.0
        %v1253 = vmax.f32 %v644, 0.0
        %v1254 = vmax.f32 %v645, 0.0
        %v1255 = vmax.f32 %v646, 0.0
        %v1256 = vmax.f32 %v647, 0.0
        %v1257 = vmax.f32 %v648, 0.0
        %v1258 = vmax.f32 %v649, 0.0
        %v1259 = vmax.f32 %v650, 0.0
        %v1260 = vmax.f32 %v651, 0.0
        %v1261 = vmax.f32 %v652, 0.0
        %v1262 = vmax.f32 %v653, 0.0
        %v1263 = vmax.f32 %v654, 0.0
        %v1264 = vmax.f32 %v655, 0.0
        %v1265 = vmax.f32 %v656, 0.0
        %v1266 = vmax.f32 %v657, 0.0
        %v1267 = vmax.f32 %v658, 0.0
        %v1268 = vmax.f32 %v659, 0.0
        %v1269 = vmax.f32 %v660, 0.0
        %v1270 = vmax.f32 %v661, 0.0
        %v1271 = vmax.f32 %v662, 0.0
        %v1272 = vmax.f32 %v663, 0.0
        %v1273 = vmax.f32 %v664, 0.0
        %v1274 = vmax.f32 %v665, 0.0
        %v1275 = vmax.f32 %v666, 0.0
        %v1276 = vmax.f32 %v667, 0.0
        %v1277 = vmax.f32 %v668, 0.0
        %v1278 = vmax.f32 %v669, 0.0
        %v1279 = vmax.f32 %v670, 0.0
        %v1280 = vmax.f32 %v671, 0.0
        %v1281 = vmax.f32 %v672, 0.0
        %v1282 = vmax.f32 %v673, 0.0
        %v1283 = vmax.f32 %v674, 0.0
        %v1284 = vmax.f32 %v675, 0.0
        %v1285 = vmax.f32 %v676, 0.0
        %v1286 = vmax.f32 %v677, 0.0
        %v1287 = vmax.f32 %v678, 0.0
        %v1288 = vmax.f32 %v679, 0.0
        %v1289 = vmax.f32 %v680, 0.0
        %v1290 = vmax.f32 %v681, 0.0
        %v1291 = vmax.f32 %v682, 0.0
        %v1292 = vmax.f32 %v683, 0.0
        %v1293 = vmax.f32 %v684, 0.0
        %v1294 = vmax.f32 %v685, 0.0
        %v1295 = vmax.f32 %v686, 0.0
        %v1296 = vmax.f32 %v687, 0.0
        %v1297 = vmax.f32 %v688, 0.0
        %v1298 = vmax.f32 %v689, 0.0
        %v1299 = vmax.f32 %v690, 0.0
        %v1300 = vmax.f32 %v691, 0.0
        %v1301 = vmax.f32 %v692, 0.0
        %v1302 = vmax.f32 %v693, 0.0
        %v1303 = vmax.f32 %v694, 0.0
        %v1304 = vmax.f32 %v695, 0.0
        %v1305 = vmax.f32 %v696, 0.0
        %v1306 = vmax.f32 %v697, 0.0
        %v1307 = vmax.f32 %v698, 0.0
        %v1308 = vmax.f32 %v699, 0.0
        %v1309 = vmax.f32 %v700, 0.0
        %v1310 = vmax.f32 %v701, 0.0
        %v1311 = vmax.f32 %v702, 0.0
        %v1312 = vmax.f32 %v703, 0.0
        %v1313 = vmax.f32 %v704, 0.0
        %v1314 = vmax.f32 %v705, 0.0
        %v1315 = vmax.f32 %v706, 0.0
        %v1316 = vmax.f32 %v707, 0.0
        %v1317 = vmax.f32 %v708, 0.0
        %v1318 = vmax.f32 %v709, 0.0
        %v1319 = vmax.f32 %v710, 0.0
        %v1320 = vmax.f32 %v711, 0.0
        %v1321 = vmax.f32 %v712, 0.0
        %v1322 = vmax.f32 %v713, 0.0
        %v1323 = vmax.f32 %v714, 0.0
        %v1324 = vmax.f32 %v715, 0.0
        %v1325 = vmax.f32 %v716, 0.0
        %v1326 = vmax.f32 %v717, 0.0
        %v1327 = vmax.f32 %v718, 0.0
        %v1328 = vmax.f32 %v719, 0.0
        %v1329 = vmax.f32 %v720, 0.0
        %v1330 = vmax.f32 %v721, 0.0
        %v1331 = vmax.f32 %v722, 0.0
        %v1332 = vmax.f32 %v723, 0.0
        %v1333 = vmax.f32 %v724, 0.0
        %v1334 = vmax.f32 %v725, 0.0
        %v1335 = vmax.f32 %v726, 0.0
        %v1336 = vmax.f32 %v727, 0.0
        %v1337 = vmax.f32 %v728, 0.0
        %v1338 = vmax.f32 %v729, 0.0
        %v1339 = vmax.f32 %v730, 0.0
        %v1340 = vmax.f32 %v731, 0.0
        %v1341 = vmax.f32 %v732, 0.0
        %v1342 = vmax.f32 %v733, 0.0
        %v1343 = vmax.f32 %v734, 0.0
        %v1344 = vmax.f32 %v735, 0.0
        %v1345 = vmax.f32 %v736, 0.0
        %v1346 = vmax.f32 %v737, 0.0
        %v1347 = vmax.f32 %v738, 0.0
        %v1348 = vmax.f32 %v739, 0.0
        %v1349 = vmax.f32 %v740, 0.0
        %v1350 = vmax.f32 %v741, 0.0
        %v1351 = vmax.f32 %v742, 0.0
        %v1352 = vmax.f32 %v743, 0.0
        %v1353 = vmax.f32 %v744, 0.0
        %v1354 = vmax.f32 %v745, 0.0
        %v1355 = vmax.f32 %v746, 0.0
        %v1356 = vmax.f32 %v747, 0.0
        %v1357 = vmax.f32 %v748, 0.0
        %v1358 = vmax.f32 %v749, 0.0
        %v1359 = vmax.f32 %v750, 0.0
        %v1360 = vmax.f32 %v751, 0.0
        %v1361 = vmax.f32 %v752, 0.0
        %v1362 = vmax.f32 %v753, 0.0
        %v1363 = vmax.f32 %v754, 0.0
        %v1364 = vmax.f32 %v755, 0.0
        %v1365 = vmax.f32 %v756, 0.0
        %v1366 = vmax.f32 %v757, 0.0
        %v1367 = vmax.f32 %v758, 0.0
        %v1368 = vmax.f32 %v759, 0.0
        %v1369 = vmax.f32 %v760, 0.0
        %v1370 = vmax.f32 %v761, 0.0
        %v1371 = vmax.f32 %v762, 0.0
        %v1372 = vmax.f32 %v763, 0.0
        %v1373 = vmax.f32 %v764, 0.0
        %v1374 = vmax.f32 %v765, 0.0
        %v1375 = vmax.f32 %v766, 0.0
        %v1376 = vmax.f32 %v767, 0.0
        %v1377 = vmax.f32 %v768, 0.0
        %v1378 = vmax.f32 %v769, 0.0
        %v1379 = vmax.f32 %v770, 0.0
        %v1380 = vmax.f32 %v771, 0.0
        %v1381 = vmax.f32 %v772, 0.0
        %v1382 = vmax.f32 %v773, 0.0
        %v1383 = vmax.f32 %v774, 0.0
        %v1384 = vmax.f32 %v775, 0.0
        %v1385 = vmax.f32 %v776, 0.0
        %v1386 = vmax.f32 %v777, 0.0
        %v1387 = vmax.f32 %v778, 0.0
        %v1388 = vmax.f32 %v779, 0.0
        %v1389 = vmax.f32 %v780, 0.0
        %v1390 = vmax.f32 %v781, 0.0
        %v1391 = vmax.f32 %v782, 0.0
        %v1392 = vmax.f32 %v783, 0.0
        %v1393 = vmax.f32 %v784, 0.0
        %v1394 = vmax.f32 %v785, 0.0
        %v1395 = vmax.f32 %v786, 0.0
        %v1396 = vmax.f32 %v787, 0.0
        %v1397 = vmax.f32 %v788, 0.0
        %v1398 = vmax.f32 %v789, 0.0
        %v1399 = vmax.f32 %v790, 0.0
        %v1400 = vmax.f32 %v791, 0.0
        %v1401 = vmax.f32 %v792, 0.0
        %v1402 = vmax.f32 %v793, 0.0
        %v1403 = vmax.f32 %v794, 0.0
        %v1404 = vmax.f32 %v795, 0.0
        %v1405 = vmax.f32 %v796, 0.0
        %v1406 = vmax.f32 %v797, 0.0
        %v1407 = vmax.f32 %v798, 0.0
        %v1408 = vmax.f32 %v799, 0.0
        %v1409 = vmax.f32 %v800, 0.0
        %v1410 = vmax.f32 %v801, 0.0
        %v1411 = vmax.f32 %v802, 0.0
        %v1412 = vmax.f32 %v803, 0.0
        %v1413 = vmax.f32 %v804, 0.0
        %v1414 = vmax.f32 %v805, 0.0
        %v1415 = vmax.f32 %v806, 0.0
        %v1416 = vmax.f32 %v807, 0.0
        %v1417 = vmax.f32 %v808, 0.0
        %v1418 = vmax.f32 %v809, 0.0
        %v1419 = vmax.f32 %v810, 0.0
        %v1420 = vmax.f32 %v811, 0.0
        %v1421 = vmax.f32 %v812, 0.0
        %v1422 = vmax.f32 %v813, 0.0
        %v1423 = vmax.f32 %v814, 0.0
        %v1424 = vpack.c.bf16 %v822, %v815
        %v1425 = vpack.c.bf16 %v823, %v816
        %v1426 = vpack.c.bf16 %v824, %v817
        %v1427 = vpack.c.bf16 %v825, %v818
        %v1428 = vpack.c.bf16 %v826, %v819
        %v1429 = vpack.c.bf16 %v827, %v820
        %v1430 = vpack.c.bf16 %v828, %v821
        %v1431 = vpack.c.bf16 %v836, %v829
        %v1432 = vpack.c.bf16 %v837, %v830
        %v1433 = vpack.c.bf16 %v838, %v831
        %v1434 = vpack.c.bf16 %v839, %v832
        %v1435 = vpack.c.bf16 %v840, %v833
        %v1436 = vpack.c.bf16 %v841, %v834
        %v1437 = vpack.c.bf16 %v842, %v835
        %v1438 = vpack.c.bf16 %v850, %v843
        %v1439 = vpack.c.bf16 %v851, %v844
        %v1440 = vpack.c.bf16 %v852, %v845
        %v1441 = vpack.c.bf16 %v853, %v846
        %v1442 = vpack.c.bf16 %v854, %v847
        %v1443 = vpack.c.bf16 %v855, %v848
        %v1444 = vpack.c.bf16 %v856, %v849
        %v1445 = vpack.c.bf16 %v864, %v857
        %v1446 = vpack.c.bf16 %v865, %v858
        %v1447 = vpack.c.bf16 %v866, %v859
        %v1448 = vpack.c.bf16 %v867, %v860
        %v1449 = vpack.c.bf16 %v868, %v861
        %v1450 = vpack.c.bf16 %v869, %v862
        %v1451 = vpack.c.bf16 %v870, %v863
        %v1452 = vpack.c.bf16 %v878, %v871
        %v1453 = vpack.c.bf16 %v879, %v872
        %v1454 = vpack.c.bf16 %v880, %v873
        %v1455 = vpack.c.bf16 %v881, %v874
        %v1456 = vpack.c.bf16 %v882, %v875
        %v1457 = vpack.c.bf16 %v883, %v876
        %v1458 = vpack.c.bf16 %v884, %v877
        %v1459 = vpack.c.bf16 %v892, %v885
        %v1460 = vpack.c.bf16 %v893, %v886
        %v1461 = vpack.c.bf16 %v894, %v887
        %v1462 = vpack.c.bf16 %v895, %v888
        %v1463 = vpack.c.bf16 %v896, %v889
        %v1464 = vpack.c.bf16 %v897, %v890
        %v1465 = vpack.c.bf16 %v898, %v891
        %v1466 = vpack.c.bf16 %v906, %v899
        %v1467 = vpack.c.bf16 %v907, %v900
        %v1468 = vpack.c.bf16 %v908, %v901
        %v1469 = vpack.c.bf16 %v909, %v902
        %v1470 = vpack.c.bf16 %v910, %v903
        %v1471 = vpack.c.bf16 %v911, %v904
        %v1472 = vpack.c.bf16 %v912, %v905
        %v1473 = vpack.c.bf16 %v920, %v913
        %v1474 = vpack.c.bf16 %v921, %v914
        %v1475 = vpack.c.bf16 %v922, %v915
        %v1476 = vpack.c.bf16 %v923, %v916
        %v1477 = vpack.c.bf16 %v924, %v917
        %v1478 = vpack.c.bf16 %v925, %v918
        %v1479 = vpack.c.bf16 %v926, %v919
        %v1480 = vpack.c.bf16 %v934, %v927
        %v1481 = vpack.c.bf16 %v935, %v928
        %v1482 = vpack.c.bf16 %v936, %v929
        %v1483 = vpack.c.bf16 %v937, %v930
        %v1484 = vpack.c.bf16 %v938, %v931
        %v1485 = vpack.c.bf16 %v939, %v932
        %v1486 = vpack.c.bf16 %v940, %v933
        %v1487 = vpack.c.bf16 %v948, %v941
        %v1488 = vpack.c.bf16 %v949, %v942
        %v1489 = vpack.c.bf16 %v950, %v943
        %v1490 = vpack.c.bf16 %v951, %v944
        %v1491 = vpack.c.bf16 %v952, %v945
        %v1492 = vpack.c.bf16 %v953, %v946
        %v1493 = vpack.c.bf16 %v954, %v947
        %v1494 = vpack.c.bf16 %v962, %v955
        %v1495 = vpack.c.bf16 %v963, %v956
        %v1496 = vpack.c.bf16 %v964, %v957
        %v1497 = vpack.c.bf16 %v965, %v958
        %v1498 = vpack.c.bf16 %v966, %v959
        %v1499 = vpack.c.bf16 %v967, %v960
        %v1500 = vpack.c.bf16 %v968, %v961
        %v1501 = vpack.c.bf16 %v976, %v969
        %v1502 = vpack.c.bf16 %v977, %v970
        %v1503 = vpack.c.bf16 %v978, %v971
        %v1504 = vpack.c.bf16 %v979, %v972
        %v1505 = vpack.c.bf16 %v980, %v973
        %v1506 = vpack.c.bf16 %v981, %v974
        %v1507 = vpack.c.bf16 %v982, %v975
        %v1508 = vpack.c.bf16 %v990, %v983
        %v1509 = vpack.c.bf16 %v991, %v984
        %v1510 = vpack.c.bf16 %v992, %v985
        %v1511 = vpack.c.bf16 %v993, %v986
        %v1512 = vpack.c.bf16 %v994, %v987
        %v1513 = vpack.c.bf16 %v995, %v988
        %v1514 = vpack.c.bf16 %v996, %v989
        %v1515 = vpack.c.bf16 %v1004, %v997
        %v1516 = vpack.c.bf16 %v1005, %v998
        %v1517 = vpack.c.bf16 %v1006, %v999
        %v1518 = vpack.c.bf16 %v1007, %v1000
        %v1519 = vpack.c.bf16 %v1008, %v1001
        %v1520 = vpack.c.bf16 %v1009, %v1002
        %v1521 = vpack.c.bf16 %v1010, %v1003
        %v1522 = vpack.c.bf16 %v1018, %v1011
        %v1523 = vpack.c.bf16 %v1019, %v1012
        %v1524 = vpack.c.bf16 %v1020, %v1013
        %v1525 = vpack.c.bf16 %v1021, %v1014
        %v1526 = vpack.c.bf16 %v1022, %v1015
        %v1527 = vpack.c.bf16 %v1023, %v1016
        %v1528 = vpack.c.bf16 %v1024, %v1017
        %v1529 = vpack.c.bf16 %v1032, %v1025
        %v1530 = vpack.c.bf16 %v1033, %v1026
        %v1531 = vpack.c.bf16 %v1034, %v1027
        %v1532 = vpack.c.bf16 %v1035, %v1028
        %v1533 = vpack.c.bf16 %v1036, %v1029
        %v1534 = vpack.c.bf16 %v1037, %v1030
        %v1535 = vpack.c.bf16 %v1038, %v1031
        %v1536 = vpack.c.bf16 %v1046, %v1039
        %v1537 = vpack.c.bf16 %v1047, %v1040
        %v1538 = vpack.c.bf16 %v1048, %v1041
        %v1539 = vpack.c.bf16 %v1049, %v1042
        %v1540 = vpack.c.bf16 %v1050, %v1043
        %v1541 = vpack.c.bf16 %v1051, %v1044
        %v1542 = vpack.c.bf16 %v1052, %v1045
        %v1543 = vpack.c.bf16 %v1060, %v1053
        %v1544 = vpack.c.bf16 %v1061, %v1054
        %v1545 = vpack.c.bf16 %v1062, %v1055
        %v1546 = vpack.c.bf16 %v1063, %v1056
        %v1547 = vpack.c.bf16 %v1064, %v1057
        %v1548 = vpack.c.bf16 %v1065, %v1058
        %v1549 = vpack.c.bf16 %v1066, %v1059
        %v1550 = vpack.c.bf16 %v1074, %v1067
        %v1551 = vpack.c.bf16 %v1075, %v1068
        %v1552 = vpack.c.bf16 %v1076, %v1069
        %v1553 = vpack.c.bf16 %v1077, %v1070
        %v1554 = vpack.c.bf16 %v1078, %v1071
        %v1555 = vpack.c.bf16 %v1079, %v1072
        %v1556 = vpack.c.bf16 %v1080, %v1073
        %v1557 = vpack.c.bf16 %v1088, %v1081
        %v1558 = vpack.c.bf16 %v1089, %v1082
        %v1559 = vpack.c.bf16 %v1090, %v1083
        %v1560 = vpack.c.bf16 %v1091, %v1084
        %v1561 = vpack.c.bf16 %v1092, %v1085
        %v1562 = vpack.c.bf16 %v1093, %v1086
        %v1563 = vpack.c.bf16 %v1094, %v1087
        %v1564 = vpack.c.bf16 %v1102, %v1095
        %v1565 = vpack.c.bf16 %v1103, %v1096
        %v1566 = vpack.c.bf16 %v1104, %v1097
        %v1567 = vpack.c.bf16 %v1105, %v1098
        %v1568 = vpack.c.bf16 %v1106, %v1099
        %v1569 = vpack.c.bf16 %v1107, %v1100
        %v1570 = vpack.c.bf16 %v1108, %v1101
        %v1571 = vpack.c.bf16 %v1116, %v1109
        %v1572 = vpack.c.bf16 %v1117, %v1110
        %v1573 = vpack.c.bf16 %v1118, %v1111
        %v1574 = vpack.c.bf16 %v1119, %v1112
        %v1575 = vpack.c.bf16 %v1120, %v1113
        %v1576 = vpack.c.bf16 %v1121, %v1114
        %v1577 = vpack.c.bf16 %v1122, %v1115
        %v1578 = vpack.c.bf16 %v1130, %v1123
        %v1579 = vpack.c.bf16 %v1131, %v1124
        %v1580 = vpack.c.bf16 %v1132, %v1125
        %v1581 = vpack.c.bf16 %v1133, %v1126
        %v1582 = vpack.c.bf16 %v1134, %v1127
        %v1583 = vpack.c.bf16 %v1135, %v1128
        %v1584 = vpack.c.bf16 %v1136, %v1129
        %v1585 = vpack.c.bf16 %v1144, %v1137
        %v1586 = vpack.c.bf16 %v1145, %v1138
        %v1587 = vpack.c.bf16 %v1146, %v1139
        %v1588 = vpack.c.bf16 %v1147, %v1140
        %v1589 = vpack.c.bf16 %v1148, %v1141
        %v1590 = vpack.c.bf16 %v1149, %v1142
        %v1591 = vpack.c.bf16 %v1150, %v1143
        %v1592 = vpack.c.bf16 %v1158, %v1151
        %v1593 = vpack.c.bf16 %v1159, %v1152
        %v1594 = vpack.c.bf16 %v1160, %v1153
        %v1595 = vpack.c.bf16 %v1161, %v1154
        %v1596 = vpack.c.bf16 %v1162, %v1155
        %v1597 = vpack.c.bf16 %v1163, %v1156
        %v1598 = vpack.c.bf16 %v1164, %v1157
        %v1599 = vpack.c.bf16 %v1172, %v1165
        %v1600 = vpack.c.bf16 %v1173, %v1166
        %v1601 = vpack.c.bf16 %v1174, %v1167
        %v1602 = vpack.c.bf16 %v1175, %v1168
        %v1603 = vpack.c.bf16 %v1176, %v1169
        %v1604 = vpack.c.bf16 %v1177, %v1170
        %v1605 = vpack.c.bf16 %v1178, %v1171
        %v1606 = vpack.c.bf16 %v1186, %v1179
        %v1607 = vpack.c.bf16 %v1187, %v1180
        %v1608 = vpack.c.bf16 %v1188, %v1181
        %v1609 = vpack.c.bf16 %v1189, %v1182
        %v1610 = vpack.c.bf16 %v1190, %v1183
        %v1611 = vpack.c.bf16 %v1191, %v1184
        %v1612 = vpack.c.bf16 %v1192, %v1185
        %v1613 = vpack.c.bf16 %v1200, %v1193
        %v1614 = vpack.c.bf16 %v1201, %v1194
        %v1615 = vpack.c.bf16 %v1202, %v1195
        %v1616 = vpack.c.bf16 %v1203, %v1196
        %v1617 = vpack.c.bf16 %v1204, %v1197
        %v1618 = vpack.c.bf16 %v1205, %v1198
        %v1619 = vpack.c.bf16 %v1206, %v1199
        %v1620 = vpack.c.bf16 %v1214, %v1207
        %v1621 = vpack.c.bf16 %v1215, %v1208
        %v1622 = vpack.c.bf16 %v1216, %v1209
        %v1623 = vpack.c.bf16 %v1217, %v1210
        %v1624 = vpack.c.bf16 %v1218, %v1211
        %v1625 = vpack.c.bf16 %v1219, %v1212
        %v1626 = vpack.c.bf16 %v1220, %v1213
        %v1627 = vpack.c.bf16 %v1228, %v1221
        %v1628 = vpack.c.bf16 %v1229, %v1222
        %v1629 = vpack.c.bf16 %v1230, %v1223
        %v1630 = vpack.c.bf16 %v1231, %v1224
        %v1631 = vpack.c.bf16 %v1232, %v1225
        %v1632 = vpack.c.bf16 %v1233, %v1226
        %v1633 = vpack.c.bf16 %v1234, %v1227
        %v1634 = vpack.c.bf16 %v1242, %v1235
        %v1635 = vpack.c.bf16 %v1243, %v1236
        %v1636 = vpack.c.bf16 %v1244, %v1237
        %v1637 = vpack.c.bf16 %v1245, %v1238
        %v1638 = vpack.c.bf16 %v1246, %v1239
        %v1639 = vpack.c.bf16 %v1247, %v1240
        %v1640 = vpack.c.bf16 %v1248, %v1241
        %v1641 = vpack.c.bf16 %v1256, %v1249
        %v1642 = vpack.c.bf16 %v1257, %v1250
        %v1643 = vpack.c.bf16 %v1258, %v1251
        %v1644 = vpack.c.bf16 %v1259, %v1252
        %v1645 = vpack.c.bf16 %v1260, %v1253
        %v1646 = vpack.c.bf16 %v1261, %v1254
        %v1647 = vpack.c.bf16 %v1262, %v1255
        %v1648 = vpack.c.bf16 %v1270, %v1263
        %v1649 = vpack.c.bf16 %v1271, %v1264
        %v1650 = vpack.c.bf16 %v1272, %v1265
        %v1651 = vpack.c.bf16 %v1273, %v1266
        %v1652 = vpack.c.bf16 %v1274, %v1267
        %v1653 = vpack.c.bf16 %v1275, %v1268
        %v1654 = vpack.c.bf16 %v1276, %v1269
        %v1655 = vpack.c.bf16 %v1284, %v1277
        %v1656 = vpack.c.bf16 %v1285, %v1278
        %v1657 = vpack.c.bf16 %v1286, %v1279
        %v1658 = vpack.c.bf16 %v1287, %v1280
        %v1659 = vpack.c.bf16 %v1288, %v1281
        %v1660 = vpack.c.bf16 %v1289, %v1282
        %v1661 = vpack.c.bf16 %v1290, %v1283
        %v1662 = vpack.c.bf16 %v1298, %v1291
        %v1663 = vpack.c.bf16 %v1299, %v1292
        %v1664 = vpack.c.bf16 %v1300, %v1293
        %v1665 = vpack.c.bf16 %v1301, %v1294
        %v1666 = vpack.c.bf16 %v1302, %v1295
        %v1667 = vpack.c.bf16 %v1303, %v1296
        %v1668 = vpack.c.bf16 %v1304, %v1297
        %v1669 = vpack.c.bf16 %v1312, %v1305
        %v1670 = vpack.c.bf16 %v1313, %v1306
        %v1671 = vpack.c.bf16 %v1314, %v1307
        %v1672 = vpack.c.bf16 %v1315, %v1308
        %v1673 = vpack.c.bf16 %v1316, %v1309
        %v1674 = vpack.c.bf16 %v1317, %v1310
        %v1675 = vpack.c.bf16 %v1318, %v1311
        %v1676 = vpack.c.bf16 %v1326, %v1319
        %v1677 = vpack.c.bf16 %v1327, %v1320
        %v1678 = vpack.c.bf16 %v1328, %v1321
        %v1679 = vpack.c.bf16 %v1329, %v1322
        %v1680 = vpack.c.bf16 %v1330, %v1323
        %v1681 = vpack.c.bf16 %v1331, %v1324
        %v1682 = vpack.c.bf16 %v1332, %v1325
        %v1683 = vpack.c.bf16 %v1340, %v1333
        %v1684 = vpack.c.bf16 %v1341, %v1334
        %v1685 = vpack.c.bf16 %v1342, %v1335
        %v1686 = vpack.c.bf16 %v1343, %v1336
        %v1687 = vpack.c.bf16 %v1344, %v1337
        %v1688 = vpack.c.bf16 %v1345, %v1338
        %v1689 = vpack.c.bf16 %v1346, %v1339
        %v1690 = vpack.c.bf16 %v1354, %v1347
        %v1691 = vpack.c.bf16 %v1355, %v1348
        %v1692 = vpack.c.bf16 %v1356, %v1349
        %v1693 = vpack.c.bf16 %v1357, %v1350
        %v1694 = vpack.c.bf16 %v1358, %v1351
        %v1695 = vpack.c.bf16 %v1359, %v1352
        %v1696 = vpack.c.bf16 %v1360, %v1353
        %v1697 = vpack.c.bf16 %v1368, %v1361
        %v1698 = vpack.c.bf16 %v1369, %v1362
        %v1699 = vpack.c.bf16 %v1370, %v1363
        %v1700 = vpack.c.bf16 %v1371, %v1364
        %v1701 = vpack.c.bf16 %v1372, %v1365
        %v1702 = vpack.c.bf16 %v1373, %v1366
        %v1703 = vpack.c.bf16 %v1374, %v1367
        %v1704 = vpack.c.bf16 %v1382, %v1375
        %v1705 = vpack.c.bf16 %v1383, %v1376
        %v1706 = vpack.c.bf16 %v1384, %v1377
        %v1707 = vpack.c.bf16 %v1385, %v1378
        %v1708 = vpack.c.bf16 %v1386, %v1379
        %v1709 = vpack.c.bf16 %v1387, %v1380
        %v1710 = vpack.c.bf16 %v1388, %v1381
        %v1711 = vpack.c.bf16 %v1396, %v1389
        %v1712 = vpack.c.bf16 %v1397, %v1390
        %v1713 = vpack.c.bf16 %v1398, %v1391
        %v1714 = vpack.c.bf16 %v1399, %v1392
        %v1715 = vpack.c.bf16 %v1400, %v1393
        %v1716 = vpack.c.bf16 %v1401, %v1394
        %v1717 = vpack.c.bf16 %v1402, %v1395
        %v1718 = vpack.c.bf16 %v1410, %v1403
        %v1719 = vpack.c.bf16 %v1411, %v1404
        %v1720 = vpack.c.bf16 %v1412, %v1405
        %v1721 = vpack.c.bf16 %v1413, %v1406
        %v1722 = vpack.c.bf16 %v1414, %v1407
        %v1723 = vpack.c.bf16 %v1415, %v1408
        %v1724 = vpack.c.bf16 %v1416, %v1409
        %v1725 = vpack.c.bf16 %v1417, %v1417
        %v1726 = vpack.c.bf16 %v1418, %v1418
        %v1727 = vpack.c.bf16 %v1419, %v1419
        %v1728 = vpack.c.bf16 %v1420, %v1420
        %v1729 = vpack.c.bf16 %v1421, %v1421
        %v1730 = vpack.c.bf16 %v1422, %v1422
        %v1731 = vpack.c.bf16 %v1423, %v1423
        %v2040 = vunpack.c.l.b16 %v1424
        %v2041 = vunpack.c.l.b16 %v1425
        %v2042 = vunpack.c.l.b16 %v1426
        %v2043 = vunpack.c.l.b16 %v1427
        %v2044 = vunpack.c.l.b16 %v1428
        %v2045 = vunpack.c.l.b16 %v1429
        %v2046 = vunpack.c.l.b16 %v1430
        %v2047 = vunpack.c.h.b16 %v1424
        %v2048 = vunpack.c.h.b16 %v1425
        %v2049 = vunpack.c.h.b16 %v1426
        %v2050 = vunpack.c.h.b16 %v1427
        %v2051 = vunpack.c.h.b16 %v1428
        %v2052 = vunpack.c.h.b16 %v1429
        %v2053 = vunpack.c.h.b16 %v1430
        %v2054 = vunpack.c.l.b16 %v1431
        %v2055 = vunpack.c.l.b16 %v1432
        %v2056 = vunpack.c.l.b16 %v1433
        %v2057 = vunpack.c.l.b16 %v1434
        %v2058 = vunpack.c.l.b16 %v1435
        %v2059 = vunpack.c.l.b16 %v1436
        %v2060 = vunpack.c.l.b16 %v1437
        %v2061 = vunpack.c.h.b16 %v1431
        %v2062 = vunpack.c.h.b16 %v1432
        %v2063 = vunpack.c.h.b16 %v1433
        %v2064 = vunpack.c.h.b16 %v1434
        %v2065 = vunpack.c.h.b16 %v1435
        %v2066 = vunpack.c.h.b16 %v1436
        %v2067 = vunpack.c.h.b16 %v1437
        %v2068 = vunpack.c.l.b16 %v1438
        %v2069 = vunpack.c.l.b16 %v1439
        %v2070 = vunpack.c.l.b16 %v1440
        %v2071 = vunpack.c.l.b16 %v1441
        %v2072 = vunpack.c.l.b16 %v1442
        %v2073 = vunpack.c.l.b16 %v1443
        %v2074 = vunpack.c.l.b16 %v1444
        %v2075 = vunpack.c.h.b16 %v1438
        %v2076 = vunpack.c.h.b16 %v1439
        %v2077 = vunpack.c.h.b16 %v1440
        %v2078 = vunpack.c.h.b16 %v1441
        %v2079 = vunpack.c.h.b16 %v1442
        %v2080 = vunpack.c.h.b16 %v1443
        %v2081 = vunpack.c.h.b16 %v1444
        %v2082 = vunpack.c.l.b16 %v1445
        %v2083 = vunpack.c.l.b16 %v1446
        %v2084 = vunpack.c.l.b16 %v1447
        %v2085 = vunpack.c.l.b16 %v1448
        %v2086 = vunpack.c.l.b16 %v1449
        %v2087 = vunpack.c.l.b16 %v1450
        %v2088 = vunpack.c.l.b16 %v1451
        %v2089 = vunpack.c.h.b16 %v1445
        %v2090 = vunpack.c.h.b16 %v1446
        %v2091 = vunpack.c.h.b16 %v1447
        %v2092 = vunpack.c.h.b16 %v1448
        %v2093 = vunpack.c.h.b16 %v1449
        %v2094 = vunpack.c.h.b16 %v1450
        %v2095 = vunpack.c.h.b16 %v1451
        %v2096 = vunpack.c.l.b16 %v1452
        %v2097 = vunpack.c.l.b16 %v1453
        %v2098 = vunpack.c.l.b16 %v1454
        %v2099 = vunpack.c.l.b16 %v1455
        %v2100 = vunpack.c.l.b16 %v1456
        %v2101 = vunpack.c.l.b16 %v1457
        %v2102 = vunpack.c.l.b16 %v1458
        %v2103 = vunpack.c.h.b16 %v1452
        %v2104 = vunpack.c.h.b16 %v1453
        %v2105 = vunpack.c.h.b16 %v1454
        %v2106 = vunpack.c.h.b16 %v1455
        %v2107 = vunpack.c.h.b16 %v1456
        %v2108 = vunpack.c.h.b16 %v1457
        %v2109 = vunpack.c.h.b16 %v1458
        %v2110 = vunpack.c.l.b16 %v1459
        %v2111 = vunpack.c.l.b16 %v1460
        %v2112 = vunpack.c.l.b16 %v1461
        %v2113 = vunpack.c.l.b16 %v1462
        %v2114 = vunpack.c.l.b16 %v1463
        %v2115 = vunpack.c.l.b16 %v1464
        %v2116 = vunpack.c.l.b16 %v1465
        %v2117 = vunpack.c.h.b16 %v1459
        %v2118 = vunpack.c.h.b16 %v1460
        %v2119 = vunpack.c.h.b16 %v1461
        %v2120 = vunpack.c.h.b16 %v1462
        %v2121 = vunpack.c.h.b16 %v1463
        %v2122 = vunpack.c.h.b16 %v1464
        %v2123 = vunpack.c.h.b16 %v1465
        %v2124 = vunpack.c.l.b16 %v1466
        %v2125 = vunpack.c.l.b16 %v1467
        %v2126 = vunpack.c.l.b16 %v1468
        %v2127 = vunpack.c.l.b16 %v1469
        %v2128 = vunpack.c.l.b16 %v1470
        %v2129 = vunpack.c.l.b16 %v1471
        %v2130 = vunpack.c.l.b16 %v1472
        %v2131 = vunpack.c.h.b16 %v1466
        %v2132 = vunpack.c.h.b16 %v1467
        %v2133 = vunpack.c.h.b16 %v1468
        %v2134 = vunpack.c.h.b16 %v1469
        %v2135 = vunpack.c.h.b16 %v1470
        %v2136 = vunpack.c.h.b16 %v1471
        %v2137 = vunpack.c.h.b16 %v1472
        %v2138 = vunpack.c.l.b16 %v1473
        %v2139 = vunpack.c.l.b16 %v1474
        %v2140 = vunpack.c.l.b16 %v1475
        %v2141 = vunpack.c.l.b16 %v1476
        %v2142 = vunpack.c.l.b16 %v1477
        %v2143 = vunpack.c.l.b16 %v1478
        %v2144 = vunpack.c.l.b16 %v1479
        %v2145 = vunpack.c.h.b16 %v1473
        %v2146 = vunpack.c.h.b16 %v1474
        %v2147 = vunpack.c.h.b16 %v1475
        %v2148 = vunpack.c.h.b16 %v1476
        %v2149 = vunpack.c.h.b16 %v1477
        %v2150 = vunpack.c.h.b16 %v1478
        %v2151 = vunpack.c.h.b16 %v1479
        %v2152 = vunpack.c.l.b16 %v1480
        %v2153 = vunpack.c.l.b16 %v1481
        %v2154 = vunpack.c.l.b16 %v1482
        %v2155 = vunpack.c.l.b16 %v1483
        %v2156 = vunpack.c.l.b16 %v1484
        %v2157 = vunpack.c.l.b16 %v1485
        %v2158 = vunpack.c.l.b16 %v1486
        %v2159 = vunpack.c.h.b16 %v1480
        %v2160 = vunpack.c.h.b16 %v1481
        %v2161 = vunpack.c.h.b16 %v1482
        %v2162 = vunpack.c.h.b16 %v1483
        %v2163 = vunpack.c.h.b16 %v1484
        %v2164 = vunpack.c.h.b16 %v1485
        %v2165 = vunpack.c.h.b16 %v1486
        %v2166 = vunpack.c.l.b16 %v1487
        %v2167 = vunpack.c.l.b16 %v1488
        %v2168 = vunpack.c.l.b16 %v1489
        %v2169 = vunpack.c.l.b16 %v1490
        %v2170 = vunpack.c.l.b16 %v1491
        %v2171 = vunpack.c.l.b16 %v1492
        %v2172 = vunpack.c.l.b16 %v1493
        %v2173 = vunpack.c.h.b16 %v1487
        %v2174 = vunpack.c.h.b16 %v1488
        %v2175 = vunpack.c.h.b16 %v1489
        %v2176 = vunpack.c.h.b16 %v1490
        %v2177 = vunpack.c.h.b16 %v1491
        %v2178 = vunpack.c.h.b16 %v1492
        %v2179 = vunpack.c.h.b16 %v1493
        %v2180 = vunpack.c.l.b16 %v1494
        %v2181 = vunpack.c.l.b16 %v1495
        %v2182 = vunpack.c.l.b16 %v1496
        %v2183 = vunpack.c.l.b16 %v1497
        %v2184 = vunpack.c.l.b16 %v1498
        %v2185 = vunpack.c.l.b16 %v1499
        %v2186 = vunpack.c.l.b16 %v1500
        %v2187 = vunpack.c.h.b16 %v1494
        %v2188 = vunpack.c.h.b16 %v1495
        %v2189 = vunpack.c.h.b16 %v1496
        %v2190 = vunpack.c.h.b16 %v1497
        %v2191 = vunpack.c.h.b16 %v1498
        %v2192 = vunpack.c.h.b16 %v1499
        %v2193 = vunpack.c.h.b16 %v1500
        %v2194 = vunpack.c.l.b16 %v1501
        %v2195 = vunpack.c.l.b16 %v1502
        %v2196 = vunpack.c.l.b16 %v1503
        %v2197 = vunpack.c.l.b16 %v1504
        %v2198 = vunpack.c.l.b16 %v1505
        %v2199 = vunpack.c.l.b16 %v1506
        %v2200 = vunpack.c.l.b16 %v1507
        %v2201 = vunpack.c.h.b16 %v1501
        %v2202 = vunpack.c.h.b16 %v1502
        %v2203 = vunpack.c.h.b16 %v1503
        %v2204 = vunpack.c.h.b16 %v1504
        %v2205 = vunpack.c.h.b16 %v1505
        %v2206 = vunpack.c.h.b16 %v1506
        %v2207 = vunpack.c.h.b16 %v1507
        %v2208 = vunpack.c.l.b16 %v1508
        %v2209 = vunpack.c.l.b16 %v1509
        %v2210 = vunpack.c.l.b16 %v1510
        %v2211 = vunpack.c.l.b16 %v1511
        %v2212 = vunpack.c.l.b16 %v1512
        %v2213 = vunpack.c.l.b16 %v1513
        %v2214 = vunpack.c.l.b16 %v1514
        %v2215 = vunpack.c.h.b16 %v1508
        %v2216 = vunpack.c.h.b16 %v1509
        %v2217 = vunpack.c.h.b16 %v1510
        %v2218 = vunpack.c.h.b16 %v1511
        %v2219 = vunpack.c.h.b16 %v1512
        %v2220 = vunpack.c.h.b16 %v1513
        %v2221 = vunpack.c.h.b16 %v1514
        %v2222 = vunpack.c.l.b16 %v1515
        %v2223 = vunpack.c.l.b16 %v1516
        %v2224 = vunpack.c.l.b16 %v1517
        %v2225 = vunpack.c.l.b16 %v1518
        %v2226 = vunpack.c.l.b16 %v1519
        %v2227 = vunpack.c.l.b16 %v1520
        %v2228 = vunpack.c.l.b16 %v1521
        %v2229 = vunpack.c.h.b16 %v1515
        %v2230 = vunpack.c.h.b16 %v1516
        %v2231 = vunpack.c.h.b16 %v1517
        %v2232 = vunpack.c.h.b16 %v1518
        %v2233 = vunpack.c.h.b16 %v1519
        %v2234 = vunpack.c.h.b16 %v1520
        %v2235 = vunpack.c.h.b16 %v1521
        %v2236 = vunpack.c.l.b16 %v1522
        %v2237 = vunpack.c.l.b16 %v1523
        %v2238 = vunpack.c.l.b16 %v1524
        %v2239 = vunpack.c.l.b16 %v1525
        %v2240 = vunpack.c.l.b16 %v1526
        %v2241 = vunpack.c.l.b16 %v1527
        %v2242 = vunpack.c.l.b16 %v1528
        %v2243 = vunpack.c.h.b16 %v1522
        %v2244 = vunpack.c.h.b16 %v1523
        %v2245 = vunpack.c.h.b16 %v1524
        %v2246 = vunpack.c.h.b16 %v1525
        %v2247 = vunpack.c.h.b16 %v1526
        %v2248 = vunpack.c.h.b16 %v1527
        %v2249 = vunpack.c.h.b16 %v1528
        %v2250 = vunpack.c.l.b16 %v1529
        %v2251 = vunpack.c.l.b16 %v1530
        %v2252 = vunpack.c.l.b16 %v1531
        %v2253 = vunpack.c.l.b16 %v1532
        %v2254 = vunpack.c.l.b16 %v1533
        %v2255 = vunpack.c.l.b16 %v1534
        %v2256 = vunpack.c.l.b16 %v1535
        %v2257 = vunpack.c.h.b16 %v1529
        %v2258 = vunpack.c.h.b16 %v1530
        %v2259 = vunpack.c.h.b16 %v1531
        %v2260 = vunpack.c.h.b16 %v1532
        %v2261 = vunpack.c.h.b16 %v1533
        %v2262 = vunpack.c.h.b16 %v1534
        %v2263 = vunpack.c.h.b16 %v1535
        %v2264 = vunpack.c.l.b16 %v1536
        %v2265 = vunpack.c.l.b16 %v1537
        %v2266 = vunpack.c.l.b16 %v1538
        %v2267 = vunpack.c.l.b16 %v1539
        %v2268 = vunpack.c.l.b16 %v1540
        %v2269 = vunpack.c.l.b16 %v1541
        %v2270 = vunpack.c.l.b16 %v1542
        %v2271 = vunpack.c.h.b16 %v1536
        %v2272 = vunpack.c.h.b16 %v1537
        %v2273 = vunpack.c.h.b16 %v1538
        %v2274 = vunpack.c.h.b16 %v1539
        %v2275 = vunpack.c.h.b16 %v1540
        %v2276 = vunpack.c.h.b16 %v1541
        %v2277 = vunpack.c.h.b16 %v1542
        %v2278 = vunpack.c.l.b16 %v1543
        %v2279 = vunpack.c.l.b16 %v1544
        %v2280 = vunpack.c.l.b16 %v1545
        %v2281 = vunpack.c.l.b16 %v1546
        %v2282 = vunpack.c.l.b16 %v1547
        %v2283 = vunpack.c.l.b16 %v1548
        %v2284 = vunpack.c.l.b16 %v1549
        %v2285 = vunpack.c.h.b16 %v1543
        %v2286 = vunpack.c.h.b16 %v1544
        %v2287 = vunpack.c.h.b16 %v1545
        %v2288 = vunpack.c.h.b16 %v1546
        %v2289 = vunpack.c.h.b16 %v1547
        %v2290 = vunpack.c.h.b16 %v1548
        %v2291 = vunpack.c.h.b16 %v1549
        %v2292 = vunpack.c.l.b16 %v1550
        %v2293 = vunpack.c.l.b16 %v1551
        %v2294 = vunpack.c.l.b16 %v1552
        %v2295 = vunpack.c.l.b16 %v1553
        %v2296 = vunpack.c.l.b16 %v1554
        %v2297 = vunpack.c.l.b16 %v1555
        %v2298 = vunpack.c.l.b16 %v1556
        %v2299 = vunpack.c.h.b16 %v1550
        %v2300 = vunpack.c.h.b16 %v1551
        %v2301 = vunpack.c.h.b16 %v1552
        %v2302 = vunpack.c.h.b16 %v1553
        %v2303 = vunpack.c.h.b16 %v1554
        %v2304 = vunpack.c.h.b16 %v1555
        %v2305 = vunpack.c.h.b16 %v1556
        %v2306 = vunpack.c.l.b16 %v1557
        %v2307 = vunpack.c.l.b16 %v1558
        %v2308 = vunpack.c.l.b16 %v1559
        %v2309 = vunpack.c.l.b16 %v1560
        %v2310 = vunpack.c.l.b16 %v1561
        %v2311 = vunpack.c.l.b16 %v1562
        %v2312 = vunpack.c.l.b16 %v1563
        %v2313 = vunpack.c.h.b16 %v1557
        %v2314 = vunpack.c.h.b16 %v1558
        %v2315 = vunpack.c.h.b16 %v1559
        %v2316 = vunpack.c.h.b16 %v1560
        %v2317 = vunpack.c.h.b16 %v1561
        %v2318 = vunpack.c.h.b16 %v1562
        %v2319 = vunpack.c.h.b16 %v1563
        %v2320 = vunpack.c.l.b16 %v1564
        %v2321 = vunpack.c.l.b16 %v1565
        %v2322 = vunpack.c.l.b16 %v1566
        %v2323 = vunpack.c.l.b16 %v1567
        %v2324 = vunpack.c.l.b16 %v1568
        %v2325 = vunpack.c.l.b16 %v1569
        %v2326 = vunpack.c.l.b16 %v1570
        %v2327 = vunpack.c.h.b16 %v1564
        %v2328 = vunpack.c.h.b16 %v1565
        %v2329 = vunpack.c.h.b16 %v1566
        %v2330 = vunpack.c.h.b16 %v1567
        %v2331 = vunpack.c.h.b16 %v1568
        %v2332 = vunpack.c.h.b16 %v1569
        %v2333 = vunpack.c.h.b16 %v1570
        %v2334 = vunpack.c.l.b16 %v1571
        %v2335 = vunpack.c.l.b16 %v1572
        %v2336 = vunpack.c.l.b16 %v1573
        %v2337 = vunpack.c.l.b16 %v1574
        %v2338 = vunpack.c.l.b16 %v1575
        %v2339 = vunpack.c.l.b16 %v1576
        %v2340 = vunpack.c.l.b16 %v1577
        %v2341 = vunpack.c.h.b16 %v1571
        %v2342 = vunpack.c.h.b16 %v1572
        %v2343 = vunpack.c.h.b16 %v1573
        %v2344 = vunpack.c.h.b16 %v1574
        %v2345 = vunpack.c.h.b16 %v1575
        %v2346 = vunpack.c.h.b16 %v1576
        %v2347 = vunpack.c.h.b16 %v1577
        %v2348 = vunpack.c.l.b16 %v1578
        %v2349 = vunpack.c.l.b16 %v1579
        %v2350 = vunpack.c.l.b16 %v1580
        %v2351 = vunpack.c.l.b16 %v1581
        %v2352 = vunpack.c.l.b16 %v1582
        %v2353 = vunpack.c.l.b16 %v1583
        %v2354 = vunpack.c.l.b16 %v1584
        %v2355 = vunpack.c.h.b16 %v1578
        %v2356 = vunpack.c.h.b16 %v1579
        %v2357 = vunpack.c.h.b16 %v1580
        %v2358 = vunpack.c.h.b16 %v1581
        %v2359 = vunpack.c.h.b16 %v1582
        %v2360 = vunpack.c.h.b16 %v1583
        %v2361 = vunpack.c.h.b16 %v1584
        %v2362 = vunpack.c.l.b16 %v1585
        %v2363 = vunpack.c.l.b16 %v1586
        %v2364 = vunpack.c.l.b16 %v1587
        %v2365 = vunpack.c.l.b16 %v1588
        %v2366 = vunpack.c.l.b16 %v1589
        %v2367 = vunpack.c.l.b16 %v1590
        %v2368 = vunpack.c.l.b16 %v1591
        %v2369 = vunpack.c.h.b16 %v1585
        %v2370 = vunpack.c.h.b16 %v1586
        %v2371 = vunpack.c.h.b16 %v1587
        %v2372 = vunpack.c.h.b16 %v1588
        %v2373 = vunpack.c.h.b16 %v1589
        %v2374 = vunpack.c.h.b16 %v1590
        %v2375 = vunpack.c.h.b16 %v1591
        %v2376 = vunpack.c.l.b16 %v1592
        %v2377 = vunpack.c.l.b16 %v1593
        %v2378 = vunpack.c.l.b16 %v1594
        %v2379 = vunpack.c.l.b16 %v1595
        %v2380 = vunpack.c.l.b16 %v1596
        %v2381 = vunpack.c.l.b16 %v1597
        %v2382 = vunpack.c.l.b16 %v1598
        %v2383 = vunpack.c.h.b16 %v1592
        %v2384 = vunpack.c.h.b16 %v1593
        %v2385 = vunpack.c.h.b16 %v1594
        %v2386 = vunpack.c.h.b16 %v1595
        %v2387 = vunpack.c.h.b16 %v1596
        %v2388 = vunpack.c.h.b16 %v1597
        %v2389 = vunpack.c.h.b16 %v1598
        %v2390 = vunpack.c.l.b16 %v1599
        %v2391 = vunpack.c.l.b16 %v1600
        %v2392 = vunpack.c.l.b16 %v1601
        %v2393 = vunpack.c.l.b16 %v1602
        %v2394 = vunpack.c.l.b16 %v1603
        %v2395 = vunpack.c.l.b16 %v1604
        %v2396 = vunpack.c.l.b16 %v1605
        %v2397 = vunpack.c.h.b16 %v1599
        %v2398 = vunpack.c.h.b16 %v1600
        %v2399 = vunpack.c.h.b16 %v1601
        %v2400 = vunpack.c.h.b16 %v1602
        %v2401 = vunpack.c.h.b16 %v1603
        %v2402 = vunpack.c.h.b16 %v1604
        %v2403 = vunpack.c.h.b16 %v1605
        %v2404 = vunpack.c.l.b16 %v1606
        %v2405 = vunpack.c.l.b16 %v1607
        %v2406 = vunpack.c.l.b16 %v1608
        %v2407 = vunpack.c.l.b16 %v1609
        %v2408 = vunpack.c.l.b16 %v1610
        %v2409 = vunpack.c.l.b16 %v1611
        %v2410 = vunpack.c.l.b16 %v1612
        %v2411 = vunpack.c.h.b16 %v1606
        %v2412 = vunpack.c.h.b16 %v1607
        %v2413 = vunpack.c.h.b16 %v1608
        %v2414 = vunpack.c.h.b16 %v1609
        %v2415 = vunpack.c.h.b16 %v1610
        %v2416 = vunpack.c.h.b16 %v1611
        %v2417 = vunpack.c.h.b16 %v1612
        %v2418 = vunpack.c.l.b16 %v1613
        %v2419 = vunpack.c.l.b16 %v1614
        %v2420 = vunpack.c.l.b16 %v1615
        %v2421 = vunpack.c.l.b16 %v1616
        %v2422 = vunpack.c.l.b16 %v1617
        %v2423 = vunpack.c.l.b16 %v1618
        %v2424 = vunpack.c.l.b16 %v1619
        %v2425 = vunpack.c.h.b16 %v1613
        %v2426 = vunpack.c.h.b16 %v1614
        %v2427 = vunpack.c.h.b16 %v1615
        %v2428 = vunpack.c.h.b16 %v1616
        %v2429 = vunpack.c.h.b16 %v1617
        %v2430 = vunpack.c.h.b16 %v1618
        %v2431 = vunpack.c.h.b16 %v1619
        %v2432 = vunpack.c.l.b16 %v1620
        %v2433 = vunpack.c.l.b16 %v1621
        %v2434 = vunpack.c.l.b16 %v1622
        %v2435 = vunpack.c.l.b16 %v1623
        %v2436 = vunpack.c.l.b16 %v1624
        %v2437 = vunpack.c.l.b16 %v1625
        %v2438 = vunpack.c.l.b16 %v1626
        %v2439 = vunpack.c.h.b16 %v1620
        %v2440 = vunpack.c.h.b16 %v1621
        %v2441 = vunpack.c.h.b16 %v1622
        %v2442 = vunpack.c.h.b16 %v1623
        %v2443 = vunpack.c.h.b16 %v1624
        %v2444 = vunpack.c.h.b16 %v1625
        %v2445 = vunpack.c.h.b16 %v1626
        %v2446 = vunpack.c.l.b16 %v1627
        %v2447 = vunpack.c.l.b16 %v1628
        %v2448 = vunpack.c.l.b16 %v1629
        %v2449 = vunpack.c.l.b16 %v1630
        %v2450 = vunpack.c.l.b16 %v1631
        %v2451 = vunpack.c.l.b16 %v1632
        %v2452 = vunpack.c.l.b16 %v1633
        %v2453 = vunpack.c.h.b16 %v1627
        %v2454 = vunpack.c.h.b16 %v1628
        %v2455 = vunpack.c.h.b16 %v1629
        %v2456 = vunpack.c.h.b16 %v1630
        %v2457 = vunpack.c.h.b16 %v1631
        %v2458 = vunpack.c.h.b16 %v1632
        %v2459 = vunpack.c.h.b16 %v1633
        %v2460 = vunpack.c.l.b16 %v1634
        %v2461 = vunpack.c.l.b16 %v1635
        %v2462 = vunpack.c.l.b16 %v1636
        %v2463 = vunpack.c.l.b16 %v1637
        %v2464 = vunpack.c.l.b16 %v1638
        %v2465 = vunpack.c.l.b16 %v1639
        %v2466 = vunpack.c.l.b16 %v1640
        %v2467 = vunpack.c.h.b16 %v1634
        %v2468 = vunpack.c.h.b16 %v1635
        %v2469 = vunpack.c.h.b16 %v1636
        %v2470 = vunpack.c.h.b16 %v1637
        %v2471 = vunpack.c.h.b16 %v1638
        %v2472 = vunpack.c.h.b16 %v1639
        %v2473 = vunpack.c.h.b16 %v1640
        %v2474 = vunpack.c.l.b16 %v1641
        %v2475 = vunpack.c.l.b16 %v1642
        %v2476 = vunpack.c.l.b16 %v1643
        %v2477 = vunpack.c.l.b16 %v1644
        %v2478 = vunpack.c.l.b16 %v1645
        %v2479 = vunpack.c.l.b16 %v1646
        %v2480 = vunpack.c.l.b16 %v1647
        %v2481 = vunpack.c.h.b16 %v1641
        %v2482 = vunpack.c.h.b16 %v1642
        %v2483 = vunpack.c.h.b16 %v1643
        %v2484 = vunpack.c.h.b16 %v1644
        %v2485 = vunpack.c.h.b16 %v1645
        %v2486 = vunpack.c.h.b16 %v1646
        %v2487 = vunpack.c.h.b16 %v1647
        %v2488 = vunpack.c.l.b16 %v1648
        %v2489 = vunpack.c.l.b16 %v1649
        %v2490 = vunpack.c.l.b16 %v1650
        %v2491 = vunpack.c.l.b16 %v1651
        %v2492 = vunpack.c.l.b16 %v1652
        %v2493 = vunpack.c.l.b16 %v1653
        %v2494 = vunpack.c.l.b16 %v1654
        %v2495 = vunpack.c.h.b16 %v1648
        %v2496 = vunpack.c.h.b16 %v1649
        %v2497 = vunpack.c.h.b16 %v1650
        %v2498 = vunpack.c.h.b16 %v1651
        %v2499 = vunpack.c.h.b16 %v1652
        %v2500 = vunpack.c.h.b16 %v1653
        %v2501 = vunpack.c.h.b16 %v1654
        %v2502 = vunpack.c.l.b16 %v1655
        %v2503 = vunpack.c.l.b16 %v1656
        %v2504 = vunpack.c.l.b16 %v1657
        %v2505 = vunpack.c.l.b16 %v1658
        %v2506 = vunpack.c.l.b16 %v1659
        %v2507 = vunpack.c.l.b16 %v1660
        %v2508 = vunpack.c.l.b16 %v1661
        %v2509 = vunpack.c.h.b16 %v1655
        %v2510 = vunpack.c.h.b16 %v1656
        %v2511 = vunpack.c.h.b16 %v1657
        %v2512 = vunpack.c.h.b16 %v1658
        %v2513 = vunpack.c.h.b16 %v1659
        %v2514 = vunpack.c.h.b16 %v1660
        %v2515 = vunpack.c.h.b16 %v1661
        %v2516 = vunpack.c.l.b16 %v1662
        %v2517 = vunpack.c.l.b16 %v1663
        %v2518 = vunpack.c.l.b16 %v1664
        %v2519 = vunpack.c.l.b16 %v1665
        %v2520 = vunpack.c.l.b16 %v1666
        %v2521 = vunpack.c.l.b16 %v1667
        %v2522 = vunpack.c.l.b16 %v1668
        %v2523 = vunpack.c.h.b16 %v1662
        %v2524 = vunpack.c.h.b16 %v1663
        %v2525 = vunpack.c.h.b16 %v1664
        %v2526 = vunpack.c.h.b16 %v1665
        %v2527 = vunpack.c.h.b16 %v1666
        %v2528 = vunpack.c.h.b16 %v1667
        %v2529 = vunpack.c.h.b16 %v1668
        %v2530 = vunpack.c.l.b16 %v1669
        %v2531 = vunpack.c.l.b16 %v1670
        %v2532 = vunpack.c.l.b16 %v1671
        %v2533 = vunpack.c.l.b16 %v1672
        %v2534 = vunpack.c.l.b16 %v1673
        %v2535 = vunpack.c.l.b16 %v1674
        %v2536 = vunpack.c.l.b16 %v1675
        %v2537 = vunpack.c.h.b16 %v1669
        %v2538 = vunpack.c.h.b16 %v1670
        %v2539 = vunpack.c.h.b16 %v1671
        %v2540 = vunpack.c.h.b16 %v1672
        %v2541 = vunpack.c.h.b16 %v1673
        %v2542 = vunpack.c.h.b16 %v1674
        %v2543 = vunpack.c.h.b16 %v1675
        %v2544 = vunpack.c.l.b16 %v1676
        %v2545 = vunpack.c.l.b16 %v1677
        %v2546 = vunpack.c.l.b16 %v1678
        %v2547 = vunpack.c.l.b16 %v1679
        %v2548 = vunpack.c.l.b16 %v1680
        %v2549 = vunpack.c.l.b16 %v1681
        %v2550 = vunpack.c.l.b16 %v1682
        %v2551 = vunpack.c.h.b16 %v1676
        %v2552 = vunpack.c.h.b16 %v1677
        %v2553 = vunpack.c.h.b16 %v1678
        %v2554 = vunpack.c.h.b16 %v1679
        %v2555 = vunpack.c.h.b16 %v1680
        %v2556 = vunpack.c.h.b16 %v1681
        %v2557 = vunpack.c.h.b16 %v1682
        %v2558 = vunpack.c.l.b16 %v1683
        %v2559 = vunpack.c.l.b16 %v1684
        %v2560 = vunpack.c.l.b16 %v1685
        %v2561 = vunpack.c.l.b16 %v1686
        %v2562 = vunpack.c.l.b16 %v1687
        %v2563 = vunpack.c.l.b16 %v1688
        %v2564 = vunpack.c.l.b16 %v1689
        %v2565 = vunpack.c.h.b16 %v1683
        %v2566 = vunpack.c.h.b16 %v1684
        %v2567 = vunpack.c.h.b16 %v1685
        %v2568 = vunpack.c.h.b16 %v1686
        %v2569 = vunpack.c.h.b16 %v1687
        %v2570 = vunpack.c.h.b16 %v1688
        %v2571 = vunpack.c.h.b16 %v1689
        %v2572 = vunpack.c.l.b16 %v1690
        %v2573 = vunpack.c.l.b16 %v1691
        %v2574 = vunpack.c.l.b16 %v1692
        %v2575 = vunpack.c.l.b16 %v1693
        %v2576 = vunpack.c.l.b16 %v1694
        %v2577 = vunpack.c.l.b16 %v1695
        %v2578 = vunpack.c.l.b16 %v1696
        %v2579 = vunpack.c.h.b16 %v1690
        %v2580 = vunpack.c.h.b16 %v1691
        %v2581 = vunpack.c.h.b16 %v1692
        %v2582 = vunpack.c.h.b16 %v1693
        %v2583 = vunpack.c.h.b16 %v1694
        %v2584 = vunpack.c.h.b16 %v1695
        %v2585 = vunpack.c.h.b16 %v1696
        %v2586 = vunpack.c.l.b16 %v1697
        %v2587 = vunpack.c.l.b16 %v1698
        %v2588 = vunpack.c.l.b16 %v1699
        %v2589 = vunpack.c.l.b16 %v1700
        %v2590 = vunpack.c.l.b16 %v1701
        %v2591 = vunpack.c.l.b16 %v1702
        %v2592 = vunpack.c.l.b16 %v1703
        %v2593 = vunpack.c.h.b16 %v1697
        %v2594 = vunpack.c.h.b16 %v1698
        %v2595 = vunpack.c.h.b16 %v1699
        %v2596 = vunpack.c.h.b16 %v1700
        %v2597 = vunpack.c.h.b16 %v1701
        %v2598 = vunpack.c.h.b16 %v1702
        %v2599 = vunpack.c.h.b16 %v1703
        %v2600 = vunpack.c.l.b16 %v1704
        %v2601 = vunpack.c.l.b16 %v1705
        %v2602 = vunpack.c.l.b16 %v1706
        %v2603 = vunpack.c.l.b16 %v1707
        %v2604 = vunpack.c.l.b16 %v1708
        %v2605 = vunpack.c.l.b16 %v1709
        %v2606 = vunpack.c.l.b16 %v1710
        %v2607 = vunpack.c.h.b16 %v1704
        %v2608 = vunpack.c.h.b16 %v1705
        %v2609 = vunpack.c.h.b16 %v1706
        %v2610 = vunpack.c.h.b16 %v1707
        %v2611 = vunpack.c.h.b16 %v1708
        %v2612 = vunpack.c.h.b16 %v1709
        %v2613 = vunpack.c.h.b16 %v1710
        %v2614 = vunpack.c.l.b16 %v1711
        %v2615 = vunpack.c.l.b16 %v1712
        %v2616 = vunpack.c.l.b16 %v1713
        %v2617 = vunpack.c.l.b16 %v1714
        %v2618 = vunpack.c.l.b16 %v1715
        %v2619 = vunpack.c.l.b16 %v1716
        %v2620 = vunpack.c.l.b16 %v1717
        %v2621 = vunpack.c.h.b16 %v1711
        %v2622 = vunpack.c.h.b16 %v1712
        %v2623 = vunpack.c.h.b16 %v1713
        %v2624 = vunpack.c.h.b16 %v1714
        %v2625 = vunpack.c.h.b16 %v1715
        %v2626 = vunpack.c.h.b16 %v1716
        %v2627 = vunpack.c.h.b16 %v1717
        %v2628 = vunpack.c.l.b16 %v1718
        %v2629 = vunpack.c.l.b16 %v1719
        %v2630 = vunpack.c.l.b16 %v1720
        %v2631 = vunpack.c.l.b16 %v1721
        %v2632 = vunpack.c.l.b16 %v1722
        %v2633 = vunpack.c.l.b16 %v1723
        %v2634 = vunpack.c.l.b16 %v1724
        %v2635 = vunpack.c.h.b16 %v1718
        %v2636 = vunpack.c.h.b16 %v1719
        %v2637 = vunpack.c.h.b16 %v1720
        %v2638 = vunpack.c.h.b16 %v1721
        %v2639 = vunpack.c.h.b16 %v1722
        %v2640 = vunpack.c.h.b16 %v1723
        %v2641 = vunpack.c.h.b16 %v1724
        %v2642 = vunpack.c.l.b16 %v1725
        %v2643 = vunpack.c.l.b16 %v1726
        %v2644 = vunpack.c.l.b16 %v1727
        %v2645 = vunpack.c.l.b16 %v1728
        %v2646 = vunpack.c.l.b16 %v1729
        %v2647 = vunpack.c.l.b16 %v1730
        %v2648 = vunpack.c.l.b16 %v1731
        %v2649 = vpack.c.b16 %v2041, %v2040
        %v2650 = vpack.c.b16 %v2043, %v2042
        %v2651 = vpack.c.b16 %v2045, %v2044
        %v2652 = vpack.c.b16 %v2046, %v2046
        %v2653 = vpack.c.b16 %v2048, %v2047
        %v2654 = vpack.c.b16 %v2050, %v2049
        %v2655 = vpack.c.b16 %v2052, %v2051
        %v2656 = vpack.c.b16 %v2053, %v2053
        %v2657 = vpack.c.b16 %v2055, %v2054
        %v2658 = vpack.c.b16 %v2057, %v2056
        %v2659 = vpack.c.b16 %v2059, %v2058
        %v2660 = vpack.c.b16 %v2060, %v2060
        %v2661 = vpack.c.b16 %v2062, %v2061
        %v2662 = vpack.c.b16 %v2064, %v2063
        %v2663 = vpack.c.b16 %v2066, %v2065
        %v2664 = vpack.c.b16 %v2067, %v2067
        %v2665 = vpack.c.b16 %v2069, %v2068
        %v2666 = vpack.c.b16 %v2071, %v2070
        %v2667 = vpack.c.b16 %v2073, %v2072
        %v2668 = vpack.c.b16 %v2074, %v2074
        %v2669 = vpack.c.b16 %v2076, %v2075
        %v2670 = vpack.c.b16 %v2078, %v2077
        %v2671 = vpack.c.b16 %v2080, %v2079
        %v2672 = vpack.c.b16 %v2081, %v2081
        %v2673 = vpack.c.b16 %v2083, %v2082
        %v2674 = vpack.c.b16 %v2085, %v2084
        %v2675 = vpack.c.b16 %v2087, %v2086
        %v2676 = vpack.c.b16 %v2088, %v2088
        %v2677 = vpack.c.b16 %v2090, %v2089
        %v2678 = vpack.c.b16 %v2092, %v2091
        %v2679 = vpack.c.b16 %v2094, %v2093
        %v2680 = vpack.c.b16 %v2095, %v2095
        %v2681 = vpack.c.b16 %v2097, %v2096
        %v2682 = vpack.c.b16 %v2099, %v2098
        %v2683 = vpack.c.b16 %v2101, %v2100
        %v2684 = vpack.c.b16 %v2102, %v2102
        %v2685 = vpack.c.b16 %v2104, %v2103
        %v2686 = vpack.c.b16 %v2106, %v2105
        %v2687 = vpack.c.b16 %v2108, %v2107
        %v2688 = vpack.c.b16 %v2109, %v2109
        %v2689 = vpack.c.b16 %v2111, %v2110
        %v2690 = vpack.c.b16 %v2113, %v2112
        %v2691 = vpack.c.b16 %v2115, %v2114
        %v2692 = vpack.c.b16 %v2116, %v2116
        %v2693 = vpack.c.b16 %v2118, %v2117
        %v2694 = vpack.c.b16 %v2120, %v2119
        %v2695 = vpack.c.b16 %v2122, %v2121
        %v2696 = vpack.c.b16 %v2123, %v2123
        %v2697 = vpack.c.b16 %v2125, %v2124
        %v2698 = vpack.c.b16 %v2127, %v2126
        %v2699 = vpack.c.b16 %v2129, %v2128
        %v2700 = vpack.c.b16 %v2130, %v2130
        %v2701 = vpack.c.b16 %v2132, %v2131
        %v2702 = vpack.c.b16 %v2134, %v2133
        %v2703 = vpack.c.b16 %v2136, %v2135
        %v2704 = vpack.c.b16 %v2137, %v2137
        %v2705 = vpack.c.b16 %v2139, %v2138
        %v2706 = vpack.c.b16 %v2141, %v2140
        %v2707 = vpack.c.b16 %v2143, %v2142
        %v2708 = vpack.c.b16 %v2144, %v2144
        %v2709 = vpack.c.b16 %v2146, %v2145
        %v2710 = vpack.c.b16 %v2148, %v2147
        %v2711 = vpack.c.b16 %v2150, %v2149
        %v2712 = vpack.c.b16 %v2151, %v2151
        %v2713 = vpack.c.b16 %v2153, %v2152
        %v2714 = vpack.c.b16 %v2155, %v2154
        %v2715 = vpack.c.b16 %v2157, %v2156
        %v2716 = vpack.c.b16 %v2158, %v2158
        %v2717 = vpack.c.b16 %v2160, %v2159
        %v2718 = vpack.c.b16 %v2162, %v2161
        %v2719 = vpack.c.b16 %v2164, %v2163
        %v2720 = vpack.c.b16 %v2165, %v2165
        %v2721 = vpack.c.b16 %v2167, %v2166
        %v2722 = vpack.c.b16 %v2169, %v2168
        %v2723 = vpack.c.b16 %v2171, %v2170
        %v2724 = vpack.c.b16 %v2172, %v2172
        %v2725 = vpack.c.b16 %v2174, %v2173
        %v2726 = vpack.c.b16 %v2176, %v2175
        %v2727 = vpack.c.b16 %v2178, %v2177
        %v2728 = vpack.c.b16 %v2179, %v2179
        %v2729 = vpack.c.b16 %v2181, %v2180
        %v2730 = vpack.c.b16 %v2183, %v2182
        %v2731 = vpack.c.b16 %v2185, %v2184
        %v2732 = vpack.c.b16 %v2186, %v2186
        %v2733 = vpack.c.b16 %v2188, %v2187
        %v2734 = vpack.c.b16 %v2190, %v2189
        %v2735 = vpack.c.b16 %v2192, %v2191
        %v2736 = vpack.c.b16 %v2193, %v2193
        %v2737 = vpack.c.b16 %v2195, %v2194
        %v2738 = vpack.c.b16 %v2197, %v2196
        %v2739 = vpack.c.b16 %v2199, %v2198
        %v2740 = vpack.c.b16 %v2200, %v2200
        %v2741 = vpack.c.b16 %v2202, %v2201
        %v2742 = vpack.c.b16 %v2204, %v2203
        %v2743 = vpack.c.b16 %v2206, %v2205
        %v2744 = vpack.c.b16 %v2207, %v2207
        %v2745 = vpack.c.b16 %v2209, %v2208
        %v2746 = vpack.c.b16 %v2211, %v2210
        %v2747 = vpack.c.b16 %v2213, %v2212
        %v2748 = vpack.c.b16 %v2214, %v2214
        %v2749 = vpack.c.b16 %v2216, %v2215
        %v2750 = vpack.c.b16 %v2218, %v2217
        %v2751 = vpack.c.b16 %v2220, %v2219
        %v2752 = vpack.c.b16 %v2221, %v2221
        %v2753 = vpack.c.b16 %v2223, %v2222
        %v2754 = vpack.c.b16 %v2225, %v2224
        %v2755 = vpack.c.b16 %v2227, %v2226
        %v2756 = vpack.c.b16 %v2228, %v2228
        %v2757 = vpack.c.b16 %v2230, %v2229
        %v2758 = vpack.c.b16 %v2232, %v2231
        %v2759 = vpack.c.b16 %v2234, %v2233
        %v2760 = vpack.c.b16 %v2235, %v2235
        %v2761 = vpack.c.b16 %v2237, %v2236
        %v2762 = vpack.c.b16 %v2239, %v2238
        %v2763 = vpack.c.b16 %v2241, %v2240
        %v2764 = vpack.c.b16 %v2242, %v2242
        %v2765 = vpack.c.b16 %v2244, %v2243
        %v2766 = vpack.c.b16 %v2246, %v2245
        %v2767 = vpack.c.b16 %v2248, %v2247
        %v2768 = vpack.c.b16 %v2249, %v2249
        %v2769 = vpack.c.b16 %v2251, %v2250
        %v2770 = vpack.c.b16 %v2253, %v2252
        %v2771 = vpack.c.b16 %v2255, %v2254
        %v2772 = vpack.c.b16 %v2256, %v2256
        %v2773 = vpack.c.b16 %v2258, %v2257
        %v2774 = vpack.c.b16 %v2260, %v2259
        %v2775 = vpack.c.b16 %v2262, %v2261
        %v2776 = vpack.c.b16 %v2263, %v2263
        %v2777 = vpack.c.b16 %v2265, %v2264
        %v2778 = vpack.c.b16 %v2267, %v2266
        %v2779 = vpack.c.b16 %v2269, %v2268
        %v2780 = vpack.c.b16 %v2270, %v2270
        %v2781 = vpack.c.b16 %v2272, %v2271
        %v2782 = vpack.c.b16 %v2274, %v2273
        %v2783 = vpack.c.b16 %v2276, %v2275
        %v2784 = vpack.c.b16 %v2277, %v2277
        %v2785 = vpack.c.b16 %v2279, %v2278
        %v2786 = vpack.c.b16 %v2281, %v2280
        %v2787 = vpack.c.b16 %v2283, %v2282
        %v2788 = vpack.c.b16 %v2284, %v2284
        %v2789 = vpack.c.b16 %v2286, %v2285
        %v2790 = vpack.c.b16 %v2288, %v2287
        %v2791 = vpack.c.b16 %v2290, %v2289
        %v2792 = vpack.c.b16 %v2291, %v2291
        %v2793 = vpack.c.b16 %v2293, %v2292
        %v2794 = vpack.c.b16 %v2295, %v2294
        %v2795 = vpack.c.b16 %v2297, %v2296
        %v2796 = vpack.c.b16 %v2298, %v2298
        %v2797 = vpack.c.b16 %v2300, %v2299
        %v2798 = vpack.c.b16 %v2302, %v2301
        %v2799 = vpack.c.b16 %v2304, %v2303
        %v2800 = vpack.c.b16 %v2305, %v2305
        %v2801 = vpack.c.b16 %v2307, %v2306
        %v2802 = vpack.c.b16 %v2309, %v2308
        %v2803 = vpack.c.b16 %v2311, %v2310
        %v2804 = vpack.c.b16 %v2312, %v2312
        %v2805 = vpack.c.b16 %v2314, %v2313
        %v2806 = vpack.c.b16 %v2316, %v2315
        %v2807 = vpack.c.b16 %v2318, %v2317
        %v2808 = vpack.c.b16 %v2319, %v2319
        %v2809 = vpack.c.b16 %v2321, %v2320
        %v2810 = vpack.c.b16 %v2323, %v2322
        %v2811 = vpack.c.b16 %v2325, %v2324
        %v2812 = vpack.c.b16 %v2326, %v2326
        %v2813 = vpack.c.b16 %v2328, %v2327
        %v2814 = vpack.c.b16 %v2330, %v2329
        %v2815 = vpack.c.b16 %v2332, %v2331
        %v2816 = vpack.c.b16 %v2333, %v2333
        %v2817 = vpack.c.b16 %v2335, %v2334
        %v2818 = vpack.c.b16 %v2337, %v2336
        %v2819 = vpack.c.b16 %v2339, %v2338
        %v2820 = vpack.c.b16 %v2340, %v2340
        %v2821 = vpack.c.b16 %v2342, %v2341
        %v2822 = vpack.c.b16 %v2344, %v2343
        %v2823 = vpack.c.b16 %v2346, %v2345
        %v2824 = vpack.c.b16 %v2347, %v2347
        %v2825 = vpack.c.b16 %v2349, %v2348
        %v2826 = vpack.c.b16 %v2351, %v2350
        %v2827 = vpack.c.b16 %v2353, %v2352
        %v2828 = vpack.c.b16 %v2354, %v2354
        %v2829 = vpack.c.b16 %v2356, %v2355
        %v2830 = vpack.c.b16 %v2358, %v2357
        %v2831 = vpack.c.b16 %v2360, %v2359
        %v2832 = vpack.c.b16 %v2361, %v2361
        %v2833 = vpack.c.b16 %v2363, %v2362
        %v2834 = vpack.c.b16 %v2365, %v2364
        %v2835 = vpack.c.b16 %v2367, %v2366
        %v2836 = vpack.c.b16 %v2368, %v2368
        %v2837 = vpack.c.b16 %v2370, %v2369
        %v2838 = vpack.c.b16 %v2372, %v2371
        %v2839 = vpack.c.b16 %v2374, %v2373
        %v2840 = vpack.c.b16 %v2375, %v2375
        %v2841 = vpack.c.b16 %v2377, %v2376
        %v2842 = vpack.c.b16 %v2379, %v2378
        %v2843 = vpack.c.b16 %v2381, %v2380
        %v2844 = vpack.c.b16 %v2382, %v2382
        %v2845 = vpack.c.b16 %v2384, %v2383
        %v2846 = vpack.c.b16 %v2386, %v2385
        %v2847 = vpack.c.b16 %v2388, %v2387
        %v2848 = vpack.c.b16 %v2389, %v2389
        %v2849 = vpack.c.b16 %v2391, %v2390
        %v2850 = vpack.c.b16 %v2393, %v2392
        %v2851 = vpack.c.b16 %v2395, %v2394
        %v2852 = vpack.c.b16 %v2396, %v2396
        %v2853 = vpack.c.b16 %v2398, %v2397
        %v2854 = vpack.c.b16 %v2400, %v2399
        %v2855 = vpack.c.b16 %v2402, %v2401
        %v2856 = vpack.c.b16 %v2403, %v2403
        %v2857 = vpack.c.b16 %v2405, %v2404
        %v2858 = vpack.c.b16 %v2407, %v2406
        %v2859 = vpack.c.b16 %v2409, %v2408
        %v2860 = vpack.c.b16 %v2410, %v2410
        %v2861 = vpack.c.b16 %v2412, %v2411
        %v2862 = vpack.c.b16 %v2414, %v2413
        %v2863 = vpack.c.b16 %v2416, %v2415
        %v2864 = vpack.c.b16 %v2417, %v2417
        %v2865 = vpack.c.b16 %v2419, %v2418
        %v2866 = vpack.c.b16 %v2421, %v2420
        %v2867 = vpack.c.b16 %v2423, %v2422
        %v2868 = vpack.c.b16 %v2424, %v2424
        %v2869 = vpack.c.b16 %v2426, %v2425
        %v2870 = vpack.c.b16 %v2428, %v2427
        %v2871 = vpack.c.b16 %v2430, %v2429
        %v2872 = vpack.c.b16 %v2431, %v2431
        %v2873 = vpack.c.b16 %v2433, %v2432
        %v2874 = vpack.c.b16 %v2435, %v2434
        %v2875 = vpack.c.b16 %v2437, %v2436
        %v2876 = vpack.c.b16 %v2438, %v2438
        %v2877 = vpack.c.b16 %v2440, %v2439
        %v2878 = vpack.c.b16 %v2442, %v2441
        %v2879 = vpack.c.b16 %v2444, %v2443
        %v2880 = vpack.c.b16 %v2445, %v2445
        %v2881 = vpack.c.b16 %v2447, %v2446
        %v2882 = vpack.c.b16 %v2449, %v2448
        %v2883 = vpack.c.b16 %v2451, %v2450
        %v2884 = vpack.c.b16 %v2452, %v2452
        %v2885 = vpack.c.b16 %v2454, %v2453
        %v2886 = vpack.c.b16 %v2456, %v2455
        %v2887 = vpack.c.b16 %v2458, %v2457
        %v2888 = vpack.c.b16 %v2459, %v2459
        %v2889 = vpack.c.b16 %v2461, %v2460
        %v2890 = vpack.c.b16 %v2463, %v2462
        %v2891 = vpack.c.b16 %v2465, %v2464
        %v2892 = vpack.c.b16 %v2466, %v2466
        %v2893 = vpack.c.b16 %v2468, %v2467
        %v2894 = vpack.c.b16 %v2470, %v2469
        %v2895 = vpack.c.b16 %v2472, %v2471
        %v2896 = vpack.c.b16 %v2473, %v2473
        %v2897 = vpack.c.b16 %v2475, %v2474
        %v2898 = vpack.c.b16 %v2477, %v2476
        %v2899 = vpack.c.b16 %v2479, %v2478
        %v2900 = vpack.c.b16 %v2480, %v2480
        %v2901 = vpack.c.b16 %v2482, %v2481
        %v2902 = vpack.c.b16 %v2484, %v2483
        %v2903 = vpack.c.b16 %v2486, %v2485
        %v2904 = vpack.c.b16 %v2487, %v2487
        %v2905 = vpack.c.b16 %v2489, %v2488
        %v2906 = vpack.c.b16 %v2491, %v2490
        %v2907 = vpack.c.b16 %v2493, %v2492
        %v2908 = vpack.c.b16 %v2494, %v2494
        %v2909 = vpack.c.b16 %v2496, %v2495
        %v2910 = vpack.c.b16 %v2498, %v2497
        %v2911 = vpack.c.b16 %v2500, %v2499
        %v2912 = vpack.c.b16 %v2501, %v2501
        %v2913 = vpack.c.b16 %v2503, %v2502
        %v2914 = vpack.c.b16 %v2505, %v2504
        %v2915 = vpack.c.b16 %v2507, %v2506
        %v2916 = vpack.c.b16 %v2508, %v2508
        %v2917 = vpack.c.b16 %v2510, %v2509
        %v2918 = vpack.c.b16 %v2512, %v2511
        %v2919 = vpack.c.b16 %v2514, %v2513
        %v2920 = vpack.c.b16 %v2515, %v2515
        %v2921 = vpack.c.b16 %v2517, %v2516
        %v2922 = vpack.c.b16 %v2519, %v2518
        %v2923 = vpack.c.b16 %v2521, %v2520
        %v2924 = vpack.c.b16 %v2522, %v2522
        %v2925 = vpack.c.b16 %v2524, %v2523
        %v2926 = vpack.c.b16 %v2526, %v2525
        %v2927 = vpack.c.b16 %v2528, %v2527
        %v2928 = vpack.c.b16 %v2529, %v2529
        %v2929 = vpack.c.b16 %v2531, %v2530
        %v2930 = vpack.c.b16 %v2533, %v2532
        %v2931 = vpack.c.b16 %v2535, %v2534
        %v2932 = vpack.c.b16 %v2536, %v2536
        %v2933 = vpack.c.b16 %v2538, %v2537
        %v2934 = vpack.c.b16 %v2540, %v2539
        %v2935 = vpack.c.b16 %v2542, %v2541
        %v2936 = vpack.c.b16 %v2543, %v2543
        %v2937 = vpack.c.b16 %v2545, %v2544
        %v2938 = vpack.c.b16 %v2547, %v2546
        %v2939 = vpack.c.b16 %v2549, %v2548
        %v2940 = vpack.c.b16 %v2550, %v2550
        %v2941 = vpack.c.b16 %v2552, %v2551
        %v2942 = vpack.c.b16 %v2554, %v2553
        %v2943 = vpack.c.b16 %v2556, %v2555
        %v2944 = vpack.c.b16 %v2557, %v2557
        %v2945 = vpack.c.b16 %v2559, %v2558
        %v2946 = vpack.c.b16 %v2561, %v2560
        %v2947 = vpack.c.b16 %v2563, %v2562
        %v2948 = vpack.c.b16 %v2564, %v2564
        %v2949 = vpack.c.b16 %v2566, %v2565
        %v2950 = vpack.c.b16 %v2568, %v2567
        %v2951 = vpack.c.b16 %v2570, %v2569
        %v2952 = vpack.c.b16 %v2571, %v2571
        %v2953 = vpack.c.b16 %v2573, %v2572
        %v2954 = vpack.c.b16 %v2575, %v2574
        %v2955 = vpack.c.b16 %v2577, %v2576
        %v2956 = vpack.c.b16 %v2578, %v2578
        %v2957 = vpack.c.b16 %v2580, %v2579
        %v2958 = vpack.c.b16 %v2582, %v2581
        %v2959 = vpack.c.b16 %v2584, %v2583
        %v2960 = vpack.c.b16 %v2585, %v2585
        %v2961 = vpack.c.b16 %v2587, %v2586
        %v2962 = vpack.c.b16 %v2589, %v2588
        %v2963 = vpack.c.b16 %v2591, %v2590
        %v2964 = vpack.c.b16 %v2592, %v2592
        %v2965 = vpack.c.b16 %v2594, %v2593
        %v2966 = vpack.c.b16 %v2596, %v2595
        %v2967 = vpack.c.b16 %v2598, %v2597
        %v2968 = vpack.c.b16 %v2599, %v2599
        %v2969 = vpack.c.b16 %v2601, %v2600
        %v2970 = vpack.c.b16 %v2603, %v2602
        %v2971 = vpack.c.b16 %v2605, %v2604
        %v2972 = vpack.c.b16 %v2606, %v2606
        %v2973 = vpack.c.b16 %v2608, %v2607
        %v2974 = vpack.c.b16 %v2610, %v2609
        %v2975 = vpack.c.b16 %v2612, %v2611
        %v2976 = vpack.c.b16 %v2613, %v2613
        %v2977 = vpack.c.b16 %v2615, %v2614
        %v2978 = vpack.c.b16 %v2617, %v2616
        %v2979 = vpack.c.b16 %v2619, %v2618
        %v2980 = vpack.c.b16 %v2620, %v2620
        %v2981 = vpack.c.b16 %v2622, %v2621
        %v2982 = vpack.c.b16 %v2624, %v2623
        %v2983 = vpack.c.b16 %v2626, %v2625
        %v2984 = vpack.c.b16 %v2627, %v2627
        %v2985 = vpack.c.b16 %v2629, %v2628
        %v2986 = vpack.c.b16 %v2631, %v2630
        %v2987 = vpack.c.b16 %v2633, %v2632
        %v2988 = vpack.c.b16 %v2634, %v2634
        %v2989 = vpack.c.b16 %v2636, %v2635
        %v2990 = vpack.c.b16 %v2638, %v2637
        %v2991 = vpack.c.b16 %v2640, %v2639
        %v2992 = vpack.c.b16 %v2641, %v2641
        %v2993 = vpack.c.b16 %v2643, %v2642
        %v2994 = vpack.c.b16 %v2645, %v2644
        %v2995 = vpack.c.b16 %v2647, %v2646
        %v2996 = vpack.c.b16 %v2648, %v2648
        %3345 = vst [vmem:[#allocation2] sm:$0xff] %v2649
        %3346 = vst [vmem:[#allocation2 + $0x8] sm:$0xff] %v2650
        %3347 = vst [vmem:[#allocation2 + $0x10] sm:$0xff] %v2651
        %vm3348 = vcmask 125952
        %3349 = vst.msk [vmem:[#allocation2 + $0x18] sm:$0xf] %vm3348, %v2652
        %3350 = vst [vmem:[#allocation2 + $0x1c] sm:$0xff] %v2653
        %3351 = vst [vmem:[#allocation2 + $0x24] sm:$0xff] %v2654
        %3352 = vst [vmem:[#allocation2 + $0x2c] sm:$0xff] %v2655
        %3353 = vst.msk [vmem:[#allocation2 + $0x34] sm:$0xf] %vm3348, %v2656
        %3354 = vst [vmem:[#allocation2 + $0x38] sm:$0xff] %v2657
        %3355 = vst [vmem:[#allocation2 + $0x40] sm:$0xff] %v2658
        %3356 = vst [vmem:[#allocation2 + $0x48] sm:$0xff] %v2659
        %3357 = vst.msk [vmem:[#allocation2 + $0x50] sm:$0xf] %vm3348, %v2660
        %3358 = vst [vmem:[#allocation2 + $0x54] sm:$0xff] %v2661
        %3359 = vst [vmem:[#allocation2 + $0x5c] sm:$0xff] %v2662
        %3360 = vst [vmem:[#allocation2 + $0x64] sm:$0xff] %v2663
        %3361 = vst.msk [vmem:[#allocation2 + $0x6c] sm:$0xf] %vm3348, %v2664
        %3362 = vst [vmem:[#allocation2 + $0x70] sm:$0xff] %v2665
        %3363 = vst [vmem:[#allocation2 + $0x78] sm:$0xff] %v2666
        %3364 = vst [vmem:[#allocation2 + $0x80] sm:$0xff] %v2667
        %3365 = vst.msk [vmem:[#allocation2 + $0x88] sm:$0xf] %vm3348, %v2668
        %3366 = vst [vmem:[#allocation2 + $0x8c] sm:$0xff] %v2669
        %3367 = vst [vmem:[#allocation2 + $0x94] sm:$0xff] %v2670
        %3368 = vst [vmem:[#allocation2 + $0x9c] sm:$0xff] %v2671
        %3369 = vst.msk [vmem:[#allocation2 + $0xa4] sm:$0xf] %vm3348, %v2672
        %3370 = vst [vmem:[#allocation2 + $0xa8] sm:$0xff] %v2673
        %3371 = vst [vmem:[#allocation2 + $0xb0] sm:$0xff] %v2674
        %3372 = vst [vmem:[#allocation2 + $0xb8] sm:$0xff] %v2675
        %3373 = vst.msk [vmem:[#allocation2 + $0xc0] sm:$0xf] %vm3348, %v2676
        %3374 = vst [vmem:[#allocation2 + $0xc4] sm:$0xff] %v2677
        %3375 = vst [vmem:[#allocation2 + $0xcc] sm:$0xff] %v2678
        %3376 = vst [vmem:[#allocation2 + $0xd4] sm:$0xff] %v2679
        %3377 = vst.msk [vmem:[#allocation2 + $0xdc] sm:$0xf] %vm3348, %v2680
        %3378 = vst [vmem:[#allocation2 + $0xe0] sm:$0xff] %v2681
        %3379 = vst [vmem:[#allocation2 + $0xe8] sm:$0xff] %v2682
        %3380 = vst [vmem:[#allocation2 + $0xf0] sm:$0xff] %v2683
        %3381 = vst.msk [vmem:[#allocation2 + $0xf8] sm:$0xf] %vm3348, %v2684
        %3382 = vst [vmem:[#allocation2 + $0xfc] sm:$0xff] %v2685
        %3383 = vst [vmem:[#allocation2 + $0x104] sm:$0xff] %v2686
        %3384 = vst [vmem:[#allocation2 + $0x10c] sm:$0xff] %v2687
        %3385 = vst.msk [vmem:[#allocation2 + $0x114] sm:$0xf] %vm3348, %v2688
        %3386 = vst [vmem:[#allocation2 + $0x118] sm:$0xff] %v2689
        %3387 = vst [vmem:[#allocation2 + $0x120] sm:$0xff] %v2690
        %3388 = vst [vmem:[#allocation2 + $0x128] sm:$0xff] %v2691
        %3389 = vst.msk [vmem:[#allocation2 + $0x130] sm:$0xf] %vm3348, %v2692
        %3390 = vst [vmem:[#allocation2 + $0x134] sm:$0xff] %v2693
        %3391 = vst [vmem:[#allocation2 + $0x13c] sm:$0xff] %v2694
        %3392 = vst [vmem:[#allocation2 + $0x144] sm:$0xff] %v2695
        %3393 = vst.msk [vmem:[#allocation2 + $0x14c] sm:$0xf] %vm3348, %v2696
        %3394 = vst [vmem:[#allocation2 + $0x150] sm:$0xff] %v2697
        %3395 = vst [vmem:[#allocation2 + $0x158] sm:$0xff] %v2698
        %3396 = vst [vmem:[#allocation2 + $0x160] sm:$0xff] %v2699
        %3397 = vst.msk [vmem:[#allocation2 + $0x168] sm:$0xf] %vm3348, %v2700
        %3398 = vst [vmem:[#allocation2 + $0x16c] sm:$0xff] %v2701
        %3399 = vst [vmem:[#allocation2 + $0x174] sm:$0xff] %v2702
        %3400 = vst [vmem:[#allocation2 + $0x17c] sm:$0xff] %v2703
        %3401 = vst.msk [vmem:[#allocation2 + $0x184] sm:$0xf] %vm3348, %v2704
        %3402 = vst [vmem:[#allocation2 + $0x188] sm:$0xff] %v2705
        %3403 = vst [vmem:[#allocation2 + $0x190] sm:$0xff] %v2706
        %3404 = vst [vmem:[#allocation2 + $0x198] sm:$0xff] %v2707
        %3405 = vst.msk [vmem:[#allocation2 + $0x1a0] sm:$0xf] %vm3348, %v2708
        %3406 = vst [vmem:[#allocation2 + $0x1a4] sm:$0xff] %v2709
        %3407 = vst [vmem:[#allocation2 + $0x1ac] sm:$0xff] %v2710
        %3408 = vst [vmem:[#allocation2 + $0x1b4] sm:$0xff] %v2711
        %3409 = vst.msk [vmem:[#allocation2 + $0x1bc] sm:$0xf] %vm3348, %v2712
        %3410 = vst [vmem:[#allocation2 + $0x1c0] sm:$0xff] %v2713
        %3411 = vst [vmem:[#allocation2 + $0x1c8] sm:$0xff] %v2714
        %3412 = vst [vmem:[#allocation2 + $0x1d0] sm:$0xff] %v2715
        %3413 = vst.msk [vmem:[#allocation2 + $0x1d8] sm:$0xf] %vm3348, %v2716
        %3414 = vst [vmem:[#allocation2 + $0x1dc] sm:$0xff] %v2717
        %3415 = vst [vmem:[#allocation2 + $0x1e4] sm:$0xff] %v2718
        %3416 = vst [vmem:[#allocation2 + $0x1ec] sm:$0xff] %v2719
        %3417 = vst.msk [vmem:[#allocation2 + $0x1f4] sm:$0xf] %vm3348, %v2720
        %3418 = vst [vmem:[#allocation2 + $0x1f8] sm:$0xff] %v2721
        %3419 = vst [vmem:[#allocation2 + $0x200] sm:$0xff] %v2722
        %3420 = vst [vmem:[#allocation2 + $0x208] sm:$0xff] %v2723
        %3421 = vst.msk [vmem:[#allocation2 + $0x210] sm:$0xf] %vm3348, %v2724
        %3422 = vst [vmem:[#allocation2 + $0x214] sm:$0xff] %v2725
        %3423 = vst [vmem:[#allocation2 + $0x21c] sm:$0xff] %v2726
        %3424 = vst [vmem:[#allocation2 + $0x224] sm:$0xff] %v2727
        %3425 = vst.msk [vmem:[#allocation2 + $0x22c] sm:$0xf] %vm3348, %v2728
        %3426 = vst [vmem:[#allocation2 + $0x230] sm:$0xff] %v2729
        %3427 = vst [vmem:[#allocation2 + $0x238] sm:$0xff] %v2730
        %3428 = vst [vmem:[#allocation2 + $0x240] sm:$0xff] %v2731
        %3429 = vst.msk [vmem:[#allocation2 + $0x248] sm:$0xf] %vm3348, %v2732
        %3430 = vst [vmem:[#allocation2 + $0x24c] sm:$0xff] %v2733
        %3431 = vst [vmem:[#allocation2 + $0x254] sm:$0xff] %v2734
        %3432 = vst [vmem:[#allocation2 + $0x25c] sm:$0xff] %v2735
        %3433 = vst.msk [vmem:[#allocation2 + $0x264] sm:$0xf] %vm3348, %v2736
        %3434 = vst [vmem:[#allocation2 + $0x268] sm:$0xff] %v2737
        %3435 = vst [vmem:[#allocation2 + $0x270] sm:$0xff] %v2738
        %3436 = vst [vmem:[#allocation2 + $0x278] sm:$0xff] %v2739
        %3437 = vst.msk [vmem:[#allocation2 + $0x280] sm:$0xf] %vm3348, %v2740
        %3438 = vst [vmem:[#allocation2 + $0x284] sm:$0xff] %v2741
        %3439 = vst [vmem:[#allocation2 + $0x28c] sm:$0xff] %v2742
        %3440 = vst [vmem:[#allocation2 + $0x294] sm:$0xff] %v2743
        %3441 = vst.msk [vmem:[#allocation2 + $0x29c] sm:$0xf] %vm3348, %v2744
        %3442 = vst [vmem:[#allocation2 + $0x2a0] sm:$0xff] %v2745
        %3443 = vst [vmem:[#allocation2 + $0x2a8] sm:$0xff] %v2746
        %3444 = vst [vmem:[#allocation2 + $0x2b0] sm:$0xff] %v2747
        %3445 = vst.msk [vmem:[#allocation2 + $0x2b8] sm:$0xf] %vm3348, %v2748
        %3446 = vst [vmem:[#allocation2 + $0x2bc] sm:$0xff] %v2749
        %3447 = vst [vmem:[#allocation2 + $0x2c4] sm:$0xff] %v2750
        %3448 = vst [vmem:[#allocation2 + $0x2cc] sm:$0xff] %v2751
        %3449 = vst.msk [vmem:[#allocation2 + $0x2d4] sm:$0xf] %vm3348, %v2752
        %3450 = vst [vmem:[#allocation2 + $0x2d8] sm:$0xff] %v2753
        %3451 = vst [vmem:[#allocation2 + $0x2e0] sm:$0xff] %v2754
        %3452 = vst [vmem:[#allocation2 + $0x2e8] sm:$0xff] %v2755
        %3453 = vst.msk [vmem:[#allocation2 + $0x2f0] sm:$0xf] %vm3348, %v2756
        %3454 = vst [vmem:[#allocation2 + $0x2f4] sm:$0xff] %v2757
        %3455 = vst [vmem:[#allocation2 + $0x2fc] sm:$0xff] %v2758
        %3456 = vst [vmem:[#allocation2 + $0x304] sm:$0xff] %v2759
        %3457 = vst.msk [vmem:[#allocation2 + $0x30c] sm:$0xf] %vm3348, %v2760
        %3458 = vst [vmem:[#allocation2 + $0x310] sm:$0xff] %v2761
        %3459 = vst [vmem:[#allocation2 + $0x318] sm:$0xff] %v2762
        %3460 = vst [vmem:[#allocation2 + $0x320] sm:$0xff] %v2763
        %3461 = vst.msk [vmem:[#allocation2 + $0x328] sm:$0xf] %vm3348, %v2764
        %3462 = vst [vmem:[#allocation2 + $0x32c] sm:$0xff] %v2765
        %3463 = vst [vmem:[#allocation2 + $0x334] sm:$0xff] %v2766
        %3464 = vst [vmem:[#allocation2 + $0x33c] sm:$0xff] %v2767
        %3465 = vst.msk [vmem:[#allocation2 + $0x344] sm:$0xf] %vm3348, %v2768
        %3466 = vst [vmem:[#allocation2 + $0x348] sm:$0xff] %v2769
        %3467 = vst [vmem:[#allocation2 + $0x350] sm:$0xff] %v2770
        %3468 = vst [vmem:[#allocation2 + $0x358] sm:$0xff] %v2771
        %3469 = vst.msk [vmem:[#allocation2 + $0x360] sm:$0xf] %vm3348, %v2772
        %3470 = vst [vmem:[#allocation2 + $0x364] sm:$0xff] %v2773
        %3471 = vst [vmem:[#allocation2 + $0x36c] sm:$0xff] %v2774
        %3472 = vst [vmem:[#allocation2 + $0x374] sm:$0xff] %v2775
        %3473 = vst.msk [vmem:[#allocation2 + $0x37c] sm:$0xf] %vm3348, %v2776
        %3474 = vst [vmem:[#allocation2 + $0x380] sm:$0xff] %v2777
        %3475 = vst [vmem:[#allocation2 + $0x388] sm:$0xff] %v2778
        %3476 = vst [vmem:[#allocation2 + $0x390] sm:$0xff] %v2779
        %3477 = vst.msk [vmem:[#allocation2 + $0x398] sm:$0xf] %vm3348, %v2780
        %3478 = vst [vmem:[#allocation2 + $0x39c] sm:$0xff] %v2781
        %3479 = vst [vmem:[#allocation2 + $0x3a4] sm:$0xff] %v2782
        %3480 = vst [vmem:[#allocation2 + $0x3ac] sm:$0xff] %v2783
        %3481 = vst.msk [vmem:[#allocation2 + $0x3b4] sm:$0xf] %vm3348, %v2784
        %3482 = vst [vmem:[#allocation2 + $0x3b8] sm:$0xff] %v2785
        %3483 = vst [vmem:[#allocation2 + $0x3c0] sm:$0xff] %v2786
        %3484 = vst [vmem:[#allocation2 + $0x3c8] sm:$0xff] %v2787
        %3485 = vst.msk [vmem:[#allocation2 + $0x3d0] sm:$0xf] %vm3348, %v2788
        %3486 = vst [vmem:[#allocation2 + $0x3d4] sm:$0xff] %v2789
        %3487 = vst [vmem:[#allocation2 + $0x3dc] sm:$0xff] %v2790
        %3488 = vst [vmem:[#allocation2 + $0x3e4] sm:$0xff] %v2791
        %3489 = vst.msk [vmem:[#allocation2 + $0x3ec] sm:$0xf] %vm3348, %v2792
        %3490 = vst [vmem:[#allocation2 + $0x3f0] sm:$0xff] %v2793
        %3491 = vst [vmem:[#allocation2 + $0x3f8] sm:$0xff] %v2794
        %3492 = vst [vmem:[#allocation2 + $0x400] sm:$0xff] %v2795
        %3493 = vst.msk [vmem:[#allocation2 + $0x408] sm:$0xf] %vm3348, %v2796
        %3494 = vst [vmem:[#allocation2 + $0x40c] sm:$0xff] %v2797
        %3495 = vst [vmem:[#allocation2 + $0x414] sm:$0xff] %v2798
        %3496 = vst [vmem:[#allocation2 + $0x41c] sm:$0xff] %v2799
        %3497 = vst.msk [vmem:[#allocation2 + $0x424] sm:$0xf] %vm3348, %v2800
        %3498 = vst [vmem:[#allocation2 + $0x428] sm:$0xff] %v2801
        %3499 = vst [vmem:[#allocation2 + $0x430] sm:$0xff] %v2802
        %3500 = vst [vmem:[#allocation2 + $0x438] sm:$0xff] %v2803
        %3501 = vst.msk [vmem:[#allocation2 + $0x440] sm:$0xf] %vm3348, %v2804
        %3502 = vst [vmem:[#allocation2 + $0x444] sm:$0xff] %v2805
        %3503 = vst [vmem:[#allocation2 + $0x44c] sm:$0xff] %v2806
        %3504 = vst [vmem:[#allocation2 + $0x454] sm:$0xff] %v2807
        %3505 = vst.msk [vmem:[#allocation2 + $0x45c] sm:$0xf] %vm3348, %v2808
        %3506 = vst [vmem:[#allocation2 + $0x460] sm:$0xff] %v2809
        %3507 = vst [vmem:[#allocation2 + $0x468] sm:$0xff] %v2810
        %3508 = vst [vmem:[#allocation2 + $0x470] sm:$0xff] %v2811
        %3509 = vst.msk [vmem:[#allocation2 + $0x478] sm:$0xf] %vm3348, %v2812
        %3510 = vst [vmem:[#allocation2 + $0x47c] sm:$0xff] %v2813
        %3511 = vst [vmem:[#allocation2 + $0x484] sm:$0xff] %v2814
        %3512 = vst [vmem:[#allocation2 + $0x48c] sm:$0xff] %v2815
        %3513 = vst.msk [vmem:[#allocation2 + $0x494] sm:$0xf] %vm3348, %v2816
        %3514 = vst [vmem:[#allocation2 + $0x498] sm:$0xff] %v2817
        %3515 = vst [vmem:[#allocation2 + $0x4a0] sm:$0xff] %v2818
        %3516 = vst [vmem:[#allocation2 + $0x4a8] sm:$0xff] %v2819
        %3517 = vst.msk [vmem:[#allocation2 + $0x4b0] sm:$0xf] %vm3348, %v2820
        %3518 = vst [vmem:[#allocation2 + $0x4b4] sm:$0xff] %v2821
        %3519 = vst [vmem:[#allocation2 + $0x4bc] sm:$0xff] %v2822
        %3520 = vst [vmem:[#allocation2 + $0x4c4] sm:$0xff] %v2823
        %3521 = vst.msk [vmem:[#allocation2 + $0x4cc] sm:$0xf] %vm3348, %v2824
        %3522 = vst [vmem:[#allocation2 + $0x4d0] sm:$0xff] %v2825
        %3523 = vst [vmem:[#allocation2 + $0x4d8] sm:$0xff] %v2826
        %3524 = vst [vmem:[#allocation2 + $0x4e0] sm:$0xff] %v2827
        %3525 = vst.msk [vmem:[#allocation2 + $0x4e8] sm:$0xf] %vm3348, %v2828
        %3526 = vst [vmem:[#allocation2 + $0x4ec] sm:$0xff] %v2829
        %3527 = vst [vmem:[#allocation2 + $0x4f4] sm:$0xff] %v2830
        %3528 = vst [vmem:[#allocation2 + $0x4fc] sm:$0xff] %v2831
        %3529 = vst.msk [vmem:[#allocation2 + $0x504] sm:$0xf] %vm3348, %v2832
        %3530 = vst [vmem:[#allocation2 + $0x508] sm:$0xff] %v2833
        %3531 = vst [vmem:[#allocation2 + $0x510] sm:$0xff] %v2834
        %3532 = vst [vmem:[#allocation2 + $0x518] sm:$0xff] %v2835
        %3533 = vst.msk [vmem:[#allocation2 + $0x520] sm:$0xf] %vm3348, %v2836
        %3534 = vst [vmem:[#allocation2 + $0x524] sm:$0xff] %v2837
        %3535 = vst [vmem:[#allocation2 + $0x52c] sm:$0xff] %v2838
        %3536 = vst [vmem:[#allocation2 + $0x534] sm:$0xff] %v2839
        %3537 = vst.msk [vmem:[#allocation2 + $0x53c] sm:$0xf] %vm3348, %v2840
        %3538 = vst [vmem:[#allocation2 + $0x540] sm:$0xff] %v2841
        %3539 = vst [vmem:[#allocation2 + $0x548] sm:$0xff] %v2842
        %3540 = vst [vmem:[#allocation2 + $0x550] sm:$0xff] %v2843
        %3541 = vst.msk [vmem:[#allocation2 + $0x558] sm:$0xf] %vm3348, %v2844
        %3542 = vst [vmem:[#allocation2 + $0x55c] sm:$0xff] %v2845
        %3543 = vst [vmem:[#allocation2 + $0x564] sm:$0xff] %v2846
        %3544 = vst [vmem:[#allocation2 + $0x56c] sm:$0xff] %v2847
        %3545 = vst.msk [vmem:[#allocation2 + $0x574] sm:$0xf] %vm3348, %v2848
        %3546 = vst [vmem:[#allocation2 + $0x578] sm:$0xff] %v2849
        %3547 = vst [vmem:[#allocation2 + $0x580] sm:$0xff] %v2850
        %3548 = vst [vmem:[#allocation2 + $0x588] sm:$0xff] %v2851
        %3549 = vst.msk [vmem:[#allocation2 + $0x590] sm:$0xf] %vm3348, %v2852
        %3550 = vst [vmem:[#allocation2 + $0x594] sm:$0xff] %v2853
        %3551 = vst [vmem:[#allocation2 + $0x59c] sm:$0xff] %v2854
        %3552 = vst [vmem:[#allocation2 + $0x5a4] sm:$0xff] %v2855
        %3553 = vst.msk [vmem:[#allocation2 + $0x5ac] sm:$0xf] %vm3348, %v2856
        %3554 = vst [vmem:[#allocation2 + $0x5b0] sm:$0xff] %v2857
        %3555 = vst [vmem:[#allocation2 + $0x5b8] sm:$0xff] %v2858
        %3556 = vst [vmem:[#allocation2 + $0x5c0] sm:$0xff] %v2859
        %3557 = vst.msk [vmem:[#allocation2 + $0x5c8] sm:$0xf] %vm3348, %v2860
        %3558 = vst [vmem:[#allocation2 + $0x5cc] sm:$0xff] %v2861
        %3559 = vst [vmem:[#allocation2 + $0x5d4] sm:$0xff] %v2862
        %3560 = vst [vmem:[#allocation2 + $0x5dc] sm:$0xff] %v2863
        %3561 = vst.msk [vmem:[#allocation2 + $0x5e4] sm:$0xf] %vm3348, %v2864
        %3562 = vst [vmem:[#allocation2 + $0x5e8] sm:$0xff] %v2865
        %3563 = vst [vmem:[#allocation2 + $0x5f0] sm:$0xff] %v2866
        %3564 = vst [vmem:[#allocation2 + $0x5f8] sm:$0xff] %v2867
        %3565 = vst.msk [vmem:[#allocation2 + $0x600] sm:$0xf] %vm3348, %v2868
        %3566 = vst [vmem:[#allocation2 + $0x604] sm:$0xff] %v2869
        %3567 = vst [vmem:[#allocation2 + $0x60c] sm:$0xff] %v2870
        %3568 = vst [vmem:[#allocation2 + $0x614] sm:$0xff] %v2871
        %3569 = vst.msk [vmem:[#allocation2 + $0x61c] sm:$0xf] %vm3348, %v2872
        %3570 = vst [vmem:[#allocation2 + $0x620] sm:$0xff] %v2873
        %3571 = vst [vmem:[#allocation2 + $0x628] sm:$0xff] %v2874
        %3572 = vst [vmem:[#allocation2 + $0x630] sm:$0xff] %v2875
        %3573 = vst.msk [vmem:[#allocation2 + $0x638] sm:$0xf] %vm3348, %v2876
        %3574 = vst [vmem:[#allocation2 + $0x63c] sm:$0xff] %v2877
        %3575 = vst [vmem:[#allocation2 + $0x644] sm:$0xff] %v2878
        %3576 = vst [vmem:[#allocation2 + $0x64c] sm:$0xff] %v2879
        %3577 = vst.msk [vmem:[#allocation2 + $0x654] sm:$0xf] %vm3348, %v2880
        %3578 = vst [vmem:[#allocation2 + $0x658] sm:$0xff] %v2881
        %3579 = vst [vmem:[#allocation2 + $0x660] sm:$0xff] %v2882
        %3580 = vst [vmem:[#allocation2 + $0x668] sm:$0xff] %v2883
        %3581 = vst.msk [vmem:[#allocation2 + $0x670] sm:$0xf] %vm3348, %v2884
        %3582 = vst [vmem:[#allocation2 + $0x674] sm:$0xff] %v2885
        %3583 = vst [vmem:[#allocation2 + $0x67c] sm:$0xff] %v2886
        %3584 = vst [vmem:[#allocation2 + $0x684] sm:$0xff] %v2887
        %3585 = vst.msk [vmem:[#allocation2 + $0x68c] sm:$0xf] %vm3348, %v2888
        %3586 = vst [vmem:[#allocation2 + $0x690] sm:$0xff] %v2889
        %3587 = vst [vmem:[#allocation2 + $0x698] sm:$0xff] %v2890
        %3588 = vst [vmem:[#allocation2 + $0x6a0] sm:$0xff] %v2891
        %3589 = vst.msk [vmem:[#allocation2 + $0x6a8] sm:$0xf] %vm3348, %v2892
        %3590 = vst [vmem:[#allocation2 + $0x6ac] sm:$0xff] %v2893
        %3591 = vst [vmem:[#allocation2 + $0x6b4] sm:$0xff] %v2894
        %3592 = vst [vmem:[#allocation2 + $0x6bc] sm:$0xff] %v2895
        %3593 = vst.msk [vmem:[#allocation2 + $0x6c4] sm:$0xf] %vm3348, %v2896
        %3594 = vst [vmem:[#allocation2 + $0x6c8] sm:$0xff] %v2897
        %3595 = vst [vmem:[#allocation2 + $0x6d0] sm:$0xff] %v2898
        %3596 = vst [vmem:[#allocation2 + $0x6d8] sm:$0xff] %v2899
        %3597 = vst.msk [vmem:[#allocation2 + $0x6e0] sm:$0xf] %vm3348, %v2900
        %3598 = vst [vmem:[#allocation2 + $0x6e4] sm:$0xff] %v2901
        %3599 = vst [vmem:[#allocation2 + $0x6ec] sm:$0xff] %v2902
        %3600 = vst [vmem:[#allocation2 + $0x6f4] sm:$0xff] %v2903
        %3601 = vst.msk [vmem:[#allocation2 + $0x6fc] sm:$0xf] %vm3348, %v2904
        %3602 = vst [vmem:[#allocation2 + $0x700] sm:$0xff] %v2905
        %3603 = vst [vmem:[#allocation2 + $0x708] sm:$0xff] %v2906
        %3604 = vst [vmem:[#allocation2 + $0x710] sm:$0xff] %v2907
        %3605 = vst.msk [vmem:[#allocation2 + $0x718] sm:$0xf] %vm3348, %v2908
        %3606 = vst [vmem:[#allocation2 + $0x71c] sm:$0xff] %v2909
        %3607 = vst [vmem:[#allocation2 + $0x724] sm:$0xff] %v2910
        %3608 = vst [vmem:[#allocation2 + $0x72c] sm:$0xff] %v2911
        %3609 = vst.msk [vmem:[#allocation2 + $0x734] sm:$0xf] %vm3348, %v2912
        %3610 = vst [vmem:[#allocation2 + $0x738] sm:$0xff] %v2913
        %3611 = vst [vmem:[#allocation2 + $0x740] sm:$0xff] %v2914
        %3612 = vst [vmem:[#allocation2 + $0x748] sm:$0xff] %v2915
        %3613 = vst.msk [vmem:[#allocation2 + $0x750] sm:$0xf] %vm3348, %v2916
        %3614 = vst [vmem:[#allocation2 + $0x754] sm:$0xff] %v2917
        %3615 = vst [vmem:[#allocation2 + $0x75c] sm:$0xff] %v2918
        %3616 = vst [vmem:[#allocation2 + $0x764] sm:$0xff] %v2919
        %3617 = vst.msk [vmem:[#allocation2 + $0x76c] sm:$0xf] %vm3348, %v2920
        %3618 = vst [vmem:[#allocation2 + $0x770] sm:$0xff] %v2921
        %3619 = vst [vmem:[#allocation2 + $0x778] sm:$0xff] %v2922
        %3620 = vst [vmem:[#allocation2 + $0x780] sm:$0xff] %v2923
        %3621 = vst.msk [vmem:[#allocation2 + $0x788] sm:$0xf] %vm3348, %v2924
        %3622 = vst [vmem:[#allocation2 + $0x78c] sm:$0xff] %v2925
        %3623 = vst [vmem:[#allocation2 + $0x794] sm:$0xff] %v2926
        %3624 = vst [vmem:[#allocation2 + $0x79c] sm:$0xff] %v2927
        %3625 = vst.msk [vmem:[#allocation2 + $0x7a4] sm:$0xf] %vm3348, %v2928
        %3626 = vst [vmem:[#allocation2 + $0x7a8] sm:$0xff] %v2929
        %3627 = vst [vmem:[#allocation2 + $0x7b0] sm:$0xff] %v2930
        %3628 = vst [vmem:[#allocation2 + $0x7b8] sm:$0xff] %v2931
        %3629 = vst.msk [vmem:[#allocation2 + $0x7c0] sm:$0xf] %vm3348, %v2932
        %3630 = vst [vmem:[#allocation2 + $0x7c4] sm:$0xff] %v2933
        %3631 = vst [vmem:[#allocation2 + $0x7cc] sm:$0xff] %v2934
        %3632 = vst [vmem:[#allocation2 + $0x7d4] sm:$0xff] %v2935
        %3633 = vst.msk [vmem:[#allocation2 + $0x7dc] sm:$0xf] %vm3348, %v2936
        %3634 = vst [vmem:[#allocation2 + $0x7e0] sm:$0xff] %v2937
        %3635 = vst [vmem:[#allocation2 + $0x7e8] sm:$0xff] %v2938
        %3636 = vst [vmem:[#allocation2 + $0x7f0] sm:$0xff] %v2939
        %3637 = vst.msk [vmem:[#allocation2 + $0x7f8] sm:$0xf] %vm3348, %v2940
        %3638 = vst [vmem:[#allocation2 + $0x7fc] sm:$0xff] %v2941
        %3639 = vst [vmem:[#allocation2 + $0x804] sm:$0xff] %v2942
        %3640 = vst [vmem:[#allocation2 + $0x80c] sm:$0xff] %v2943
        %3641 = vst.msk [vmem:[#allocation2 + $0x814] sm:$0xf] %vm3348, %v2944
        %3642 = vst [vmem:[#allocation2 + $0x818] sm:$0xff] %v2945
        %3643 = vst [vmem:[#allocation2 + $0x820] sm:$0xff] %v2946
        %3644 = vst [vmem:[#allocation2 + $0x828] sm:$0xff] %v2947
        %3645 = vst.msk [vmem:[#allocation2 + $0x830] sm:$0xf] %vm3348, %v2948
        %3646 = vst [vmem:[#allocation2 + $0x834] sm:$0xff] %v2949
        %3647 = vst [vmem:[#allocation2 + $0x83c] sm:$0xff] %v2950
        %3648 = vst [vmem:[#allocation2 + $0x844] sm:$0xff] %v2951
        %3649 = vst.msk [vmem:[#allocation2 + $0x84c] sm:$0xf] %vm3348, %v2952
        %3650 = vst [vmem:[#allocation2 + $0x850] sm:$0xff] %v2953
        %3651 = vst [vmem:[#allocation2 + $0x858] sm:$0xff] %v2954
        %3652 = vst [vmem:[#allocation2 + $0x860] sm:$0xff] %v2955
        %3653 = vst.msk [vmem:[#allocation2 + $0x868] sm:$0xf] %vm3348, %v2956
        %3654 = vst [vmem:[#allocation2 + $0x86c] sm:$0xff] %v2957
        %3655 = vst [vmem:[#allocation2 + $0x874] sm:$0xff] %v2958
        %3656 = vst [vmem:[#allocation2 + $0x87c] sm:$0xff] %v2959
        %3657 = vst.msk [vmem:[#allocation2 + $0x884] sm:$0xf] %vm3348, %v2960
        %3658 = vst [vmem:[#allocation2 + $0x888] sm:$0xff] %v2961
        %3659 = vst [vmem:[#allocation2 + $0x890] sm:$0xff] %v2962
        %3660 = vst [vmem:[#allocation2 + $0x898] sm:$0xff] %v2963
        %3661 = vst.msk [vmem:[#allocation2 + $0x8a0] sm:$0xf] %vm3348, %v2964
        %3662 = vst [vmem:[#allocation2 + $0x8a4] sm:$0xff] %v2965
        %3663 = vst [vmem:[#allocation2 + $0x8ac] sm:$0xff] %v2966
        %3664 = vst [vmem:[#allocation2 + $0x8b4] sm:$0xff] %v2967
        %3665 = vst.msk [vmem:[#allocation2 + $0x8bc] sm:$0xf] %vm3348, %v2968
        %3666 = vst [vmem:[#allocation2 + $0x8c0] sm:$0xff] %v2969
        %3667 = vst [vmem:[#allocation2 + $0x8c8] sm:$0xff] %v2970
        %3668 = vst [vmem:[#allocation2 + $0x8d0] sm:$0xff] %v2971
        %3669 = vst.msk [vmem:[#allocation2 + $0x8d8] sm:$0xf] %vm3348, %v2972
        %3670 = vst [vmem:[#allocation2 + $0x8dc] sm:$0xff] %v2973
        %3671 = vst [vmem:[#allocation2 + $0x8e4] sm:$0xff] %v2974
        %3672 = vst [vmem:[#allocation2 + $0x8ec] sm:$0xff] %v2975
        %3673 = vst.msk [vmem:[#allocation2 + $0x8f4] sm:$0xf] %vm3348, %v2976
        %3674 = vst [vmem:[#allocation2 + $0x8f8] sm:$0xff] %v2977
        %3675 = vst [vmem:[#allocation2 + $0x900] sm:$0xff] %v2978
        %3676 = vst [vmem:[#allocation2 + $0x908] sm:$0xff] %v2979
        %3677 = vst.msk [vmem:[#allocation2 + $0x910] sm:$0xf] %vm3348, %v2980
        %3678 = vst [vmem:[#allocation2 + $0x914] sm:$0xff] %v2981
        %3679 = vst [vmem:[#allocation2 + $0x91c] sm:$0xff] %v2982
        %3680 = vst [vmem:[#allocation2 + $0x924] sm:$0xff] %v2983
        %3681 = vst.msk [vmem:[#allocation2 + $0x92c] sm:$0xf] %vm3348, %v2984
        %3682 = vst [vmem:[#allocation2 + $0x930] sm:$0xff] %v2985
        %3683 = vst [vmem:[#allocation2 + $0x938] sm:$0xff] %v2986
        %3684 = vst [vmem:[#allocation2 + $0x940] sm:$0xff] %v2987
        %3685 = vst.msk [vmem:[#allocation2 + $0x948] sm:$0xf] %vm3348, %v2988
        %3686 = vst [vmem:[#allocation2 + $0x94c] sm:$0xff] %v2989
        %3687 = vst [vmem:[#allocation2 + $0x954] sm:$0xff] %v2990
        %3688 = vst [vmem:[#allocation2 + $0x95c] sm:$0xff] %v2991
        %3689 = vst.msk [vmem:[#allocation2 + $0x964] sm:$0xf] %vm3348, %v2992
        %3690 = vst [vmem:[#allocation2 + $0x968] sm:$0xff] %v2993
        %3691 = vst [vmem:[#allocation2 + $0x970] sm:$0xff] %v2994
        %3692 = vst [vmem:[#allocation2 + $0x978] sm:$0xff] %v2995
        %3693 = vst.msk [vmem:[#allocation2 + $0x980] sm:$0xf] %vm3348, %v2996
      $region36: #{tpu_custom_call.1} parent=31 // pred_fallthru
        _
      %v3694 = vld [vmem:[%s186] sm:$0xff]
      %v3695 = vld [vmem:[%s186 + $0x8] sm:$0xff]
      %v3696 = vld [vmem:[%s186 + $0x10] sm:$0xff]
      %v3697 = vld [vmem:[%s186 + $0x18] sm:$0xff]
      %v3698 = vld [vmem:[%s186 + $0x20] sm:$0xff]
      %v3699 = vld [vmem:[%s186 + $0x28] sm:$0xff]
      %v3700 = vld [vmem:[%s186 + $0x30] sm:$0xff]
      %v3701 = vld [vmem:[%s186 + $0x38] sm:$0xff]
      %v3702 = vld [vmem:[%s186 + $0x40] sm:$0xff]
      %v3703 = vld [vmem:[%s186 + $0x48] sm:$0xff]
      %v3704 = vld [vmem:[%s186 + $0x50] sm:$0xff]
      %v3705 = vld [vmem:[%s186 + $0x58] sm:$0xff]
      %v3706 = vld [vmem:[%s186 + $0x60] sm:$0xff]
      %v3707 = vld [vmem:[%s186 + $0x68] sm:$0xff]
      %v3708 = vld [vmem:[%s186 + $0x70] sm:$0xff]
      %v3709 = vld [vmem:[%s186 + $0x78] sm:$0xff]
      %v3710 = vld [vmem:[%s186 + $0x80] sm:$0xff]
      %v3711 = vld [vmem:[%s186 + $0x88] sm:$0xff]
      %v3712 = vld [vmem:[%s186 + $0x90] sm:$0xff]
      %v3713 = vld [vmem:[%s186 + $0x98] sm:$0xff]
      %v3714 = vld [vmem:[%s186 + $0xa0] sm:$0xff]
      %v3715 = vld [vmem:[%s186 + $0xa8] sm:$0xff]
      %v3716 = vld [vmem:[%s186 + $0xb0] sm:$0xff]
      %v3717 = vld [vmem:[%s186 + $0xb8] sm:$0xff]
      %v3718 = vld [vmem:[%s186 + $0xc0] sm:$0xff]
      %v3719 = vld [vmem:[%s186 + $0xc8] sm:$0xff]
      %v3720 = vld [vmem:[%s186 + $0xd0] sm:$0xff]
      %v3721 = vld [vmem:[%s186 + $0xd8] sm:$0xff]
      %v3722 = vld [vmem:[%s186 + $0xe0] sm:$0xff]
      %v3723 = vld [vmem:[%s186 + $0xe8] sm:$0xff]
      %v3724 = vld [vmem:[%s186 + $0xf0] sm:$0xff]
      %v3725 = vld [vmem:[%s186 + $0xf8] sm:$0xff]
      %v3726 = vld [vmem:[%s186 + $0x100] sm:$0xff]
      %v3727 = vld [vmem:[%s186 + $0x108] sm:$0xff]
      %v3728 = vld [vmem:[%s186 + $0x110] sm:$0xff]
      %v3729 = vld [vmem:[%s186 + $0x118] sm:$0xff]
      %v3730 = vld [vmem:[%s186 + $0x120] sm:$0xff]
      %v3731 = vld [vmem:[%s186 + $0x128] sm:$0xff]
      %v3732 = vld [vmem:[%s186 + $0x130] sm:$0xff]
      %v3733 = vld [vmem:[%s186 + $0x138] sm:$0xff]
      %v3734 = vld [vmem:[%s186 + $0x140] sm:$0xff]
      %v3735 = vld [vmem:[%s186 + $0x148] sm:$0xff]
      %v3736 = vld [vmem:[%s186 + $0x150] sm:$0xff]
      %v3737 = vld [vmem:[%s186 + $0x158] sm:$0xff]
      %v3738 = vld [vmem:[%s186 + $0x160] sm:$0xff]
      %v3739 = vld [vmem:[%s186 + $0x168] sm:$0xff]
      %v3740 = vld [vmem:[%s186 + $0x170] sm:$0xff]
      %v3741 = vld [vmem:[%s186 + $0x178] sm:$0xff]
      %v3742 = vld [vmem:[%s186 + $0x180] sm:$0xff]
      %v3743 = vld [vmem:[%s186 + $0x188] sm:$0xff]
      %v3744 = vld [vmem:[%s186 + $0x190] sm:$0xff]
      %v3745 = vld [vmem:[%s186 + $0x198] sm:$0xff]
      %v3746 = vld [vmem:[%s186 + $0x1a0] sm:$0xff]
      %v3747 = vld [vmem:[%s186 + $0x1a8] sm:$0xff]
      %v3748 = vld [vmem:[%s186 + $0x1b0] sm:$0xff]
      %v3749 = vld [vmem:[%s186 + $0x1b8] sm:$0xff]
      %v3750 = vld [vmem:[%s186 + $0x1c0] sm:$0xff]
      %v3751 = vld [vmem:[%s186 + $0x1c8] sm:$0xff]
      %v3752 = vld [vmem:[%s186 + $0x1d0] sm:$0xff]
      %v3753 = vld [vmem:[%s186 + $0x1d8] sm:$0xff]
      %v3754 = vld [vmem:[%s186 + $0x1e0] sm:$0xff]
      %v3755 = vld [vmem:[%s186 + $0x1e8] sm:$0xff]
      %v3756 = vld [vmem:[%s186 + $0x1f0] sm:$0xff]
      %v3757 = vld [vmem:[%s186 + $0x1f8] sm:$0xff]
      %v3758 = vld [vmem:[%s186 + $0x200] sm:$0xff]
      %v3759 = vld [vmem:[%s186 + $0x208] sm:$0xff]
      %v3760 = vld [vmem:[%s186 + $0x210] sm:$0xff]
      %v3761 = vld [vmem:[%s186 + $0x218] sm:$0xff]
      %v3762 = vld [vmem:[%s186 + $0x220] sm:$0xff]
      %v3763 = vld [vmem:[%s186 + $0x228] sm:$0xff]
      %v3764 = vld [vmem:[%s186 + $0x230] sm:$0xff]
      %v3765 = vld [vmem:[%s186 + $0x238] sm:$0xff]
      %v3766 = vld [vmem:[%s186 + $0x240] sm:$0xff]
      %v3767 = vld [vmem:[%s186 + $0x248] sm:$0xff]
      %v3768 = vld [vmem:[%s186 + $0x250] sm:$0xff]
      %v3769 = vld [vmem:[%s186 + $0x258] sm:$0xff]
      %v3770 = vld [vmem:[%s186 + $0x260] sm:$0xff]
      %v3771 = vld [vmem:[%s186 + $0x268] sm:$0xff]
      %v3772 = vld [vmem:[%s186 + $0x270] sm:$0xff]
      %v3773 = vld [vmem:[%s186 + $0x278] sm:$0xff]
      %v3774 = vld [vmem:[%s186 + $0x280] sm:$0xff]
      %v3775 = vld [vmem:[%s186 + $0x288] sm:$0xff]
      %v3776 = vld [vmem:[%s186 + $0x290] sm:$0xff]
      %v3777 = vld [vmem:[%s186 + $0x298] sm:$0xff]
      %v3778 = vld [vmem:[%s186 + $0x2a0] sm:$0xff]
      %v3779 = vld [vmem:[%s186 + $0x2a8] sm:$0xff]
      %v3780 = vld [vmem:[%s186 + $0x2b0] sm:$0xff]
      %v3781 = vld [vmem:[%s186 + $0x2b8] sm:$0xff]
      %v3782 = vld [vmem:[%s186 + $0x2c0] sm:$0xff]
      %v3783 = vld [vmem:[%s186 + $0x2c8] sm:$0xff]
      %v3784 = vld [vmem:[%s186 + $0x2d0] sm:$0xff]
      %v3785 = vld [vmem:[%s186 + $0x2d8] sm:$0xff]
      %v3786 = vld [vmem:[%s186 + $0x2e0] sm:$0xff]
      %v3787 = vld [vmem:[%s186 + $0x2e8] sm:$0xff]
      %v3788 = vld [vmem:[%s186 + $0x2f0] sm:$0xff]
      %v3789 = vld [vmem:[%s186 + $0x2f8] sm:$0xff]
      %v3790 = vld [vmem:[%s186 + $0x300] sm:$0xff]
      %v3791 = vld [vmem:[%s186 + $0x308] sm:$0xff]
      %v3792 = vld [vmem:[%s186 + $0x310] sm:$0xff]
      %v3793 = vld [vmem:[%s186 + $0x318] sm:$0xff]
      %v3794 = vld [vmem:[%s186 + $0x320] sm:$0xff]
      %v3795 = vld [vmem:[%s186 + $0x328] sm:$0xff]
      %v3796 = vld [vmem:[%s186 + $0x330] sm:$0xff]
      %v3797 = vld [vmem:[%s186 + $0x338] sm:$0xff]
      %v3798 = vld [vmem:[%s186 + $0x340] sm:$0xff]
      %v3799 = vld [vmem:[%s186 + $0x348] sm:$0xff]
      %v3800 = vld [vmem:[%s186 + $0x350] sm:$0xff]
      %v3801 = vld [vmem:[%s186 + $0x358] sm:$0xff]
      %v3802 = vld [vmem:[%s186 + $0x360] sm:$0xff]
      %v3803 = vld [vmem:[%s186 + $0x368] sm:$0xff]
      %v3804 = vld [vmem:[%s186 + $0x370] sm:$0xff]
      %v3805 = vld [vmem:[%s186 + $0x378] sm:$0xff]
      %v3806 = vld [vmem:[%s186 + $0x380] sm:$0xff]
      %v3807 = vld [vmem:[%s186 + $0x388] sm:$0xff]
      %v3808 = vld [vmem:[%s186 + $0x390] sm:$0xff]
      %v3809 = vld [vmem:[%s186 + $0x398] sm:$0xff]
      %v3810 = vld [vmem:[%s186 + $0x3a0] sm:$0xff]
      %v3811 = vld [vmem:[%s186 + $0x3a8] sm:$0xff]
      %v3812 = vld [vmem:[%s186 + $0x3b0] sm:$0xff]
      %v3813 = vld [vmem:[%s186 + $0x3b8] sm:$0xff]
      %v3814 = vld [vmem:[%s186 + $0x3c0] sm:$0xff]
      %v3815 = vld [vmem:[%s186 + $0x3c8] sm:$0xff]
      %v3816 = vld [vmem:[%s186 + $0x3d0] sm:$0xff]
      %v3817 = vld [vmem:[%s186 + $0x3d8] sm:$0xff]
      %v3818 = vld [vmem:[%s186 + $0x3e0] sm:$0xff]
      %v3819 = vld [vmem:[%s186 + $0x3e8] sm:$0xff]
      %v3820 = vld [vmem:[%s186 + $0x3f0] sm:$0xff]
      %v3821 = vld [vmem:[%s186 + $0x3f8] sm:$0xff]
      %v3822 = vld [vmem:[%s186 + $0x400] sm:$0xff]
      %v3823 = vld [vmem:[%s186 + $0x408] sm:$0xff]
      %v3824 = vld [vmem:[%s186 + $0x410] sm:$0xff]
      %v3825 = vld [vmem:[%s186 + $0x418] sm:$0xff]
      %v3826 = vld [vmem:[%s186 + $0x420] sm:$0xff]
      %v3827 = vld [vmem:[%s186 + $0x428] sm:$0xff]
      %v3828 = vld [vmem:[%s186 + $0x430] sm:$0xff]
      %v3829 = vld [vmem:[%s186 + $0x438] sm:$0xff]
      %v3830 = vld [vmem:[%s186 + $0x440] sm:$0xff]
      %v3831 = vld [vmem:[%s186 + $0x448] sm:$0xff]
      %v3832 = vld [vmem:[%s186 + $0x450] sm:$0xff]
      %v3833 = vld [vmem:[%s186 + $0x458] sm:$0xff]
      %v3834 = vld [vmem:[%s186 + $0x460] sm:$0xff]
      %v3835 = vld [vmem:[%s186 + $0x468] sm:$0xff]
      %v3836 = vld [vmem:[%s186 + $0x470] sm:$0xff]
      %v3837 = vld [vmem:[%s186 + $0x478] sm:$0xff]
      %v3838 = vld [vmem:[%s186 + $0x480] sm:$0xff]
      %v3839 = vld [vmem:[%s186 + $0x488] sm:$0xff]
      %v3840 = vld [vmem:[%s186 + $0x490] sm:$0xff]
      %v3841 = vld [vmem:[%s186 + $0x498] sm:$0xff]
      %v3842 = vld [vmem:[%s186 + $0x4a0] sm:$0xff]
      %v3843 = vld [vmem:[%s186 + $0x4a8] sm:$0xff]
      %v3844 = vld [vmem:[%s186 + $0x4b0] sm:$0xff]
      %v3845 = vld [vmem:[%s186 + $0x4b8] sm:$0xff]
      %v3846 = vld [vmem:[%s186 + $0x4c0] sm:$0xff]
      %v3847 = vld [vmem:[%s186 + $0x4c8] sm:$0xff]
      %v3848 = vld [vmem:[%s186 + $0x4d0] sm:$0xff]
      %v3849 = vld [vmem:[%s186 + $0x4d8] sm:$0xff]
      %v3850 = vld [vmem:[%s186 + $0x4e0] sm:$0xff]
      %v3851 = vld [vmem:[%s186 + $0x4e8] sm:$0xff]
      %v3852 = vld [vmem:[%s186 + $0x4f0] sm:$0xff]
      %v3853 = vld [vmem:[%s186 + $0x4f8] sm:$0xff]
      %v3854 = vld [vmem:[%s186 + $0x500] sm:$0xff]
      %v3855 = vld [vmem:[%s186 + $0x508] sm:$0xff]
      %v3856 = vld [vmem:[%s186 + $0x510] sm:$0xff]
      %v3857 = vld [vmem:[%s186 + $0x518] sm:$0xff]
      %v3858 = vld [vmem:[%s186 + $0x520] sm:$0xff]
      %v3859 = vld [vmem:[%s186 + $0x528] sm:$0xff]
      %v3860 = vld [vmem:[%s186 + $0x530] sm:$0xff]
      %v3861 = vld [vmem:[%s186 + $0x538] sm:$0xff]
      %v3862 = vld [vmem:[%s186 + $0x540] sm:$0xff]
      %v3863 = vld [vmem:[%s186 + $0x548] sm:$0xff]
      %v3864 = vld [vmem:[%s186 + $0x550] sm:$0xff]
      %v3865 = vld [vmem:[%s186 + $0x558] sm:$0xff]
      %v3866 = vld [vmem:[%s186 + $0x560] sm:$0xff]
      %v3867 = vld [vmem:[%s186 + $0x568] sm:$0xff]
      %v3868 = vpack.c.bf16 %v3700, %v3694
      %v3869 = vpack.c.bf16 %v3701, %v3695
      %v3870 = vpack.c.bf16 %v3702, %v3696
      %v3871 = vpack.c.bf16 %v3703, %v3697
      %v3872 = vpack.c.bf16 %v3704, %v3698
      %v3873 = vpack.c.bf16 %v3705, %v3699
      %v3874 = vpack.c.bf16 %v3712, %v3706
      %v3875 = vpack.c.bf16 %v3713, %v3707
      %v3876 = vpack.c.bf16 %v3714, %v3708
      %v3877 = vpack.c.bf16 %v3715, %v3709
      %v3878 = vpack.c.bf16 %v3716, %v3710
      %v3879 = vpack.c.bf16 %v3717, %v3711
      %v3880 = vpack.c.bf16 %v3724, %v3718
      %v3881 = vpack.c.bf16 %v3725, %v3719
      %v3882 = vpack.c.bf16 %v3726, %v3720
      %v3883 = vpack.c.bf16 %v3727, %v3721
      %v3884 = vpack.c.bf16 %v3728, %v3722
      %v3885 = vpack.c.bf16 %v3729, %v3723
      %v3886 = vpack.c.bf16 %v3736, %v3730
      %v3887 = vpack.c.bf16 %v3737, %v3731
      %v3888 = vpack.c.bf16 %v3738, %v3732
      %v3889 = vpack.c.bf16 %v3739, %v3733
      %v3890 = vpack.c.bf16 %v3740, %v3734
      %v3891 = vpack.c.bf16 %v3741, %v3735
      %v3892 = vpack.c.bf16 %v3748, %v3742
      %v3893 = vpack.c.bf16 %v3749, %v3743
      %v3894 = vpack.c.bf16 %v3750, %v3744
      %v3895 = vpack.c.bf16 %v3751, %v3745
      %v3896 = vpack.c.bf16 %v3752, %v3746
      %v3897 = vpack.c.bf16 %v3753, %v3747
      %v3898 = vpack.c.bf16 %v3760, %v3754
      %v3899 = vpack.c.bf16 %v3761, %v3755
      %v3900 = vpack.c.bf16 %v3762, %v3756
      %v3901 = vpack.c.bf16 %v3763, %v3757
      %v3902 = vpack.c.bf16 %v3764, %v3758
      %v3903 = vpack.c.bf16 %v3765, %v3759
      %v3904 = vpack.c.bf16 %v3772, %v3766
      %v3905 = vpack.c.bf16 %v3773, %v3767
      %v3906 = vpack.c.bf16 %v3774, %v3768
      %v3907 = vpack.c.bf16 %v3775, %v3769
      %v3908 = vpack.c.bf16 %v3776, %v3770
      %v3909 = vpack.c.bf16 %v3777, %v3771
      %v3910 = vpack.c.bf16 %v3784, %v3778
      %v3911 = vpack.c.bf16 %v3785, %v3779
      %v3912 = vpack.c.bf16 %v3786, %v3780
      %v3913 = vpack.c.bf16 %v3787, %v3781
      %v3914 = vpack.c.bf16 %v3788, %v3782
      %v3915 = vpack.c.bf16 %v3789, %v3783
      %v3916 = vpack.c.bf16 %v3796, %v3790
      %v3917 = vpack.c.bf16 %v3797, %v3791
      %v3918 = vpack.c.bf16 %v3798, %v3792
      %v3919 = vpack.c.bf16 %v3799, %v3793
      %v3920 = vpack.c.bf16 %v3800, %v3794
      %v3921 = vpack.c.bf16 %v3801, %v3795
      %v3922 = vpack.c.bf16 %v3808, %v3802
      %v3923 = vpack.c.bf16 %v3809, %v3803
      %v3924 = vpack.c.bf16 %v3810, %v3804
      %v3925 = vpack.c.bf16 %v3811, %v3805
      %v3926 = vpack.c.bf16 %v3812, %v3806
      %v3927 = vpack.c.bf16 %v3813, %v3807
      %v3928 = vpack.c.bf16 %v3820, %v3814
      %v3929 = vpack.c.bf16 %v3821, %v3815
      %v3930 = vpack.c.bf16 %v3822, %v3816
      %v3931 = vpack.c.bf16 %v3823, %v3817
      %v3932 = vpack.c.bf16 %v3824, %v3818
      %v3933 = vpack.c.bf16 %v3825, %v3819
      %v3934 = vpack.c.bf16 %v3832, %v3826
      %v3935 = vpack.c.bf16 %v3833, %v3827
      %v3936 = vpack.c.bf16 %v3834, %v3828
      %v3937 = vpack.c.bf16 %v3835, %v3829
      %v3938 = vpack.c.bf16 %v3836, %v3830
      %v3939 = vpack.c.bf16 %v3837, %v3831
      %v3940 = vpack.c.bf16 %v3844, %v3838
      %v3941 = vpack.c.bf16 %v3845, %v3839
      %v3942 = vpack.c.bf16 %v3846, %v3840
      %v3943 = vpack.c.bf16 %v3847, %v3841
      %v3944 = vpack.c.bf16 %v3848, %v3842
      %v3945 = vpack.c.bf16 %v3849, %v3843
      %v3946 = vpack.c.bf16 %v3856, %v3850
      %v3947 = vpack.c.bf16 %v3857, %v3851
      %v3948 = vpack.c.bf16 %v3858, %v3852
      %v3949 = vpack.c.bf16 %v3859, %v3853
      %v3950 = vpack.c.bf16 %v3860, %v3854
      %v3951 = vpack.c.bf16 %v3861, %v3855
      %v3952 = vpack.c.bf16 %v3862, %v3862
      %v3953 = vpack.c.bf16 %v3863, %v3863
      %v3954 = vpack.c.bf16 %v3864, %v3864
      %v3955 = vpack.c.bf16 %v3865, %v3865
      %v3956 = vpack.c.bf16 %v3866, %v3866
      %v3957 = vpack.c.bf16 %v3867, %v3867
      %v3958 = vld [vmem:[#allocation2] sm:$0xff]
      %v3959 = vld [vmem:[#allocation2 + $0x8] sm:$0xff]
      %v3960 = vld [vmem:[#allocation2 + $0x10] sm:$0xff]
      %v3961 = vld [vmem:[#allocation2 + $0x18] sm:$0xf]
      %v3962 = vld [vmem:[#allocation2 + $0x1c] sm:$0xff]
      %v3963 = vld [vmem:[#allocation2 + $0x24] sm:$0xff]
      %v3964 = vld [vmem:[#allocation2 + $0x2c] sm:$0xff]
      %v3965 = vld [vmem:[#allocation2 + $0x34] sm:$0xf]
      %v3966 = vld [vmem:[#allocation2 + $0x38] sm:$0xff]
      %v3967 = vld [vmem:[#allocation2 + $0x40] sm:$0xff]
      %v3968 = vld [vmem:[#allocation2 + $0x48] sm:$0xff]
      %v3969 = vld [vmem:[#allocation2 + $0x50] sm:$0xf]
      %v3970 = vld [vmem:[#allocation2 + $0x54] sm:$0xff]
      %v3971 = vld [vmem:[#allocation2 + $0x5c] sm:$0xff]
      %v3972 = vld [vmem:[#allocation2 + $0x64] sm:$0xff]
      %v3973 = vld [vmem:[#allocation2 + $0x6c] sm:$0xf]
      %v3974 = vld [vmem:[#allocation2 + $0x70] sm:$0xff]
      %v3975 = vld [vmem:[#allocation2 + $0x78] sm:$0xff]
      %v3976 = vld [vmem:[#allocation2 + $0x80] sm:$0xff]
      %v3977 = vld [vmem:[#allocation2 + $0x88] sm:$0xf]
      %v3978 = vld [vmem:[#allocation2 + $0x8c] sm:$0xff]
      %v3979 = vld [vmem:[#allocation2 + $0x94] sm:$0xff]
      %v3980 = vld [vmem:[#allocation2 + $0x9c] sm:$0xff]
      %v3981 = vld [vmem:[#allocation2 + $0xa4] sm:$0xf]
      %v3982 = vld [vmem:[#allocation2 + $0xa8] sm:$0xff]
      %v3983 = vld [vmem:[#allocation2 + $0xb0] sm:$0xff]
      %v3984 = vld [vmem:[#allocation2 + $0xb8] sm:$0xff]
      %v3985 = vld [vmem:[#allocation2 + $0xc0] sm:$0xf]
      %v3986 = vld [vmem:[#allocation2 + $0xc4] sm:$0xff]
      %v3987 = vld [vmem:[#allocation2 + $0xcc] sm:$0xff]
      %v3988 = vld [vmem:[#allocation2 + $0xd4] sm:$0xff]
      %v3989 = vld [vmem:[#allocation2 + $0xdc] sm:$0xf]
      %v3990 = vld [vmem:[#allocation2 + $0xe0] sm:$0xff]
      %v3991 = vld [vmem:[#allocation2 + $0xe8] sm:$0xff]
      %v3992 = vld [vmem:[#allocation2 + $0xf0] sm:$0xff]
      %v3993 = vld [vmem:[#allocation2 + $0xf8] sm:$0xf]
      %v3994 = vld [vmem:[#allocation2 + $0xfc] sm:$0xff]
      %v3995 = vld [vmem:[#allocation2 + $0x104] sm:$0xff]
      %v3996 = vld [vmem:[#allocation2 + $0x10c] sm:$0xff]
      %v3997 = vld [vmem:[#allocation2 + $0x114] sm:$0xf]
      %v3998 = vld [vmem:[#allocation2 + $0x118] sm:$0xff]
      %v3999 = vld [vmem:[#allocation2 + $0x120] sm:$0xff]
      %v4000 = vld [vmem:[#allocation2 + $0x128] sm:$0xff]
      %v4001 = vld [vmem:[#allocation2 + $0x130] sm:$0xf]
      %v4002 = vld [vmem:[#allocation2 + $0x134] sm:$0xff]
      %v4003 = vld [vmem:[#allocation2 + $0x13c] sm:$0xff]
      %v4004 = vld [vmem:[#allocation2 + $0x144] sm:$0xff]
      %v4005 = vld [vmem:[#allocation2 + $0x14c] sm:$0xf]
      %v4006 = vld [vmem:[#allocation2 + $0x150] sm:$0xff]
      %v4007 = vld [vmem:[#allocation2 + $0x158] sm:$0xff]
      %v4008 = vld [vmem:[#allocation2 + $0x160] sm:$0xff]
      %v4009 = vld [vmem:[#allocation2 + $0x168] sm:$0xf]
      %v4010 = vld [vmem:[#allocation2 + $0x16c] sm:$0xff]
      %v4011 = vld [vmem:[#allocation2 + $0x174] sm:$0xff]
      %v4012 = vld [vmem:[#allocation2 + $0x17c] sm:$0xff]
      %v4013 = vld [vmem:[#allocation2 + $0x184] sm:$0xf]
      %v4014 = vld [vmem:[#allocation2 + $0x188] sm:$0xff]
      %v4015 = vld [vmem:[#allocation2 + $0x190] sm:$0xff]
      %v4016 = vld [vmem:[#allocation2 + $0x198] sm:$0xff]
      %v4017 = vld [vmem:[#allocation2 + $0x1a0] sm:$0xf]
      %v4018 = vld [vmem:[#allocation2 + $0x1a4] sm:$0xff]
      %v4019 = vld [vmem:[#allocation2 + $0x1ac] sm:$0xff]
      %v4020 = vld [vmem:[#allocation2 + $0x1b4] sm:$0xff]
      %v4021 = vld [vmem:[#allocation2 + $0x1bc] sm:$0xf]
      %v4022 = vld [vmem:[#allocation2 + $0x1c0] sm:$0xff]
      %v4023 = vld [vmem:[#allocation2 + $0x1c8] sm:$0xff]
      %v4024 = vld [vmem:[#allocation2 + $0x1d0] sm:$0xff]
      %v4025 = vld [vmem:[#allocation2 + $0x1d8] sm:$0xf]
      %v4026 = vld [vmem:[#allocation2 + $0x1dc] sm:$0xff]
      %v4027 = vld [vmem:[#allocation2 + $0x1e4] sm:$0xff]
      %v4028 = vld [vmem:[#allocation2 + $0x1ec] sm:$0xff]
      %v4029 = vld [vmem:[#allocation2 + $0x1f4] sm:$0xf]
      %v4030 = vld [vmem:[#allocation2 + $0x1f8] sm:$0xff]
      %v4031 = vld [vmem:[#allocation2 + $0x200] sm:$0xff]
      %v4032 = vld [vmem:[#allocation2 + $0x208] sm:$0xff]
      %v4033 = vld [vmem:[#allocation2 + $0x210] sm:$0xf]
      %v4034 = vld [vmem:[#allocation2 + $0x214] sm:$0xff]
      %v4035 = vld [vmem:[#allocation2 + $0x21c] sm:$0xff]
      %v4036 = vld [vmem:[#allocation2 + $0x224] sm:$0xff]
      %v4037 = vld [vmem:[#allocation2 + $0x22c] sm:$0xf]
      %v4038 = vld [vmem:[#allocation2 + $0x230] sm:$0xff]
      %v4039 = vld [vmem:[#allocation2 + $0x238] sm:$0xff]
      %v4040 = vld [vmem:[#allocation2 + $0x240] sm:$0xff]
      %v4041 = vld [vmem:[#allocation2 + $0x248] sm:$0xf]
      %v4042 = vld [vmem:[#allocation2 + $0x24c] sm:$0xff]
      %v4043 = vld [vmem:[#allocation2 + $0x254] sm:$0xff]
      %v4044 = vld [vmem:[#allocation2 + $0x25c] sm:$0xff]
      %v4045 = vld [vmem:[#allocation2 + $0x264] sm:$0xf]
      %v4046 = vld [vmem:[#allocation2 + $0x268] sm:$0xff]
      %v4047 = vld [vmem:[#allocation2 + $0x270] sm:$0xff]
      %v4048 = vld [vmem:[#allocation2 + $0x278] sm:$0xff]
      %v4049 = vld [vmem:[#allocation2 + $0x280] sm:$0xf]
      %v4050 = vld [vmem:[#allocation2 + $0x284] sm:$0xff]
      %v4051 = vld [vmem:[#allocation2 + $0x28c] sm:$0xff]
      %v4052 = vld [vmem:[#allocation2 + $0x294] sm:$0xff]
      %v4053 = vld [vmem:[#allocation2 + $0x29c] sm:$0xf]
      %v4054 = vld [vmem:[#allocation2 + $0x2a0] sm:$0xff]
      %v4055 = vld [vmem:[#allocation2 + $0x2a8] sm:$0xff]
      %v4056 = vld [vmem:[#allocation2 + $0x2b0] sm:$0xff]
      %v4057 = vld [vmem:[#allocation2 + $0x2b8] sm:$0xf]
      %v4058 = vld [vmem:[#allocation2 + $0x2bc] sm:$0xff]
      %v4059 = vld [vmem:[#allocation2 + $0x2c4] sm:$0xff]
      %v4060 = vld [vmem:[#allocation2 + $0x2cc] sm:$0xff]
      %v4061 = vld [vmem:[#allocation2 + $0x2d4] sm:$0xf]
      %v4062 = vld [vmem:[#allocation2 + $0x2d8] sm:$0xff]
      %v4063 = vld [vmem:[#allocation2 + $0x2e0] sm:$0xff]
      %v4064 = vld [vmem:[#allocation2 + $0x2e8] sm:$0xff]
      %v4065 = vld [vmem:[#allocation2 + $0x2f0] sm:$0xf]
      %v4066 = vld [vmem:[#allocation2 + $0x2f4] sm:$0xff]
      %v4067 = vld [vmem:[#allocation2 + $0x2fc] sm:$0xff]
      %v4068 = vld [vmem:[#allocation2 + $0x304] sm:$0xff]
      %v4069 = vld [vmem:[#allocation2 + $0x30c] sm:$0xf]
      %v4070 = vld [vmem:[#allocation2 + $0x310] sm:$0xff]
      %v4071 = vld [vmem:[#allocation2 + $0x318] sm:$0xff]
      %v4072 = vld [vmem:[#allocation2 + $0x320] sm:$0xff]
      %v4073 = vld [vmem:[#allocation2 + $0x328] sm:$0xf]
      %v4074 = vld [vmem:[#allocation2 + $0x32c] sm:$0xff]
      %v4075 = vld [vmem:[#allocation2 + $0x334] sm:$0xff]
      %v4076 = vld [vmem:[#allocation2 + $0x33c] sm:$0xff]
      %v4077 = vld [vmem:[#allocation2 + $0x344] sm:$0xf]
      %v4078 = vld [vmem:[#allocation2 + $0x348] sm:$0xff]
      %v4079 = vld [vmem:[#allocation2 + $0x350] sm:$0xff]
      %v4080 = vld [vmem:[#allocation2 + $0x358] sm:$0xff]
      %v4081 = vld [vmem:[#allocation2 + $0x360] sm:$0xf]
      %v4082 = vld [vmem:[#allocation2 + $0x364] sm:$0xff]
      %v4083 = vld [vmem:[#allocation2 + $0x36c] sm:$0xff]
      %v4084 = vld [vmem:[#allocation2 + $0x374] sm:$0xff]
      %v4085 = vld [vmem:[#allocation2 + $0x37c] sm:$0xf]
      %v4086 = vld [vmem:[#allocation2 + $0x380] sm:$0xff]
      %v4087 = vld [vmem:[#allocation2 + $0x388] sm:$0xff]
      %v4088 = vld [vmem:[#allocation2 + $0x390] sm:$0xff]
      %v4089 = vld [vmem:[#allocation2 + $0x398] sm:$0xf]
      %v4090 = vld [vmem:[#allocation2 + $0x39c] sm:$0xff]
      %v4091 = vld [vmem:[#allocation2 + $0x3a4] sm:$0xff]
      %v4092 = vld [vmem:[#allocation2 + $0x3ac] sm:$0xff]
      %v4093 = vld [vmem:[#allocation2 + $0x3b4] sm:$0xf]
      %v4094 = vld [vmem:[#allocation2 + $0x3b8] sm:$0xff]
      %v4095 = vld [vmem:[#allocation2 + $0x3c0] sm:$0xff]
      %v4096 = vld [vmem:[#allocation2 + $0x3c8] sm:$0xff]
      %v4097 = vld [vmem:[#allocation2 + $0x3d0] sm:$0xf]
      %v4098 = vld [vmem:[#allocation2 + $0x3d4] sm:$0xff]
      %v4099 = vld [vmem:[#allocation2 + $0x3dc] sm:$0xff]
      %v4100 = vld [vmem:[#allocation2 + $0x3e4] sm:$0xff]
      %v4101 = vld [vmem:[#allocation2 + $0x3ec] sm:$0xf]
      %v4102 = vld [vmem:[#allocation2 + $0x3f0] sm:$0xff]
      %v4103 = vld [vmem:[#allocation2 + $0x3f8] sm:$0xff]
      %v4104 = vld [vmem:[#allocation2 + $0x400] sm:$0xff]
      %v4105 = vld [vmem:[#allocation2 + $0x408] sm:$0xf]
      %v4106 = vld [vmem:[#allocation2 + $0x40c] sm:$0xff]
      %v4107 = vld [vmem:[#allocation2 + $0x414] sm:$0xff]
      %v4108 = vld [vmem:[#allocation2 + $0x41c] sm:$0xff]
      %v4109 = vld [vmem:[#allocation2 + $0x424] sm:$0xf]
      %v4110 = vld [vmem:[#allocation2 + $0x428] sm:$0xff]
      %v4111 = vld [vmem:[#allocation2 + $0x430] sm:$0xff]
      %v4112 = vld [vmem:[#allocation2 + $0x438] sm:$0xff]
      %v4113 = vld [vmem:[#allocation2 + $0x440] sm:$0xf]
      %v4114 = vld [vmem:[#allocation2 + $0x444] sm:$0xff]
      %v4115 = vld [vmem:[#allocation2 + $0x44c] sm:$0xff]
      %v4116 = vld [vmem:[#allocation2 + $0x454] sm:$0xff]
      %v4117 = vld [vmem:[#allocation2 + $0x45c] sm:$0xf]
      %v4118 = vld [vmem:[#allocation2 + $0x460] sm:$0xff]
      %v4119 = vld [vmem:[#allocation2 + $0x468] sm:$0xff]
      %v4120 = vld [vmem:[#allocation2 + $0x470] sm:$0xff]
      %v4121 = vld [vmem:[#allocation2 + $0x478] sm:$0xf]
      %v4122 = vld [vmem:[#allocation2 + $0x47c] sm:$0xff]
      %v4123 = vld [vmem:[#allocation2 + $0x484] sm:$0xff]
      %v4124 = vld [vmem:[#allocation2 + $0x48c] sm:$0xff]
      %v4125 = vld [vmem:[#allocation2 + $0x494] sm:$0xf]
      %v4126 = vld [vmem:[#allocation2 + $0x498] sm:$0xff]
      %v4127 = vld [vmem:[#allocation2 + $0x4a0] sm:$0xff]
      %v4128 = vld [vmem:[#allocation2 + $0x4a8] sm:$0xff]
      %v4129 = vld [vmem:[#allocation2 + $0x4b0] sm:$0xf]
      %v4130 = vld [vmem:[#allocation2 + $0x4b4] sm:$0xff]
      %v4131 = vld [vmem:[#allocation2 + $0x4bc] sm:$0xff]
      %v4132 = vld [vmem:[#allocation2 + $0x4c4] sm:$0xff]
      %v4133 = vld [vmem:[#allocation2 + $0x4cc] sm:$0xf]
      %v4134 = vld [vmem:[#allocation2 + $0x4d0] sm:$0xff]
      %v4135 = vld [vmem:[#allocation2 + $0x4d8] sm:$0xff]
      %v4136 = vld [vmem:[#allocation2 + $0x4e0] sm:$0xff]
      %v4137 = vld [vmem:[#allocation2 + $0x4e8] sm:$0xf]
      %v4138 = vld [vmem:[#allocation2 + $0x4ec] sm:$0xff]
      %v4139 = vld [vmem:[#allocation2 + $0x4f4] sm:$0xff]
      %v4140 = vld [vmem:[#allocation2 + $0x4fc] sm:$0xff]
      %v4141 = vld [vmem:[#allocation2 + $0x504] sm:$0xf]
      %v4142 = vld [vmem:[#allocation2 + $0x508] sm:$0xff]
      %v4143 = vld [vmem:[#allocation2 + $0x510] sm:$0xff]
      %v4144 = vld [vmem:[#allocation2 + $0x518] sm:$0xff]
      %v4145 = vld [vmem:[#allocation2 + $0x520] sm:$0xf]
      %v4146 = vld [vmem:[#allocation2 + $0x524] sm:$0xff]
      %v4147 = vld [vmem:[#allocation2 + $0x52c] sm:$0xff]
      %v4148 = vld [vmem:[#allocation2 + $0x534] sm:$0xff]
      %v4149 = vld [vmem:[#allocation2 + $0x53c] sm:$0xf]
      %v4150 = vld [vmem:[#allocation2 + $0x540] sm:$0xff]
      %v4151 = vld [vmem:[#allocation2 + $0x548] sm:$0xff]
      %v4152 = vld [vmem:[#allocation2 + $0x550] sm:$0xff]
      %v4153 = vld [vmem:[#allocation2 + $0x558] sm:$0xf]
      %v4154 = vld [vmem:[#allocation2 + $0x55c] sm:$0xff]
      %v4155 = vld [vmem:[#allocation2 + $0x564] sm:$0xff]
      %v4156 = vld [vmem:[#allocation2 + $0x56c] sm:$0xff]
      %v4157 = vld [vmem:[#allocation2 + $0x574] sm:$0xf]
      %v4158 = vld [vmem:[#allocation2 + $0x578] sm:$0xff]
      %v4159 = vld [vmem:[#allocation2 + $0x580] sm:$0xff]
      %v4160 = vld [vmem:[#allocation2 + $0x588] sm:$0xff]
      %v4161 = vld [vmem:[#allocation2 + $0x590] sm:$0xf]
      %v4162 = vld [vmem:[#allocation2 + $0x594] sm:$0xff]
      %v4163 = vld [vmem:[#allocation2 + $0x59c] sm:$0xff]
      %v4164 = vld [vmem:[#allocation2 + $0x5a4] sm:$0xff]
      %v4165 = vld [vmem:[#allocation2 + $0x5ac] sm:$0xf]
      %v4166 = vld [vmem:[#allocation2 + $0x5b0] sm:$0xff]
      %v4167 = vld [vmem:[#allocation2 + $0x5b8] sm:$0xff]
      %v4168 = vld [vmem:[#allocation2 + $0x5c0] sm:$0xff]
      %v4169 = vld [vmem:[#allocation2 + $0x5c8] sm:$0xf]
      %v4170 = vld [vmem:[#allocation2 + $0x5cc] sm:$0xff]
      %v4171 = vld [vmem:[#allocation2 + $0x5d4] sm:$0xff]
      %v4172 = vld [vmem:[#allocation2 + $0x5dc] sm:$0xff]
      %v4173 = vld [vmem:[#allocation2 + $0x5e4] sm:$0xf]
      %v4174 = vld [vmem:[#allocation2 + $0x5e8] sm:$0xff]
      %v4175 = vld [vmem:[#allocation2 + $0x5f0] sm:$0xff]
      %v4176 = vld [vmem:[#allocation2 + $0x5f8] sm:$0xff]
      %v4177 = vld [vmem:[#allocation2 + $0x600] sm:$0xf]
      %v4178 = vld [vmem:[#allocation2 + $0x604] sm:$0xff]
      %v4179 = vld [vmem:[#allocation2 + $0x60c] sm:$0xff]
      %v4180 = vld [vmem:[#allocation2 + $0x614] sm:$0xff]
      %v4181 = vld [vmem:[#allocation2 + $0x61c] sm:$0xf]
      %v4182 = vld [vmem:[#allocation2 + $0x620] sm:$0xff]
      %v4183 = vld [vmem:[#allocation2 + $0x628] sm:$0xff]
      %v4184 = vld [vmem:[#allocation2 + $0x630] sm:$0xff]
      %v4185 = vld [vmem:[#allocation2 + $0x638] sm:$0xf]
      %v4186 = vld [vmem:[#allocation2 + $0x63c] sm:$0xff]
      %v4187 = vld [vmem:[#allocation2 + $0x644] sm:$0xff]
      %v4188 = vld [vmem:[#allocation2 + $0x64c] sm:$0xff]
      %v4189 = vld [vmem:[#allocation2 + $0x654] sm:$0xf]
      %v4190 = vld [vmem:[#allocation2 + $0x658] sm:$0xff]
      %v4191 = vld [vmem:[#allocation2 + $0x660] sm:$0xff]
      %v4192 = vld [vmem:[#allocation2 + $0x668] sm:$0xff]
      %v4193 = vld [vmem:[#allocation2 + $0x670] sm:$0xf]
      %v4194 = vld [vmem:[#allocation2 + $0x674] sm:$0xff]
      %v4195 = vld [vmem:[#allocation2 + $0x67c] sm:$0xff]
      %v4196 = vld [vmem:[#allocation2 + $0x684] sm:$0xff]
      %v4197 = vld [vmem:[#allocation2 + $0x68c] sm:$0xf]
      %v4198 = vld [vmem:[#allocation2 + $0x690] sm:$0xff]
      %v4199 = vld [vmem:[#allocation2 + $0x698] sm:$0xff]
      %v4200 = vld [vmem:[#allocation2 + $0x6a0] sm:$0xff]
      %v4201 = vld [vmem:[#allocation2 + $0x6a8] sm:$0xf]
      %v4202 = vld [vmem:[#allocation2 + $0x6ac] sm:$0xff]
      %v4203 = vld [vmem:[#allocation2 + $0x6b4] sm:$0xff]
      %v4204 = vld [vmem:[#allocation2 + $0x6bc] sm:$0xff]
      %v4205 = vld [vmem:[#allocation2 + $0x6c4] sm:$0xf]
      %v4206 = vld [vmem:[#allocation2 + $0x6c8] sm:$0xff]
      %v4207 = vld [vmem:[#allocation2 + $0x6d0] sm:$0xff]
      %v4208 = vld [vmem:[#allocation2 + $0x6d8] sm:$0xff]
      %v4209 = vld [vmem:[#allocation2 + $0x6e0] sm:$0xf]
      %v4210 = vld [vmem:[#allocation2 + $0x6e4] sm:$0xff]
      %v4211 = vld [vmem:[#allocation2 + $0x6ec] sm:$0xff]
      %v4212 = vld [vmem:[#allocation2 + $0x6f4] sm:$0xff]
      %v4213 = vld [vmem:[#allocation2 + $0x6fc] sm:$0xf]
      %v4214 = vld [vmem:[#allocation2 + $0x700] sm:$0xff]
      %v4215 = vld [vmem:[#allocation2 + $0x708] sm:$0xff]
      %v4216 = vld [vmem:[#allocation2 + $0x710] sm:$0xff]
      %v4217 = vld [vmem:[#allocation2 + $0x718] sm:$0xf]
      %v4218 = vld [vmem:[#allocation2 + $0x71c] sm:$0xff]
      %v4219 = vld [vmem:[#allocation2 + $0x724] sm:$0xff]
      %v4220 = vld [vmem:[#allocation2 + $0x72c] sm:$0xff]
      %v4221 = vld [vmem:[#allocation2 + $0x734] sm:$0xf]
      %v4222 = vld [vmem:[#allocation2 + $0x738] sm:$0xff]
      %v4223 = vld [vmem:[#allocation2 + $0x740] sm:$0xff]
      %v4224 = vld [vmem:[#allocation2 + $0x748] sm:$0xff]
      %v4225 = vld [vmem:[#allocation2 + $0x750] sm:$0xf]
      %v4226 = vld [vmem:[#allocation2 + $0x754] sm:$0xff]
      %v4227 = vld [vmem:[#allocation2 + $0x75c] sm:$0xff]
      %v4228 = vld [vmem:[#allocation2 + $0x764] sm:$0xff]
      %v4229 = vld [vmem:[#allocation2 + $0x76c] sm:$0xf]
      %v4230 = vld [vmem:[#allocation2 + $0x770] sm:$0xff]
      %v4231 = vld [vmem:[#allocation2 + $0x778] sm:$0xff]
      %v4232 = vld [vmem:[#allocation2 + $0x780] sm:$0xff]
      %v4233 = vld [vmem:[#allocation2 + $0x788] sm:$0xf]
      %v4234 = vld [vmem:[#allocation2 + $0x78c] sm:$0xff]
      %v4235 = vld [vmem:[#allocation2 + $0x794] sm:$0xff]
      %v4236 = vld [vmem:[#allocation2 + $0x79c] sm:$0xff]
      %v4237 = vld [vmem:[#allocation2 + $0x7a4] sm:$0xf]
      %v4238 = vld [vmem:[#allocation2 + $0x7a8] sm:$0xff]
      %v4239 = vld [vmem:[#allocation2 + $0x7b0] sm:$0xff]
      %v4240 = vld [vmem:[#allocation2 + $0x7b8] sm:$0xff]
      %v4241 = vld [vmem:[#allocation2 + $0x7c0] sm:$0xf]
      %v4242 = vld [vmem:[#allocation2 + $0x7c4] sm:$0xff]
      %v4243 = vld [vmem:[#allocation2 + $0x7cc] sm:$0xff]
      %v4244 = vld [vmem:[#allocation2 + $0x7d4] sm:$0xff]
      %v4245 = vld [vmem:[#allocation2 + $0x7dc] sm:$0xf]
      %v4246 = vld [vmem:[#allocation2 + $0x7e0] sm:$0xff]
      %v4247 = vld [vmem:[#allocation2 + $0x7e8] sm:$0xff]
      %v4248 = vld [vmem:[#allocation2 + $0x7f0] sm:$0xff]
      %v4249 = vld [vmem:[#allocation2 + $0x7f8] sm:$0xf]
      %v4250 = vld [vmem:[#allocation2 + $0x7fc] sm:$0xff]
      %v4251 = vld [vmem:[#allocation2 + $0x804] sm:$0xff]
      %v4252 = vld [vmem:[#allocation2 + $0x80c] sm:$0xff]
      %v4253 = vld [vmem:[#allocation2 + $0x814] sm:$0xf]
      %v4254 = vld [vmem:[#allocation2 + $0x818] sm:$0xff]
      %v4255 = vld [vmem:[#allocation2 + $0x820] sm:$0xff]
      %v4256 = vld [vmem:[#allocation2 + $0x828] sm:$0xff]
      %v4257 = vld [vmem:[#allocation2 + $0x830] sm:$0xf]
      %v4258 = vld [vmem:[#allocation2 + $0x834] sm:$0xff]
      %v4259 = vld [vmem:[#allocation2 + $0x83c] sm:$0xff]
      %v4260 = vld [vmem:[#allocation2 + $0x844] sm:$0xff]
      %v4261 = vld [vmem:[#allocation2 + $0x84c] sm:$0xf]
      %v4262 = vld [vmem:[#allocation2 + $0x850] sm:$0xff]
      %v4263 = vld [vmem:[#allocation2 + $0x858] sm:$0xff]
      %v4264 = vld [vmem:[#allocation2 + $0x860] sm:$0xff]
      %v4265 = vld [vmem:[#allocation2 + $0x868] sm:$0xf]
      %v4266 = vld [vmem:[#allocation2 + $0x86c] sm:$0xff]
      %v4267 = vld [vmem:[#allocation2 + $0x874] sm:$0xff]
      %v4268 = vld [vmem:[#allocation2 + $0x87c] sm:$0xff]
      %v4269 = vld [vmem:[#allocation2 + $0x884] sm:$0xf]
      %v4270 = vld [vmem:[#allocation2 + $0x888] sm:$0xff]
      %v4271 = vld [vmem:[#allocation2 + $0x890] sm:$0xff]
      %v4272 = vld [vmem:[#allocation2 + $0x898] sm:$0xff]
      %v4273 = vld [vmem:[#allocation2 + $0x8a0] sm:$0xf]
      %v4274 = vld [vmem:[#allocation2 + $0x8a4] sm:$0xff]
      %v4275 = vld [vmem:[#allocation2 + $0x8ac] sm:$0xff]
      %v4276 = vld [vmem:[#allocation2 + $0x8b4] sm:$0xff]
      %v4277 = vld [vmem:[#allocation2 + $0x8bc] sm:$0xf]
      %v4278 = vld [vmem:[#allocation2 + $0x8c0] sm:$0xff]
      %v4279 = vld [vmem:[#allocation2 + $0x8c8] sm:$0xff]
      %v4280 = vld [vmem:[#allocation2 + $0x8d0] sm:$0xff]
      %v4281 = vld [vmem:[#allocation2 + $0x8d8] sm:$0xf]
      %v4282 = vld [vmem:[#allocation2 + $0x8dc] sm:$0xff]
      %v4283 = vld [vmem:[#allocation2 + $0x8e4] sm:$0xff]
      %v4284 = vld [vmem:[#allocation2 + $0x8ec] sm:$0xff]
      %v4285 = vld [vmem:[#allocation2 + $0x8f4] sm:$0xf]
      %v4286 = vld [vmem:[#allocation2 + $0x8f8] sm:$0xff]
      %v4287 = vld [vmem:[#allocation2 + $0x900] sm:$0xff]
      %v4288 = vld [vmem:[#allocation2 + $0x908] sm:$0xff]
      %v4289 = vld [vmem:[#allocation2 + $0x910] sm:$0xf]
      %v4290 = vld [vmem:[#allocation2 + $0x914] sm:$0xff]
      %v4291 = vld [vmem:[#allocation2 + $0x91c] sm:$0xff]
      %v4292 = vld [vmem:[#allocation2 + $0x924] sm:$0xff]
      %v4293 = vld [vmem:[#allocation2 + $0x92c] sm:$0xf]
      %v4294 = vld [vmem:[#allocation2 + $0x930] sm:$0xff]
      %v4295 = vld [vmem:[#allocation2 + $0x938] sm:$0xff]
      %v4296 = vld [vmem:[#allocation2 + $0x940] sm:$0xff]
      %v4297 = vld [vmem:[#allocation2 + $0x948] sm:$0xf]
      %v4298 = vld [vmem:[#allocation2 + $0x94c] sm:$0xff]
      %v4299 = vld [vmem:[#allocation2 + $0x954] sm:$0xff]
      %v4300 = vld [vmem:[#allocation2 + $0x95c] sm:$0xff]
      %v4301 = vld [vmem:[#allocation2 + $0x964] sm:$0xf]
      %v4302 = vld [vmem:[#allocation2 + $0x968] sm:$0xff]
      %v4303 = vld [vmem:[#allocation2 + $0x970] sm:$0xff]
      %v4304 = vld [vmem:[#allocation2 + $0x978] sm:$0xff]
      %v4305 = vld [vmem:[#allocation2 + $0x980] sm:$0xf]
      %v4654 = vunpack.c.l.b16 %v3958
      %v4655 = vunpack.c.h.b16 %v3958
      %v4656 = vunpack.c.l.b16 %v3959
      %v4657 = vunpack.c.h.b16 %v3959
      %v4658 = vunpack.c.l.b16 %v3960
      %v4659 = vunpack.c.h.b16 %v3960
      %v4660 = vunpack.c.l.b16 %v3961
      %v4661 = vunpack.c.l.b16 %v3962
      %v4662 = vunpack.c.h.b16 %v3962
      %v4663 = vunpack.c.l.b16 %v3963
      %v4664 = vunpack.c.h.b16 %v3963
      %v4665 = vunpack.c.l.b16 %v3964
      %v4666 = vunpack.c.h.b16 %v3964
      %v4667 = vunpack.c.l.b16 %v3965
      %v4668 = vunpack.c.l.b16 %v3966
      %v4669 = vunpack.c.h.b16 %v3966
      %v4670 = vunpack.c.l.b16 %v3967
      %v4671 = vunpack.c.h.b16 %v3967
      %v4672 = vunpack.c.l.b16 %v3968
      %v4673 = vunpack.c.h.b16 %v3968
      %v4674 = vunpack.c.l.b16 %v3969
      %v4675 = vunpack.c.l.b16 %v3970
      %v4676 = vunpack.c.h.b16 %v3970
      %v4677 = vunpack.c.l.b16 %v3971
      %v4678 = vunpack.c.h.b16 %v3971
      %v4679 = vunpack.c.l.b16 %v3972
      %v4680 = vunpack.c.h.b16 %v3972
      %v4681 = vunpack.c.l.b16 %v3973
      %v4682 = vunpack.c.l.b16 %v3974
      %v4683 = vunpack.c.h.b16 %v3974
      %v4684 = vunpack.c.l.b16 %v3975
      %v4685 = vunpack.c.h.b16 %v3975
      %v4686 = vunpack.c.l.b16 %v3976
      %v4687 = vunpack.c.h.b16 %v3976
      %v4688 = vunpack.c.l.b16 %v3977
      %v4689 = vunpack.c.l.b16 %v3978
      %v4690 = vunpack.c.h.b16 %v3978
      %v4691 = vunpack.c.l.b16 %v3979
      %v4692 = vunpack.c.h.b16 %v3979
      %v4693 = vunpack.c.l.b16 %v3980
      %v4694 = vunpack.c.h.b16 %v3980
      %v4695 = vunpack.c.l.b16 %v3981
      %v4696 = vunpack.c.l.b16 %v3982
      %v4697 = vunpack.c.h.b16 %v3982
      %v4698 = vunpack.c.l.b16 %v3983
      %v4699 = vunpack.c.h.b16 %v3983
      %v4700 = vunpack.c.l.b16 %v3984
      %v4701 = vunpack.c.h.b16 %v3984
      %v4702 = vunpack.c.l.b16 %v3985
      %v4703 = vunpack.c.l.b16 %v3986
      %v4704 = vunpack.c.h.b16 %v3986
      %v4705 = vunpack.c.l.b16 %v3987
      %v4706 = vunpack.c.h.b16 %v3987
      %v4707 = vunpack.c.l.b16 %v3988
      %v4708 = vunpack.c.h.b16 %v3988
      %v4709 = vunpack.c.l.b16 %v3989
      %v4710 = vunpack.c.l.b16 %v3990
      %v4711 = vunpack.c.h.b16 %v3990
      %v4712 = vunpack.c.l.b16 %v3991
      %v4713 = vunpack.c.h.b16 %v3991
      %v4714 = vunpack.c.l.b16 %v3992
      %v4715 = vunpack.c.h.b16 %v3992
      %v4716 = vunpack.c.l.b16 %v3993
      %v4717 = vunpack.c.l.b16 %v3994
      %v4718 = vunpack.c.h.b16 %v3994
      %v4719 = vunpack.c.l.b16 %v3995
      %v4720 = vunpack.c.h.b16 %v3995
      %v4721 = vunpack.c.l.b16 %v3996
      %v4722 = vunpack.c.h.b16 %v3996
      %v4723 = vunpack.c.l.b16 %v3997
      %v4724 = vunpack.c.l.b16 %v3998
      %v4725 = vunpack.c.h.b16 %v3998
      %v4726 = vunpack.c.l.b16 %v3999
      %v4727 = vunpack.c.h.b16 %v3999
      %v4728 = vunpack.c.l.b16 %v4000
      %v4729 = vunpack.c.h.b16 %v4000
      %v4730 = vunpack.c.l.b16 %v4001
      %v4731 = vunpack.c.l.b16 %v4002
      %v4732 = vunpack.c.h.b16 %v4002
      %v4733 = vunpack.c.l.b16 %v4003
      %v4734 = vunpack.c.h.b16 %v4003
      %v4735 = vunpack.c.l.b16 %v4004
      %v4736 = vunpack.c.h.b16 %v4004
      %v4737 = vunpack.c.l.b16 %v4005
      %v4738 = vunpack.c.l.b16 %v4006
      %v4739 = vunpack.c.h.b16 %v4006
      %v4740 = vunpack.c.l.b16 %v4007
      %v4741 = vunpack.c.h.b16 %v4007
      %v4742 = vunpack.c.l.b16 %v4008
      %v4743 = vunpack.c.h.b16 %v4008
      %v4744 = vunpack.c.l.b16 %v4009
      %v4745 = vunpack.c.l.b16 %v4010
      %v4746 = vunpack.c.h.b16 %v4010
      %v4747 = vunpack.c.l.b16 %v4011
      %v4748 = vunpack.c.h.b16 %v4011
      %v4749 = vunpack.c.l.b16 %v4012
      %v4750 = vunpack.c.h.b16 %v4012
      %v4751 = vunpack.c.l.b16 %v4013
      %v4752 = vunpack.c.l.b16 %v4014
      %v4753 = vunpack.c.h.b16 %v4014
      %v4754 = vunpack.c.l.b16 %v4015
      %v4755 = vunpack.c.h.b16 %v4015
      %v4756 = vunpack.c.l.b16 %v4016
      %v4757 = vunpack.c.h.b16 %v4016
      %v4758 = vunpack.c.l.b16 %v4017
      %v4759 = vunpack.c.l.b16 %v4018
      %v4760 = vunpack.c.h.b16 %v4018
      %v4761 = vunpack.c.l.b16 %v4019
      %v4762 = vunpack.c.h.b16 %v4019
      %v4763 = vunpack.c.l.b16 %v4020
      %v4764 = vunpack.c.h.b16 %v4020
      %v4765 = vunpack.c.l.b16 %v4021
      %v4766 = vunpack.c.l.b16 %v4022
      %v4767 = vunpack.c.h.b16 %v4022
      %v4768 = vunpack.c.l.b16 %v4023
      %v4769 = vunpack.c.h.b16 %v4023
      %v4770 = vunpack.c.l.b16 %v4024
      %v4771 = vunpack.c.h.b16 %v4024
      %v4772 = vunpack.c.l.b16 %v4025
      %v4773 = vunpack.c.l.b16 %v4026
      %v4774 = vunpack.c.h.b16 %v4026
      %v4775 = vunpack.c.l.b16 %v4027
      %v4776 = vunpack.c.h.b16 %v4027
      %v4777 = vunpack.c.l.b16 %v4028
      %v4778 = vunpack.c.h.b16 %v4028
      %v4779 = vunpack.c.l.b16 %v4029
      %v4780 = vunpack.c.l.b16 %v4030
      %v4781 = vunpack.c.h.b16 %v4030
      %v4782 = vunpack.c.l.b16 %v4031
      %v4783 = vunpack.c.h.b16 %v4031
      %v4784 = vunpack.c.l.b16 %v4032
      %v4785 = vunpack.c.h.b16 %v4032
      %v4786 = vunpack.c.l.b16 %v4033
      %v4787 = vunpack.c.l.b16 %v4034
      %v4788 = vunpack.c.h.b16 %v4034
      %v4789 = vunpack.c.l.b16 %v4035
      %v4790 = vunpack.c.h.b16 %v4035
      %v4791 = vunpack.c.l.b16 %v4036
      %v4792 = vunpack.c.h.b16 %v4036
      %v4793 = vunpack.c.l.b16 %v4037
      %v4794 = vunpack.c.l.b16 %v4038
      %v4795 = vunpack.c.h.b16 %v4038
      %v4796 = vunpack.c.l.b16 %v4039
      %v4797 = vunpack.c.h.b16 %v4039
      %v4798 = vunpack.c.l.b16 %v4040
      %v4799 = vunpack.c.h.b16 %v4040
      %v4800 = vunpack.c.l.b16 %v4041
      %v4801 = vunpack.c.l.b16 %v4042
      %v4802 = vunpack.c.h.b16 %v4042
      %v4803 = vunpack.c.l.b16 %v4043
      %v4804 = vunpack.c.h.b16 %v4043
      %v4805 = vunpack.c.l.b16 %v4044
      %v4806 = vunpack.c.h.b16 %v4044
      %v4807 = vunpack.c.l.b16 %v4045
      %v4808 = vunpack.c.l.b16 %v4046
      %v4809 = vunpack.c.h.b16 %v4046
      %v4810 = vunpack.c.l.b16 %v4047
      %v4811 = vunpack.c.h.b16 %v4047
      %v4812 = vunpack.c.l.b16 %v4048
      %v4813 = vunpack.c.h.b16 %v4048
      %v4814 = vunpack.c.l.b16 %v4049
      %v4815 = vunpack.c.l.b16 %v4050
      %v4816 = vunpack.c.h.b16 %v4050
      %v4817 = vunpack.c.l.b16 %v4051
      %v4818 = vunpack.c.h.b16 %v4051
      %v4819 = vunpack.c.l.b16 %v4052
      %v4820 = vunpack.c.h.b16 %v4052
      %v4821 = vunpack.c.l.b16 %v4053
      %v4822 = vunpack.c.l.b16 %v4054
      %v4823 = vunpack.c.h.b16 %v4054
      %v4824 = vunpack.c.l.b16 %v4055
      %v4825 = vunpack.c.h.b16 %v4055
      %v4826 = vunpack.c.l.b16 %v4056
      %v4827 = vunpack.c.h.b16 %v4056
      %v4828 = vunpack.c.l.b16 %v4057
      %v4829 = vunpack.c.l.b16 %v4058
      %v4830 = vunpack.c.h.b16 %v4058
      %v4831 = vunpack.c.l.b16 %v4059
      %v4832 = vunpack.c.h.b16 %v4059
      %v4833 = vunpack.c.l.b16 %v4060
      %v4834 = vunpack.c.h.b16 %v4060
      %v4835 = vunpack.c.l.b16 %v4061
      %v4836 = vunpack.c.l.b16 %v4062
      %v4837 = vunpack.c.h.b16 %v4062
      %v4838 = vunpack.c.l.b16 %v4063
      %v4839 = vunpack.c.h.b16 %v4063
      %v4840 = vunpack.c.l.b16 %v4064
      %v4841 = vunpack.c.h.b16 %v4064
      %v4842 = vunpack.c.l.b16 %v4065
      %v4843 = vunpack.c.l.b16 %v4066
      %v4844 = vunpack.c.h.b16 %v4066
      %v4845 = vunpack.c.l.b16 %v4067
      %v4846 = vunpack.c.h.b16 %v4067
      %v4847 = vunpack.c.l.b16 %v4068
      %v4848 = vunpack.c.h.b16 %v4068
      %v4849 = vunpack.c.l.b16 %v4069
      %v4850 = vunpack.c.l.b16 %v4070
      %v4851 = vunpack.c.h.b16 %v4070
      %v4852 = vunpack.c.l.b16 %v4071
      %v4853 = vunpack.c.h.b16 %v4071
      %v4854 = vunpack.c.l.b16 %v4072
      %v4855 = vunpack.c.h.b16 %v4072
      %v4856 = vunpack.c.l.b16 %v4073
      %v4857 = vunpack.c.l.b16 %v4074
      %v4858 = vunpack.c.h.b16 %v4074
      %v4859 = vunpack.c.l.b16 %v4075
      %v4860 = vunpack.c.h.b16 %v4075
      %v4861 = vunpack.c.l.b16 %v4076
      %v4862 = vunpack.c.h.b16 %v4076
      %v4863 = vunpack.c.l.b16 %v4077
      %v4864 = vunpack.c.l.b16 %v4078
      %v4865 = vunpack.c.h.b16 %v4078
      %v4866 = vunpack.c.l.b16 %v4079
      %v4867 = vunpack.c.h.b16 %v4079
      %v4868 = vunpack.c.l.b16 %v4080
      %v4869 = vunpack.c.h.b16 %v4080
      %v4870 = vunpack.c.l.b16 %v4081
      %v4871 = vunpack.c.l.b16 %v4082
      %v4872 = vunpack.c.h.b16 %v4082
      %v4873 = vunpack.c.l.b16 %v4083
      %v4874 = vunpack.c.h.b16 %v4083
      %v4875 = vunpack.c.l.b16 %v4084
      %v4876 = vunpack.c.h.b16 %v4084
      %v4877 = vunpack.c.l.b16 %v4085
      %v4878 = vunpack.c.l.b16 %v4086
      %v4879 = vunpack.c.h.b16 %v4086
      %v4880 = vunpack.c.l.b16 %v4087
      %v4881 = vunpack.c.h.b16 %v4087
      %v4882 = vunpack.c.l.b16 %v4088
      %v4883 = vunpack.c.h.b16 %v4088
      %v4884 = vunpack.c.l.b16 %v4089
      %v4885 = vunpack.c.l.b16 %v4090
      %v4886 = vunpack.c.h.b16 %v4090
      %v4887 = vunpack.c.l.b16 %v4091
      %v4888 = vunpack.c.h.b16 %v4091
      %v4889 = vunpack.c.l.b16 %v4092
      %v4890 = vunpack.c.h.b16 %v4092
      %v4891 = vunpack.c.l.b16 %v4093
      %v4892 = vunpack.c.l.b16 %v4094
      %v4893 = vunpack.c.h.b16 %v4094
      %v4894 = vunpack.c.l.b16 %v4095
      %v4895 = vunpack.c.h.b16 %v4095
      %v4896 = vunpack.c.l.b16 %v4096
      %v4897 = vunpack.c.h.b16 %v4096
      %v4898 = vunpack.c.l.b16 %v4097
      %v4899 = vunpack.c.l.b16 %v4098
      %v4900 = vunpack.c.h.b16 %v4098
      %v4901 = vunpack.c.l.b16 %v4099
      %v4902 = vunpack.c.h.b16 %v4099
      %v4903 = vunpack.c.l.b16 %v4100
      %v4904 = vunpack.c.h.b16 %v4100
      %v4905 = vunpack.c.l.b16 %v4101
      %v4906 = vunpack.c.l.b16 %v4102
      %v4907 = vunpack.c.h.b16 %v4102
      %v4908 = vunpack.c.l.b16 %v4103
      %v4909 = vunpack.c.h.b16 %v4103
      %v4910 = vunpack.c.l.b16 %v4104
      %v4911 = vunpack.c.h.b16 %v4104
      %v4912 = vunpack.c.l.b16 %v4105
      %v4913 = vunpack.c.l.b16 %v4106
      %v4914 = vunpack.c.h.b16 %v4106
      %v4915 = vunpack.c.l.b16 %v4107
      %v4916 = vunpack.c.h.b16 %v4107
      %v4917 = vunpack.c.l.b16 %v4108
      %v4918 = vunpack.c.h.b16 %v4108
      %v4919 = vunpack.c.l.b16 %v4109
      %v4920 = vunpack.c.l.b16 %v4110
      %v4921 = vunpack.c.h.b16 %v4110
      %v4922 = vunpack.c.l.b16 %v4111
      %v4923 = vunpack.c.h.b16 %v4111
      %v4924 = vunpack.c.l.b16 %v4112
      %v4925 = vunpack.c.h.b16 %v4112
      %v4926 = vunpack.c.l.b16 %v4113
      %v4927 = vunpack.c.l.b16 %v4114
      %v4928 = vunpack.c.h.b16 %v4114
      %v4929 = vunpack.c.l.b16 %v4115
      %v4930 = vunpack.c.h.b16 %v4115
      %v4931 = vunpack.c.l.b16 %v4116
      %v4932 = vunpack.c.h.b16 %v4116
      %v4933 = vunpack.c.l.b16 %v4117
      %v4934 = vunpack.c.l.b16 %v4118
      %v4935 = vunpack.c.h.b16 %v4118
      %v4936 = vunpack.c.l.b16 %v4119
      %v4937 = vunpack.c.h.b16 %v4119
      %v4938 = vunpack.c.l.b16 %v4120
      %v4939 = vunpack.c.h.b16 %v4120
      %v4940 = vunpack.c.l.b16 %v4121
      %v4941 = vunpack.c.l.b16 %v4122
      %v4942 = vunpack.c.h.b16 %v4122
      %v4943 = vunpack.c.l.b16 %v4123
      %v4944 = vunpack.c.h.b16 %v4123
      %v4945 = vunpack.c.l.b16 %v4124
      %v4946 = vunpack.c.h.b16 %v4124
      %v4947 = vunpack.c.l.b16 %v4125
      %v4948 = vunpack.c.l.b16 %v4126
      %v4949 = vunpack.c.h.b16 %v4126
      %v4950 = vunpack.c.l.b16 %v4127
      %v4951 = vunpack.c.h.b16 %v4127
      %v4952 = vunpack.c.l.b16 %v4128
      %v4953 = vunpack.c.h.b16 %v4128
      %v4954 = vunpack.c.l.b16 %v4129
      %v4955 = vunpack.c.l.b16 %v4130
      %v4956 = vunpack.c.h.b16 %v4130
      %v4957 = vunpack.c.l.b16 %v4131
      %v4958 = vunpack.c.h.b16 %v4131
      %v4959 = vunpack.c.l.b16 %v4132
      %v4960 = vunpack.c.h.b16 %v4132
      %v4961 = vunpack.c.l.b16 %v4133
      %v4962 = vunpack.c.l.b16 %v4134
      %v4963 = vunpack.c.h.b16 %v4134
      %v4964 = vunpack.c.l.b16 %v4135
      %v4965 = vunpack.c.h.b16 %v4135
      %v4966 = vunpack.c.l.b16 %v4136
      %v4967 = vunpack.c.h.b16 %v4136
      %v4968 = vunpack.c.l.b16 %v4137
      %v4969 = vunpack.c.l.b16 %v4138
      %v4970 = vunpack.c.h.b16 %v4138
      %v4971 = vunpack.c.l.b16 %v4139
      %v4972 = vunpack.c.h.b16 %v4139
      %v4973 = vunpack.c.l.b16 %v4140
      %v4974 = vunpack.c.h.b16 %v4140
      %v4975 = vunpack.c.l.b16 %v4141
      %v4976 = vunpack.c.l.b16 %v4142
      %v4977 = vunpack.c.h.b16 %v4142
      %v4978 = vunpack.c.l.b16 %v4143
      %v4979 = vunpack.c.h.b16 %v4143
      %v4980 = vunpack.c.l.b16 %v4144
      %v4981 = vunpack.c.h.b16 %v4144
      %v4982 = vunpack.c.l.b16 %v4145
      %v4983 = vunpack.c.l.b16 %v4146
      %v4984 = vunpack.c.h.b16 %v4146
      %v4985 = vunpack.c.l.b16 %v4147
      %v4986 = vunpack.c.h.b16 %v4147
      %v4987 = vunpack.c.l.b16 %v4148
      %v4988 = vunpack.c.h.b16 %v4148
      %v4989 = vunpack.c.l.b16 %v4149
      %v4990 = vunpack.c.l.b16 %v4150
      %v4991 = vunpack.c.h.b16 %v4150
      %v4992 = vunpack.c.l.b16 %v4151
      %v4993 = vunpack.c.h.b16 %v4151
      %v4994 = vunpack.c.l.b16 %v4152
      %v4995 = vunpack.c.h.b16 %v4152
      %v4996 = vunpack.c.l.b16 %v4153
      %v4997 = vunpack.c.l.b16 %v4154
      %v4998 = vunpack.c.h.b16 %v4154
      %v4999 = vunpack.c.l.b16 %v4155
      %v5000 = vunpack.c.h.b16 %v4155
      %v5001 = vunpack.c.l.b16 %v4156
      %v5002 = vunpack.c.h.b16 %v4156
      %v5003 = vunpack.c.l.b16 %v4157
      %v5004 = vunpack.c.l.b16 %v4158
      %v5005 = vunpack.c.h.b16 %v4158
      %v5006 = vunpack.c.l.b16 %v4159
      %v5007 = vunpack.c.h.b16 %v4159
      %v5008 = vunpack.c.l.b16 %v4160
      %v5009 = vunpack.c.h.b16 %v4160
      %v5010 = vunpack.c.l.b16 %v4161
      %v5011 = vunpack.c.l.b16 %v4162
      %v5012 = vunpack.c.h.b16 %v4162
      %v5013 = vunpack.c.l.b16 %v4163
      %v5014 = vunpack.c.h.b16 %v4163
      %v5015 = vunpack.c.l.b16 %v4164
      %v5016 = vunpack.c.h.b16 %v4164
      %v5017 = vunpack.c.l.b16 %v4165
      %v5018 = vunpack.c.l.b16 %v4166
      %v5019 = vunpack.c.h.b16 %v4166
      %v5020 = vunpack.c.l.b16 %v4167
      %v5021 = vunpack.c.h.b16 %v4167
      %v5022 = vunpack.c.l.b16 %v4168
      %v5023 = vunpack.c.h.b16 %v4168
      %v5024 = vunpack.c.l.b16 %v4169
      %v5025 = vunpack.c.l.b16 %v4170
      %v5026 = vunpack.c.h.b16 %v4170
      %v5027 = vunpack.c.l.b16 %v4171
      %v5028 = vunpack.c.h.b16 %v4171
      %v5029 = vunpack.c.l.b16 %v4172
      %v5030 = vunpack.c.h.b16 %v4172
      %v5031 = vunpack.c.l.b16 %v4173
      %v5032 = vunpack.c.l.b16 %v4174
      %v5033 = vunpack.c.h.b16 %v4174
      %v5034 = vunpack.c.l.b16 %v4175
      %v5035 = vunpack.c.h.b16 %v4175
      %v5036 = vunpack.c.l.b16 %v4176
      %v5037 = vunpack.c.h.b16 %v4176
      %v5038 = vunpack.c.l.b16 %v4177
      %v5039 = vunpack.c.l.b16 %v4178
      %v5040 = vunpack.c.h.b16 %v4178
      %v5041 = vunpack.c.l.b16 %v4179
      %v5042 = vunpack.c.h.b16 %v4179
      %v5043 = vunpack.c.l.b16 %v4180
      %v5044 = vunpack.c.h.b16 %v4180
      %v5045 = vunpack.c.l.b16 %v4181
      %v5046 = vunpack.c.l.b16 %v4182
      %v5047 = vunpack.c.h.b16 %v4182
      %v5048 = vunpack.c.l.b16 %v4183
      %v5049 = vunpack.c.h.b16 %v4183
      %v5050 = vunpack.c.l.b16 %v4184
      %v5051 = vunpack.c.h.b16 %v4184
      %v5052 = vunpack.c.l.b16 %v4185
      %v5053 = vunpack.c.l.b16 %v4186
      %v5054 = vunpack.c.h.b16 %v4186
      %v5055 = vunpack.c.l.b16 %v4187
      %v5056 = vunpack.c.h.b16 %v4187
      %v5057 = vunpack.c.l.b16 %v4188
      %v5058 = vunpack.c.h.b16 %v4188
      %v5059 = vunpack.c.l.b16 %v4189
      %v5060 = vunpack.c.l.b16 %v4190
      %v5061 = vunpack.c.h.b16 %v4190
      %v5062 = vunpack.c.l.b16 %v4191
      %v5063 = vunpack.c.h.b16 %v4191
      %v5064 = vunpack.c.l.b16 %v4192
      %v5065 = vunpack.c.h.b16 %v4192
      %v5066 = vunpack.c.l.b16 %v4193
      %v5067 = vunpack.c.l.b16 %v4194
      %v5068 = vunpack.c.h.b16 %v4194
      %v5069 = vunpack.c.l.b16 %v4195
      %v5070 = vunpack.c.h.b16 %v4195
      %v5071 = vunpack.c.l.b16 %v4196
      %v5072 = vunpack.c.h.b16 %v4196
      %v5073 = vunpack.c.l.b16 %v4197
      %v5074 = vunpack.c.l.b16 %v4198
      %v5075 = vunpack.c.h.b16 %v4198
      %v5076 = vunpack.c.l.b16 %v4199
      %v5077 = vunpack.c.h.b16 %v4199
      %v5078 = vunpack.c.l.b16 %v4200
      %v5079 = vunpack.c.h.b16 %v4200
      %v5080 = vunpack.c.l.b16 %v4201
      %v5081 = vunpack.c.l.b16 %v4202
      %v5082 = vunpack.c.h.b16 %v4202
      %v5083 = vunpack.c.l.b16 %v4203
      %v5084 = vunpack.c.h.b16 %v4203
      %v5085 = vunpack.c.l.b16 %v4204
      %v5086 = vunpack.c.h.b16 %v4204
      %v5087 = vunpack.c.l.b16 %v4205
      %v5088 = vunpack.c.l.b16 %v4206
      %v5089 = vunpack.c.h.b16 %v4206
      %v5090 = vunpack.c.l.b16 %v4207
      %v5091 = vunpack.c.h.b16 %v4207
      %v5092 = vunpack.c.l.b16 %v4208
      %v5093 = vunpack.c.h.b16 %v4208
      %v5094 = vunpack.c.l.b16 %v4209
      %v5095 = vunpack.c.l.b16 %v4210
      %v5096 = vunpack.c.h.b16 %v4210
      %v5097 = vunpack.c.l.b16 %v4211
      %v5098 = vunpack.c.h.b16 %v4211
      %v5099 = vunpack.c.l.b16 %v4212
      %v5100 = vunpack.c.h.b16 %v4212
      %v5101 = vunpack.c.l.b16 %v4213
      %v5102 = vunpack.c.l.b16 %v4214
      %v5103 = vunpack.c.h.b16 %v4214
      %v5104 = vunpack.c.l.b16 %v4215
      %v5105 = vunpack.c.h.b16 %v4215
      %v5106 = vunpack.c.l.b16 %v4216
      %v5107 = vunpack.c.h.b16 %v4216
      %v5108 = vunpack.c.l.b16 %v4217
      %v5109 = vunpack.c.l.b16 %v4218
      %v5110 = vunpack.c.h.b16 %v4218
      %v5111 = vunpack.c.l.b16 %v4219
      %v5112 = vunpack.c.h.b16 %v4219
      %v5113 = vunpack.c.l.b16 %v4220
      %v5114 = vunpack.c.h.b16 %v4220
      %v5115 = vunpack.c.l.b16 %v4221
      %v5116 = vunpack.c.l.b16 %v4222
      %v5117 = vunpack.c.h.b16 %v4222
      %v5118 = vunpack.c.l.b16 %v4223
      %v5119 = vunpack.c.h.b16 %v4223
      %v5120 = vunpack.c.l.b16 %v4224
      %v5121 = vunpack.c.h.b16 %v4224
      %v5122 = vunpack.c.l.b16 %v4225
      %v5123 = vunpack.c.l.b16 %v4226
      %v5124 = vunpack.c.h.b16 %v4226
      %v5125 = vunpack.c.l.b16 %v4227
      %v5126 = vunpack.c.h.b16 %v4227
      %v5127 = vunpack.c.l.b16 %v4228
      %v5128 = vunpack.c.h.b16 %v4228
      %v5129 = vunpack.c.l.b16 %v4229
      %v5130 = vunpack.c.l.b16 %v4230
      %v5131 = vunpack.c.h.b16 %v4230
      %v5132 = vunpack.c.l.b16 %v4231
      %v5133 = vunpack.c.h.b16 %v4231
      %v5134 = vunpack.c.l.b16 %v4232
      %v5135 = vunpack.c.h.b16 %v4232
      %v5136 = vunpack.c.l.b16 %v4233
      %v5137 = vunpack.c.l.b16 %v4234
      %v5138 = vunpack.c.h.b16 %v4234
      %v5139 = vunpack.c.l.b16 %v4235
      %v5140 = vunpack.c.h.b16 %v4235
      %v5141 = vunpack.c.l.b16 %v4236
      %v5142 = vunpack.c.h.b16 %v4236
      %v5143 = vunpack.c.l.b16 %v4237
      %v5144 = vunpack.c.l.b16 %v4238
      %v5145 = vunpack.c.h.b16 %v4238
      %v5146 = vunpack.c.l.b16 %v4239
      %v5147 = vunpack.c.h.b16 %v4239
      %v5148 = vunpack.c.l.b16 %v4240
      %v5149 = vunpack.c.h.b16 %v4240
      %v5150 = vunpack.c.l.b16 %v4241
      %v5151 = vunpack.c.l.b16 %v4242
      %v5152 = vunpack.c.h.b16 %v4242
      %v5153 = vunpack.c.l.b16 %v4243
      %v5154 = vunpack.c.h.b16 %v4243
      %v5155 = vunpack.c.l.b16 %v4244
      %v5156 = vunpack.c.h.b16 %v4244
      %v5157 = vunpack.c.l.b16 %v4245
      %v5158 = vunpack.c.l.b16 %v4246
      %v5159 = vunpack.c.h.b16 %v4246
      %v5160 = vunpack.c.l.b16 %v4247
      %v5161 = vunpack.c.h.b16 %v4247
      %v5162 = vunpack.c.l.b16 %v4248
      %v5163 = vunpack.c.h.b16 %v4248
      %v5164 = vunpack.c.l.b16 %v4249
      %v5165 = vunpack.c.l.b16 %v4250
      %v5166 = vunpack.c.h.b16 %v4250
      %v5167 = vunpack.c.l.b16 %v4251
      %v5168 = vunpack.c.h.b16 %v4251
      %v5169 = vunpack.c.l.b16 %v4252
      %v5170 = vunpack.c.h.b16 %v4252
      %v5171 = vunpack.c.l.b16 %v4253
      %v5172 = vunpack.c.l.b16 %v4254
      %v5173 = vunpack.c.h.b16 %v4254
      %v5174 = vunpack.c.l.b16 %v4255
      %v5175 = vunpack.c.h.b16 %v4255
      %v5176 = vunpack.c.l.b16 %v4256
      %v5177 = vunpack.c.h.b16 %v4256
      %v5178 = vunpack.c.l.b16 %v4257
      %v5179 = vunpack.c.l.b16 %v4258
      %v5180 = vunpack.c.h.b16 %v4258
      %v5181 = vunpack.c.l.b16 %v4259
      %v5182 = vunpack.c.h.b16 %v4259
      %v5183 = vunpack.c.l.b16 %v4260
      %v5184 = vunpack.c.h.b16 %v4260
      %v5185 = vunpack.c.l.b16 %v4261
      %v5186 = vunpack.c.l.b16 %v4262
      %v5187 = vunpack.c.h.b16 %v4262
      %v5188 = vunpack.c.l.b16 %v4263
      %v5189 = vunpack.c.h.b16 %v4263
      %v5190 = vunpack.c.l.b16 %v4264
      %v5191 = vunpack.c.h.b16 %v4264
      %v5192 = vunpack.c.l.b16 %v4265
      %v5193 = vunpack.c.l.b16 %v4266
      %v5194 = vunpack.c.h.b16 %v4266
      %v5195 = vunpack.c.l.b16 %v4267
      %v5196 = vunpack.c.h.b16 %v4267
      %v5197 = vunpack.c.l.b16 %v4268
      %v5198 = vunpack.c.h.b16 %v4268
      %v5199 = vunpack.c.l.b16 %v4269
      %v5200 = vunpack.c.l.b16 %v4270
      %v5201 = vunpack.c.h.b16 %v4270
      %v5202 = vunpack.c.l.b16 %v4271
      %v5203 = vunpack.c.h.b16 %v4271
      %v5204 = vunpack.c.l.b16 %v4272
      %v5205 = vunpack.c.h.b16 %v4272
      %v5206 = vunpack.c.l.b16 %v4273
      %v5207 = vunpack.c.l.b16 %v4274
      %v5208 = vunpack.c.h.b16 %v4274
      %v5209 = vunpack.c.l.b16 %v4275
      %v5210 = vunpack.c.h.b16 %v4275
      %v5211 = vunpack.c.l.b16 %v4276
      %v5212 = vunpack.c.h.b16 %v4276
      %v5213 = vunpack.c.l.b16 %v4277
      %v5214 = vunpack.c.l.b16 %v4278
      %v5215 = vunpack.c.h.b16 %v4278
      %v5216 = vunpack.c.l.b16 %v4279
      %v5217 = vunpack.c.h.b16 %v4279
      %v5218 = vunpack.c.l.b16 %v4280
      %v5219 = vunpack.c.h.b16 %v4280
      %v5220 = vunpack.c.l.b16 %v4281
      %v5221 = vunpack.c.l.b16 %v4282
      %v5222 = vunpack.c.h.b16 %v4282
      %v5223 = vunpack.c.l.b16 %v4283
      %v5224 = vunpack.c.h.b16 %v4283
      %v5225 = vunpack.c.l.b16 %v4284
      %v5226 = vunpack.c.h.b16 %v4284
      %v5227 = vunpack.c.l.b16 %v4285
      %v5228 = vunpack.c.l.b16 %v4286
      %v5229 = vunpack.c.h.b16 %v4286
      %v5230 = vunpack.c.l.b16 %v4287
      %v5231 = vunpack.c.h.b16 %v4287
      %v5232 = vunpack.c.l.b16 %v4288
      %v5233 = vunpack.c.h.b16 %v4288
      %v5234 = vunpack.c.l.b16 %v4289
      %v5235 = vunpack.c.l.b16 %v4290
      %v5236 = vunpack.c.h.b16 %v4290
      %v5237 = vunpack.c.l.b16 %v4291
      %v5238 = vunpack.c.h.b16 %v4291
      %v5239 = vunpack.c.l.b16 %v4292
      %v5240 = vunpack.c.h.b16 %v4292
      %v5241 = vunpack.c.l.b16 %v4293
      %v5242 = vunpack.c.l.b16 %v4294
      %v5243 = vunpack.c.h.b16 %v4294
      %v5244 = vunpack.c.l.b16 %v4295
      %v5245 = vunpack.c.h.b16 %v4295
      %v5246 = vunpack.c.l.b16 %v4296
      %v5247 = vunpack.c.h.b16 %v4296
      %v5248 = vunpack.c.l.b16 %v4297
      %v5249 = vunpack.c.l.b16 %v4298
      %v5250 = vunpack.c.h.b16 %v4298
      %v5251 = vunpack.c.l.b16 %v4299
      %v5252 = vunpack.c.h.b16 %v4299
      %v5253 = vunpack.c.l.b16 %v4300
      %v5254 = vunpack.c.h.b16 %v4300
      %v5255 = vunpack.c.l.b16 %v4301
      %v5256 = vunpack.c.l.b16 %v4302
      %v5257 = vunpack.c.h.b16 %v4302
      %v5258 = vunpack.c.l.b16 %v4303
      %v5259 = vunpack.c.h.b16 %v4303
      %v5260 = vunpack.c.l.b16 %v4304
      %v5261 = vunpack.c.h.b16 %v4304
      %v5262 = vunpack.c.l.b16 %v4305
      %v5263 = vpack.c.b16 %v4661, %v4654
      %v5264 = vpack.c.b16 %v4662, %v4655
      %v5265 = vpack.c.b16 %v4663, %v4656
      %v5266 = vpack.c.b16 %v4664, %v4657
      %v5267 = vpack.c.b16 %v4665, %v4658
      %v5268 = vpack.c.b16 %v4666, %v4659
      %v5269 = vpack.c.b16 %v4667, %v4660
      %v5270 = vpack.c.b16 %v4675, %v4668
      %v5271 = vpack.c.b16 %v4676, %v4669
      %v5272 = vpack.c.b16 %v4677, %v4670
      %v5273 = vpack.c.b16 %v4678, %v4671
      %v5274 = vpack.c.b16 %v4679, %v4672
      %v5275 = vpack.c.b16 %v4680, %v4673
      %v5276 = vpack.c.b16 %v4681, %v4674
      %v5277 = vpack.c.b16 %v4689, %v4682
      %v5278 = vpack.c.b16 %v4690, %v4683
      %v5279 = vpack.c.b16 %v4691, %v4684
      %v5280 = vpack.c.b16 %v4692, %v4685
      %v5281 = vpack.c.b16 %v4693, %v4686
      %v5282 = vpack.c.b16 %v4694, %v4687
      %v5283 = vpack.c.b16 %v4695, %v4688
      %v5284 = vpack.c.b16 %v4703, %v4696
      %v5285 = vpack.c.b16 %v4704, %v4697
      %v5286 = vpack.c.b16 %v4705, %v4698
      %v5287 = vpack.c.b16 %v4706, %v4699
      %v5288 = vpack.c.b16 %v4707, %v4700
      %v5289 = vpack.c.b16 %v4708, %v4701
      %v5290 = vpack.c.b16 %v4709, %v4702
      %v5291 = vpack.c.b16 %v4717, %v4710
      %v5292 = vpack.c.b16 %v4718, %v4711
      %v5293 = vpack.c.b16 %v4719, %v4712
      %v5294 = vpack.c.b16 %v4720, %v4713
      %v5295 = vpack.c.b16 %v4721, %v4714
      %v5296 = vpack.c.b16 %v4722, %v4715
      %v5297 = vpack.c.b16 %v4723, %v4716
      %v5298 = vpack.c.b16 %v4731, %v4724
      %v5299 = vpack.c.b16 %v4732, %v4725
      %v5300 = vpack.c.b16 %v4733, %v4726
      %v5301 = vpack.c.b16 %v4734, %v4727
      %v5302 = vpack.c.b16 %v4735, %v4728
      %v5303 = vpack.c.b16 %v4736, %v4729
      %v5304 = vpack.c.b16 %v4737, %v4730
      %v5305 = vpack.c.b16 %v4745, %v4738
      %v5306 = vpack.c.b16 %v4746, %v4739
      %v5307 = vpack.c.b16 %v4747, %v4740
      %v5308 = vpack.c.b16 %v4748, %v4741
      %v5309 = vpack.c.b16 %v4749, %v4742
      %v5310 = vpack.c.b16 %v4750, %v4743
      %v5311 = vpack.c.b16 %v4751, %v4744
      %v5312 = vpack.c.b16 %v4759, %v4752
      %v5313 = vpack.c.b16 %v4760, %v4753
      %v5314 = vpack.c.b16 %v4761, %v4754
      %v5315 = vpack.c.b16 %v4762, %v4755
      %v5316 = vpack.c.b16 %v4763, %v4756
      %v5317 = vpack.c.b16 %v4764, %v4757
      %v5318 = vpack.c.b16 %v4765, %v4758
      %v5319 = vpack.c.b16 %v4773, %v4766
      %v5320 = vpack.c.b16 %v4774, %v4767
      %v5321 = vpack.c.b16 %v4775, %v4768
      %v5322 = vpack.c.b16 %v4776, %v4769
      %v5323 = vpack.c.b16 %v4777, %v4770
      %v5324 = vpack.c.b16 %v4778, %v4771
      %v5325 = vpack.c.b16 %v4779, %v4772
      %v5326 = vpack.c.b16 %v4787, %v4780
      %v5327 = vpack.c.b16 %v4788, %v4781
      %v5328 = vpack.c.b16 %v4789, %v4782
      %v5329 = vpack.c.b16 %v4790, %v4783
      %v5330 = vpack.c.b16 %v4791, %v4784
      %v5331 = vpack.c.b16 %v4792, %v4785
      %v5332 = vpack.c.b16 %v4793, %v4786
      %v5333 = vpack.c.b16 %v4801, %v4794
      %v5334 = vpack.c.b16 %v4802, %v4795
      %v5335 = vpack.c.b16 %v4803, %v4796
      %v5336 = vpack.c.b16 %v4804, %v4797
      %v5337 = vpack.c.b16 %v4805, %v4798
      %v5338 = vpack.c.b16 %v4806, %v4799
      %v5339 = vpack.c.b16 %v4807, %v4800
      %v5340 = vpack.c.b16 %v4815, %v4808
      %v5341 = vpack.c.b16 %v4816, %v4809
      %v5342 = vpack.c.b16 %v4817, %v4810
      %v5343 = vpack.c.b16 %v4818, %v4811
      %v5344 = vpack.c.b16 %v4819, %v4812
      %v5345 = vpack.c.b16 %v4820, %v4813
      %v5346 = vpack.c.b16 %v4821, %v4814
      %v5347 = vpack.c.b16 %v4829, %v4822
      %v5348 = vpack.c.b16 %v4830, %v4823
      %v5349 = vpack.c.b16 %v4831, %v4824
      %v5350 = vpack.c.b16 %v4832, %v4825
      %v5351 = vpack.c.b16 %v4833, %v4826
      %v5352 = vpack.c.b16 %v4834, %v4827
      %v5353 = vpack.c.b16 %v4835, %v4828
      %v5354 = vpack.c.b16 %v4843, %v4836
      %v5355 = vpack.c.b16 %v4844, %v4837
      %v5356 = vpack.c.b16 %v4845, %v4838
      %v5357 = vpack.c.b16 %v4846, %v4839
      %v5358 = vpack.c.b16 %v4847, %v4840
      %v5359 = vpack.c.b16 %v4848, %v4841
      %v5360 = vpack.c.b16 %v4849, %v4842
      %v5361 = vpack.c.b16 %v4857, %v4850
      %v5362 = vpack.c.b16 %v4858, %v4851
      %v5363 = vpack.c.b16 %v4859, %v4852
      %v5364 = vpack.c.b16 %v4860, %v4853
      %v5365 = vpack.c.b16 %v4861, %v4854
      %v5366 = vpack.c.b16 %v4862, %v4855
      %v5367 = vpack.c.b16 %v4863, %v4856
      %v5368 = vpack.c.b16 %v4871, %v4864
      %v5369 = vpack.c.b16 %v4872, %v4865
      %v5370 = vpack.c.b16 %v4873, %v4866
      %v5371 = vpack.c.b16 %v4874, %v4867
      %v5372 = vpack.c.b16 %v4875, %v4868
      %v5373 = vpack.c.b16 %v4876, %v4869
      %v5374 = vpack.c.b16 %v4877, %v4870
      %v5375 = vpack.c.b16 %v4885, %v4878
      %v5376 = vpack.c.b16 %v4886, %v4879
      %v5377 = vpack.c.b16 %v4887, %v4880
      %v5378 = vpack.c.b16 %v4888, %v4881
      %v5379 = vpack.c.b16 %v4889, %v4882
      %v5380 = vpack.c.b16 %v4890, %v4883
      %v5381 = vpack.c.b16 %v4891, %v4884
      %v5382 = vpack.c.b16 %v4899, %v4892
      %v5383 = vpack.c.b16 %v4900, %v4893
      %v5384 = vpack.c.b16 %v4901, %v4894
      %v5385 = vpack.c.b16 %v4902, %v4895
      %v5386 = vpack.c.b16 %v4903, %v4896
      %v5387 = vpack.c.b16 %v4904, %v4897
      %v5388 = vpack.c.b16 %v4905, %v4898
      %v5389 = vpack.c.b16 %v4913, %v4906
      %v5390 = vpack.c.b16 %v4914, %v4907
      %v5391 = vpack.c.b16 %v4915, %v4908
      %v5392 = vpack.c.b16 %v4916, %v4909
      %v5393 = vpack.c.b16 %v4917, %v4910
      %v5394 = vpack.c.b16 %v4918, %v4911
      %v5395 = vpack.c.b16 %v4919, %v4912
      %v5396 = vpack.c.b16 %v4927, %v4920
      %v5397 = vpack.c.b16 %v4928, %v4921
      %v5398 = vpack.c.b16 %v4929, %v4922
      %v5399 = vpack.c.b16 %v4930, %v4923
      %v5400 = vpack.c.b16 %v4931, %v4924
      %v5401 = vpack.c.b16 %v4932, %v4925
      %v5402 = vpack.c.b16 %v4933, %v4926
      %v5403 = vpack.c.b16 %v4941, %v4934
      %v5404 = vpack.c.b16 %v4942, %v4935
      %v5405 = vpack.c.b16 %v4943, %v4936
      %v5406 = vpack.c.b16 %v4944, %v4937
      %v5407 = vpack.c.b16 %v4945, %v4938
      %v5408 = vpack.c.b16 %v4946, %v4939
      %v5409 = vpack.c.b16 %v4947, %v4940
      %v5410 = vpack.c.b16 %v4955, %v4948
      %v5411 = vpack.c.b16 %v4956, %v4949
      %v5412 = vpack.c.b16 %v4957, %v4950
      %v5413 = vpack.c.b16 %v4958, %v4951
      %v5414 = vpack.c.b16 %v4959, %v4952
      %v5415 = vpack.c.b16 %v4960, %v4953
      %v5416 = vpack.c.b16 %v4961, %v4954
      %v5417 = vpack.c.b16 %v4969, %v4962
      %v5418 = vpack.c.b16 %v4970, %v4963
      %v5419 = vpack.c.b16 %v4971, %v4964
      %v5420 = vpack.c.b16 %v4972, %v4965
      %v5421 = vpack.c.b16 %v4973, %v4966
      %v5422 = vpack.c.b16 %v4974, %v4967
      %v5423 = vpack.c.b16 %v4975, %v4968
      %v5424 = vpack.c.b16 %v4983, %v4976
      %v5425 = vpack.c.b16 %v4984, %v4977
      %v5426 = vpack.c.b16 %v4985, %v4978
      %v5427 = vpack.c.b16 %v4986, %v4979
      %v5428 = vpack.c.b16 %v4987, %v4980
      %v5429 = vpack.c.b16 %v4988, %v4981
      %v5430 = vpack.c.b16 %v4989, %v4982
      %v5431 = vpack.c.b16 %v4997, %v4990
      %v5432 = vpack.c.b16 %v4998, %v4991
      %v5433 = vpack.c.b16 %v4999, %v4992
      %v5434 = vpack.c.b16 %v5000, %v4993
      %v5435 = vpack.c.b16 %v5001, %v4994
      %v5436 = vpack.c.b16 %v5002, %v4995
      %v5437 = vpack.c.b16 %v5003, %v4996
      %v5438 = vpack.c.b16 %v5011, %v5004
      %v5439 = vpack.c.b16 %v5012, %v5005
      %v5440 = vpack.c.b16 %v5013, %v5006
      %v5441 = vpack.c.b16 %v5014, %v5007
      %v5442 = vpack.c.b16 %v5015, %v5008
      %v5443 = vpack.c.b16 %v5016, %v5009
      %v5444 = vpack.c.b16 %v5017, %v5010
      %v5445 = vpack.c.b16 %v5025, %v5018
      %v5446 = vpack.c.b16 %v5026, %v5019
      %v5447 = vpack.c.b16 %v5027, %v5020
      %v5448 = vpack.c.b16 %v5028, %v5021
      %v5449 = vpack.c.b16 %v5029, %v5022
      %v5450 = vpack.c.b16 %v5030, %v5023
      %v5451 = vpack.c.b16 %v5031, %v5024
      %v5452 = vpack.c.b16 %v5039, %v5032
      %v5453 = vpack.c.b16 %v5040, %v5033
      %v5454 = vpack.c.b16 %v5041, %v5034
      %v5455 = vpack.c.b16 %v5042, %v5035
      %v5456 = vpack.c.b16 %v5043, %v5036
      %v5457 = vpack.c.b16 %v5044, %v5037
      %v5458 = vpack.c.b16 %v5045, %v5038
      %v5459 = vpack.c.b16 %v5053, %v5046
      %v5460 = vpack.c.b16 %v5054, %v5047
      %v5461 = vpack.c.b16 %v5055, %v5048
      %v5462 = vpack.c.b16 %v5056, %v5049
      %v5463 = vpack.c.b16 %v5057, %v5050
      %v5464 = vpack.c.b16 %v5058, %v5051
      %v5465 = vpack.c.b16 %v5059, %v5052
      %v5466 = vpack.c.b16 %v5067, %v5060
      %v5467 = vpack.c.b16 %v5068, %v5061
      %v5468 = vpack.c.b16 %v5069, %v5062
      %v5469 = vpack.c.b16 %v5070, %v5063
      %v5470 = vpack.c.b16 %v5071, %v5064
      %v5471 = vpack.c.b16 %v5072, %v5065
      %v5472 = vpack.c.b16 %v5073, %v5066
      %v5473 = vpack.c.b16 %v5081, %v5074
      %v5474 = vpack.c.b16 %v5082, %v5075
      %v5475 = vpack.c.b16 %v5083, %v5076
      %v5476 = vpack.c.b16 %v5084, %v5077
      %v5477 = vpack.c.b16 %v5085, %v5078
      %v5478 = vpack.c.b16 %v5086, %v5079
      %v5479 = vpack.c.b16 %v5087, %v5080
      %v5480 = vpack.c.b16 %v5095, %v5088
      %v5481 = vpack.c.b16 %v5096, %v5089
      %v5482 = vpack.c.b16 %v5097, %v5090
      %v5483 = vpack.c.b16 %v5098, %v5091
      %v5484 = vpack.c.b16 %v5099, %v5092
      %v5485 = vpack.c.b16 %v5100, %v5093
      %v5486 = vpack.c.b16 %v5101, %v5094
      %v5487 = vpack.c.b16 %v5109, %v5102
      %v5488 = vpack.c.b16 %v5110, %v5103
      %v5489 = vpack.c.b16 %v5111, %v5104
      %v5490 = vpack.c.b16 %v5112, %v5105
      %v5491 = vpack.c.b16 %v5113, %v5106
      %v5492 = vpack.c.b16 %v5114, %v5107
      %v5493 = vpack.c.b16 %v5115, %v5108
      %v5494 = vpack.c.b16 %v5123, %v5116
      %v5495 = vpack.c.b16 %v5124, %v5117
      %v5496 = vpack.c.b16 %v5125, %v5118
      %v5497 = vpack.c.b16 %v5126, %v5119
      %v5498 = vpack.c.b16 %v5127, %v5120
      %v5499 = vpack.c.b16 %v5128, %v5121
      %v5500 = vpack.c.b16 %v5129, %v5122
      %v5501 = vpack.c.b16 %v5137, %v5130
      %v5502 = vpack.c.b16 %v5138, %v5131
      %v5503 = vpack.c.b16 %v5139, %v5132
      %v5504 = vpack.c.b16 %v5140, %v5133
      %v5505 = vpack.c.b16 %v5141, %v5134
      %v5506 = vpack.c.b16 %v5142, %v5135
      %v5507 = vpack.c.b16 %v5143, %v5136
      %v5508 = vpack.c.b16 %v5151, %v5144
      %v5509 = vpack.c.b16 %v5152, %v5145
      %v5510 = vpack.c.b16 %v5153, %v5146
      %v5511 = vpack.c.b16 %v5154, %v5147
      %v5512 = vpack.c.b16 %v5155, %v5148
      %v5513 = vpack.c.b16 %v5156, %v5149
      %v5514 = vpack.c.b16 %v5157, %v5150
      %v5515 = vpack.c.b16 %v5165, %v5158
      %v5516 = vpack.c.b16 %v5166, %v5159
      %v5517 = vpack.c.b16 %v5167, %v5160
      %v5518 = vpack.c.b16 %v5168, %v5161
      %v5519 = vpack.c.b16 %v5169, %v5162
      %v5520 = vpack.c.b16 %v5170, %v5163
      %v5521 = vpack.c.b16 %v5171, %v5164
      %v5522 = vpack.c.b16 %v5179, %v5172
      %v5523 = vpack.c.b16 %v5180, %v5173
      %v5524 = vpack.c.b16 %v5181, %v5174
      %v5525 = vpack.c.b16 %v5182, %v5175
      %v5526 = vpack.c.b16 %v5183, %v5176
      %v5527 = vpack.c.b16 %v5184, %v5177
      %v5528 = vpack.c.b16 %v5185, %v5178
      %v5529 = vpack.c.b16 %v5193, %v5186
      %v5530 = vpack.c.b16 %v5194, %v5187
      %v5531 = vpack.c.b16 %v5195, %v5188
      %v5532 = vpack.c.b16 %v5196, %v5189
      %v5533 = vpack.c.b16 %v5197, %v5190
      %v5534 = vpack.c.b16 %v5198, %v5191
      %v5535 = vpack.c.b16 %v5199, %v5192
      %v5536 = vpack.c.b16 %v5207, %v5200
      %v5537 = vpack.c.b16 %v5208, %v5201
      %v5538 = vpack.c.b16 %v5209, %v5202
      %v5539 = vpack.c.b16 %v5210, %v5203
      %v5540 = vpack.c.b16 %v5211, %v5204
      %v5541 = vpack.c.b16 %v5212, %v5205
      %v5542 = vpack.c.b16 %v5213, %v5206
      %v5543 = vpack.c.b16 %v5221, %v5214
      %v5544 = vpack.c.b16 %v5222, %v5215
      %v5545 = vpack.c.b16 %v5223, %v5216
      %v5546 = vpack.c.b16 %v5224, %v5217
      %v5547 = vpack.c.b16 %v5225, %v5218
      %v5548 = vpack.c.b16 %v5226, %v5219
      %v5549 = vpack.c.b16 %v5227, %v5220
      %v5550 = vpack.c.b16 %v5235, %v5228
      %v5551 = vpack.c.b16 %v5236, %v5229
      %v5552 = vpack.c.b16 %v5237, %v5230
      %v5553 = vpack.c.b16 %v5238, %v5231
      %v5554 = vpack.c.b16 %v5239, %v5232
      %v5555 = vpack.c.b16 %v5240, %v5233
      %v5556 = vpack.c.b16 %v5241, %v5234
      %v5557 = vpack.c.b16 %v5249, %v5242
      %v5558 = vpack.c.b16 %v5250, %v5243
      %v5559 = vpack.c.b16 %v5251, %v5244
      %v5560 = vpack.c.b16 %v5252, %v5245
      %v5561 = vpack.c.b16 %v5253, %v5246
      %v5562 = vpack.c.b16 %v5254, %v5247
      %v5563 = vpack.c.b16 %v5255, %v5248
      %v5564 = vpack.c.b16 %v5256, %v5256
      %v5565 = vpack.c.b16 %v5257, %v5257
      %v5566 = vpack.c.b16 %v5258, %v5258
      %v5567 = vpack.c.b16 %v5259, %v5259
      %v5568 = vpack.c.b16 %v5260, %v5260
      %v5569 = vpack.c.b16 %v5261, %v5261
      %v5570 = vpack.c.b16 %v5262, %v5262
      %vm5872 = vcmask 457728
      %v5874 = vsel %vm5872, %v3873, 0
      %v5877 = vsel %vm5872, %v3879, 0
      %v5880 = vsel %vm5872, %v3885, 0
      %v5883 = vsel %vm5872, %v3891, 0
      %v5886 = vsel %vm5872, %v3897, 0
      %v5889 = vsel %vm5872, %v3903, 0
      %v5892 = vsel %vm5872, %v3909, 0
      %v5895 = vsel %vm5872, %v3915, 0
      %v5898 = vsel %vm5872, %v3921, 0
      %v5901 = vsel %vm5872, %v3927, 0
      %v5904 = vsel %vm5872, %v3933, 0
      %v5907 = vsel %vm5872, %v3939, 0
      %v5910 = vsel %vm5872, %v3945, 0
      %v5913 = vsel %vm5872, %v3951, 0
      %v5916 = vsel %vm5872, %v3957, 0
      %vm5918 = vcmask 1043456
      %v5920 = vsel %vm5918, %v5564, 0
      %v5923 = vsel %vm5918, %v5565, 0
      %v5926 = vsel %vm5918, %v5566, 0
      %v5929 = vsel %vm5918, %v5567, 0
      %v5932 = vsel %vm5918, %v5568, 0
      %v5935 = vsel %vm5918, %v5569, 0
      %v5938 = vsel %vm5918, %v5570, 0
      %5940 = vmatprep.subr.bf16.mxu0 %v5264
      %5941 = vmatpush1.bf16.msra.mxu0 %v5263
      %5942 = vmatprep.subr.bf16.mxu0 %v5271
      %5943 = vmatpush1.bf16.msra.mxu0 %v5270
      %5944 = vmatprep.subr.bf16.mxu0 %v5278
      %5945 = vmatpush1.bf16.msra.mxu0 %v5277
      %5946 = vmatprep.subr.bf16.mxu0 %v5285
      %5947 = vmatpush1.bf16.msra.mxu0 %v5284
      %5948 = vmatprep.subr.bf16.mxu0 %v5292
      %5949 = vmatpush1.bf16.msra.mxu0 %v5291
      %5950 = vmatprep.subr.bf16.mxu0 %v5299
      %5951 = vmatpush1.bf16.msra.mxu0 %v5298
      %5952 = vmatprep.subr.bf16.mxu0 %v5306
      %5953 = vmatpush1.bf16.msra.mxu0 %v5305
      %5954 = vmatprep.subr.bf16.mxu0 %v5313
      %5955 = vmatpush1.bf16.msra.mxu0 %v5312
      %5956 = vmatprep.subr.bf16.mxu0 %v5320
      %5957 = vmatpush1.bf16.msra.mxu0 %v5319
      %5958 = vmatprep.subr.bf16.mxu0 %v5327
      %5959 = vmatpush1.bf16.msra.mxu0 %v5326
      %5960 = vmatprep.subr.bf16.mxu0 %v5334
      %5961 = vmatpush1.bf16.msra.mxu0 %v5333
      %5962 = vmatprep.subr.bf16.mxu0 %v5341
      %5963 = vmatpush1.bf16.msra.mxu0 %v5340
      %5964 = vmatprep.subr.bf16.mxu0 %v5348
      %5965 = vmatpush1.bf16.msra.mxu0 %v5347
      %5966 = vmatprep.subr.bf16.mxu0 %v5355
      %5967 = vmatpush1.bf16.msra.mxu0 %v5354
      %5968 = vmatprep.subr.bf16.mxu0 %v5362
      %5969 = vmatpush1.bf16.msra.mxu0 %v5361
      %5970 = vmatprep.subr.bf16.mxu0 %v5369
      %5971 = vmatpush1.bf16.msra.mxu0 %v5368
      %5972 = vmatprep.mubr.bf16.mxu0 %v3869
      %5973 = vmatmul.mubr.bf16.gmra.mrb[0].mxu0 %v3868
      %v5974 = vpop.f32.mrb[0].mxu0
      %v5975 = vadd.f32 0.0, %v5974
      %v5976 = vpop.f32.mrb[0].mxu0
      %v5977 = vadd.f32 0.0, %v5976
      %v5978 = vpop.f32.mrb[0].mxu0
      %v5979 = vadd.f32 0.0, %v5978
      %v5980 = vpop.f32.mrb[0].mxu0
      %v5981 = vadd.f32 0.0, %v5980
      %5982 = vmatprep.mubr.bf16.mxu0 %v3875
      %5983 = vmatmul.mubr.bf16.gmra.mrb[0].mxu0 %v3874
      %v5984 = vpop.f32.mrb[0].mxu0
      %v5985 = vadd.f32 0.0, %v5984
      %v5986 = vpop.f32.mrb[0].mxu0
      %v5987 = vadd.f32 0.0, %v5986
      %v5988 = vpop.f32.mrb[0].mxu0
      %v5989 = vadd.f32 0.0, %v5988
      %v5990 = vpop.f32.mrb[0].mxu0
      %v5991 = vadd.f32 0.0, %v5990
      %5992 = vmatprep.mubr.bf16.mxu0 %v3881
      %5993 = vmatmul.mubr.bf16.gmra.mrb[0].mxu0 %v3880
      %v5994 = vpop.f32.mrb[0].mxu0
      %v5995 = vadd.f32 0.0, %v5994
      %v5996 = vpop.f32.mrb[0].mxu0
      %v5997 = vadd.f32 0.0, %v5996
      %v5998 = vpop.f32.mrb[0].mxu0
      %v5999 = vadd.f32 0.0, %v5998
      %v6000 = vpop.f32.mrb[0].mxu0
      %v6001 = vadd.f32 0.0, %v6000
      %6002 = vmatprep.mubr.bf16.mxu0 %v3887
      %6003 = vmatmul.mubr.bf16.gmra.mrb[0].mxu0 %v3886
      %v6004 = vpop.f32.mrb[0].mxu0
      %v6005 = vadd.f32 0.0, %v6004
      %v6006 = vpop.f32.mrb[0].mxu0
      %v6007 = vadd.f32 0.0, %v6006
      %v6008 = vpop.f32.mrb[0].mxu0
      %v6009 = vadd.f32 0.0, %v6008
      %v6010 = vpop.f32.mrb[0].mxu0
      %v6011 = vadd.f32 0.0, %v6010
      %6012 = vmatprep.mubr.bf16.mxu0 %v3893
      %6013 = vmatmul.mubr.bf16.gmra.mrb[0].mxu0 %v3892
      %v6014 = vpop.f32.mrb[0].mxu0
      %v6015 = vadd.f32 0.0, %v6014
      %v6016 = vpop.f32.mrb[0].mxu0
      %v6017 = vadd.f32 0.0, %v6016
      %v6018 = vpop.f32.mrb[0].mxu0
      %v6019 = vadd.f32 0.0, %v6018
      %v6020 = vpop.f32.mrb[0].mxu0
      %v6021 = vadd.f32 0.0, %v6020
      %6022 = vmatprep.mubr.bf16.mxu0 %v3899
      %6023 = vmatmul.mubr.bf16.gmra.mrb[0].mxu0 %v3898
      %v6024 = vpop.f32.mrb[0].mxu0
      %v6025 = vadd.f32 0.0, %v6024
      %v6026 = vpop.f32.mrb[0].mxu0
      %v6027 = vadd.f32 0.0, %v6026
      %v6028 = vpop.f32.mrb[0].mxu0
      %v6029 = vadd.f32 0.0, %v6028
      %v6030 = vpop.f32.mrb[0].mxu0
      %v6031 = vadd.f32 0.0, %v6030
      %6032 = vmatprep.mubr.bf16.mxu0 %v3905
      %6033 = vmatmul.mubr.bf16.gmra.mrb[0].mxu0 %v3904
      %v6034 = vpop.f32.mrb[0].mxu0
      %v6035 = vadd.f32 0.0, %v6034
      %v6036 = vpop.f32.mrb[0].mxu0
      %v6037 = vadd.f32 0.0, %v6036
      %v6038 = vpop.f32.mrb[0].mxu0
      %v6039 = vadd.f32 0.0, %v6038
      %v6040 = vpop.f32.mrb[0].mxu0
      %v6041 = vadd.f32 0.0, %v6040
      %6042 = vmatprep.mubr.bf16.mxu0 %v3911
      %6043 = vmatmul.mubr.bf16.gmra.mrb[0].mxu0 %v3910
      %v6044 = vpop.f32.mrb[0].mxu0
      %v6045 = vadd.f32 0.0, %v6044
      %v6046 = vpop.f32.mrb[0].mxu0
      %v6047 = vadd.f32 0.0, %v6046
      %v6048 = vpop.f32.mrb[0].mxu0
      %v6049 = vadd.f32 0.0, %v6048
      %v6050 = vpop.f32.mrb[0].mxu0
      %v6051 = vadd.f32 0.0, %v6050
      %6052 = vmatprep.mubr.bf16.mxu0 %v3917
      %6053 = vmatmul.mubr.bf16.gmra.mrb[0].mxu0 %v3916
      %v6054 = vpop.f32.mrb[0].mxu0
      %v6055 = vadd.f32 0.0, %v6054
      %v6056 = vpop.f32.mrb[0].mxu0
      %v6057 = vadd.f32 0.0, %v6056
      %v6058 = vpop.f32.mrb[0].mxu0
      %v6059 = vadd.f32 0.0, %v6058
      %v6060 = vpop.f32.mrb[0].mxu0
      %v6061 = vadd.f32 0.0, %v6060
      %6062 = vmatprep.mubr.bf16.mxu0 %v3923
      %6063 = vmatmul.mubr.bf16.gmra.mrb[0].mxu0 %v3922
      %v6064 = vpop.f32.mrb[0].mxu0
      %v6065 = vadd.f32 0.0, %v6064
      %v6066 = vpop.f32.mrb[0].mxu0
      %v6067 = vadd.f32 0.0, %v6066
      %v6068 = vpop.f32.mrb[0].mxu0
      %v6069 = vadd.f32 0.0, %v6068
      %v6070 = vpop.f32.mrb[0].mxu0
      %v6071 = vadd.f32 0.0, %v6070
      %6072 = vmatprep.mubr.bf16.mxu0 %v3929
      %6073 = vmatmul.mubr.bf16.gmra.mrb[0].mxu0 %v3928
      %v6074 = vpop.f32.mrb[0].mxu0
      %v6075 = vadd.f32 0.0, %v6074
      %v6076 = vpop.f32.mrb[0].mxu0
      %v6077 = vadd.f32 0.0, %v6076
      %v6078 = vpop.f32.mrb[0].mxu0
      %v6079 = vadd.f32 0.0, %v6078
      %v6080 = vpop.f32.mrb[0].mxu0
      %v6081 = vadd.f32 0.0, %v6080
      %6082 = vmatprep.mubr.bf16.mxu0 %v3935
      %6083 = vmatmul.mubr.bf16.gmra.mrb[0].mxu0 %v3934
      %v6084 = vpop.f32.mrb[0].mxu0
      %v6085 = vadd.f32 0.0, %v6084
      %v6086 = vpop.f32.mrb[0].mxu0
      %v6087 = vadd.f32 0.0, %v6086
      %v6088 = vpop.f32.mrb[0].mxu0
      %v6089 = vadd.f32 0.0, %v6088
      %v6090 = vpop.f32.mrb[0].mxu0
      %v6091 = vadd.f32 0.0, %v6090
      %6092 = vmatprep.mubr.bf16.mxu0 %v3941
      %6093 = vmatmul.mubr.bf16.gmra.mrb[0].mxu0 %v3940
      %v6094 = vpop.f32.mrb[0].mxu0
      %v6095 = vadd.f32 0.0, %v6094
      %v6096 = vpop.f32.mrb[0].mxu0
      %v6097 = vadd.f32 0.0, %v6096
      %v6098 = vpop.f32.mrb[0].mxu0
      %v6099 = vadd.f32 0.0, %v6098
      %v6100 = vpop.f32.mrb[0].mxu0
      %v6101 = vadd.f32 0.0, %v6100
      %6102 = vmatprep.mubr.bf16.mxu0 %v3947
      %6103 = vmatmul.mubr.bf16.gmra.mrb[0].mxu0 %v3946
      %v6104 = vpop.f32.mrb[0].mxu0
      %v6105 = vadd.f32 0.0, %v6104
      %v6106 = vpop.f32.mrb[0].mxu0
      %v6107 = vadd.f32 0.0, %v6106
      %v6108 = vpop.f32.mrb[0].mxu0
      %v6109 = vadd.f32 0.0, %v6108
      %v6110 = vpop.f32.mrb[0].mxu0
      %v6111 = vadd.f32 0.0, %v6110
      %6112 = vmatprep.mubr.bf16.mxu0 %v3953
      %6113 = vmatmul.mubr.bf16.gmra.mrb[0].mxu0 %v3952
      %v6114 = vpop.f32.mrb[0].mxu0
      %v6115 = vadd.f32 0.0, %v6114
      %v6116 = vpop.f32.mrb[0].mxu0
      %v6117 = vadd.f32 0.0, %v6116
      %v6118 = vpop.f32.mrb[0].mxu0
      %v6119 = vpop.f32.mrb[0].mxu0
      %6120 = vdwg.mxu0
      %6121 = vmatprep.subr.bf16.mxu0 %v5376
      %6122 = vmatpush1.bf16.msra.mxu0 %v5375
      %6123 = vmatprep.subr.bf16.mxu0 %v5383
      %6124 = vmatpush1.bf16.msra.mxu0 %v5382
      %6125 = vmatprep.subr.bf16.mxu0 %v5390
      %6126 = vmatpush1.bf16.msra.mxu0 %v5389
      %6127 = vmatprep.subr.bf16.mxu0 %v5397
      %6128 = vmatpush1.bf16.msra.mxu0 %v5396
      %6129 = vmatprep.subr.bf16.mxu0 %v5404
      %6130 = vmatpush1.bf16.msra.mxu0 %v5403
      %6131 = vmatprep.subr.bf16.mxu0 %v5411
      %6132 = vmatpush1.bf16.msra.mxu0 %v5410
      %6133 = vmatprep.subr.bf16.mxu0 %v5418
      %6134 = vmatpush1.bf16.msra.mxu0 %v5417
      %6135 = vmatprep.subr.bf16.mxu0 %v5425
      %6136 = vmatpush1.bf16.msra.mxu0 %v5424
      %6137 = vmatprep.subr.bf16.mxu0 %v5432
      %6138 = vmatpush1.bf16.msra.mxu0 %v5431
      %6139 = vmatprep.subr.bf16.mxu0 %v5439
      %6140 = vmatpush1.bf16.msra.mxu0 %v5438
      %6141 = vmatprep.subr.bf16.mxu0 %v5446
      %6142 = vmatpush1.bf16.msra.mxu0 %v5445
      %6143 = vmatprep.subr.bf16.mxu0 %v5453
      %6144 = vmatpush1.bf16.msra.mxu0 %v5452
      %6145 = vmatprep.subr.bf16.mxu0 %v5460
      %6146 = vmatpush1.bf16.msra.mxu0 %v5459
      %6147 = vmatprep.subr.bf16.mxu0 %v5467
      %6148 = vmatpush1.bf16.msra.mxu0 %v5466
      %6149 = vmatprep.subr.bf16.mxu0 %v5474
      %6150 = vmatpush1.bf16.msra.mxu0 %v5473
      %6151 = vmatprep.subr.bf16.mxu0 %v5481
      %6152 = vmatpush1.bf16.msra.mxu0 %v5480
      %6153 = vmatprep.mubr.bf16.mxu0 %v3871
      %6154 = vmatmul.mubr.bf16.gmra.mrb[0].mxu0 %v3870
      %v6155 = vpop.f32.mrb[0].mxu0
      %v6156 = vadd.f32 %v5975, %v6155
      %v6157 = vpop.f32.mrb[0].mxu0
      %v6158 = vadd.f32 %v5977, %v6157
      %v6159 = vpop.f32.mrb[0].mxu0
      %v6160 = vadd.f32 %v5979, %v6159
      %v6161 = vpop.f32.mrb[0].mxu0
      %v6162 = vadd.f32 %v5981, %v6161
      %6163 = vmatprep.mubr.bf16.mxu0 %v3877
      %6164 = vmatmul.mubr.bf16.gmra.mrb[0].mxu0 %v3876
      %v6165 = vpop.f32.mrb[0].mxu0
      %v6166 = vadd.f32 %v5985, %v6165
      %v6167 = vpop.f32.mrb[0].mxu0
      %v6168 = vadd.f32 %v5987, %v6167
      %v6169 = vpop.f32.mrb[0].mxu0
      %v6170 = vadd.f32 %v5989, %v6169
      %v6171 = vpop.f32.mrb[0].mxu0
      %v6172 = vadd.f32 %v5991, %v6171
      %6173 = vmatprep.mubr.bf16.mxu0 %v3883
      %6174 = vmatmul.mubr.bf16.gmra.mrb[0].mxu0 %v3882
      %v6175 = vpop.f32.mrb[0].mxu0
      %v6176 = vadd.f32 %v5995, %v6175
      %v6177 = vpop.f32.mrb[0].mxu0
      %v6178 = vadd.f32 %v5997, %v6177
      %v6179 = vpop.f32.mrb[0].mxu0
      %v6180 = vadd.f32 %v5999, %v6179
      %v6181 = vpop.f32.mrb[0].mxu0
      %v6182 = vadd.f32 %v6001, %v6181
      %6183 = vmatprep.mubr.bf16.mxu0 %v3889
      %6184 = vmatmul.mubr.bf16.gmra.mrb[0].mxu0 %v3888
      %v6185 = vpop.f32.mrb[0].mxu0
      %v6186 = vadd.f32 %v6005, %v6185
      %v6187 = vpop.f32.mrb[0].mxu0
      %v6188 = vadd.f32 %v6007, %v6187
      %v6189 = vpop.f32.mrb[0].mxu0
      %v6190 = vadd.f32 %v6009, %v6189
      %v6191 = vpop.f32.mrb[0].mxu0
      %v6192 = vadd.f32 %v6011, %v6191
      %6193 = vmatprep.mubr.bf16.mxu0 %v3895
      %6194 = vmatmul.mubr.bf16.gmra.mrb[0].mxu0 %v3894
      %v6195 = vpop.f32.mrb[0].mxu0
      %v6196 = vadd.f32 %v6015, %v6195
      %v6197 = vpop.f32.mrb[0].mxu0
      %v6198 = vadd.f32 %v6017, %v6197
      %v6199 = vpop.f32.mrb[0].mxu0
      %v6200 = vadd.f32 %v6019, %v6199
      %v6201 = vpop.f32.mrb[0].mxu0
      %v6202 = vadd.f32 %v6021, %v6201
      %6203 = vmatprep.mubr.bf16.mxu0 %v3901
      %6204 = vmatmul.mubr.bf16.gmra.mrb[0].mxu0 %v3900
      %v6205 = vpop.f32.mrb[0].mxu0
      %v6206 = vadd.f32 %v6025, %v6205
      %v6207 = vpop.f32.mrb[0].mxu0
      %v6208 = vadd.f32 %v6027, %v6207
      %v6209 = vpop.f32.mrb[0].mxu0
      %v6210 = vadd.f32 %v6029, %v6209
      %v6211 = vpop.f32.mrb[0].mxu0
      %v6212 = vadd.f32 %v6031, %v6211
      %6213 = vmatprep.mubr.bf16.mxu0 %v3907
      %6214 = vmatmul.mubr.bf16.gmra.mrb[0].mxu0 %v3906
      %v6215 = vpop.f32.mrb[0].mxu0
      %v6216 = vadd.f32 %v6035, %v6215
      %v6217 = vpop.f32.mrb[0].mxu0
      %v6218 = vadd.f32 %v6037, %v6217
      %v6219 = vpop.f32.mrb[0].mxu0
      %v6220 = vadd.f32 %v6039, %v6219
      %v6221 = vpop.f32.mrb[0].mxu0
      %v6222 = vadd.f32 %v6041, %v6221
      %6223 = vmatprep.mubr.bf16.mxu0 %v3913
      %6224 = vmatmul.mubr.bf16.gmra.mrb[0].mxu0 %v3912
      %v6225 = vpop.f32.mrb[0].mxu0
      %v6226 = vadd.f32 %v6045, %v6225
      %v6227 = vpop.f32.mrb[0].mxu0
      %v6228 = vadd.f32 %v6047, %v6227
      %v6229 = vpop.f32.mrb[0].mxu0
      %v6230 = vadd.f32 %v6049, %v6229
      %v6231 = vpop.f32.mrb[0].mxu0
      %v6232 = vadd.f32 %v6051, %v6231
      %6233 = vmatprep.mubr.bf16.mxu0 %v3919
      %6234 = vmatmul.mubr.bf16.gmra.mrb[0].mxu0 %v3918
      %v6235 = vpop.f32.mrb[0].mxu0
      %v6236 = vadd.f32 %v6055, %v6235
      %v6237 = vpop.f32.mrb[0].mxu0
      %v6238 = vadd.f32 %v6057, %v6237
      %v6239 = vpop.f32.mrb[0].mxu0
      %v6240 = vadd.f32 %v6059, %v6239
      %v6241 = vpop.f32.mrb[0].mxu0
      %v6242 = vadd.f32 %v6061, %v6241
      %6243 = vmatprep.mubr.bf16.mxu0 %v3925
      %6244 = vmatmul.mubr.bf16.gmra.mrb[0].mxu0 %v3924
      %v6245 = vpop.f32.mrb[0].mxu0
      %v6246 = vadd.f32 %v6065, %v6245
      %v6247 = vpop.f32.mrb[0].mxu0
      %v6248 = vadd.f32 %v6067, %v6247
      %v6249 = vpop.f32.mrb[0].mxu0
      %v6250 = vadd.f32 %v6069, %v6249
      %v6251 = vpop.f32.mrb[0].mxu0
      %v6252 = vadd.f32 %v6071, %v6251
      %6253 = vmatprep.mubr.bf16.mxu0 %v3931
      %6254 = vmatmul.mubr.bf16.gmra.mrb[0].mxu0 %v3930
      %v6255 = vpop.f32.mrb[0].mxu0
      %v6256 = vadd.f32 %v6075, %v6255
      %v6257 = vpop.f32.mrb[0].mxu0
      %v6258 = vadd.f32 %v6077, %v6257
      %v6259 = vpop.f32.mrb[0].mxu0
      %v6260 = vadd.f32 %v6079, %v6259
      %v6261 = vpop.f32.mrb[0].mxu0
      %v6262 = vadd.f32 %v6081, %v6261
      %6263 = vmatprep.mubr.bf16.mxu0 %v3937
      %6264 = vmatmul.mubr.bf16.gmra.mrb[0].mxu0 %v3936
      %v6265 = vpop.f32.mrb[0].mxu0
      %v6266 = vadd.f32 %v6085, %v6265
      %v6267 = vpop.f32.mrb[0].mxu0
      %v6268 = vadd.f32 %v6087, %v6267
      %v6269 = vpop.f32.mrb[0].mxu0
      %v6270 = vadd.f32 %v6089, %v6269
      %v6271 = vpop.f32.mrb[0].mxu0
      %v6272 = vadd.f32 %v6091, %v6271
      %6273 = vmatprep.mubr.bf16.mxu0 %v3943
      %6274 = vmatmul.mubr.bf16.gmra.mrb[0].mxu0 %v3942
      %v6275 = vpop.f32.mrb[0].mxu0
      %v6276 = vadd.f32 %v6095, %v6275
      %v6277 = vpop.f32.mrb[0].mxu0
      %v6278 = vadd.f32 %v6097, %v6277
      %v6279 = vpop.f32.mrb[0].mxu0
      %v6280 = vadd.f32 %v6099, %v6279
      %v6281 = vpop.f32.mrb[0].mxu0
      %v6282 = vadd.f32 %v6101, %v6281
      %6283 = vmatprep.mubr.bf16.mxu0 %v3949
      %6284 = vmatmul.mubr.bf16.gmra.mrb[0].mxu0 %v3948
      %v6285 = vpop.f32.mrb[0].mxu0
      %v6286 = vadd.f32 %v6105, %v6285
      %v6287 = vpop.f32.mrb[0].mxu0
      %v6288 = vadd.f32 %v6107, %v6287
      %v6289 = vpop.f32.mrb[0].mxu0
      %v6290 = vadd.f32 %v6109, %v6289
      %v6291 = vpop.f32.mrb[0].mxu0
      %v6292 = vadd.f32 %v6111, %v6291
      %6293 = vmatprep.mubr.bf16.mxu0 %v3955
      %6294 = vmatmul.mubr.bf16.gmra.mrb[0].mxu0 %v3954
      %v6295 = vpop.f32.mrb[0].mxu0
      %v6296 = vadd.f32 %v6115, %v6295
      %v6297 = vpop.f32.mrb[0].mxu0
      %v6298 = vadd.f32 %v6117, %v6297
      %v6299 = vpop.f32.mrb[0].mxu0
      %v6300 = vpop.f32.mrb[0].mxu0
      %6301 = vdwg.mxu0
      %6302 = vmatprep.subr.bf16.mxu0 %v5488
      %6303 = vmatpush1.bf16.msra.mxu0 %v5487
      %6304 = vmatprep.subr.bf16.mxu0 %v5495
      %6305 = vmatpush1.bf16.msra.mxu0 %v5494
      %6306 = vmatprep.subr.bf16.mxu0 %v5502
      %6307 = vmatpush1.bf16.msra.mxu0 %v5501
      %6308 = vmatprep.subr.bf16.mxu0 %v5509
      %6309 = vmatpush1.bf16.msra.mxu0 %v5508
      %6310 = vmatprep.subr.bf16.mxu0 %v5516
      %6311 = vmatpush1.bf16.msra.mxu0 %v5515
      %6312 = vmatprep.subr.bf16.mxu0 %v5523
      %6313 = vmatpush1.bf16.msra.mxu0 %v5522
      %6314 = vmatprep.subr.bf16.mxu0 %v5530
      %6315 = vmatpush1.bf16.msra.mxu0 %v5529
      %6316 = vmatprep.subr.bf16.mxu0 %v5537
      %6317 = vmatpush1.bf16.msra.mxu0 %v5536
      %6318 = vmatprep.subr.bf16.mxu0 %v5544
      %6319 = vmatpush1.bf16.msra.mxu0 %v5543
      %6320 = vmatprep.subr.bf16.mxu0 %v5551
      %6321 = vmatpush1.bf16.msra.mxu0 %v5550
      %6322 = vmatprep.subr.bf16.mxu0 %v5558
      %6323 = vmatpush1.bf16.msra.mxu0 %v5557
      %6324 = vmatprep.subr.bf16.mxu0 %v5923
      %6325 = vmatpush1.bf16.msra.mxu0 %v5920
      %6326 = vmatprep.subr.bf16.mxu0 0
      %6327 = vmatpush1.bf16.msra.mxu0 0
      %6328 = vmatprep.subr.bf16.mxu0 0
      %6329 = vmatpush1.bf16.msra.mxu0 0
      %6330 = vmatprep.subr.bf16.mxu0 0
      %6331 = vmatpush1.bf16.msra.mxu0 0
      %6332 = vmatprep.subr.bf16.mxu0 0
      %6333 = vmatpush1.bf16.msra.mxu0 0
      %6334 = vmatprep.mubr.bf16.mxu0 %v5874
      %6335 = vmatmul.mubr.bf16.gmra.mrb[0].mxu0 %v3872
      %v6336 = vpop.f32.mrb[0].mxu0
      %v6337 = vadd.f32 %v6156, %v6336
      %v6338 = vpop.f32.mrb[0].mxu0
      %v6339 = vadd.f32 %v6158, %v6338
      %v6340 = vpop.f32.mrb[0].mxu0
      %v6341 = vadd.f32 %v6160, %v6340
      %v6342 = vpop.f32.mrb[0].mxu0
      %v6343 = vadd.f32 %v6162, %v6342
      %6344 = vmatprep.mubr.bf16.mxu0 %v5877
      %6345 = vmatmul.mubr.bf16.gmra.mrb[0].mxu0 %v3878
      %v6346 = vpop.f32.mrb[0].mxu0
      %v6347 = vadd.f32 %v6166, %v6346
      %v6348 = vpop.f32.mrb[0].mxu0
      %v6349 = vadd.f32 %v6168, %v6348
      %v6350 = vpop.f32.mrb[0].mxu0
      %v6351 = vadd.f32 %v6170, %v6350
      %v6352 = vpop.f32.mrb[0].mxu0
      %v6353 = vadd.f32 %v6172, %v6352
      %6354 = vmatprep.mubr.bf16.mxu0 %v5880
      %6355 = vmatmul.mubr.bf16.gmra.mrb[0].mxu0 %v3884
      %v6356 = vpop.f32.mrb[0].mxu0
      %v6357 = vadd.f32 %v6176, %v6356
      %v6358 = vpop.f32.mrb[0].mxu0
      %v6359 = vadd.f32 %v6178, %v6358
      %v6360 = vpop.f32.mrb[0].mxu0
      %v6361 = vadd.f32 %v6180, %v6360
      %v6362 = vpop.f32.mrb[0].mxu0
      %v6363 = vadd.f32 %v6182, %v6362
      %6364 = vmatprep.mubr.bf16.mxu0 %v5883
      %6365 = vmatmul.mubr.bf16.gmra.mrb[0].mxu0 %v3890
      %v6366 = vpop.f32.mrb[0].mxu0
      %v6367 = vadd.f32 %v6186, %v6366
      %v6368 = vpop.f32.mrb[0].mxu0
      %v6369 = vadd.f32 %v6188, %v6368
      %v6370 = vpop.f32.mrb[0].mxu0
      %v6371 = vadd.f32 %v6190, %v6370
      %v6372 = vpop.f32.mrb[0].mxu0
      %v6373 = vadd.f32 %v6192, %v6372
      %6374 = vmatprep.mubr.bf16.mxu0 %v5886
      %6375 = vmatmul.mubr.bf16.gmra.mrb[0].mxu0 %v3896
      %v6376 = vpop.f32.mrb[0].mxu0
      %v6377 = vadd.f32 %v6196, %v6376
      %v6378 = vpop.f32.mrb[0].mxu0
      %v6379 = vadd.f32 %v6198, %v6378
      %v6380 = vpop.f32.mrb[0].mxu0
      %v6381 = vadd.f32 %v6200, %v6380
      %v6382 = vpop.f32.mrb[0].mxu0
      %v6383 = vadd.f32 %v6202, %v6382
      %6384 = vmatprep.mubr.bf16.mxu0 %v5889
      %6385 = vmatmul.mubr.bf16.gmra.mrb[0].mxu0 %v3902
      %v6386 = vpop.f32.mrb[0].mxu0
      %v6387 = vadd.f32 %v6206, %v6386
      %v6388 = vpop.f32.mrb[0].mxu0
      %v6389 = vadd.f32 %v6208, %v6388
      %v6390 = vpop.f32.mrb[0].mxu0
      %v6391 = vadd.f32 %v6210, %v6390
      %v6392 = vpop.f32.mrb[0].mxu0
      %v6393 = vadd.f32 %v6212, %v6392
      %6394 = vmatprep.mubr.bf16.mxu0 %v5892
      %6395 = vmatmul.mubr.bf16.gmra.mrb[0].mxu0 %v3908
      %v6396 = vpop.f32.mrb[0].mxu0
      %v6397 = vadd.f32 %v6216, %v6396
      %v6398 = vpop.f32.mrb[0].mxu0
      %v6399 = vadd.f32 %v6218, %v6398
      %v6400 = vpop.f32.mrb[0].mxu0
      %v6401 = vadd.f32 %v6220, %v6400
      %v6402 = vpop.f32.mrb[0].mxu0
      %v6403 = vadd.f32 %v6222, %v6402
      %6404 = vmatprep.mubr.bf16.mxu0 %v5895
      %6405 = vmatmul.mubr.bf16.gmra.mrb[0].mxu0 %v3914
      %v6406 = vpop.f32.mrb[0].mxu0
      %v6407 = vadd.f32 %v6226, %v6406
      %v6408 = vpop.f32.mrb[0].mxu0
      %v6409 = vadd.f32 %v6228, %v6408
      %v6410 = vpop.f32.mrb[0].mxu0
      %v6411 = vadd.f32 %v6230, %v6410
      %v6412 = vpop.f32.mrb[0].mxu0
      %v6413 = vadd.f32 %v6232, %v6412
      %6414 = vmatprep.mubr.bf16.mxu0 %v5898
      %6415 = vmatmul.mubr.bf16.gmra.mrb[0].mxu0 %v3920
      %v6416 = vpop.f32.mrb[0].mxu0
      %v6417 = vadd.f32 %v6236, %v6416
      %v6418 = vpop.f32.mrb[0].mxu0
      %v6419 = vadd.f32 %v6238, %v6418
      %v6420 = vpop.f32.mrb[0].mxu0
      %v6421 = vadd.f32 %v6240, %v6420
      %v6422 = vpop.f32.mrb[0].mxu0
      %v6423 = vadd.f32 %v6242, %v6422
      %6424 = vmatprep.mubr.bf16.mxu0 %v5901
      %6425 = vmatmul.mubr.bf16.gmra.mrb[0].mxu0 %v3926
      %v6426 = vpop.f32.mrb[0].mxu0
      %v6427 = vadd.f32 %v6246, %v6426
      %v6428 = vpop.f32.mrb[0].mxu0
      %v6429 = vadd.f32 %v6248, %v6428
      %v6430 = vpop.f32.mrb[0].mxu0
      %v6431 = vadd.f32 %v6250, %v6430
      %v6432 = vpop.f32.mrb[0].mxu0
      %v6433 = vadd.f32 %v6252, %v6432
      %6434 = vmatprep.mubr.bf16.mxu0 %v5904
      %6435 = vmatmul.mubr.bf16.gmra.mrb[0].mxu0 %v3932
      %v6436 = vpop.f32.mrb[0].mxu0
      %v6437 = vadd.f32 %v6256, %v6436
      %v6438 = vpop.f32.mrb[0].mxu0
      %v6439 = vadd.f32 %v6258, %v6438
      %v6440 = vpop.f32.mrb[0].mxu0
      %v6441 = vadd.f32 %v6260, %v6440
      %v6442 = vpop.f32.mrb[0].mxu0
      %v6443 = vadd.f32 %v6262, %v6442
      %6444 = vmatprep.mubr.bf16.mxu0 %v5907
      %6445 = vmatmul.mubr.bf16.gmra.mrb[0].mxu0 %v3938
      %v6446 = vpop.f32.mrb[0].mxu0
      %v6447 = vadd.f32 %v6266, %v6446
      %v6448 = vpop.f32.mrb[0].mxu0
      %v6449 = vadd.f32 %v6268, %v6448
      %v6450 = vpop.f32.mrb[0].mxu0
      %v6451 = vadd.f32 %v6270, %v6450
      %v6452 = vpop.f32.mrb[0].mxu0
      %v6453 = vadd.f32 %v6272, %v6452
      %6454 = vmatprep.mubr.bf16.mxu0 %v5910
      %6455 = vmatmul.mubr.bf16.gmra.mrb[0].mxu0 %v3944
      %v6456 = vpop.f32.mrb[0].mxu0
      %v6457 = vadd.f32 %v6276, %v6456
      %v6458 = vpop.f32.mrb[0].mxu0
      %v6459 = vadd.f32 %v6278, %v6458
      %v6460 = vpop.f32.mrb[0].mxu0
      %v6461 = vadd.f32 %v6280, %v6460
      %v6462 = vpop.f32.mrb[0].mxu0
      %v6463 = vadd.f32 %v6282, %v6462
      %6464 = vmatprep.mubr.bf16.mxu0 %v5913
      %6465 = vmatmul.mubr.bf16.gmra.mrb[0].mxu0 %v3950
      %v6466 = vpop.f32.mrb[0].mxu0
      %v6467 = vadd.f32 %v6286, %v6466
      %v6468 = vpop.f32.mrb[0].mxu0
      %v6469 = vadd.f32 %v6288, %v6468
      %v6470 = vpop.f32.mrb[0].mxu0
      %v6471 = vadd.f32 %v6290, %v6470
      %v6472 = vpop.f32.mrb[0].mxu0
      %v6473 = vadd.f32 %v6292, %v6472
      %6474 = vmatprep.mubr.bf16.mxu0 %v5916
      %6475 = vmatmul.mubr.bf16.gmra.mrb[0].mxu0 %v3956
      %v6476 = vpop.f32.mrb[0].mxu0
      %v6477 = vadd.f32 %v6296, %v6476
      %v6478 = vpop.f32.mrb[0].mxu0
      %v6479 = vadd.f32 %v6298, %v6478
      %v6480 = vpop.f32.mrb[0].mxu0
      %v6481 = vpop.f32.mrb[0].mxu0
      %6482 = vdwg.mxu0
      %6483 = vmatprep.subr.bf16.mxu0 %v5266
      %6484 = vmatpush1.bf16.msra.mxu0 %v5265
      %6485 = vmatprep.subr.bf16.mxu0 %v5273
      %6486 = vmatpush1.bf16.msra.mxu0 %v5272
      %6487 = vmatprep.subr.bf16.mxu0 %v5280
      %6488 = vmatpush1.bf16.msra.mxu0 %v5279
      %6489 = vmatprep.subr.bf16.mxu0 %v5287
      %6490 = vmatpush1.bf16.msra.mxu0 %v5286
      %6491 = vmatprep.subr.bf16.mxu0 %v5294
      %6492 = vmatpush1.bf16.msra.mxu0 %v5293
      %6493 = vmatprep.subr.bf16.mxu0 %v5301
      %6494 = vmatpush1.bf16.msra.mxu0 %v5300
      %6495 = vmatprep.subr.bf16.mxu0 %v5308
      %6496 = vmatpush1.bf16.msra.mxu0 %v5307
      %6497 = vmatprep.subr.bf16.mxu0 %v5315
      %6498 = vmatpush1.bf16.msra.mxu0 %v5314
      %6499 = vmatprep.subr.bf16.mxu0 %v5322
      %6500 = vmatpush1.bf16.msra.mxu0 %v5321
      %6501 = vmatprep.subr.bf16.mxu0 %v5329
      %6502 = vmatpush1.bf16.msra.mxu0 %v5328
      %6503 = vmatprep.subr.bf16.mxu0 %v5336
      %6504 = vmatpush1.bf16.msra.mxu0 %v5335
      %6505 = vmatprep.subr.bf16.mxu0 %v5343
      %6506 = vmatpush1.bf16.msra.mxu0 %v5342
      %6507 = vmatprep.subr.bf16.mxu0 %v5350
      %6508 = vmatpush1.bf16.msra.mxu0 %v5349
      %6509 = vmatprep.subr.bf16.mxu0 %v5357
      %6510 = vmatpush1.bf16.msra.mxu0 %v5356
      %6511 = vmatprep.subr.bf16.mxu0 %v5364
      %6512 = vmatpush1.bf16.msra.mxu0 %v5363
      %6513 = vmatprep.subr.bf16.mxu0 %v5371
      %6514 = vmatpush1.bf16.msra.mxu0 %v5370
      %6515 = vmatprep.mubr.bf16.mxu0 %v3869
      %6516 = vmatmul.mubr.bf16.gmra.mrb[0].mxu0 %v3868
      %v6517 = vpop.f32.mrb[0].mxu0
      %v6518 = vadd.f32 0.0, %v6517
      %v6519 = vpop.f32.mrb[0].mxu0
      %v6520 = vadd.f32 0.0, %v6519
      %v6521 = vpop.f32.mrb[0].mxu0
      %v6522 = vadd.f32 0.0, %v6521
      %v6523 = vpop.f32.mrb[0].mxu0
      %v6524 = vadd.f32 0.0, %v6523
      %6525 = vmatprep.mubr.bf16.mxu0 %v3875
      %6526 = vmatmul.mubr.bf16.gmra.mrb[0].mxu0 %v3874
      %v6527 = vpop.f32.mrb[0].mxu0
      %v6528 = vadd.f32 0.0, %v6527
      %v6529 = vpop.f32.mrb[0].mxu0
      %v6530 = vadd.f32 0.0, %v6529
      %v6531 = vpop.f32.mrb[0].mxu0
      %v6532 = vadd.f32 0.0, %v6531
      %v6533 = vpop.f32.mrb[0].mxu0
      %v6534 = vadd.f32 0.0, %v6533
      %6535 = vmatprep.mubr.bf16.mxu0 %v3881
      %6536 = vmatmul.mubr.bf16.gmra.mrb[0].mxu0 %v3880
      %v6537 = vpop.f32.mrb[0].mxu0
      %v6538 = vadd.f32 0.0, %v6537
      %v6539 = vpop.f32.mrb[0].mxu0
      %v6540 = vadd.f32 0.0, %v6539
      %v6541 = vpop.f32.mrb[0].mxu0
      %v6542 = vadd.f32 0.0, %v6541
      %v6543 = vpop.f32.mrb[0].mxu0
      %v6544 = vadd.f32 0.0, %v6543
      %6545 = vmatprep.mubr.bf16.mxu0 %v3887
      %6546 = vmatmul.mubr.bf16.gmra.mrb[0].mxu0 %v3886
      %v6547 = vpop.f32.mrb[0].mxu0
      %v6548 = vadd.f32 0.0, %v6547
      %v6549 = vpop.f32.mrb[0].mxu0
      %v6550 = vadd.f32 0.0, %v6549
      %v6551 = vpop.f32.mrb[0].mxu0
      %v6552 = vadd.f32 0.0, %v6551
      %v6553 = vpop.f32.mrb[0].mxu0
      %v6554 = vadd.f32 0.0, %v6553
      %6555 = vmatprep.mubr.bf16.mxu0 %v3893
      %6556 = vmatmul.mubr.bf16.gmra.mrb[0].mxu0 %v3892
      %v6557 = vpop.f32.mrb[0].mxu0
      %v6558 = vadd.f32 0.0, %v6557
      %v6559 = vpop.f32.mrb[0].mxu0
      %v6560 = vadd.f32 0.0, %v6559
      %v6561 = vpop.f32.mrb[0].mxu0
      %v6562 = vadd.f32 0.0, %v6561
      %v6563 = vpop.f32.mrb[0].mxu0
      %v6564 = vadd.f32 0.0, %v6563
      %6565 = vmatprep.mubr.bf16.mxu0 %v3899
      %6566 = vmatmul.mubr.bf16.gmra.mrb[0].mxu0 %v3898
      %v6567 = vpop.f32.mrb[0].mxu0
      %v6568 = vadd.f32 0.0, %v6567
      %v6569 = vpop.f32.mrb[0].mxu0
      %v6570 = vadd.f32 0.0, %v6569
      %v6571 = vpop.f32.mrb[0].mxu0
      %v6572 = vadd.f32 0.0, %v6571
      %v6573 = vpop.f32.mrb[0].mxu0
      %v6574 = vadd.f32 0.0, %v6573
      %6575 = vmatprep.mubr.bf16.mxu0 %v3905
      %6576 = vmatmul.mubr.bf16.gmra.mrb[0].mxu0 %v3904
      %v6577 = vpop.f32.mrb[0].mxu0
      %v6578 = vadd.f32 0.0, %v6577
      %v6579 = vpop.f32.mrb[0].mxu0
      %v6580 = vadd.f32 0.0, %v6579
      %v6581 = vpop.f32.mrb[0].mxu0
      %v6582 = vadd.f32 0.0, %v6581
      %v6583 = vpop.f32.mrb[0].mxu0
      %v6584 = vadd.f32 0.0, %v6583
      %6585 = vmatprep.mubr.bf16.mxu0 %v3911
      %6586 = vmatmul.mubr.bf16.gmra.mrb[0].mxu0 %v3910
      %v6587 = vpop.f32.mrb[0].mxu0
      %v6588 = vadd.f32 0.0, %v6587
      %v6589 = vpop.f32.mrb[0].mxu0
      %v6590 = vadd.f32 0.0, %v6589
      %v6591 = vpop.f32.mrb[0].mxu0
      %v6592 = vadd.f32 0.0, %v6591
      %v6593 = vpop.f32.mrb[0].mxu0
      %v6594 = vadd.f32 0.0, %v6593
      %6595 = vmatprep.mubr.bf16.mxu0 %v3917
      %6596 = vmatmul.mubr.bf16.gmra.mrb[0].mxu0 %v3916
      %v6597 = vpop.f32.mrb[0].mxu0
      %v6598 = vadd.f32 0.0, %v6597
      %v6599 = vpop.f32.mrb[0].mxu0
      %v6600 = vadd.f32 0.0, %v6599
      %v6601 = vpop.f32.mrb[0].mxu0
      %v6602 = vadd.f32 0.0, %v6601
      %v6603 = vpop.f32.mrb[0].mxu0
      %v6604 = vadd.f32 0.0, %v6603
      %6605 = vmatprep.mubr.bf16.mxu0 %v3923
      %6606 = vmatmul.mubr.bf16.gmra.mrb[0].mxu0 %v3922
      %v6607 = vpop.f32.mrb[0].mxu0
      %v6608 = vadd.f32 0.0, %v6607
      %v6609 = vpop.f32.mrb[0].mxu0
      %v6610 = vadd.f32 0.0, %v6609
      %v6611 = vpop.f32.mrb[0].mxu0
      %v6612 = vadd.f32 0.0, %v6611
      %v6613 = vpop.f32.mrb[0].mxu0
      %v6614 = vadd.f32 0.0, %v6613
      %6615 = vmatprep.mubr.bf16.mxu0 %v3929
      %6616 = vmatmul.mubr.bf16.gmra.mrb[0].mxu0 %v3928
      %v6617 = vpop.f32.mrb[0].mxu0
      %v6618 = vadd.f32 0.0, %v6617
      %v6619 = vpop.f32.mrb[0].mxu0
      %v6620 = vadd.f32 0.0, %v6619
      %v6621 = vpop.f32.mrb[0].mxu0
      %v6622 = vadd.f32 0.0, %v6621
      %v6623 = vpop.f32.mrb[0].mxu0
      %v6624 = vadd.f32 0.0, %v6623
      %6625 = vmatprep.mubr.bf16.mxu0 %v3935
      %6626 = vmatmul.mubr.bf16.gmra.mrb[0].mxu0 %v3934
      %v6627 = vpop.f32.mrb[0].mxu0
      %v6628 = vadd.f32 0.0, %v6627
      %v6629 = vpop.f32.mrb[0].mxu0
      %v6630 = vadd.f32 0.0, %v6629
      %v6631 = vpop.f32.mrb[0].mxu0
      %v6632 = vadd.f32 0.0, %v6631
      %v6633 = vpop.f32.mrb[0].mxu0
      %v6634 = vadd.f32 0.0, %v6633
      %6635 = vmatprep.mubr.bf16.mxu0 %v3941
      %6636 = vmatmul.mubr.bf16.gmra.mrb[0].mxu0 %v3940
      %v6637 = vpop.f32.mrb[0].mxu0
      %v6638 = vadd.f32 0.0, %v6637
      %v6639 = vpop.f32.mrb[0].mxu0
      %v6640 = vadd.f32 0.0, %v6639
      %v6641 = vpop.f32.mrb[0].mxu0
      %v6642 = vadd.f32 0.0, %v6641
      %v6643 = vpop.f32.mrb[0].mxu0
      %v6644 = vadd.f32 0.0, %v6643
      %6645 = vmatprep.mubr.bf16.mxu0 %v3947
      %6646 = vmatmul.mubr.bf16.gmra.mrb[0].mxu0 %v3946
      %v6647 = vpop.f32.mrb[0].mxu0
      %v6648 = vadd.f32 0.0, %v6647
      %v6649 = vpop.f32.mrb[0].mxu0
      %v6650 = vadd.f32 0.0, %v6649
      %v6651 = vpop.f32.mrb[0].mxu0
      %v6652 = vadd.f32 0.0, %v6651
      %v6653 = vpop.f32.mrb[0].mxu0
      %v6654 = vadd.f32 0.0, %v6653
      %6655 = vmatprep.mubr.bf16.mxu0 %v3953
      %6656 = vmatmul.mubr.bf16.gmra.mrb[0].mxu0 %v3952
      %v6657 = vpop.f32.mrb[0].mxu0
      %v6658 = vadd.f32 0.0, %v6657
      %v6659 = vpop.f32.mrb[0].mxu0
      %v6660 = vadd.f32 0.0, %v6659
      %v6661 = vpop.f32.mrb[0].mxu0
      %v6662 = vpop.f32.mrb[0].mxu0
      %6663 = vdwg.mxu0
      %6664 = vmatprep.subr.bf16.mxu0 %v5378
      %6665 = vmatpush1.bf16.msra.mxu0 %v5377
      %6666 = vmatprep.subr.bf16.mxu0 %v5385
      %6667 = vmatpush1.bf16.msra.mxu0 %v5384
      %6668 = vmatprep.subr.bf16.mxu0 %v5392
      %6669 = vmatpush1.bf16.msra.mxu0 %v5391
      %6670 = vmatprep.subr.bf16.mxu0 %v5399
      %6671 = vmatpush1.bf16.msra.mxu0 %v5398
      %6672 = vmatprep.subr.bf16.mxu0 %v5406
      %6673 = vmatpush1.bf16.msra.mxu0 %v5405
      %6674 = vmatprep.subr.bf16.mxu0 %v5413
      %6675 = vmatpush1.bf16.msra.mxu0 %v5412
      %6676 = vmatprep.subr.bf16.mxu0 %v5420
      %6677 = vmatpush1.bf16.msra.mxu0 %v5419
      %6678 = vmatprep.subr.bf16.mxu0 %v5427
      %6679 = vmatpush1.bf16.msra.mxu0 %v5426
      %6680 = vmatprep.subr.bf16.mxu0 %v5434
      %6681 = vmatpush1.bf16.msra.mxu0 %v5433
      %6682 = vmatprep.subr.bf16.mxu0 %v5441
      %6683 = vmatpush1.bf16.msra.mxu0 %v5440
      %6684 = vmatprep.subr.bf16.mxu0 %v5448
      %6685 = vmatpush1.bf16.msra.mxu0 %v5447
      %6686 = vmatprep.subr.bf16.mxu0 %v5455
      %6687 = vmatpush1.bf16.msra.mxu0 %v5454
      %6688 = vmatprep.subr.bf16.mxu0 %v5462
      %6689 = vmatpush1.bf16.msra.mxu0 %v5461
      %6690 = vmatprep.subr.bf16.mxu0 %v5469
      %6691 = vmatpush1.bf16.msra.mxu0 %v5468
      %6692 = vmatprep.subr.bf16.mxu0 %v5476
      %6693 = vmatpush1.bf16.msra.mxu0 %v5475
      %6694 = vmatprep.subr.bf16.mxu0 %v5483
      %6695 = vmatpush1.bf16.msra.mxu0 %v5482
      %6696 = vmatprep.mubr.bf16.mxu0 %v3871
      %6697 = vmatmul.mubr.bf16.gmra.mrb[0].mxu0 %v3870
      %v6698 = vpop.f32.mrb[0].mxu0
      %v6699 = vadd.f32 %v6518, %v6698
      %v6700 = vpop.f32.mrb[0].mxu0
      %v6701 = vadd.f32 %v6520, %v6700
      %v6702 = vpop.f32.mrb[0].mxu0
      %v6703 = vadd.f32 %v6522, %v6702
      %v6704 = vpop.f32.mrb[0].mxu0
      %v6705 = vadd.f32 %v6524, %v6704
      %6706 = vmatprep.mubr.bf16.mxu0 %v3877
      %6707 = vmatmul.mubr.bf16.gmra.mrb[0].mxu0 %v3876
      %v6708 = vpop.f32.mrb[0].mxu0
      %v6709 = vadd.f32 %v6528, %v6708
      %v6710 = vpop.f32.mrb[0].mxu0
      %v6711 = vadd.f32 %v6530, %v6710
      %v6712 = vpop.f32.mrb[0].mxu0
      %v6713 = vadd.f32 %v6532, %v6712
      %v6714 = vpop.f32.mrb[0].mxu0
      %v6715 = vadd.f32 %v6534, %v6714
      %6716 = vmatprep.mubr.bf16.mxu0 %v3883
      %6717 = vmatmul.mubr.bf16.gmra.mrb[0].mxu0 %v3882
      %v6718 = vpop.f32.mrb[0].mxu0
      %v6719 = vadd.f32 %v6538, %v6718
      %v6720 = vpop.f32.mrb[0].mxu0
      %v6721 = vadd.f32 %v6540, %v6720
      %v6722 = vpop.f32.mrb[0].mxu0
      %v6723 = vadd.f32 %v6542, %v6722
      %v6724 = vpop.f32.mrb[0].mxu0
      %v6725 = vadd.f32 %v6544, %v6724
      %6726 = vmatprep.mubr.bf16.mxu0 %v3889
      %6727 = vmatmul.mubr.bf16.gmra.mrb[0].mxu0 %v3888
      %v6728 = vpop.f32.mrb[0].mxu0
      %v6729 = vadd.f32 %v6548, %v6728
      %v6730 = vpop.f32.mrb[0].mxu0
      %v6731 = vadd.f32 %v6550, %v6730
      %v6732 = vpop.f32.mrb[0].mxu0
      %v6733 = vadd.f32 %v6552, %v6732
      %v6734 = vpop.f32.mrb[0].mxu0
      %v6735 = vadd.f32 %v6554, %v6734
      %6736 = vmatprep.mubr.bf16.mxu0 %v3895
      %6737 = vmatmul.mubr.bf16.gmra.mrb[0].mxu0 %v3894
      %v6738 = vpop.f32.mrb[0].mxu0
      %v6739 = vadd.f32 %v6558, %v6738
      %v6740 = vpop.f32.mrb[0].mxu0
      %v6741 = vadd.f32 %v6560, %v6740
      %v6742 = vpop.f32.mrb[0].mxu0
      %v6743 = vadd.f32 %v6562, %v6742
      %v6744 = vpop.f32.mrb[0].mxu0
      %v6745 = vadd.f32 %v6564, %v6744
      %6746 = vmatprep.mubr.bf16.mxu0 %v3901
      %6747 = vmatmul.mubr.bf16.gmra.mrb[0].mxu0 %v3900
      %v6748 = vpop.f32.mrb[0].mxu0
      %v6749 = vadd.f32 %v6568, %v6748
      %v6750 = vpop.f32.mrb[0].mxu0
      %v6751 = vadd.f32 %v6570, %v6750
      %v6752 = vpop.f32.mrb[0].mxu0
      %v6753 = vadd.f32 %v6572, %v6752
      %v6754 = vpop.f32.mrb[0].mxu0
      %v6755 = vadd.f32 %v6574, %v6754
      %6756 = vmatprep.mubr.bf16.mxu0 %v3907
      %6757 = vmatmul.mubr.bf16.gmra.mrb[0].mxu0 %v3906
      %v6758 = vpop.f32.mrb[0].mxu0
      %v6759 = vadd.f32 %v6578, %v6758
      %v6760 = vpop.f32.mrb[0].mxu0
      %v6761 = vadd.f32 %v6580, %v6760
      %v6762 = vpop.f32.mrb[0].mxu0
      %v6763 = vadd.f32 %v6582, %v6762
      %v6764 = vpop.f32.mrb[0].mxu0
      %v6765 = vadd.f32 %v6584, %v6764
      %6766 = vmatprep.mubr.bf16.mxu0 %v3913
      %6767 = vmatmul.mubr.bf16.gmra.mrb[0].mxu0 %v3912
      %v6768 = vpop.f32.mrb[0].mxu0
      %v6769 = vadd.f32 %v6588, %v6768
      %v6770 = vpop.f32.mrb[0].mxu0
      %v6771 = vadd.f32 %v6590, %v6770
      %v6772 = vpop.f32.mrb[0].mxu0
      %v6773 = vadd.f32 %v6592, %v6772
      %v6774 = vpop.f32.mrb[0].mxu0
      %v6775 = vadd.f32 %v6594, %v6774
      %6776 = vmatprep.mubr.bf16.mxu0 %v3919
      %6777 = vmatmul.mubr.bf16.gmra.mrb[0].mxu0 %v3918
      %v6778 = vpop.f32.mrb[0].mxu0
      %v6779 = vadd.f32 %v6598, %v6778
      %v6780 = vpop.f32.mrb[0].mxu0
      %v6781 = vadd.f32 %v6600, %v6780
      %v6782 = vpop.f32.mrb[0].mxu0
      %v6783 = vadd.f32 %v6602, %v6782
      %v6784 = vpop.f32.mrb[0].mxu0
      %v6785 = vadd.f32 %v6604, %v6784
      %6786 = vmatprep.mubr.bf16.mxu0 %v3925
      %6787 = vmatmul.mubr.bf16.gmra.mrb[0].mxu0 %v3924
      %v6788 = vpop.f32.mrb[0].mxu0
      %v6789 = vadd.f32 %v6608, %v6788
      %v6790 = vpop.f32.mrb[0].mxu0
      %v6791 = vadd.f32 %v6610, %v6790
      %v6792 = vpop.f32.mrb[0].mxu0
      %v6793 = vadd.f32 %v6612, %v6792
      %v6794 = vpop.f32.mrb[0].mxu0
      %v6795 = vadd.f32 %v6614, %v6794
      %6796 = vmatprep.mubr.bf16.mxu0 %v3931
      %6797 = vmatmul.mubr.bf16.gmra.mrb[0].mxu0 %v3930
      %v6798 = vpop.f32.mrb[0].mxu0
      %v6799 = vadd.f32 %v6618, %v6798
      %v6800 = vpop.f32.mrb[0].mxu0
      %v6801 = vadd.f32 %v6620, %v6800
      %v6802 = vpop.f32.mrb[0].mxu0
      %v6803 = vadd.f32 %v6622, %v6802
      %v6804 = vpop.f32.mrb[0].mxu0
      %v6805 = vadd.f32 %v6624, %v6804
      %6806 = vmatprep.mubr.bf16.mxu0 %v3937
      %6807 = vmatmul.mubr.bf16.gmra.mrb[0].mxu0 %v3936
      %v6808 = vpop.f32.mrb[0].mxu0
      %v6809 = vadd.f32 %v6628, %v6808
      %v6810 = vpop.f32.mrb[0].mxu0
      %v6811 = vadd.f32 %v6630, %v6810
      %v6812 = vpop.f32.mrb[0].mxu0
      %v6813 = vadd.f32 %v6632, %v6812
      %v6814 = vpop.f32.mrb[0].mxu0
      %v6815 = vadd.f32 %v6634, %v6814
      %6816 = vmatprep.mubr.bf16.mxu0 %v3943
      %6817 = vmatmul.mubr.bf16.gmra.mrb[0].mxu0 %v3942
      %v6818 = vpop.f32.mrb[0].mxu0
      %v6819 = vadd.f32 %v6638, %v6818
      %v6820 = vpop.f32.mrb[0].mxu0
      %v6821 = vadd.f32 %v6640, %v6820
      %v6822 = vpop.f32.mrb[0].mxu0
      %v6823 = vadd.f32 %v6642, %v6822
      %v6824 = vpop.f32.mrb[0].mxu0
      %v6825 = vadd.f32 %v6644, %v6824
      %6826 = vmatprep.mubr.bf16.mxu0 %v3949
      %6827 = vmatmul.mubr.bf16.gmra.mrb[0].mxu0 %v3948
      %v6828 = vpop.f32.mrb[0].mxu0
      %v6829 = vadd.f32 %v6648, %v6828
      %v6830 = vpop.f32.mrb[0].mxu0
      %v6831 = vadd.f32 %v6650, %v6830
      %v6832 = vpop.f32.mrb[0].mxu0
      %v6833 = vadd.f32 %v6652, %v6832
      %v6834 = vpop.f32.mrb[0].mxu0
      %v6835 = vadd.f32 %v6654, %v6834
      %6836 = vmatprep.mubr.bf16.mxu0 %v3955
      %6837 = vmatmul.mubr.bf16.gmra.mrb[0].mxu0 %v3954
      %v6838 = vpop.f32.mrb[0].mxu0
      %v6839 = vadd.f32 %v6658, %v6838
      %v6840 = vpop.f32.mrb[0].mxu0
      %v6841 = vadd.f32 %v6660, %v6840
      %v6842 = vpop.f32.mrb[0].mxu0
      %v6843 = vpop.f32.mrb[0].mxu0
      %6844 = vdwg.mxu0
      %6845 = vmatprep.subr.bf16.mxu0 %v5490
      %6846 = vmatpush1.bf16.msra.mxu0 %v5489
      %6847 = vmatprep.subr.bf16.mxu0 %v5497
      %6848 = vmatpush1.bf16.msra.mxu0 %v5496
      %6849 = vmatprep.subr.bf16.mxu0 %v5504
      %6850 = vmatpush1.bf16.msra.mxu0 %v5503
      %6851 = vmatprep.subr.bf16.mxu0 %v5511
      %6852 = vmatpush1.bf16.msra.mxu0 %v5510
      %6853 = vmatprep.subr.bf16.mxu0 %v5518
      %6854 = vmatpush1.bf16.msra.mxu0 %v5517
      %6855 = vmatprep.subr.bf16.mxu0 %v5525
      %6856 = vmatpush1.bf16.msra.mxu0 %v5524
      %6857 = vmatprep.subr.bf16.mxu0 %v5532
      %6858 = vmatpush1.bf16.msra.mxu0 %v5531
      %6859 = vmatprep.subr.bf16.mxu0 %v5539
      %6860 = vmatpush1.bf16.msra.mxu0 %v5538
      %6861 = vmatprep.subr.bf16.mxu0 %v5546
      %6862 = vmatpush1.bf16.msra.mxu0 %v5545
      %6863 = vmatprep.subr.bf16.mxu0 %v5553
      %6864 = vmatpush1.bf16.msra.mxu0 %v5552
      %6865 = vmatprep.subr.bf16.mxu0 %v5560
      %6866 = vmatpush1.bf16.msra.mxu0 %v5559
      %6867 = vmatprep.subr.bf16.mxu0 %v5929
      %6868 = vmatpush1.bf16.msra.mxu0 %v5926
      %6869 = vmatprep.subr.bf16.mxu0 0
      %6870 = vmatpush1.bf16.msra.mxu0 0
      %6871 = vmatprep.subr.bf16.mxu0 0
      %6872 = vmatpush1.bf16.msra.mxu0 0
      %6873 = vmatprep.subr.bf16.mxu0 0
      %6874 = vmatpush1.bf16.msra.mxu0 0
      %6875 = vmatprep.subr.bf16.mxu0 0
      %6876 = vmatpush1.bf16.msra.mxu0 0
      %6877 = vmatprep.mubr.bf16.mxu0 %v5874
      %6878 = vmatmul.mubr.bf16.gmra.mrb[0].mxu0 %v3872
      %v6879 = vpop.f32.mrb[0].mxu0
      %v6880 = vadd.f32 %v6699, %v6879
      %v6881 = vpop.f32.mrb[0].mxu0
      %v6882 = vadd.f32 %v6701, %v6881
      %v6883 = vpop.f32.mrb[0].mxu0
      %v6884 = vadd.f32 %v6703, %v6883
      %v6885 = vpop.f32.mrb[0].mxu0
      %v6886 = vadd.f32 %v6705, %v6885
      %6887 = vmatprep.mubr.bf16.mxu0 %v5877
      %6888 = vmatmul.mubr.bf16.gmra.mrb[0].mxu0 %v3878
      %v6889 = vpop.f32.mrb[0].mxu0
      %v6890 = vadd.f32 %v6709, %v6889
      %v6891 = vpop.f32.mrb[0].mxu0
      %v6892 = vadd.f32 %v6711, %v6891
      %v6893 = vpop.f32.mrb[0].mxu0
      %v6894 = vadd.f32 %v6713, %v6893
      %v6895 = vpop.f32.mrb[0].mxu0
      %v6896 = vadd.f32 %v6715, %v6895
      %6897 = vmatprep.mubr.bf16.mxu0 %v5880
      %6898 = vmatmul.mubr.bf16.gmra.mrb[0].mxu0 %v3884
      %v6899 = vpop.f32.mrb[0].mxu0
      %v6900 = vadd.f32 %v6719, %v6899
      %v6901 = vpop.f32.mrb[0].mxu0
      %v6902 = vadd.f32 %v6721, %v6901
      %v6903 = vpop.f32.mrb[0].mxu0
      %v6904 = vadd.f32 %v6723, %v6903
      %v6905 = vpop.f32.mrb[0].mxu0
      %v6906 = vadd.f32 %v6725, %v6905
      %6907 = vmatprep.mubr.bf16.mxu0 %v5883
      %6908 = vmatmul.mubr.bf16.gmra.mrb[0].mxu0 %v3890
      %v6909 = vpop.f32.mrb[0].mxu0
      %v6910 = vadd.f32 %v6729, %v6909
      %v6911 = vpop.f32.mrb[0].mxu0
      %v6912 = vadd.f32 %v6731, %v6911
      %v6913 = vpop.f32.mrb[0].mxu0
      %v6914 = vadd.f32 %v6733, %v6913
      %v6915 = vpop.f32.mrb[0].mxu0
      %v6916 = vadd.f32 %v6735, %v6915
      %6917 = vmatprep.mubr.bf16.mxu0 %v5886
      %6918 = vmatmul.mubr.bf16.gmra.mrb[0].mxu0 %v3896
      %v6919 = vpop.f32.mrb[0].mxu0
      %v6920 = vadd.f32 %v6739, %v6919
      %v6921 = vpop.f32.mrb[0].mxu0
      %v6922 = vadd.f32 %v6741, %v6921
      %v6923 = vpop.f32.mrb[0].mxu0
      %v6924 = vadd.f32 %v6743, %v6923
      %v6925 = vpop.f32.mrb[0].mxu0
      %v6926 = vadd.f32 %v6745, %v6925
      %6927 = vmatprep.mubr.bf16.mxu0 %v5889
      %6928 = vmatmul.mubr.bf16.gmra.mrb[0].mxu0 %v3902
      %v6929 = vpop.f32.mrb[0].mxu0
      %v6930 = vadd.f32 %v6749, %v6929
      %v6931 = vpop.f32.mrb[0].mxu0
      %v6932 = vadd.f32 %v6751, %v6931
      %v6933 = vpop.f32.mrb[0].mxu0
      %v6934 = vadd.f32 %v6753, %v6933
      %v6935 = vpop.f32.mrb[0].mxu0
      %v6936 = vadd.f32 %v6755, %v6935
      %6937 = vmatprep.mubr.bf16.mxu0 %v5892
      %6938 = vmatmul.mubr.bf16.gmra.mrb[0].mxu0 %v3908
      %v6939 = vpop.f32.mrb[0].mxu0
      %v6940 = vadd.f32 %v6759, %v6939
      %v6941 = vpop.f32.mrb[0].mxu0
      %v6942 = vadd.f32 %v6761, %v6941
      %v6943 = vpop.f32.mrb[0].mxu0
      %v6944 = vadd.f32 %v6763, %v6943
      %v6945 = vpop.f32.mrb[0].mxu0
      %v6946 = vadd.f32 %v6765, %v6945
      %6947 = vmatprep.mubr.bf16.mxu0 %v5895
      %6948 = vmatmul.mubr.bf16.gmra.mrb[0].mxu0 %v3914
      %v6949 = vpop.f32.mrb[0].mxu0
      %v6950 = vadd.f32 %v6769, %v6949
      %v6951 = vpop.f32.mrb[0].mxu0
      %v6952 = vadd.f32 %v6771, %v6951
      %v6953 = vpop.f32.mrb[0].mxu0
      %v6954 = vadd.f32 %v6773, %v6953
      %v6955 = vpop.f32.mrb[0].mxu0
      %v6956 = vadd.f32 %v6775, %v6955
      %6957 = vmatprep.mubr.bf16.mxu0 %v5898
      %6958 = vmatmul.mubr.bf16.gmra.mrb[0].mxu0 %v3920
      %v6959 = vpop.f32.mrb[0].mxu0
      %v6960 = vadd.f32 %v6779, %v6959
      %v6961 = vpop.f32.mrb[0].mxu0
      %v6962 = vadd.f32 %v6781, %v6961
      %v6963 = vpop.f32.mrb[0].mxu0
      %v6964 = vadd.f32 %v6783, %v6963
      %v6965 = vpop.f32.mrb[0].mxu0
      %v6966 = vadd.f32 %v6785, %v6965
      %6967 = vmatprep.mubr.bf16.mxu0 %v5901
      %6968 = vmatmul.mubr.bf16.gmra.mrb[0].mxu0 %v3926
      %v6969 = vpop.f32.mrb[0].mxu0
      %v6970 = vadd.f32 %v6789, %v6969
      %v6971 = vpop.f32.mrb[0].mxu0
      %v6972 = vadd.f32 %v6791, %v6971
      %v6973 = vpop.f32.mrb[0].mxu0
      %v6974 = vadd.f32 %v6793, %v6973
      %v6975 = vpop.f32.mrb[0].mxu0
      %v6976 = vadd.f32 %v6795, %v6975
      %6977 = vmatprep.mubr.bf16.mxu0 %v5904
      %6978 = vmatmul.mubr.bf16.gmra.mrb[0].mxu0 %v3932
      %v6979 = vpop.f32.mrb[0].mxu0
      %v6980 = vadd.f32 %v6799, %v6979
      %v6981 = vpop.f32.mrb[0].mxu0
      %v6982 = vadd.f32 %v6801, %v6981
      %v6983 = vpop.f32.mrb[0].mxu0
      %v6984 = vadd.f32 %v6803, %v6983
      %v6985 = vpop.f32.mrb[0].mxu0
      %v6986 = vadd.f32 %v6805, %v6985
      %6987 = vmatprep.mubr.bf16.mxu0 %v5907
      %6988 = vmatmul.mubr.bf16.gmra.mrb[0].mxu0 %v3938
      %v6989 = vpop.f32.mrb[0].mxu0
      %v6990 = vadd.f32 %v6809, %v6989
      %v6991 = vpop.f32.mrb[0].mxu0
      %v6992 = vadd.f32 %v6811, %v6991
      %v6993 = vpop.f32.mrb[0].mxu0
      %v6994 = vadd.f32 %v6813, %v6993
      %v6995 = vpop.f32.mrb[0].mxu0
      %v6996 = vadd.f32 %v6815, %v6995
      %6997 = vmatprep.mubr.bf16.mxu0 %v5910
      %6998 = vmatmul.mubr.bf16.gmra.mrb[0].mxu0 %v3944
      %v6999 = vpop.f32.mrb[0].mxu0
      %v7000 = vadd.f32 %v6819, %v6999
      %v7001 = vpop.f32.mrb[0].mxu0
      %v7002 = vadd.f32 %v6821, %v7001
      %v7003 = vpop.f32.mrb[0].mxu0
      %v7004 = vadd.f32 %v6823, %v7003
      %v7005 = vpop.f32.mrb[0].mxu0
      %v7006 = vadd.f32 %v6825, %v7005
      %7007 = vmatprep.mubr.bf16.mxu0 %v5913
      %7008 = vmatmul.mubr.bf16.gmra.mrb[0].mxu0 %v3950
      %v7009 = vpop.f32.mrb[0].mxu0
      %v7010 = vadd.f32 %v6829, %v7009
      %v7011 = vpop.f32.mrb[0].mxu0
      %v7012 = vadd.f32 %v6831, %v7011
      %v7013 = vpop.f32.mrb[0].mxu0
      %v7014 = vadd.f32 %v6833, %v7013
      %v7015 = vpop.f32.mrb[0].mxu0
      %v7016 = vadd.f32 %v6835, %v7015
      %7017 = vmatprep.mubr.bf16.mxu0 %v5916
      %7018 = vmatmul.mubr.bf16.gmra.mrb[0].mxu0 %v3956
      %v7019 = vpop.f32.mrb[0].mxu0
      %v7020 = vadd.f32 %v6839, %v7019
      %v7021 = vpop.f32.mrb[0].mxu0
      %v7022 = vadd.f32 %v6841, %v7021
      %v7023 = vpop.f32.mrb[0].mxu0
      %v7024 = vpop.f32.mrb[0].mxu0
      %7025 = vdwg.mxu0
      %7026 = vmatprep.subr.bf16.mxu0 %v5268
      %7027 = vmatpush1.bf16.msra.mxu0 %v5267
      %7028 = vmatprep.subr.bf16.mxu0 %v5275
      %7029 = vmatpush1.bf16.msra.mxu0 %v5274
      %7030 = vmatprep.subr.bf16.mxu0 %v5282
      %7031 = vmatpush1.bf16.msra.mxu0 %v5281
      %7032 = vmatprep.subr.bf16.mxu0 %v5289
      %7033 = vmatpush1.bf16.msra.mxu0 %v5288
      %7034 = vmatprep.subr.bf16.mxu0 %v5296
      %7035 = vmatpush1.bf16.msra.mxu0 %v5295
      %7036 = vmatprep.subr.bf16.mxu0 %v5303
      %7037 = vmatpush1.bf16.msra.mxu0 %v5302
      %7038 = vmatprep.subr.bf16.mxu0 %v5310
      %7039 = vmatpush1.bf16.msra.mxu0 %v5309
      %7040 = vmatprep.subr.bf16.mxu0 %v5317
      %7041 = vmatpush1.bf16.msra.mxu0 %v5316
      %7042 = vmatprep.subr.bf16.mxu0 %v5324
      %7043 = vmatpush1.bf16.msra.mxu0 %v5323
      %7044 = vmatprep.subr.bf16.mxu0 %v5331
      %7045 = vmatpush1.bf16.msra.mxu0 %v5330
      %7046 = vmatprep.subr.bf16.mxu0 %v5338
      %7047 = vmatpush1.bf16.msra.mxu0 %v5337
      %7048 = vmatprep.subr.bf16.mxu0 %v5345
      %7049 = vmatpush1.bf16.msra.mxu0 %v5344
      %7050 = vmatprep.subr.bf16.mxu0 %v5352
      %7051 = vmatpush1.bf16.msra.mxu0 %v5351
      %7052 = vmatprep.subr.bf16.mxu0 %v5359
      %7053 = vmatpush1.bf16.msra.mxu0 %v5358
      %7054 = vmatprep.subr.bf16.mxu0 %v5366
      %7055 = vmatpush1.bf16.msra.mxu0 %v5365
      %7056 = vmatprep.subr.bf16.mxu0 %v5373
      %7057 = vmatpush1.bf16.msra.mxu0 %v5372
      %7058 = vmatprep.mubr.bf16.mxu0 %v3869
      %7059 = vmatmul.mubr.bf16.gmra.mrb[0].mxu0 %v3868
      %v7060 = vpop.f32.mrb[0].mxu0
      %v7061 = vadd.f32 0.0, %v7060
      %v7062 = vpop.f32.mrb[0].mxu0
      %v7063 = vadd.f32 0.0, %v7062
      %v7064 = vpop.f32.mrb[0].mxu0
      %v7065 = vadd.f32 0.0, %v7064
      %v7066 = vpop.f32.mrb[0].mxu0
      %v7067 = vadd.f32 0.0, %v7066
      %7068 = vmatprep.mubr.bf16.mxu0 %v3875
      %7069 = vmatmul.mubr.bf16.gmra.mrb[0].mxu0 %v3874
      %v7070 = vpop.f32.mrb[0].mxu0
      %v7071 = vadd.f32 0.0, %v7070
      %v7072 = vpop.f32.mrb[0].mxu0
      %v7073 = vadd.f32 0.0, %v7072
      %v7074 = vpop.f32.mrb[0].mxu0
      %v7075 = vadd.f32 0.0, %v7074
      %v7076 = vpop.f32.mrb[0].mxu0
      %v7077 = vadd.f32 0.0, %v7076
      %7078 = vmatprep.mubr.bf16.mxu0 %v3881
      %7079 = vmatmul.mubr.bf16.gmra.mrb[0].mxu0 %v3880
      %v7080 = vpop.f32.mrb[0].mxu0
      %v7081 = vadd.f32 0.0, %v7080
      %v7082 = vpop.f32.mrb[0].mxu0
      %v7083 = vadd.f32 0.0, %v7082
      %v7084 = vpop.f32.mrb[0].mxu0
      %v7085 = vadd.f32 0.0, %v7084
      %v7086 = vpop.f32.mrb[0].mxu0
      %v7087 = vadd.f32 0.0, %v7086
      %7088 = vmatprep.mubr.bf16.mxu0 %v3887
      %7089 = vmatmul.mubr.bf16.gmra.mrb[0].mxu0 %v3886
      %v7090 = vpop.f32.mrb[0].mxu0
      %v7091 = vadd.f32 0.0, %v7090
      %v7092 = vpop.f32.mrb[0].mxu0
      %v7093 = vadd.f32 0.0, %v7092
      %v7094 = vpop.f32.mrb[0].mxu0
      %v7095 = vadd.f32 0.0, %v7094
      %v7096 = vpop.f32.mrb[0].mxu0
      %v7097 = vadd.f32 0.0, %v7096
      %7098 = vmatprep.mubr.bf16.mxu0 %v3893
      %7099 = vmatmul.mubr.bf16.gmra.mrb[0].mxu0 %v3892
      %v7100 = vpop.f32.mrb[0].mxu0
      %v7101 = vadd.f32 0.0, %v7100
      %v7102 = vpop.f32.mrb[0].mxu0
      %v7103 = vadd.f32 0.0, %v7102
      %v7104 = vpop.f32.mrb[0].mxu0
      %v7105 = vadd.f32 0.0, %v7104
      %v7106 = vpop.f32.mrb[0].mxu0
      %v7107 = vadd.f32 0.0, %v7106
      %7108 = vmatprep.mubr.bf16.mxu0 %v3899
      %7109 = vmatmul.mubr.bf16.gmra.mrb[0].mxu0 %v3898
      %v7110 = vpop.f32.mrb[0].mxu0
      %v7111 = vadd.f32 0.0, %v7110
      %v7112 = vpop.f32.mrb[0].mxu0
      %v7113 = vadd.f32 0.0, %v7112
      %v7114 = vpop.f32.mrb[0].mxu0
      %v7115 = vadd.f32 0.0, %v7114
      %v7116 = vpop.f32.mrb[0].mxu0
      %v7117 = vadd.f32 0.0, %v7116
      %7118 = vmatprep.mubr.bf16.mxu0 %v3905
      %7119 = vmatmul.mubr.bf16.gmra.mrb[0].mxu0 %v3904
      %v7120 = vpop.f32.mrb[0].mxu0
      %v7121 = vadd.f32 0.0, %v7120
      %v7122 = vpop.f32.mrb[0].mxu0
      %v7123 = vadd.f32 0.0, %v7122
      %v7124 = vpop.f32.mrb[0].mxu0
      %v7125 = vadd.f32 0.0, %v7124
      %v7126 = vpop.f32.mrb[0].mxu0
      %v7127 = vadd.f32 0.0, %v7126
      %7128 = vmatprep.mubr.bf16.mxu0 %v3911
      %7129 = vmatmul.mubr.bf16.gmra.mrb[0].mxu0 %v3910
      %v7130 = vpop.f32.mrb[0].mxu0
      %v7131 = vadd.f32 0.0, %v7130
      %v7132 = vpop.f32.mrb[0].mxu0
      %v7133 = vadd.f32 0.0, %v7132
      %v7134 = vpop.f32.mrb[0].mxu0
      %v7135 = vadd.f32 0.0, %v7134
      %v7136 = vpop.f32.mrb[0].mxu0
      %v7137 = vadd.f32 0.0, %v7136
      %7138 = vmatprep.mubr.bf16.mxu0 %v3917
      %7139 = vmatmul.mubr.bf16.gmra.mrb[0].mxu0 %v3916
      %v7140 = vpop.f32.mrb[0].mxu0
      %v7141 = vadd.f32 0.0, %v7140
      %v7142 = vpop.f32.mrb[0].mxu0
      %v7143 = vadd.f32 0.0, %v7142
      %v7144 = vpop.f32.mrb[0].mxu0
      %v7145 = vadd.f32 0.0, %v7144
      %v7146 = vpop.f32.mrb[0].mxu0
      %v7147 = vadd.f32 0.0, %v7146
      %7148 = vmatprep.mubr.bf16.mxu0 %v3923
      %7149 = vmatmul.mubr.bf16.gmra.mrb[0].mxu0 %v3922
      %v7150 = vpop.f32.mrb[0].mxu0
      %v7151 = vadd.f32 0.0, %v7150
      %v7152 = vpop.f32.mrb[0].mxu0
      %v7153 = vadd.f32 0.0, %v7152
      %v7154 = vpop.f32.mrb[0].mxu0
      %v7155 = vadd.f32 0.0, %v7154
      %v7156 = vpop.f32.mrb[0].mxu0
      %v7157 = vadd.f32 0.0, %v7156
      %7158 = vmatprep.mubr.bf16.mxu0 %v3929
      %7159 = vmatmul.mubr.bf16.gmra.mrb[0].mxu0 %v3928
      %v7160 = vpop.f32.mrb[0].mxu0
      %v7161 = vadd.f32 0.0, %v7160
      %v7162 = vpop.f32.mrb[0].mxu0
      %v7163 = vadd.f32 0.0, %v7162
      %v7164 = vpop.f32.mrb[0].mxu0
      %v7165 = vadd.f32 0.0, %v7164
      %v7166 = vpop.f32.mrb[0].mxu0
      %v7167 = vadd.f32 0.0, %v7166
      %7168 = vmatprep.mubr.bf16.mxu0 %v3935
      %7169 = vmatmul.mubr.bf16.gmra.mrb[0].mxu0 %v3934
      %v7170 = vpop.f32.mrb[0].mxu0
      %v7171 = vadd.f32 0.0, %v7170
      %v7172 = vpop.f32.mrb[0].mxu0
      %v7173 = vadd.f32 0.0, %v7172
      %v7174 = vpop.f32.mrb[0].mxu0
      %v7175 = vadd.f32 0.0, %v7174
      %v7176 = vpop.f32.mrb[0].mxu0
      %v7177 = vadd.f32 0.0, %v7176
      %7178 = vmatprep.mubr.bf16.mxu0 %v3941
      %7179 = vmatmul.mubr.bf16.gmra.mrb[0].mxu0 %v3940
      %v7180 = vpop.f32.mrb[0].mxu0
      %v7181 = vadd.f32 0.0, %v7180
      %v7182 = vpop.f32.mrb[0].mxu0
      %v7183 = vadd.f32 0.0, %v7182
      %v7184 = vpop.f32.mrb[0].mxu0
      %v7185 = vadd.f32 0.0, %v7184
      %v7186 = vpop.f32.mrb[0].mxu0
      %v7187 = vadd.f32 0.0, %v7186
      %7188 = vmatprep.mubr.bf16.mxu0 %v3947
      %7189 = vmatmul.mubr.bf16.gmra.mrb[0].mxu0 %v3946
      %v7190 = vpop.f32.mrb[0].mxu0
      %v7191 = vadd.f32 0.0, %v7190
      %v7192 = vpop.f32.mrb[0].mxu0
      %v7193 = vadd.f32 0.0, %v7192
      %v7194 = vpop.f32.mrb[0].mxu0
      %v7195 = vadd.f32 0.0, %v7194
      %v7196 = vpop.f32.mrb[0].mxu0
      %v7197 = vadd.f32 0.0, %v7196
      %7198 = vmatprep.mubr.bf16.mxu0 %v3953
      %7199 = vmatmul.mubr.bf16.gmra.mrb[0].mxu0 %v3952
      %v7200 = vpop.f32.mrb[0].mxu0
      %v7201 = vadd.f32 0.0, %v7200
      %v7202 = vpop.f32.mrb[0].mxu0
      %v7203 = vadd.f32 0.0, %v7202
      %v7204 = vpop.f32.mrb[0].mxu0
      %v7205 = vpop.f32.mrb[0].mxu0
      %7206 = vdwg.mxu0
      %7207 = vmatprep.subr.bf16.mxu0 %v5380
      %7208 = vmatpush1.bf16.msra.mxu0 %v5379
      %7209 = vmatprep.subr.bf16.mxu0 %v5387
      %7210 = vmatpush1.bf16.msra.mxu0 %v5386
      %7211 = vmatprep.subr.bf16.mxu0 %v5394
      %7212 = vmatpush1.bf16.msra.mxu0 %v5393
      %7213 = vmatprep.subr.bf16.mxu0 %v5401
      %7214 = vmatpush1.bf16.msra.mxu0 %v5400
      %7215 = vmatprep.subr.bf16.mxu0 %v5408
      %7216 = vmatpush1.bf16.msra.mxu0 %v5407
      %7217 = vmatprep.subr.bf16.mxu0 %v5415
      %7218 = vmatpush1.bf16.msra.mxu0 %v5414
      %7219 = vmatprep.subr.bf16.mxu0 %v5422
      %7220 = vmatpush1.bf16.msra.mxu0 %v5421
      %7221 = vmatprep.subr.bf16.mxu0 %v5429
      %7222 = vmatpush1.bf16.msra.mxu0 %v5428
      %7223 = vmatprep.subr.bf16.mxu0 %v5436
      %7224 = vmatpush1.bf16.msra.mxu0 %v5435
      %7225 = vmatprep.subr.bf16.mxu0 %v5443
      %7226 = vmatpush1.bf16.msra.mxu0 %v5442
      %7227 = vmatprep.subr.bf16.mxu0 %v5450
      %7228 = vmatpush1.bf16.msra.mxu0 %v5449
      %7229 = vmatprep.subr.bf16.mxu0 %v5457
      %7230 = vmatpush1.bf16.msra.mxu0 %v5456
      %7231 = vmatprep.subr.bf16.mxu0 %v5464
      %7232 = vmatpush1.bf16.msra.mxu0 %v5463
      %7233 = vmatprep.subr.bf16.mxu0 %v5471
      %7234 = vmatpush1.bf16.msra.mxu0 %v5470
      %7235 = vmatprep.subr.bf16.mxu0 %v5478
      %7236 = vmatpush1.bf16.msra.mxu0 %v5477
      %7237 = vmatprep.subr.bf16.mxu0 %v5485
      %7238 = vmatpush1.bf16.msra.mxu0 %v5484
      %7239 = vmatprep.mubr.bf16.mxu0 %v3871
      %7240 = vmatmul.mubr.bf16.gmra.mrb[0].mxu0 %v3870
      %v7241 = vpop.f32.mrb[0].mxu0
      %v7242 = vadd.f32 %v7061, %v7241
      %v7243 = vpop.f32.mrb[0].mxu0
      %v7244 = vadd.f32 %v7063, %v7243
      %v7245 = vpop.f32.mrb[0].mxu0
      %v7246 = vadd.f32 %v7065, %v7245
      %v7247 = vpop.f32.mrb[0].mxu0
      %v7248 = vadd.f32 %v7067, %v7247
      %7249 = vmatprep.mubr.bf16.mxu0 %v3877
      %7250 = vmatmul.mubr.bf16.gmra.mrb[0].mxu0 %v3876
      %v7251 = vpop.f32.mrb[0].mxu0
      %v7252 = vadd.f32 %v7071, %v7251
      %v7253 = vpop.f32.mrb[0].mxu0
      %v7254 = vadd.f32 %v7073, %v7253
      %v7255 = vpop.f32.mrb[0].mxu0
      %v7256 = vadd.f32 %v7075, %v7255
      %v7257 = vpop.f32.mrb[0].mxu0
      %v7258 = vadd.f32 %v7077, %v7257
      %7259 = vmatprep.mubr.bf16.mxu0 %v3883
      %7260 = vmatmul.mubr.bf16.gmra.mrb[0].mxu0 %v3882
      %v7261 = vpop.f32.mrb[0].mxu0
      %v7262 = vadd.f32 %v7081, %v7261
      %v7263 = vpop.f32.mrb[0].mxu0
      %v7264 = vadd.f32 %v7083, %v7263
      %v7265 = vpop.f32.mrb[0].mxu0
      %v7266 = vadd.f32 %v7085, %v7265
      %v7267 = vpop.f32.mrb[0].mxu0
      %v7268 = vadd.f32 %v7087, %v7267
      %7269 = vmatprep.mubr.bf16.mxu0 %v3889
      %7270 = vmatmul.mubr.bf16.gmra.mrb[0].mxu0 %v3888
      %v7271 = vpop.f32.mrb[0].mxu0
      %v7272 = vadd.f32 %v7091, %v7271
      %v7273 = vpop.f32.mrb[0].mxu0
      %v7274 = vadd.f32 %v7093, %v7273
      %v7275 = vpop.f32.mrb[0].mxu0
      %v7276 = vadd.f32 %v7095, %v7275
      %v7277 = vpop.f32.mrb[0].mxu0
      %v7278 = vadd.f32 %v7097, %v7277
      %7279 = vmatprep.mubr.bf16.mxu0 %v3895
      %7280 = vmatmul.mubr.bf16.gmra.mrb[0].mxu0 %v3894
      %v7281 = vpop.f32.mrb[0].mxu0
      %v7282 = vadd.f32 %v7101, %v7281
      %v7283 = vpop.f32.mrb[0].mxu0
      %v7284 = vadd.f32 %v7103, %v7283
      %v7285 = vpop.f32.mrb[0].mxu0
      %v7286 = vadd.f32 %v7105, %v7285
      %v7287 = vpop.f32.mrb[0].mxu0
      %v7288 = vadd.f32 %v7107, %v7287
      %7289 = vmatprep.mubr.bf16.mxu0 %v3901
      %7290 = vmatmul.mubr.bf16.gmra.mrb[0].mxu0 %v3900
      %v7291 = vpop.f32.mrb[0].mxu0
      %v7292 = vadd.f32 %v7111, %v7291
      %v7293 = vpop.f32.mrb[0].mxu0
      %v7294 = vadd.f32 %v7113, %v7293
      %v7295 = vpop.f32.mrb[0].mxu0
      %v7296 = vadd.f32 %v7115, %v7295
      %v7297 = vpop.f32.mrb[0].mxu0
      %v7298 = vadd.f32 %v7117, %v7297
      %7299 = vmatprep.mubr.bf16.mxu0 %v3907
      %7300 = vmatmul.mubr.bf16.gmra.mrb[0].mxu0 %v3906
      %v7301 = vpop.f32.mrb[0].mxu0
      %v7302 = vadd.f32 %v7121, %v7301
      %v7303 = vpop.f32.mrb[0].mxu0
      %v7304 = vadd.f32 %v7123, %v7303
      %v7305 = vpop.f32.mrb[0].mxu0
      %v7306 = vadd.f32 %v7125, %v7305
      %v7307 = vpop.f32.mrb[0].mxu0
      %v7308 = vadd.f32 %v7127, %v7307
      %7309 = vmatprep.mubr.bf16.mxu0 %v3913
      %7310 = vmatmul.mubr.bf16.gmra.mrb[0].mxu0 %v3912
      %v7311 = vpop.f32.mrb[0].mxu0
      %v7312 = vadd.f32 %v7131, %v7311
      %v7313 = vpop.f32.mrb[0].mxu0
      %v7314 = vadd.f32 %v7133, %v7313
      %v7315 = vpop.f32.mrb[0].mxu0
      %v7316 = vadd.f32 %v7135, %v7315
      %v7317 = vpop.f32.mrb[0].mxu0
      %v7318 = vadd.f32 %v7137, %v7317
      %7319 = vmatprep.mubr.bf16.mxu0 %v3919
      %7320 = vmatmul.mubr.bf16.gmra.mrb[0].mxu0 %v3918
      %v7321 = vpop.f32.mrb[0].mxu0
      %v7322 = vadd.f32 %v7141, %v7321
      %v7323 = vpop.f32.mrb[0].mxu0
      %v7324 = vadd.f32 %v7143, %v7323
      %v7325 = vpop.f32.mrb[0].mxu0
      %v7326 = vadd.f32 %v7145, %v7325
      %v7327 = vpop.f32.mrb[0].mxu0
      %v7328 = vadd.f32 %v7147, %v7327
      %7329 = vmatprep.mubr.bf16.mxu0 %v3925
      %7330 = vmatmul.mubr.bf16.gmra.mrb[0].mxu0 %v3924
      %v7331 = vpop.f32.mrb[0].mxu0
      %v7332 = vadd.f32 %v7151, %v7331
      %v7333 = vpop.f32.mrb[0].mxu0
      %v7334 = vadd.f32 %v7153, %v7333
      %v7335 = vpop.f32.mrb[0].mxu0
      %v7336 = vadd.f32 %v7155, %v7335
      %v7337 = vpop.f32.mrb[0].mxu0
      %v7338 = vadd.f32 %v7157, %v7337
      %7339 = vmatprep.mubr.bf16.mxu0 %v3931
      %7340 = vmatmul.mubr.bf16.gmra.mrb[0].mxu0 %v3930
      %v7341 = vpop.f32.mrb[0].mxu0
      %v7342 = vadd.f32 %v7161, %v7341
      %v7343 = vpop.f32.mrb[0].mxu0
      %v7344 = vadd.f32 %v7163, %v7343
      %v7345 = vpop.f32.mrb[0].mxu0
      %v7346 = vadd.f32 %v7165, %v7345
      %v7347 = vpop.f32.mrb[0].mxu0
      %v7348 = vadd.f32 %v7167, %v7347
      %7349 = vmatprep.mubr.bf16.mxu0 %v3937
      %7350 = vmatmul.mubr.bf16.gmra.mrb[0].mxu0 %v3936
      %v7351 = vpop.f32.mrb[0].mxu0
      %v7352 = vadd.f32 %v7171, %v7351
      %v7353 = vpop.f32.mrb[0].mxu0
      %v7354 = vadd.f32 %v7173, %v7353
      %v7355 = vpop.f32.mrb[0].mxu0
      %v7356 = vadd.f32 %v7175, %v7355
      %v7357 = vpop.f32.mrb[0].mxu0
      %v7358 = vadd.f32 %v7177, %v7357
      %7359 = vmatprep.mubr.bf16.mxu0 %v3943
      %7360 = vmatmul.mubr.bf16.gmra.mrb[0].mxu0 %v3942
      %v7361 = vpop.f32.mrb[0].mxu0
      %v7362 = vadd.f32 %v7181, %v7361
      %v7363 = vpop.f32.mrb[0].mxu0
      %v7364 = vadd.f32 %v7183, %v7363
      %v7365 = vpop.f32.mrb[0].mxu0
      %v7366 = vadd.f32 %v7185, %v7365
      %v7367 = vpop.f32.mrb[0].mxu0
      %v7368 = vadd.f32 %v7187, %v7367
      %7369 = vmatprep.mubr.bf16.mxu0 %v3949
      %7370 = vmatmul.mubr.bf16.gmra.mrb[0].mxu0 %v3948
      %v7371 = vpop.f32.mrb[0].mxu0
      %v7372 = vadd.f32 %v7191, %v7371
      %v7373 = vpop.f32.mrb[0].mxu0
      %v7374 = vadd.f32 %v7193, %v7373
      %v7375 = vpop.f32.mrb[0].mxu0
      %v7376 = vadd.f32 %v7195, %v7375
      %v7377 = vpop.f32.mrb[0].mxu0
      %v7378 = vadd.f32 %v7197, %v7377
      %7379 = vmatprep.mubr.bf16.mxu0 %v3955
      %7380 = vmatmul.mubr.bf16.gmra.mrb[0].mxu0 %v3954
      %v7381 = vpop.f32.mrb[0].mxu0
      %v7382 = vadd.f32 %v7201, %v7381
      %v7383 = vpop.f32.mrb[0].mxu0
      %v7384 = vadd.f32 %v7203, %v7383
      %v7385 = vpop.f32.mrb[0].mxu0
      %v7386 = vpop.f32.mrb[0].mxu0
      %7387 = vdwg.mxu0
      %7388 = vmatprep.subr.bf16.mxu0 %v5492
      %7389 = vmatpush1.bf16.msra.mxu0 %v5491
      %7390 = vmatprep.subr.bf16.mxu0 %v5499
      %7391 = vmatpush1.bf16.msra.mxu0 %v5498
      %7392 = vmatprep.subr.bf16.mxu0 %v5506
      %7393 = vmatpush1.bf16.msra.mxu0 %v5505
      %7394 = vmatprep.subr.bf16.mxu0 %v5513
      %7395 = vmatpush1.bf16.msra.mxu0 %v5512
      %7396 = vmatprep.subr.bf16.mxu0 %v5520
      %7397 = vmatpush1.bf16.msra.mxu0 %v5519
      %7398 = vmatprep.subr.bf16.mxu0 %v5527
      %7399 = vmatpush1.bf16.msra.mxu0 %v5526
      %7400 = vmatprep.subr.bf16.mxu0 %v5534
      %7401 = vmatpush1.bf16.msra.mxu0 %v5533
      %7402 = vmatprep.subr.bf16.mxu0 %v5541
      %7403 = vmatpush1.bf16.msra.mxu0 %v5540
      %7404 = vmatprep.subr.bf16.mxu0 %v5548
      %7405 = vmatpush1.bf16.msra.mxu0 %v5547
      %7406 = vmatprep.subr.bf16.mxu0 %v5555
      %7407 = vmatpush1.bf16.msra.mxu0 %v5554
      %7408 = vmatprep.subr.bf16.mxu0 %v5562
      %7409 = vmatpush1.bf16.msra.mxu0 %v5561
      %7410 = vmatprep.subr.bf16.mxu0 %v5935
      %7411 = vmatpush1.bf16.msra.mxu0 %v5932
      %7412 = vmatprep.subr.bf16.mxu0 0
      %7413 = vmatpush1.bf16.msra.mxu0 0
      %7414 = vmatprep.subr.bf16.mxu0 0
      %7415 = vmatpush1.bf16.msra.mxu0 0
      %7416 = vmatprep.subr.bf16.mxu0 0
      %7417 = vmatpush1.bf16.msra.mxu0 0
      %7418 = vmatprep.subr.bf16.mxu0 0
      %7419 = vmatpush1.bf16.msra.mxu0 0
      %7420 = vmatprep.mubr.bf16.mxu0 %v5874
      %7421 = vmatmul.mubr.bf16.gmra.mrb[0].mxu0 %v3872
      %v7422 = vpop.f32.mrb[0].mxu0
      %v7423 = vadd.f32 %v7242, %v7422
      %v7424 = vpop.f32.mrb[0].mxu0
      %v7425 = vadd.f32 %v7244, %v7424
      %v7426 = vpop.f32.mrb[0].mxu0
      %v7427 = vadd.f32 %v7246, %v7426
      %v7428 = vpop.f32.mrb[0].mxu0
      %v7429 = vadd.f32 %v7248, %v7428
      %7430 = vmatprep.mubr.bf16.mxu0 %v5877
      %7431 = vmatmul.mubr.bf16.gmra.mrb[0].mxu0 %v3878
      %v7432 = vpop.f32.mrb[0].mxu0
      %v7433 = vadd.f32 %v7252, %v7432
      %v7434 = vpop.f32.mrb[0].mxu0
      %v7435 = vadd.f32 %v7254, %v7434
      %v7436 = vpop.f32.mrb[0].mxu0
      %v7437 = vadd.f32 %v7256, %v7436
      %v7438 = vpop.f32.mrb[0].mxu0
      %v7439 = vadd.f32 %v7258, %v7438
      %7440 = vmatprep.mubr.bf16.mxu0 %v5880
      %7441 = vmatmul.mubr.bf16.gmra.mrb[0].mxu0 %v3884
      %v7442 = vpop.f32.mrb[0].mxu0
      %v7443 = vadd.f32 %v7262, %v7442
      %v7444 = vpop.f32.mrb[0].mxu0
      %v7445 = vadd.f32 %v7264, %v7444
      %v7446 = vpop.f32.mrb[0].mxu0
      %v7447 = vadd.f32 %v7266, %v7446
      %v7448 = vpop.f32.mrb[0].mxu0
      %v7449 = vadd.f32 %v7268, %v7448
      %7450 = vmatprep.mubr.bf16.mxu0 %v5883
      %7451 = vmatmul.mubr.bf16.gmra.mrb[0].mxu0 %v3890
      %v7452 = vpop.f32.mrb[0].mxu0
      %v7453 = vadd.f32 %v7272, %v7452
      %v7454 = vpop.f32.mrb[0].mxu0
      %v7455 = vadd.f32 %v7274, %v7454
      %v7456 = vpop.f32.mrb[0].mxu0
      %v7457 = vadd.f32 %v7276, %v7456
      %v7458 = vpop.f32.mrb[0].mxu0
      %v7459 = vadd.f32 %v7278, %v7458
      %7460 = vmatprep.mubr.bf16.mxu0 %v5886
      %7461 = vmatmul.mubr.bf16.gmra.mrb[0].mxu0 %v3896
      %v7462 = vpop.f32.mrb[0].mxu0
      %v7463 = vadd.f32 %v7282, %v7462
      %v7464 = vpop.f32.mrb[0].mxu0
      %v7465 = vadd.f32 %v7284, %v7464
      %v7466 = vpop.f32.mrb[0].mxu0
      %v7467 = vadd.f32 %v7286, %v7466
      %v7468 = vpop.f32.mrb[0].mxu0
      %v7469 = vadd.f32 %v7288, %v7468
      %7470 = vmatprep.mubr.bf16.mxu0 %v5889
      %7471 = vmatmul.mubr.bf16.gmra.mrb[0].mxu0 %v3902
      %v7472 = vpop.f32.mrb[0].mxu0
      %v7473 = vadd.f32 %v7292, %v7472
      %v7474 = vpop.f32.mrb[0].mxu0
      %v7475 = vadd.f32 %v7294, %v7474
      %v7476 = vpop.f32.mrb[0].mxu0
      %v7477 = vadd.f32 %v7296, %v7476
      %v7478 = vpop.f32.mrb[0].mxu0
      %v7479 = vadd.f32 %v7298, %v7478
      %7480 = vmatprep.mubr.bf16.mxu0 %v5892
      %7481 = vmatmul.mubr.bf16.gmra.mrb[0].mxu0 %v3908
      %v7482 = vpop.f32.mrb[0].mxu0
      %v7483 = vadd.f32 %v7302, %v7482
      %v7484 = vpop.f32.mrb[0].mxu0
      %v7485 = vadd.f32 %v7304, %v7484
      %v7486 = vpop.f32.mrb[0].mxu0
      %v7487 = vadd.f32 %v7306, %v7486
      %v7488 = vpop.f32.mrb[0].mxu0
      %v7489 = vadd.f32 %v7308, %v7488
      %7490 = vmatprep.mubr.bf16.mxu0 %v5895
      %7491 = vmatmul.mubr.bf16.gmra.mrb[0].mxu0 %v3914
      %v7492 = vpop.f32.mrb[0].mxu0
      %v7493 = vadd.f32 %v7312, %v7492
      %v7494 = vpop.f32.mrb[0].mxu0
      %v7495 = vadd.f32 %v7314, %v7494
      %v7496 = vpop.f32.mrb[0].mxu0
      %v7497 = vadd.f32 %v7316, %v7496
      %v7498 = vpop.f32.mrb[0].mxu0
      %v7499 = vadd.f32 %v7318, %v7498
      %7500 = vmatprep.mubr.bf16.mxu0 %v5898
      %7501 = vmatmul.mubr.bf16.gmra.mrb[0].mxu0 %v3920
      %v7502 = vpop.f32.mrb[0].mxu0
      %v7503 = vadd.f32 %v7322, %v7502
      %v7504 = vpop.f32.mrb[0].mxu0
      %v7505 = vadd.f32 %v7324, %v7504
      %v7506 = vpop.f32.mrb[0].mxu0
      %v7507 = vadd.f32 %v7326, %v7506
      %v7508 = vpop.f32.mrb[0].mxu0
      %v7509 = vadd.f32 %v7328, %v7508
      %7510 = vmatprep.mubr.bf16.mxu0 %v5901
      %7511 = vmatmul.mubr.bf16.gmra.mrb[0].mxu0 %v3926
      %v7512 = vpop.f32.mrb[0].mxu0
      %v7513 = vadd.f32 %v7332, %v7512
      %v7514 = vpop.f32.mrb[0].mxu0
      %v7515 = vadd.f32 %v7334, %v7514
      %v7516 = vpop.f32.mrb[0].mxu0
      %v7517 = vadd.f32 %v7336, %v7516
      %v7518 = vpop.f32.mrb[0].mxu0
      %v7519 = vadd.f32 %v7338, %v7518
      %7520 = vmatprep.mubr.bf16.mxu0 %v5904
      %7521 = vmatmul.mubr.bf16.gmra.mrb[0].mxu0 %v3932
      %v7522 = vpop.f32.mrb[0].mxu0
      %v7523 = vadd.f32 %v7342, %v7522
      %v7524 = vpop.f32.mrb[0].mxu0
      %v7525 = vadd.f32 %v7344, %v7524
      %v7526 = vpop.f32.mrb[0].mxu0
      %v7527 = vadd.f32 %v7346, %v7526
      %v7528 = vpop.f32.mrb[0].mxu0
      %v7529 = vadd.f32 %v7348, %v7528
      %7530 = vmatprep.mubr.bf16.mxu0 %v5907
      %7531 = vmatmul.mubr.bf16.gmra.mrb[0].mxu0 %v3938
      %v7532 = vpop.f32.mrb[0].mxu0
      %v7533 = vadd.f32 %v7352, %v7532
      %v7534 = vpop.f32.mrb[0].mxu0
      %v7535 = vadd.f32 %v7354, %v7534
      %v7536 = vpop.f32.mrb[0].mxu0
      %v7537 = vadd.f32 %v7356, %v7536
      %v7538 = vpop.f32.mrb[0].mxu0
      %v7539 = vadd.f32 %v7358, %v7538
      %7540 = vmatprep.mubr.bf16.mxu0 %v5910
      %7541 = vmatmul.mubr.bf16.gmra.mrb[0].mxu0 %v3944
      %v7542 = vpop.f32.mrb[0].mxu0
      %v7543 = vadd.f32 %v7362, %v7542
      %v7544 = vpop.f32.mrb[0].mxu0
      %v7545 = vadd.f32 %v7364, %v7544
      %v7546 = vpop.f32.mrb[0].mxu0
      %v7547 = vadd.f32 %v7366, %v7546
      %v7548 = vpop.f32.mrb[0].mxu0
      %v7549 = vadd.f32 %v7368, %v7548
      %7550 = vmatprep.mubr.bf16.mxu0 %v5913
      %7551 = vmatmul.mubr.bf16.gmra.mrb[0].mxu0 %v3950
      %v7552 = vpop.f32.mrb[0].mxu0
      %v7553 = vadd.f32 %v7372, %v7552
      %v7554 = vpop.f32.mrb[0].mxu0
      %v7555 = vadd.f32 %v7374, %v7554
      %v7556 = vpop.f32.mrb[0].mxu0
      %v7557 = vadd.f32 %v7376, %v7556
      %v7558 = vpop.f32.mrb[0].mxu0
      %v7559 = vadd.f32 %v7378, %v7558
      %7560 = vmatprep.mubr.bf16.mxu0 %v5916
      %7561 = vmatmul.mubr.bf16.gmra.mrb[0].mxu0 %v3956
      %v7562 = vpop.f32.mrb[0].mxu0
      %v7563 = vadd.f32 %v7382, %v7562
      %v7564 = vpop.f32.mrb[0].mxu0
      %v7565 = vadd.f32 %v7384, %v7564
      %v7566 = vpop.f32.mrb[0].mxu0
      %v7567 = vpop.f32.mrb[0].mxu0
      %7568 = vdwg.mxu0
      %7569 = vmatprep.subr.bf16.mxu0 0
      %7570 = vmatpush1.bf16.msra.mxu0 %v5269
      %7571 = vmatprep.subr.bf16.mxu0 0
      %7572 = vmatpush1.bf16.msra.mxu0 %v5276
      %7573 = vmatprep.subr.bf16.mxu0 0
      %7574 = vmatpush1.bf16.msra.mxu0 %v5283
      %7575 = vmatprep.subr.bf16.mxu0 0
      %7576 = vmatpush1.bf16.msra.mxu0 %v5290
      %7577 = vmatprep.subr.bf16.mxu0 0
      %7578 = vmatpush1.bf16.msra.mxu0 %v5297
      %7579 = vmatprep.subr.bf16.mxu0 0
      %7580 = vmatpush1.bf16.msra.mxu0 %v5304
      %7581 = vmatprep.subr.bf16.mxu0 0
      %7582 = vmatpush1.bf16.msra.mxu0 %v5311
      %7583 = vmatprep.subr.bf16.mxu0 0
      %7584 = vmatpush1.bf16.msra.mxu0 %v5318
      %7585 = vmatprep.subr.bf16.mxu0 0
      %7586 = vmatpush1.bf16.msra.mxu0 %v5325
      %7587 = vmatprep.subr.bf16.mxu0 0
      %7588 = vmatpush1.bf16.msra.mxu0 %v5332
      %7589 = vmatprep.subr.bf16.mxu0 0
      %7590 = vmatpush1.bf16.msra.mxu0 %v5339
      %7591 = vmatprep.subr.bf16.mxu0 0
      %7592 = vmatpush1.bf16.msra.mxu0 %v5346
      %7593 = vmatprep.subr.bf16.mxu0 0
      %7594 = vmatpush1.bf16.msra.mxu0 %v5353
      %7595 = vmatprep.subr.bf16.mxu0 0
      %7596 = vmatpush1.bf16.msra.mxu0 %v5360
      %7597 = vmatprep.subr.bf16.mxu0 0
      %7598 = vmatpush1.bf16.msra.mxu0 %v5367
      %7599 = vmatprep.subr.bf16.mxu0 0
      %7600 = vmatpush1.bf16.msra.mxu0 %v5374
      %7601 = vmatprep.mubr.bf16.mxu0 %v3869
      %7602 = vmatmul.mubr.bf16.gmra.mrb[0].mxu0 %v3868
      %v7603 = vpop.f32.mrb[0].mxu0
      %v7604 = vadd.f32 0.0, %v7603
      %v7605 = vpop.f32.mrb[0].mxu0
      %v7606 = vpop.f32.mrb[0].mxu0
      %v7607 = vadd.f32 0.0, %v7606
      %v7608 = vpop.f32.mrb[0].mxu0
      %7609 = vmatprep.mubr.bf16.mxu0 %v3875
      %7610 = vmatmul.mubr.bf16.gmra.mrb[0].mxu0 %v3874
      %v7611 = vpop.f32.mrb[0].mxu0
      %v7612 = vadd.f32 0.0, %v7611
      %v7613 = vpop.f32.mrb[0].mxu0
      %v7614 = vpop.f32.mrb[0].mxu0
      %v7615 = vadd.f32 0.0, %v7614
      %v7616 = vpop.f32.mrb[0].mxu0
      %7617 = vmatprep.mubr.bf16.mxu0 %v3881
      %7618 = vmatmul.mubr.bf16.gmra.mrb[0].mxu0 %v3880
      %v7619 = vpop.f32.mrb[0].mxu0
      %v7620 = vadd.f32 0.0, %v7619
      %v7621 = vpop.f32.mrb[0].mxu0
      %v7622 = vpop.f32.mrb[0].mxu0
      %v7623 = vadd.f32 0.0, %v7622
      %v7624 = vpop.f32.mrb[0].mxu0
      %7625 = vmatprep.mubr.bf16.mxu0 %v3887
      %7626 = vmatmul.mubr.bf16.gmra.mrb[0].mxu0 %v3886
      %v7627 = vpop.f32.mrb[0].mxu0
      %v7628 = vadd.f32 0.0, %v7627
      %v7629 = vpop.f32.mrb[0].mxu0
      %v7630 = vpop.f32.mrb[0].mxu0
      %v7631 = vadd.f32 0.0, %v7630
      %v7632 = vpop.f32.mrb[0].mxu0
      %7633 = vmatprep.mubr.bf16.mxu0 %v3893
      %7634 = vmatmul.mubr.bf16.gmra.mrb[0].mxu0 %v3892
      %v7635 = vpop.f32.mrb[0].mxu0
      %v7636 = vadd.f32 0.0, %v7635
      %v7637 = vpop.f32.mrb[0].mxu0
      %v7638 = vpop.f32.mrb[0].mxu0
      %v7639 = vadd.f32 0.0, %v7638
      %v7640 = vpop.f32.mrb[0].mxu0
      %7641 = vmatprep.mubr.bf16.mxu0 %v3899
      %7642 = vmatmul.mubr.bf16.gmra.mrb[0].mxu0 %v3898
      %v7643 = vpop.f32.mrb[0].mxu0
      %v7644 = vadd.f32 0.0, %v7643
      %v7645 = vpop.f32.mrb[0].mxu0
      %v7646 = vpop.f32.mrb[0].mxu0
      %v7647 = vadd.f32 0.0, %v7646
      %v7648 = vpop.f32.mrb[0].mxu0
      %7649 = vmatprep.mubr.bf16.mxu0 %v3905
      %7650 = vmatmul.mubr.bf16.gmra.mrb[0].mxu0 %v3904
      %v7651 = vpop.f32.mrb[0].mxu0
      %v7652 = vadd.f32 0.0, %v7651
      %v7653 = vpop.f32.mrb[0].mxu0
      %v7654 = vpop.f32.mrb[0].mxu0
      %v7655 = vadd.f32 0.0, %v7654
      %v7656 = vpop.f32.mrb[0].mxu0
      %7657 = vmatprep.mubr.bf16.mxu0 %v3911
      %7658 = vmatmul.mubr.bf16.gmra.mrb[0].mxu0 %v3910
      %v7659 = vpop.f32.mrb[0].mxu0
      %v7660 = vadd.f32 0.0, %v7659
      %v7661 = vpop.f32.mrb[0].mxu0
      %v7662 = vpop.f32.mrb[0].mxu0
      %v7663 = vadd.f32 0.0, %v7662
      %v7664 = vpop.f32.mrb[0].mxu0
      %7665 = vmatprep.mubr.bf16.mxu0 %v3917
      %7666 = vmatmul.mubr.bf16.gmra.mrb[0].mxu0 %v3916
      %v7667 = vpop.f32.mrb[0].mxu0
      %v7668 = vadd.f32 0.0, %v7667
      %v7669 = vpop.f32.mrb[0].mxu0
      %v7670 = vpop.f32.mrb[0].mxu0
      %v7671 = vadd.f32 0.0, %v7670
      %v7672 = vpop.f32.mrb[0].mxu0
      %7673 = vmatprep.mubr.bf16.mxu0 %v3923
      %7674 = vmatmul.mubr.bf16.gmra.mrb[0].mxu0 %v3922
      %v7675 = vpop.f32.mrb[0].mxu0
      %v7676 = vadd.f32 0.0, %v7675
      %v7677 = vpop.f32.mrb[0].mxu0
      %v7678 = vpop.f32.mrb[0].mxu0
      %v7679 = vadd.f32 0.0, %v7678
      %v7680 = vpop.f32.mrb[0].mxu0
      %7681 = vmatprep.mubr.bf16.mxu0 %v3929
      %7682 = vmatmul.mubr.bf16.gmra.mrb[0].mxu0 %v3928
      %v7683 = vpop.f32.mrb[0].mxu0
      %v7684 = vadd.f32 0.0, %v7683
      %v7685 = vpop.f32.mrb[0].mxu0
      %v7686 = vpop.f32.mrb[0].mxu0
      %v7687 = vadd.f32 0.0, %v7686
      %v7688 = vpop.f32.mrb[0].mxu0
      %7689 = vmatprep.mubr.bf16.mxu0 %v3935
      %7690 = vmatmul.mubr.bf16.gmra.mrb[0].mxu0 %v3934
      %v7691 = vpop.f32.mrb[0].mxu0
      %v7692 = vadd.f32 0.0, %v7691
      %v7693 = vpop.f32.mrb[0].mxu0
      %v7694 = vpop.f32.mrb[0].mxu0
      %v7695 = vadd.f32 0.0, %v7694
      %v7696 = vpop.f32.mrb[0].mxu0
      %7697 = vmatprep.mubr.bf16.mxu0 %v3941
      %7698 = vmatmul.mubr.bf16.gmra.mrb[0].mxu0 %v3940
      %v7699 = vpop.f32.mrb[0].mxu0
      %v7700 = vadd.f32 0.0, %v7699
      %v7701 = vpop.f32.mrb[0].mxu0
      %v7702 = vpop.f32.mrb[0].mxu0
      %v7703 = vadd.f32 0.0, %v7702
      %v7704 = vpop.f32.mrb[0].mxu0
      %7705 = vmatprep.mubr.bf16.mxu0 %v3947
      %7706 = vmatmul.mubr.bf16.gmra.mrb[0].mxu0 %v3946
      %v7707 = vpop.f32.mrb[0].mxu0
      %v7708 = vadd.f32 0.0, %v7707
      %v7709 = vpop.f32.mrb[0].mxu0
      %v7710 = vpop.f32.mrb[0].mxu0
      %v7711 = vadd.f32 0.0, %v7710
      %v7712 = vpop.f32.mrb[0].mxu0
      %7713 = vmatprep.mubr.bf16.mxu0 %v3953
      %7714 = vmatmul.mubr.bf16.gmra.mrb[0].mxu0 %v3952
      %v7715 = vpop.f32.mrb[0].mxu0
      %v7716 = vadd.f32 0.0, %v7715
      %v7717 = vpop.f32.mrb[0].mxu0
      %v7718 = vpop.f32.mrb[0].mxu0
      %v7719 = vpop.f32.mrb[0].mxu0
      %7720 = vdwg.mxu0
      %7721 = vmatprep.subr.bf16.mxu0 0
      %7722 = vmatpush1.bf16.msra.mxu0 %v5381
      %7723 = vmatprep.subr.bf16.mxu0 0
      %7724 = vmatpush1.bf16.msra.mxu0 %v5388
      %7725 = vmatprep.subr.bf16.mxu0 0
      %7726 = vmatpush1.bf16.msra.mxu0 %v5395
      %7727 = vmatprep.subr.bf16.mxu0 0
      %7728 = vmatpush1.bf16.msra.mxu0 %v5402
      %7729 = vmatprep.subr.bf16.mxu0 0
      %7730 = vmatpush1.bf16.msra.mxu0 %v5409
      %7731 = vmatprep.subr.bf16.mxu0 0
      %7732 = vmatpush1.bf16.msra.mxu0 %v5416
      %7733 = vmatprep.subr.bf16.mxu0 0
      %7734 = vmatpush1.bf16.msra.mxu0 %v5423
      %7735 = vmatprep.subr.bf16.mxu0 0
      %7736 = vmatpush1.bf16.msra.mxu0 %v5430
      %7737 = vmatprep.subr.bf16.mxu0 0
      %7738 = vmatpush1.bf16.msra.mxu0 %v5437
      %7739 = vmatprep.subr.bf16.mxu0 0
      %7740 = vmatpush1.bf16.msra.mxu0 %v5444
      %7741 = vmatprep.subr.bf16.mxu0 0
      %7742 = vmatpush1.bf16.msra.mxu0 %v5451
      %7743 = vmatprep.subr.bf16.mxu0 0
      %7744 = vmatpush1.bf16.msra.mxu0 %v5458
      %7745 = vmatprep.subr.bf16.mxu0 0
      %7746 = vmatpush1.bf16.msra.mxu0 %v5465
      %7747 = vmatprep.subr.bf16.mxu0 0
      %7748 = vmatpush1.bf16.msra.mxu0 %v5472
      %7749 = vmatprep.subr.bf16.mxu0 0
      %7750 = vmatpush1.bf16.msra.mxu0 %v5479
      %7751 = vmatprep.subr.bf16.mxu0 0
      %7752 = vmatpush1.bf16.msra.mxu0 %v5486
      %7753 = vmatprep.mubr.bf16.mxu0 %v3871
      %7754 = vmatmul.mubr.bf16.gmra.mrb[0].mxu0 %v3870
      %v7755 = vpop.f32.mrb[0].mxu0
      %v7756 = vadd.f32 %v7604, %v7755
      %v7757 = vpop.f32.mrb[0].mxu0
      %v7758 = vpop.f32.mrb[0].mxu0
      %v7759 = vadd.f32 %v7607, %v7758
      %v7760 = vpop.f32.mrb[0].mxu0
      %7761 = vmatprep.mubr.bf16.mxu0 %v3877
      %7762 = vmatmul.mubr.bf16.gmra.mrb[0].mxu0 %v3876
      %v7763 = vpop.f32.mrb[0].mxu0
      %v7764 = vadd.f32 %v7612, %v7763
      %v7765 = vpop.f32.mrb[0].mxu0
      %v7766 = vpop.f32.mrb[0].mxu0
      %v7767 = vadd.f32 %v7615, %v7766
      %v7768 = vpop.f32.mrb[0].mxu0
      %7769 = vmatprep.mubr.bf16.mxu0 %v3883
      %7770 = vmatmul.mubr.bf16.gmra.mrb[0].mxu0 %v3882
      %v7771 = vpop.f32.mrb[0].mxu0
      %v7772 = vadd.f32 %v7620, %v7771
      %v7773 = vpop.f32.mrb[0].mxu0
      %v7774 = vpop.f32.mrb[0].mxu0
      %v7775 = vadd.f32 %v7623, %v7774
      %v7776 = vpop.f32.mrb[0].mxu0
      %7777 = vmatprep.mubr.bf16.mxu0 %v3889
      %7778 = vmatmul.mubr.bf16.gmra.mrb[0].mxu0 %v3888
      %v7779 = vpop.f32.mrb[0].mxu0
      %v7780 = vadd.f32 %v7628, %v7779
      %v7781 = vpop.f32.mrb[0].mxu0
      %v7782 = vpop.f32.mrb[0].mxu0
      %v7783 = vadd.f32 %v7631, %v7782
      %v7784 = vpop.f32.mrb[0].mxu0
      %7785 = vmatprep.mubr.bf16.mxu0 %v3895
      %7786 = vmatmul.mubr.bf16.gmra.mrb[0].mxu0 %v3894
      %v7787 = vpop.f32.mrb[0].mxu0
      %v7788 = vadd.f32 %v7636, %v7787
      %v7789 = vpop.f32.mrb[0].mxu0
      %v7790 = vpop.f32.mrb[0].mxu0
      %v7791 = vadd.f32 %v7639, %v7790
      %v7792 = vpop.f32.mrb[0].mxu0
      %7793 = vmatprep.mubr.bf16.mxu0 %v3901
      %7794 = vmatmul.mubr.bf16.gmra.mrb[0].mxu0 %v3900
      %v7795 = vpop.f32.mrb[0].mxu0
      %v7796 = vadd.f32 %v7644, %v7795
      %v7797 = vpop.f32.mrb[0].mxu0
      %v7798 = vpop.f32.mrb[0].mxu0
      %v7799 = vadd.f32 %v7647, %v7798
      %v7800 = vpop.f32.mrb[0].mxu0
      %7801 = vmatprep.mubr.bf16.mxu0 %v3907
      %7802 = vmatmul.mubr.bf16.gmra.mrb[0].mxu0 %v3906
      %v7803 = vpop.f32.mrb[0].mxu0
      %v7804 = vadd.f32 %v7652, %v7803
      %v7805 = vpop.f32.mrb[0].mxu0
      %v7806 = vpop.f32.mrb[0].mxu0
      %v7807 = vadd.f32 %v7655, %v7806
      %v7808 = vpop.f32.mrb[0].mxu0
      %7809 = vmatprep.mubr.bf16.mxu0 %v3913
      %7810 = vmatmul.mubr.bf16.gmra.mrb[0].mxu0 %v3912
      %v7811 = vpop.f32.mrb[0].mxu0
      %v7812 = vadd.f32 %v7660, %v7811
      %v7813 = vpop.f32.mrb[0].mxu0
      %v7814 = vpop.f32.mrb[0].mxu0
      %v7815 = vadd.f32 %v7663, %v7814
      %v7816 = vpop.f32.mrb[0].mxu0
      %7817 = vmatprep.mubr.bf16.mxu0 %v3919
      %7818 = vmatmul.mubr.bf16.gmra.mrb[0].mxu0 %v3918
      %v7819 = vpop.f32.mrb[0].mxu0
      %v7820 = vadd.f32 %v7668, %v7819
      %v7821 = vpop.f32.mrb[0].mxu0
      %v7822 = vpop.f32.mrb[0].mxu0
      %v7823 = vadd.f32 %v7671, %v7822
      %v7824 = vpop.f32.mrb[0].mxu0
      %7825 = vmatprep.mubr.bf16.mxu0 %v3925
      %7826 = vmatmul.mubr.bf16.gmra.mrb[0].mxu0 %v3924
      %v7827 = vpop.f32.mrb[0].mxu0
      %v7828 = vadd.f32 %v7676, %v7827
      %v7829 = vpop.f32.mrb[0].mxu0
      %v7830 = vpop.f32.mrb[0].mxu0
      %v7831 = vadd.f32 %v7679, %v7830
      %v7832 = vpop.f32.mrb[0].mxu0
      %7833 = vmatprep.mubr.bf16.mxu0 %v3931
      %7834 = vmatmul.mubr.bf16.gmra.mrb[0].mxu0 %v3930
      %v7835 = vpop.f32.mrb[0].mxu0
      %v7836 = vadd.f32 %v7684, %v7835
      %v7837 = vpop.f32.mrb[0].mxu0
      %v7838 = vpop.f32.mrb[0].mxu0
      %v7839 = vadd.f32 %v7687, %v7838
      %v7840 = vpop.f32.mrb[0].mxu0
      %7841 = vmatprep.mubr.bf16.mxu0 %v3937
      %7842 = vmatmul.mubr.bf16.gmra.mrb[0].mxu0 %v3936
      %v7843 = vpop.f32.mrb[0].mxu0
      %v7844 = vadd.f32 %v7692, %v7843
      %v7845 = vpop.f32.mrb[0].mxu0
      %v7846 = vpop.f32.mrb[0].mxu0
      %v7847 = vadd.f32 %v7695, %v7846
      %v7848 = vpop.f32.mrb[0].mxu0
      %7849 = vmatprep.mubr.bf16.mxu0 %v3943
      %7850 = vmatmul.mubr.bf16.gmra.mrb[0].mxu0 %v3942
      %v7851 = vpop.f32.mrb[0].mxu0
      %v7852 = vadd.f32 %v7700, %v7851
      %v7853 = vpop.f32.mrb[0].mxu0
      %v7854 = vpop.f32.mrb[0].mxu0
      %v7855 = vadd.f32 %v7703, %v7854
      %v7856 = vpop.f32.mrb[0].mxu0
      %7857 = vmatprep.mubr.bf16.mxu0 %v3949
      %7858 = vmatmul.mubr.bf16.gmra.mrb[0].mxu0 %v3948
      %v7859 = vpop.f32.mrb[0].mxu0
      %v7860 = vadd.f32 %v7708, %v7859
      %v7861 = vpop.f32.mrb[0].mxu0
      %v7862 = vpop.f32.mrb[0].mxu0
      %v7863 = vadd.f32 %v7711, %v7862
      %v7864 = vpop.f32.mrb[0].mxu0
      %7865 = vmatprep.mubr.bf16.mxu0 %v3955
      %7866 = vmatmul.mubr.bf16.gmra.mrb[0].mxu0 %v3954
      %v7867 = vpop.f32.mrb[0].mxu0
      %v7868 = vadd.f32 %v7716, %v7867
      %v7869 = vpop.f32.mrb[0].mxu0
      %v7870 = vpop.f32.mrb[0].mxu0
      %v7871 = vpop.f32.mrb[0].mxu0
      %7872 = vdwg.mxu0
      %7873 = vmatprep.subr.bf16.mxu0 0
      %7874 = vmatpush1.bf16.msra.mxu0 %v5493
      %7875 = vmatprep.subr.bf16.mxu0 0
      %7876 = vmatpush1.bf16.msra.mxu0 %v5500
      %7877 = vmatprep.subr.bf16.mxu0 0
      %7878 = vmatpush1.bf16.msra.mxu0 %v5507
      %7879 = vmatprep.subr.bf16.mxu0 0
      %7880 = vmatpush1.bf16.msra.mxu0 %v5514
      %7881 = vmatprep.subr.bf16.mxu0 0
      %7882 = vmatpush1.bf16.msra.mxu0 %v5521
      %7883 = vmatprep.subr.bf16.mxu0 0
      %7884 = vmatpush1.bf16.msra.mxu0 %v5528
      %7885 = vmatprep.subr.bf16.mxu0 0
      %7886 = vmatpush1.bf16.msra.mxu0 %v5535
      %7887 = vmatprep.subr.bf16.mxu0 0
      %7888 = vmatpush1.bf16.msra.mxu0 %v5542
      %7889 = vmatprep.subr.bf16.mxu0 0
      %7890 = vmatpush1.bf16.msra.mxu0 %v5549
      %7891 = vmatprep.subr.bf16.mxu0 0
      %7892 = vmatpush1.bf16.msra.mxu0 %v5556
      %7893 = vmatprep.subr.bf16.mxu0 0
      %7894 = vmatpush1.bf16.msra.mxu0 %v5563
      %7895 = vmatprep.subr.bf16.mxu0 0
      %7896 = vmatpush1.bf16.msra.mxu0 %v5938
      %7897 = vmatprep.subr.bf16.mxu0 0
      %7898 = vmatpush1.bf16.msra.mxu0 0
      %7899 = vmatprep.subr.bf16.mxu0 0
      %7900 = vmatpush1.bf16.msra.mxu0 0
      %7901 = vmatprep.subr.bf16.mxu0 0
      %7902 = vmatpush1.bf16.msra.mxu0 0
      %7903 = vmatprep.subr.bf16.mxu0 0
      %7904 = vmatpush1.bf16.msra.mxu0 0
      %7905 = vmatprep.mubr.bf16.mxu0 %v5874
      %7906 = vmatmul.mubr.bf16.gmra.mrb[0].mxu0 %v3872
      %v7907 = vpop.f32.mrb[0].mxu0
      %v7908 = vadd.f32 %v7756, %v7907
      %v7909 = vpop.f32.mrb[0].mxu0
      %v7910 = vpop.f32.mrb[0].mxu0
      %v7911 = vadd.f32 %v7759, %v7910
      %v7912 = vpop.f32.mrb[0].mxu0
      %7913 = vmatprep.mubr.bf16.mxu0 %v5877
      %7914 = vmatmul.mubr.bf16.gmra.mrb[0].mxu0 %v3878
      %v7915 = vpop.f32.mrb[0].mxu0
      %v7916 = vadd.f32 %v7764, %v7915
      %v7917 = vpop.f32.mrb[0].mxu0
      %v7918 = vpop.f32.mrb[0].mxu0
      %v7919 = vadd.f32 %v7767, %v7918
      %v7920 = vpop.f32.mrb[0].mxu0
      %7921 = vmatprep.mubr.bf16.mxu0 %v5880
      %7922 = vmatmul.mubr.bf16.gmra.mrb[0].mxu0 %v3884
      %v7923 = vpop.f32.mrb[0].mxu0
      %v7924 = vadd.f32 %v7772, %v7923
      %v7925 = vpop.f32.mrb[0].mxu0
      %v7926 = vpop.f32.mrb[0].mxu0
      %v7927 = vadd.f32 %v7775, %v7926
      %v7928 = vpop.f32.mrb[0].mxu0
      %7929 = vmatprep.mubr.bf16.mxu0 %v5883
      %7930 = vmatmul.mubr.bf16.gmra.mrb[0].mxu0 %v3890
      %v7931 = vpop.f32.mrb[0].mxu0
      %v7932 = vadd.f32 %v7780, %v7931
      %v7933 = vpop.f32.mrb[0].mxu0
      %v7934 = vpop.f32.mrb[0].mxu0
      %v7935 = vadd.f32 %v7783, %v7934
      %v7936 = vpop.f32.mrb[0].mxu0
      %7937 = vmatprep.mubr.bf16.mxu0 %v5886
      %7938 = vmatmul.mubr.bf16.gmra.mrb[0].mxu0 %v3896
      %v7939 = vpop.f32.mrb[0].mxu0
      %v7940 = vadd.f32 %v7788, %v7939
      %v7941 = vpop.f32.mrb[0].mxu0
      %v7942 = vpop.f32.mrb[0].mxu0
      %v7943 = vadd.f32 %v7791, %v7942
      %v7944 = vpop.f32.mrb[0].mxu0
      %7945 = vmatprep.mubr.bf16.mxu0 %v5889
      %7946 = vmatmul.mubr.bf16.gmra.mrb[0].mxu0 %v3902
      %v7947 = vpop.f32.mrb[0].mxu0
      %v7948 = vadd.f32 %v7796, %v7947
      %v7949 = vpop.f32.mrb[0].mxu0
      %v7950 = vpop.f32.mrb[0].mxu0
      %v7951 = vadd.f32 %v7799, %v7950
      %v7952 = vpop.f32.mrb[0].mxu0
      %7953 = vmatprep.mubr.bf16.mxu0 %v5892
      %7954 = vmatmul.mubr.bf16.gmra.mrb[0].mxu0 %v3908
      %v7955 = vpop.f32.mrb[0].mxu0
      %v7956 = vadd.f32 %v7804, %v7955
      %v7957 = vpop.f32.mrb[0].mxu0
      %v7958 = vpop.f32.mrb[0].mxu0
      %v7959 = vadd.f32 %v7807, %v7958
      %v7960 = vpop.f32.mrb[0].mxu0
      %7961 = vmatprep.mubr.bf16.mxu0 %v5895
      %7962 = vmatmul.mubr.bf16.gmra.mrb[0].mxu0 %v3914
      %v7963 = vpop.f32.mrb[0].mxu0
      %v7964 = vadd.f32 %v7812, %v7963
      %v7965 = vpop.f32.mrb[0].mxu0
      %v7966 = vpop.f32.mrb[0].mxu0
      %v7967 = vadd.f32 %v7815, %v7966
      %v7968 = vpop.f32.mrb[0].mxu0
      %7969 = vmatprep.mubr.bf16.mxu0 %v5898
      %7970 = vmatmul.mubr.bf16.gmra.mrb[0].mxu0 %v3920
      %v7971 = vpop.f32.mrb[0].mxu0
      %v7972 = vadd.f32 %v7820, %v7971
      %v7973 = vpop.f32.mrb[0].mxu0
      %v7974 = vpop.f32.mrb[0].mxu0
      %v7975 = vadd.f32 %v7823, %v7974
      %v7976 = vpop.f32.mrb[0].mxu0
      %7977 = vmatprep.mubr.bf16.mxu0 %v5901
      %7978 = vmatmul.mubr.bf16.gmra.mrb[0].mxu0 %v3926
      %v7979 = vpop.f32.mrb[0].mxu0
      %v7980 = vadd.f32 %v7828, %v7979
      %v7981 = vpop.f32.mrb[0].mxu0
      %v7982 = vpop.f32.mrb[0].mxu0
      %v7983 = vadd.f32 %v7831, %v7982
      %v7984 = vpop.f32.mrb[0].mxu0
      %7985 = vmatprep.mubr.bf16.mxu0 %v5904
      %7986 = vmatmul.mubr.bf16.gmra.mrb[0].mxu0 %v3932
      %v7987 = vpop.f32.mrb[0].mxu0
      %v7988 = vadd.f32 %v7836, %v7987
      %v7989 = vpop.f32.mrb[0].mxu0
      %v7990 = vpop.f32.mrb[0].mxu0
      %v7991 = vadd.f32 %v7839, %v7990
      %v7992 = vpop.f32.mrb[0].mxu0
      %7993 = vmatprep.mubr.bf16.mxu0 %v5907
      %7994 = vmatmul.mubr.bf16.gmra.mrb[0].mxu0 %v3938
      %v7995 = vpop.f32.mrb[0].mxu0
      %v7996 = vadd.f32 %v7844, %v7995
      %v7997 = vpop.f32.mrb[0].mxu0
      %v7998 = vpop.f32.mrb[0].mxu0
      %v7999 = vadd.f32 %v7847, %v7998
      %v8000 = vpop.f32.mrb[0].mxu0
      %8001 = vmatprep.mubr.bf16.mxu0 %v5910
      %8002 = vmatmul.mubr.bf16.gmra.mrb[0].mxu0 %v3944
      %v8003 = vpop.f32.mrb[0].mxu0
      %v8004 = vadd.f32 %v7852, %v8003
      %v8005 = vpop.f32.mrb[0].mxu0
      %v8006 = vpop.f32.mrb[0].mxu0
      %v8007 = vadd.f32 %v7855, %v8006
      %v8008 = vpop.f32.mrb[0].mxu0
      %8009 = vmatprep.mubr.bf16.mxu0 %v5913
      %8010 = vmatmul.mubr.bf16.gmra.mrb[0].mxu0 %v3950
      %v8011 = vpop.f32.mrb[0].mxu0
      %v8012 = vadd.f32 %v7860, %v8011
      %v8013 = vpop.f32.mrb[0].mxu0
      %v8014 = vpop.f32.mrb[0].mxu0
      %v8015 = vadd.f32 %v7863, %v8014
      %v8016 = vpop.f32.mrb[0].mxu0
      %8017 = vmatprep.mubr.bf16.mxu0 %v5916
      %8018 = vmatmul.mubr.bf16.gmra.mrb[0].mxu0 %v3956
      %v8019 = vpop.f32.mrb[0].mxu0
      %v8020 = vadd.f32 %v7868, %v8019
      %v8021 = vpop.f32.mrb[0].mxu0
      %v8022 = vpop.f32.mrb[0].mxu0
      %v8023 = vpop.f32.mrb[0].mxu0
      %8024 = vdwg.mxu0
      %v8025 = vadd.f32 %v6337, %v6339
      %v8026 = vadd.f32 %v8025, %v6880
      %v8027 = vadd.f32 %v8026, %v6882
      %v8028 = vadd.f32 %v8027, %v7423
      %v8029 = vadd.f32 %v8028, %v7425
      %vm8030 = vcmask 130048
      %v8031 = vsel %vm8030, %v7908, 0.0
      %v8032 = vadd.f32 %v8029, %v8031
      %8033 = vadd.xlane.f32.xlu0 %v8032
      %v8034 = vpop.xlane.xlu0 %8033
      %v8035 = vadd.f32 %v6341, %v6343
      %v8036 = vadd.f32 %v8035, %v6884
      %v8037 = vadd.f32 %v8036, %v6886
      %v8038 = vadd.f32 %v8037, %v7427
      %v8039 = vadd.f32 %v8038, %v7429
      %v8040 = vsel %vm8030, %v7911, 0.0
      %v8041 = vadd.f32 %v8039, %v8040
      %8042 = vadd.xlane.f32.xlu0 %v8041
      %v8043 = vpop.xlane.xlu0 %8042
      %v8044 = vadd.f32 %v6347, %v6349
      %v8045 = vadd.f32 %v8044, %v6890
      %v8046 = vadd.f32 %v8045, %v6892
      %v8047 = vadd.f32 %v8046, %v7433
      %v8048 = vadd.f32 %v8047, %v7435
      %v8049 = vsel %vm8030, %v7916, 0.0
      %v8050 = vadd.f32 %v8048, %v8049
      %8051 = vadd.xlane.f32.xlu0 %v8050
      %v8052 = vpop.xlane.xlu0 %8051
      %v8053 = vadd.f32 %v6351, %v6353
      %v8054 = vadd.f32 %v8053, %v6894
      %v8055 = vadd.f32 %v8054, %v6896
      %v8056 = vadd.f32 %v8055, %v7437
      %v8057 = vadd.f32 %v8056, %v7439
      %v8058 = vsel %vm8030, %v7919, 0.0
      %v8059 = vadd.f32 %v8057, %v8058
      %8060 = vadd.xlane.f32.xlu0 %v8059
      %v8061 = vpop.xlane.xlu0 %8060
      %v8062 = vadd.f32 %v6357, %v6359
      %v8063 = vadd.f32 %v8062, %v6900
      %v8064 = vadd.f32 %v8063, %v6902
      %v8065 = vadd.f32 %v8064, %v7443
      %v8066 = vadd.f32 %v8065, %v7445
      %v8067 = vsel %vm8030, %v7924, 0.0
      %v8068 = vadd.f32 %v8066, %v8067
      %8069 = vadd.xlane.f32.xlu0 %v8068
      %v8070 = vpop.xlane.xlu0 %8069
      %v8071 = vadd.f32 %v6361, %v6363
      %v8072 = vadd.f32 %v8071, %v6904
      %v8073 = vadd.f32 %v8072, %v6906
      %v8074 = vadd.f32 %v8073, %v7447
      %v8075 = vadd.f32 %v8074, %v7449
      %v8076 = vsel %vm8030, %v7927, 0.0
      %v8077 = vadd.f32 %v8075, %v8076
      %8078 = vadd.xlane.f32.xlu0 %v8077
      %v8079 = vpop.xlane.xlu0 %8078
      %v8080 = vadd.f32 %v6367, %v6369
      %v8081 = vadd.f32 %v8080, %v6910
      %v8082 = vadd.f32 %v8081, %v6912
      %v8083 = vadd.f32 %v8082, %v7453
      %v8084 = vadd.f32 %v8083, %v7455
      %v8085 = vsel %vm8030, %v7932, 0.0
      %v8086 = vadd.f32 %v8084, %v8085
      %8087 = vadd.xlane.f32.xlu0 %v8086
      %v8088 = vpop.xlane.xlu0 %8087
      %v8089 = vadd.f32 %v6371, %v6373
      %v8090 = vadd.f32 %v8089, %v6914
      %v8091 = vadd.f32 %v8090, %v6916
      %v8092 = vadd.f32 %v8091, %v7457
      %v8093 = vadd.f32 %v8092, %v7459
      %v8094 = vsel %vm8030, %v7935, 0.0
      %v8095 = vadd.f32 %v8093, %v8094
      %8096 = vadd.xlane.f32.xlu0 %v8095
      %v8097 = vpop.xlane.xlu0 %8096
      %v8098 = vadd.f32 %v6377, %v6379
      %v8099 = vadd.f32 %v8098, %v6920
      %v8100 = vadd.f32 %v8099, %v6922
      %v8101 = vadd.f32 %v8100, %v7463
      %v8102 = vadd.f32 %v8101, %v7465
      %v8103 = vsel %vm8030, %v7940, 0.0
      %v8104 = vadd.f32 %v8102, %v8103
      %8105 = vadd.xlane.f32.xlu0 %v8104
      %v8106 = vpop.xlane.xlu0 %8105
      %v8107 = vadd.f32 %v6381, %v6383
      %v8108 = vadd.f32 %v8107, %v6924
      %v8109 = vadd.f32 %v8108, %v6926
      %v8110 = vadd.f32 %v8109, %v7467
      %v8111 = vadd.f32 %v8110, %v7469
      %v8112 = vsel %vm8030, %v7943, 0.0
      %v8113 = vadd.f32 %v8111, %v8112
      %8114 = vadd.xlane.f32.xlu0 %v8113
      %v8115 = vpop.xlane.xlu0 %8114
      %v8116 = vadd.f32 %v6387, %v6389
      %v8117 = vadd.f32 %v8116, %v6930
      %v8118 = vadd.f32 %v8117, %v6932
      %v8119 = vadd.f32 %v8118, %v7473
      %v8120 = vadd.f32 %v8119, %v7475
      %v8121 = vsel %vm8030, %v7948, 0.0
      %v8122 = vadd.f32 %v8120, %v8121
      %8123 = vadd.xlane.f32.xlu0 %v8122
      %v8124 = vpop.xlane.xlu0 %8123
      %v8125 = vadd.f32 %v6391, %v6393
      %v8126 = vadd.f32 %v8125, %v6934
      %v8127 = vadd.f32 %v8126, %v6936
      %v8128 = vadd.f32 %v8127, %v7477
      %v8129 = vadd.f32 %v8128, %v7479
      %v8130 = vsel %vm8030, %v7951, 0.0
      %v8131 = vadd.f32 %v8129, %v8130
      %8132 = vadd.xlane.f32.xlu0 %v8131
      %v8133 = vpop.xlane.xlu0 %8132
      %v8134 = vadd.f32 %v6397, %v6399
      %v8135 = vadd.f32 %v8134, %v6940
      %v8136 = vadd.f32 %v8135, %v6942
      %v8137 = vadd.f32 %v8136, %v7483
      %v8138 = vadd.f32 %v8137, %v7485
      %v8139 = vsel %vm8030, %v7956, 0.0
      %v8140 = vadd.f32 %v8138, %v8139
      %8141 = vadd.xlane.f32.xlu0 %v8140
      %v8142 = vpop.xlane.xlu0 %8141
      %v8143 = vadd.f32 %v6401, %v6403
      %v8144 = vadd.f32 %v8143, %v6944
      %v8145 = vadd.f32 %v8144, %v6946
      %v8146 = vadd.f32 %v8145, %v7487
      %v8147 = vadd.f32 %v8146, %v7489
      %v8148 = vsel %vm8030, %v7959, 0.0
      %v8149 = vadd.f32 %v8147, %v8148
      %8150 = vadd.xlane.f32.xlu0 %v8149
      %v8151 = vpop.xlane.xlu0 %8150
      %v8152 = vadd.f32 %v6407, %v6409
      %v8153 = vadd.f32 %v8152, %v6950
      %v8154 = vadd.f32 %v8153, %v6952
      %v8155 = vadd.f32 %v8154, %v7493
      %v8156 = vadd.f32 %v8155, %v7495
      %v8157 = vsel %vm8030, %v7964, 0.0
      %v8158 = vadd.f32 %v8156, %v8157
      %8159 = vadd.xlane.f32.xlu0 %v8158
      %v8160 = vpop.xlane.xlu0 %8159
      %v8161 = vadd.f32 %v6411, %v6413
      %v8162 = vadd.f32 %v8161, %v6954
      %v8163 = vadd.f32 %v8162, %v6956
      %v8164 = vadd.f32 %v8163, %v7497
      %v8165 = vadd.f32 %v8164, %v7499
      %v8166 = vsel %vm8030, %v7967, 0.0
      %v8167 = vadd.f32 %v8165, %v8166
      %8168 = vadd.xlane.f32.xlu0 %v8167
      %v8169 = vpop.xlane.xlu0 %8168
      %v8170 = vadd.f32 %v6417, %v6419
      %v8171 = vadd.f32 %v8170, %v6960
      %v8172 = vadd.f32 %v8171, %v6962
      %v8173 = vadd.f32 %v8172, %v7503
      %v8174 = vadd.f32 %v8173, %v7505
      %v8175 = vsel %vm8030, %v7972, 0.0
      %v8176 = vadd.f32 %v8174, %v8175
      %8177 = vadd.xlane.f32.xlu0 %v8176
      %v8178 = vpop.xlane.xlu0 %8177
      %v8179 = vadd.f32 %v6421, %v6423
      %v8180 = vadd.f32 %v8179, %v6964
      %v8181 = vadd.f32 %v8180, %v6966
      %v8182 = vadd.f32 %v8181, %v7507
      %v8183 = vadd.f32 %v8182, %v7509
      %v8184 = vsel %vm8030, %v7975, 0.0
      %v8185 = vadd.f32 %v8183, %v8184
      %8186 = vadd.xlane.f32.xlu0 %v8185
      %v8187 = vpop.xlane.xlu0 %8186
      %v8188 = vadd.f32 %v6427, %v6429
      %v8189 = vadd.f32 %v8188, %v6970
      %v8190 = vadd.f32 %v8189, %v6972
      %v8191 = vadd.f32 %v8190, %v7513
      %v8192 = vadd.f32 %v8191, %v7515
      %v8193 = vsel %vm8030, %v7980, 0.0
      %v8194 = vadd.f32 %v8192, %v8193
      %8195 = vadd.xlane.f32.xlu0 %v8194
      %v8196 = vpop.xlane.xlu0 %8195
      %v8197 = vadd.f32 %v6431, %v6433
      %v8198 = vadd.f32 %v8197, %v6974
      %v8199 = vadd.f32 %v8198, %v6976
      %v8200 = vadd.f32 %v8199, %v7517
      %v8201 = vadd.f32 %v8200, %v7519
      %v8202 = vsel %vm8030, %v7983, 0.0
      %v8203 = vadd.f32 %v8201, %v8202
      %8204 = vadd.xlane.f32.xlu0 %v8203
      %v8205 = vpop.xlane.xlu0 %8204
      %v8206 = vadd.f32 %v6437, %v6439
      %v8207 = vadd.f32 %v8206, %v6980
      %v8208 = vadd.f32 %v8207, %v6982
      %v8209 = vadd.f32 %v8208, %v7523
      %v8210 = vadd.f32 %v8209, %v7525
      %v8211 = vsel %vm8030, %v7988, 0.0
      %v8212 = vadd.f32 %v8210, %v8211
      %8213 = vadd.xlane.f32.xlu0 %v8212
      %v8214 = vpop.xlane.xlu0 %8213
      %v8215 = vadd.f32 %v6441, %v6443
      %v8216 = vadd.f32 %v8215, %v6984
      %v8217 = vadd.f32 %v8216, %v6986
      %v8218 = vadd.f32 %v8217, %v7527
      %v8219 = vadd.f32 %v8218, %v7529
      %v8220 = vsel %vm8030, %v7991, 0.0
      %v8221 = vadd.f32 %v8219, %v8220
      %8222 = vadd.xlane.f32.xlu0 %v8221
      %v8223 = vpop.xlane.xlu0 %8222
      %v8224 = vadd.f32 %v6447, %v6449
      %v8225 = vadd.f32 %v8224, %v6990
      %v8226 = vadd.f32 %v8225, %v6992
      %v8227 = vadd.f32 %v8226, %v7533
      %v8228 = vadd.f32 %v8227, %v7535
      %v8229 = vsel %vm8030, %v7996, 0.0
      %v8230 = vadd.f32 %v8228, %v8229
      %8231 = vadd.xlane.f32.xlu0 %v8230
      %v8232 = vpop.xlane.xlu0 %8231
      %v8233 = vadd.f32 %v6451, %v6453
      %v8234 = vadd.f32 %v8233, %v6994
      %v8235 = vadd.f32 %v8234, %v6996
      %v8236 = vadd.f32 %v8235, %v7537
      %v8237 = vadd.f32 %v8236, %v7539
      %v8238 = vsel %vm8030, %v7999, 0.0
      %v8239 = vadd.f32 %v8237, %v8238
      %8240 = vadd.xlane.f32.xlu0 %v8239
      %v8241 = vpop.xlane.xlu0 %8240
      %v8242 = vadd.f32 %v6457, %v6459
      %v8243 = vadd.f32 %v8242, %v7000
      %v8244 = vadd.f32 %v8243, %v7002
      %v8245 = vadd.f32 %v8244, %v7543
      %v8246 = vadd.f32 %v8245, %v7545
      %v8247 = vsel %vm8030, %v8004, 0.0
      %v8248 = vadd.f32 %v8246, %v8247
      %8249 = vadd.xlane.f32.xlu0 %v8248
      %v8250 = vpop.xlane.xlu0 %8249
      %v8251 = vadd.f32 %v6461, %v6463
      %v8252 = vadd.f32 %v8251, %v7004
      %v8253 = vadd.f32 %v8252, %v7006
      %v8254 = vadd.f32 %v8253, %v7547
      %v8255 = vadd.f32 %v8254, %v7549
      %v8256 = vsel %vm8030, %v8007, 0.0
      %v8257 = vadd.f32 %v8255, %v8256
      %8258 = vadd.xlane.f32.xlu0 %v8257
      %v8259 = vpop.xlane.xlu0 %8258
      %v8260 = vadd.f32 %v6467, %v6469
      %v8261 = vadd.f32 %v8260, %v7010
      %v8262 = vadd.f32 %v8261, %v7012
      %v8263 = vadd.f32 %v8262, %v7553
      %v8264 = vadd.f32 %v8263, %v7555
      %v8265 = vsel %vm8030, %v8012, 0.0
      %v8266 = vadd.f32 %v8264, %v8265
      %8267 = vadd.xlane.f32.xlu0 %v8266
      %v8268 = vpop.xlane.xlu0 %8267
      %v8269 = vadd.f32 %v6471, %v6473
      %v8270 = vadd.f32 %v8269, %v7014
      %v8271 = vadd.f32 %v8270, %v7016
      %v8272 = vadd.f32 %v8271, %v7557
      %v8273 = vadd.f32 %v8272, %v7559
      %v8274 = vsel %vm8030, %v8015, 0.0
      %v8275 = vadd.f32 %v8273, %v8274
      %8276 = vadd.xlane.f32.xlu0 %v8275
      %v8277 = vpop.xlane.xlu0 %8276
      %v8278 = vadd.f32 %v6477, %v6479
      %v8279 = vadd.f32 %v8278, %v7020
      %v8280 = vadd.f32 %v8279, %v7022
      %v8281 = vadd.f32 %v8280, %v7563
      %v8282 = vadd.f32 %v8281, %v7565
      %v8283 = vsel %vm8030, %v8020, 0.0
      %v8284 = vadd.f32 %v8282, %v8283
      %8285 = vadd.xlane.f32.xlu0 %v8284
      %v8286 = vpop.xlane.xlu0 %8285
      %v8287 = vmul.f32 %v6337, %v6337
      %v8288 = vmul.f32 %v6339, %v6339
      %v8289 = vmul.f32 %v6880, %v6880
      %v8290 = vmul.f32 %v6882, %v6882
      %v8291 = vmul.f32 %v7423, %v7423
      %v8292 = vmul.f32 %v7425, %v7425
      %v8293 = vmul.f32 %v7908, %v7908
      %v8294 = vmul.f32 %v6341, %v6341
      %v8295 = vmul.f32 %v6343, %v6343
      %v8296 = vmul.f32 %v6884, %v6884
      %v8297 = vmul.f32 %v6886, %v6886
      %v8298 = vmul.f32 %v7427, %v7427
      %v8299 = vmul.f32 %v7429, %v7429
      %v8300 = vmul.f32 %v7911, %v7911
      %v8301 = vmul.f32 %v6347, %v6347
      %v8302 = vmul.f32 %v6349, %v6349
      %v8303 = vmul.f32 %v6890, %v6890
      %v8304 = vmul.f32 %v6892, %v6892
      %v8305 = vmul.f32 %v7433, %v7433
      %v8306 = vmul.f32 %v7435, %v7435
      %v8307 = vmul.f32 %v7916, %v7916
      %v8308 = vmul.f32 %v6351, %v6351
      %v8309 = vmul.f32 %v6353, %v6353
      %v8310 = vmul.f32 %v6894, %v6894
      %v8311 = vmul.f32 %v6896, %v6896
      %v8312 = vmul.f32 %v7437, %v7437
      %v8313 = vmul.f32 %v7439, %v7439
      %v8314 = vmul.f32 %v7919, %v7919
      %v8315 = vmul.f32 %v6357, %v6357
      %v8316 = vmul.f32 %v6359, %v6359
      %v8317 = vmul.f32 %v6900, %v6900
      %v8318 = vmul.f32 %v6902, %v6902
      %v8319 = vmul.f32 %v7443, %v7443
      %v8320 = vmul.f32 %v7445, %v7445
      %v8321 = vmul.f32 %v7924, %v7924
      %v8322 = vmul.f32 %v6361, %v6361
      %v8323 = vmul.f32 %v6363, %v6363
      %v8324 = vmul.f32 %v6904, %v6904
      %v8325 = vmul.f32 %v6906, %v6906
      %v8326 = vmul.f32 %v7447, %v7447
      %v8327 = vmul.f32 %v7449, %v7449
      %v8328 = vmul.f32 %v7927, %v7927
      %v8329 = vmul.f32 %v6367, %v6367
      %v8330 = vmul.f32 %v6369, %v6369
      %v8331 = vmul.f32 %v6910, %v6910
      %v8332 = vmul.f32 %v6912, %v6912
      %v8333 = vmul.f32 %v7453, %v7453
      %v8334 = vmul.f32 %v7455, %v7455
      %v8335 = vmul.f32 %v7932, %v7932
      %v8336 = vmul.f32 %v6371, %v6371
      %v8337 = vmul.f32 %v6373, %v6373
      %v8338 = vmul.f32 %v6914, %v6914
      %v8339 = vmul.f32 %v6916, %v6916
      %v8340 = vmul.f32 %v7457, %v7457
      %v8341 = vmul.f32 %v7459, %v7459
      %v8342 = vmul.f32 %v7935, %v7935
      %v8343 = vmul.f32 %v6377, %v6377
      %v8344 = vmul.f32 %v6379, %v6379
      %v8345 = vmul.f32 %v6920, %v6920
      %v8346 = vmul.f32 %v6922, %v6922
      %v8347 = vmul.f32 %v7463, %v7463
      %v8348 = vmul.f32 %v7465, %v7465
      %v8349 = vmul.f32 %v7940, %v7940
      %v8350 = vmul.f32 %v6381, %v6381
      %v8351 = vmul.f32 %v6383, %v6383
      %v8352 = vmul.f32 %v6924, %v6924
      %v8353 = vmul.f32 %v6926, %v6926
      %v8354 = vmul.f32 %v7467, %v7467
      %v8355 = vmul.f32 %v7469, %v7469
      %v8356 = vmul.f32 %v7943, %v7943
      %v8357 = vmul.f32 %v6387, %v6387
      %v8358 = vmul.f32 %v6389, %v6389
      %v8359 = vmul.f32 %v6930, %v6930
      %v8360 = vmul.f32 %v6932, %v6932
      %v8361 = vmul.f32 %v7473, %v7473
      %v8362 = vmul.f32 %v7475, %v7475
      %v8363 = vmul.f32 %v7948, %v7948
      %v8364 = vmul.f32 %v6391, %v6391
      %v8365 = vmul.f32 %v6393, %v6393
      %v8366 = vmul.f32 %v6934, %v6934
      %v8367 = vmul.f32 %v6936, %v6936
      %v8368 = vmul.f32 %v7477, %v7477
      %v8369 = vmul.f32 %v7479, %v7479
      %v8370 = vmul.f32 %v7951, %v7951
      %v8371 = vmul.f32 %v6397, %v6397
      %v8372 = vmul.f32 %v6399, %v6399
      %v8373 = vmul.f32 %v6940, %v6940
      %v8374 = vmul.f32 %v6942, %v6942
      %v8375 = vmul.f32 %v7483, %v7483
      %v8376 = vmul.f32 %v7485, %v7485
      %v8377 = vmul.f32 %v7956, %v7956
      %v8378 = vmul.f32 %v6401, %v6401
      %v8379 = vmul.f32 %v6403, %v6403
      %v8380 = vmul.f32 %v6944, %v6944
      %v8381 = vmul.f32 %v6946, %v6946
      %v8382 = vmul.f32 %v7487, %v7487
      %v8383 = vmul.f32 %v7489, %v7489
      %v8384 = vmul.f32 %v7959, %v7959
      %v8385 = vmul.f32 %v6407, %v6407
      %v8386 = vmul.f32 %v6409, %v6409
      %v8387 = vmul.f32 %v6950, %v6950
      %v8388 = vmul.f32 %v6952, %v6952
      %v8389 = vmul.f32 %v7493, %v7493
      %v8390 = vmul.f32 %v7495, %v7495
      %v8391 = vmul.f32 %v7964, %v7964
      %v8392 = vmul.f32 %v6411, %v6411
      %v8393 = vmul.f32 %v6413, %v6413
      %v8394 = vmul.f32 %v6954, %v6954
      %v8395 = vmul.f32 %v6956, %v6956
      %v8396 = vmul.f32 %v7497, %v7497
      %v8397 = vmul.f32 %v7499, %v7499
      %v8398 = vmul.f32 %v7967, %v7967
      %v8399 = vmul.f32 %v6417, %v6417
      %v8400 = vmul.f32 %v6419, %v6419
      %v8401 = vmul.f32 %v6960, %v6960
      %v8402 = vmul.f32 %v6962, %v6962
      %v8403 = vmul.f32 %v7503, %v7503
      %v8404 = vmul.f32 %v7505, %v7505
      %v8405 = vmul.f32 %v7972, %v7972
      %v8406 = vmul.f32 %v6421, %v6421
      %v8407 = vmul.f32 %v6423, %v6423
      %v8408 = vmul.f32 %v6964, %v6964
      %v8409 = vmul.f32 %v6966, %v6966
      %v8410 = vmul.f32 %v7507, %v7507
      %v8411 = vmul.f32 %v7509, %v7509
      %v8412 = vmul.f32 %v7975, %v7975
      %v8413 = vmul.f32 %v6427, %v6427
      %v8414 = vmul.f32 %v6429, %v6429
      %v8415 = vmul.f32 %v6970, %v6970
      %v8416 = vmul.f32 %v6972, %v6972
      %v8417 = vmul.f32 %v7513, %v7513
      %v8418 = vmul.f32 %v7515, %v7515
      %v8419 = vmul.f32 %v7980, %v7980
      %v8420 = vmul.f32 %v6431, %v6431
      %v8421 = vmul.f32 %v6433, %v6433
      %v8422 = vmul.f32 %v6974, %v6974
      %v8423 = vmul.f32 %v6976, %v6976
      %v8424 = vmul.f32 %v7517, %v7517
      %v8425 = vmul.f32 %v7519, %v7519
      %v8426 = vmul.f32 %v7983, %v7983
      %v8427 = vmul.f32 %v6437, %v6437
      %v8428 = vmul.f32 %v6439, %v6439
      %v8429 = vmul.f32 %v6980, %v6980
      %v8430 = vmul.f32 %v6982, %v6982
      %v8431 = vmul.f32 %v7523, %v7523
      %v8432 = vmul.f32 %v7525, %v7525
      %v8433 = vmul.f32 %v7988, %v7988
      %v8434 = vmul.f32 %v6441, %v6441
      %v8435 = vmul.f32 %v6443, %v6443
      %v8436 = vmul.f32 %v6984, %v6984
      %v8437 = vmul.f32 %v6986, %v6986
      %v8438 = vmul.f32 %v7527, %v7527
      %v8439 = vmul.f32 %v7529, %v7529
      %v8440 = vmul.f32 %v7991, %v7991
      %v8441 = vmul.f32 %v6447, %v6447
      %v8442 = vmul.f32 %v6449, %v6449
      %v8443 = vmul.f32 %v6990, %v6990
      %v8444 = vmul.f32 %v6992, %v6992
      %v8445 = vmul.f32 %v7533, %v7533
      %v8446 = vmul.f32 %v7535, %v7535
      %v8447 = vmul.f32 %v7996, %v7996
      %v8448 = vmul.f32 %v6451, %v6451
      %v8449 = vmul.f32 %v6453, %v6453
      %v8450 = vmul.f32 %v6994, %v6994
      %v8451 = vmul.f32 %v6996, %v6996
      %v8452 = vmul.f32 %v7537, %v7537
      %v8453 = vmul.f32 %v7539, %v7539
      %v8454 = vmul.f32 %v7999, %v7999
      %v8455 = vmul.f32 %v6457, %v6457
      %v8456 = vmul.f32 %v6459, %v6459
      %v8457 = vmul.f32 %v7000, %v7000
      %v8458 = vmul.f32 %v7002, %v7002
      %v8459 = vmul.f32 %v7543, %v7543
      %v8460 = vmul.f32 %v7545, %v7545
      %v8461 = vmul.f32 %v8004, %v8004
      %v8462 = vmul.f32 %v6461, %v6461
      %v8463 = vmul.f32 %v6463, %v6463
      %v8464 = vmul.f32 %v7004, %v7004
      %v8465 = vmul.f32 %v7006, %v7006
      %v8466 = vmul.f32 %v7547, %v7547
      %v8467 = vmul.f32 %v7549, %v7549
      %v8468 = vmul.f32 %v8007, %v8007
      %v8469 = vmul.f32 %v6467, %v6467
      %v8470 = vmul.f32 %v6469, %v6469
      %v8471 = vmul.f32 %v7010, %v7010
      %v8472 = vmul.f32 %v7012, %v7012
      %v8473 = vmul.f32 %v7553, %v7553
      %v8474 = vmul.f32 %v7555, %v7555
      %v8475 = vmul.f32 %v8012, %v8012
      %v8476 = vmul.f32 %v6471, %v6471
      %v8477 = vmul.f32 %v6473, %v6473
      %v8478 = vmul.f32 %v7014, %v7014
      %v8479 = vmul.f32 %v7016, %v7016
      %v8480 = vmul.f32 %v7557, %v7557
      %v8481 = vmul.f32 %v7559, %v7559
      %v8482 = vmul.f32 %v8015, %v8015
      %v8483 = vmul.f32 %v6477, %v6477
      %v8484 = vmul.f32 %v6479, %v6479
      %v8485 = vmul.f32 %v7020, %v7020
      %v8486 = vmul.f32 %v7022, %v7022
      %v8487 = vmul.f32 %v7563, %v7563
      %v8488 = vmul.f32 %v7565, %v7565
      %v8489 = vmul.f32 %v8020, %v8020
      %v8490 = vadd.f32 %v8287, %v8288
      %v8491 = vadd.f32 %v8490, %v8289
      %v8492 = vadd.f32 %v8491, %v8290
      %v8493 = vadd.f32 %v8492, %v8291
      %v8494 = vadd.f32 %v8493, %v8292
      %v8495 = vsel %vm8030, %v8293, 0.0
      %v8496 = vadd.f32 %v8494, %v8495
      %8497 = vadd.xlane.f32.xlu0 %v8496
      %v8498 = vpop.xlane.xlu0 %8497
      %v8499 = vadd.f32 %v8294, %v8295
      %v8500 = vadd.f32 %v8499, %v8296
      %v8501 = vadd.f32 %v8500, %v8297
      %v8502 = vadd.f32 %v8501, %v8298
      %v8503 = vadd.f32 %v8502, %v8299
      %v8504 = vsel %vm8030, %v8300, 0.0
      %v8505 = vadd.f32 %v8503, %v8504
      %8506 = vadd.xlane.f32.xlu0 %v8505
      %v8507 = vpop.xlane.xlu0 %8506
      %v8508 = vadd.f32 %v8301, %v8302
      %v8509 = vadd.f32 %v8508, %v8303
      %v8510 = vadd.f32 %v8509, %v8304
      %v8511 = vadd.f32 %v8510, %v8305
      %v8512 = vadd.f32 %v8511, %v8306
      %v8513 = vsel %vm8030, %v8307, 0.0
      %v8514 = vadd.f32 %v8512, %v8513
      %8515 = vadd.xlane.f32.xlu0 %v8514
      %v8516 = vpop.xlane.xlu0 %8515
      %v8517 = vadd.f32 %v8308, %v8309
      %v8518 = vadd.f32 %v8517, %v8310
      %v8519 = vadd.f32 %v8518, %v8311
      %v8520 = vadd.f32 %v8519, %v8312
      %v8521 = vadd.f32 %v8520, %v8313
      %v8522 = vsel %vm8030, %v8314, 0.0
      %v8523 = vadd.f32 %v8521, %v8522
      %8524 = vadd.xlane.f32.xlu0 %v8523
      %v8525 = vpop.xlane.xlu0 %8524
      %v8526 = vadd.f32 %v8315, %v8316
      %v8527 = vadd.f32 %v8526, %v8317
      %v8528 = vadd.f32 %v8527, %v8318
      %v8529 = vadd.f32 %v8528, %v8319
      %v8530 = vadd.f32 %v8529, %v8320
      %v8531 = vsel %vm8030, %v8321, 0.0
      %v8532 = vadd.f32 %v8530, %v8531
      %8533 = vadd.xlane.f32.xlu0 %v8532
      %v8534 = vpop.xlane.xlu0 %8533
      %v8535 = vadd.f32 %v8322, %v8323
      %v8536 = vadd.f32 %v8535, %v8324
      %v8537 = vadd.f32 %v8536, %v8325
      %v8538 = vadd.f32 %v8537, %v8326
      %v8539 = vadd.f32 %v8538, %v8327
      %v8540 = vsel %vm8030, %v8328, 0.0
      %v8541 = vadd.f32 %v8539, %v8540
      %8542 = vadd.xlane.f32.xlu0 %v8541
      %v8543 = vpop.xlane.xlu0 %8542
      %v8544 = vadd.f32 %v8329, %v8330
      %v8545 = vadd.f32 %v8544, %v8331
      %v8546 = vadd.f32 %v8545, %v8332
      %v8547 = vadd.f32 %v8546, %v8333
      %v8548 = vadd.f32 %v8547, %v8334
      %v8549 = vsel %vm8030, %v8335, 0.0
      %v8550 = vadd.f32 %v8548, %v8549
      %8551 = vadd.xlane.f32.xlu0 %v8550
      %v8552 = vpop.xlane.xlu0 %8551
      %v8553 = vadd.f32 %v8336, %v8337
      %v8554 = vadd.f32 %v8553, %v8338
      %v8555 = vadd.f32 %v8554, %v8339
      %v8556 = vadd.f32 %v8555, %v8340
      %v8557 = vadd.f32 %v8556, %v8341
      %v8558 = vsel %vm8030, %v8342, 0.0
      %v8559 = vadd.f32 %v8557, %v8558
      %8560 = vadd.xlane.f32.xlu0 %v8559
      %v8561 = vpop.xlane.xlu0 %8560
      %v8562 = vadd.f32 %v8343, %v8344
      %v8563 = vadd.f32 %v8562, %v8345
      %v8564 = vadd.f32 %v8563, %v8346
      %v8565 = vadd.f32 %v8564, %v8347
      %v8566 = vadd.f32 %v8565, %v8348
      %v8567 = vsel %vm8030, %v8349, 0.0
      %v8568 = vadd.f32 %v8566, %v8567
      %8569 = vadd.xlane.f32.xlu0 %v8568
      %v8570 = vpop.xlane.xlu0 %8569
      %v8571 = vadd.f32 %v8350, %v8351
      %v8572 = vadd.f32 %v8571, %v8352
      %v8573 = vadd.f32 %v8572, %v8353
      %v8574 = vadd.f32 %v8573, %v8354
      %v8575 = vadd.f32 %v8574, %v8355
      %v8576 = vsel %vm8030, %v8356, 0.0
      %v8577 = vadd.f32 %v8575, %v8576
      %8578 = vadd.xlane.f32.xlu0 %v8577
      %v8579 = vpop.xlane.xlu0 %8578
      %v8580 = vadd.f32 %v8357, %v8358
      %v8581 = vadd.f32 %v8580, %v8359
      %v8582 = vadd.f32 %v8581, %v8360
      %v8583 = vadd.f32 %v8582, %v8361
      %v8584 = vadd.f32 %v8583, %v8362
      %v8585 = vsel %vm8030, %v8363, 0.0
      %v8586 = vadd.f32 %v8584, %v8585
      %8587 = vadd.xlane.f32.xlu0 %v8586
      %v8588 = vpop.xlane.xlu0 %8587
      %v8589 = vadd.f32 %v8364, %v8365
      %v8590 = vadd.f32 %v8589, %v8366
      %v8591 = vadd.f32 %v8590, %v8367
      %v8592 = vadd.f32 %v8591, %v8368
      %v8593 = vadd.f32 %v8592, %v8369
      %v8594 = vsel %vm8030, %v8370, 0.0
      %v8595 = vadd.f32 %v8593, %v8594
      %8596 = vadd.xlane.f32.xlu0 %v8595
      %v8597 = vpop.xlane.xlu0 %8596
      %v8598 = vadd.f32 %v8371, %v8372
      %v8599 = vadd.f32 %v8598, %v8373
      %v8600 = vadd.f32 %v8599, %v8374
      %v8601 = vadd.f32 %v8600, %v8375
      %v8602 = vadd.f32 %v8601, %v8376
      %v8603 = vsel %vm8030, %v8377, 0.0
      %v8604 = vadd.f32 %v8602, %v8603
      %8605 = vadd.xlane.f32.xlu0 %v8604
      %v8606 = vpop.xlane.xlu0 %8605
      %v8607 = vadd.f32 %v8378, %v8379
      %v8608 = vadd.f32 %v8607, %v8380
      %v8609 = vadd.f32 %v8608, %v8381
      %v8610 = vadd.f32 %v8609, %v8382
      %v8611 = vadd.f32 %v8610, %v8383
      %v8612 = vsel %vm8030, %v8384, 0.0
      %v8613 = vadd.f32 %v8611, %v8612
      %8614 = vadd.xlane.f32.xlu0 %v8613
      %v8615 = vpop.xlane.xlu0 %8614
      %v8616 = vadd.f32 %v8385, %v8386
      %v8617 = vadd.f32 %v8616, %v8387
      %v8618 = vadd.f32 %v8617, %v8388
      %v8619 = vadd.f32 %v8618, %v8389
      %v8620 = vadd.f32 %v8619, %v8390
      %v8621 = vsel %vm8030, %v8391, 0.0
      %v8622 = vadd.f32 %v8620, %v8621
      %8623 = vadd.xlane.f32.xlu0 %v8622
      %v8624 = vpop.xlane.xlu0 %8623
      %v8625 = vadd.f32 %v8392, %v8393
      %v8626 = vadd.f32 %v8625, %v8394
      %v8627 = vadd.f32 %v8626, %v8395
      %v8628 = vadd.f32 %v8627, %v8396
      %v8629 = vadd.f32 %v8628, %v8397
      %v8630 = vsel %vm8030, %v8398, 0.0
      %v8631 = vadd.f32 %v8629, %v8630
      %8632 = vadd.xlane.f32.xlu0 %v8631
      %v8633 = vpop.xlane.xlu0 %8632
      %v8634 = vadd.f32 %v8399, %v8400
      %v8635 = vadd.f32 %v8634, %v8401
      %v8636 = vadd.f32 %v8635, %v8402
      %v8637 = vadd.f32 %v8636, %v8403
      %v8638 = vadd.f32 %v8637, %v8404
      %v8639 = vsel %vm8030, %v8405, 0.0
      %v8640 = vadd.f32 %v8638, %v8639
      %8641 = vadd.xlane.f32.xlu0 %v8640
      %v8642 = vpop.xlane.xlu0 %8641
      %v8643 = vadd.f32 %v8406, %v8407
      %v8644 = vadd.f32 %v8643, %v8408
      %v8645 = vadd.f32 %v8644, %v8409
      %v8646 = vadd.f32 %v8645, %v8410
      %v8647 = vadd.f32 %v8646, %v8411
      %v8648 = vsel %vm8030, %v8412, 0.0
      %v8649 = vadd.f32 %v8647, %v8648
      %8650 = vadd.xlane.f32.xlu0 %v8649
      %v8651 = vpop.xlane.xlu0 %8650
      %v8652 = vadd.f32 %v8413, %v8414
      %v8653 = vadd.f32 %v8652, %v8415
      %v8654 = vadd.f32 %v8653, %v8416
      %v8655 = vadd.f32 %v8654, %v8417
      %v8656 = vadd.f32 %v8655, %v8418
      %v8657 = vsel %vm8030, %v8419, 0.0
      %v8658 = vadd.f32 %v8656, %v8657
      %8659 = vadd.xlane.f32.xlu0 %v8658
      %v8660 = vpop.xlane.xlu0 %8659
      %v8661 = vadd.f32 %v8420, %v8421
      %v8662 = vadd.f32 %v8661, %v8422
      %v8663 = vadd.f32 %v8662, %v8423
      %v8664 = vadd.f32 %v8663, %v8424
      %v8665 = vadd.f32 %v8664, %v8425
      %v8666 = vsel %vm8030, %v8426, 0.0
      %v8667 = vadd.f32 %v8665, %v8666
      %8668 = vadd.xlane.f32.xlu0 %v8667
      %v8669 = vpop.xlane.xlu0 %8668
      %v8670 = vadd.f32 %v8427, %v8428
      %v8671 = vadd.f32 %v8670, %v8429
      %v8672 = vadd.f32 %v8671, %v8430
      %v8673 = vadd.f32 %v8672, %v8431
      %v8674 = vadd.f32 %v8673, %v8432
      %v8675 = vsel %vm8030, %v8433, 0.0
      %v8676 = vadd.f32 %v8674, %v8675
      %8677 = vadd.xlane.f32.xlu0 %v8676
      %v8678 = vpop.xlane.xlu0 %8677
      %v8679 = vadd.f32 %v8434, %v8435
      %v8680 = vadd.f32 %v8679, %v8436
      %v8681 = vadd.f32 %v8680, %v8437
      %v8682 = vadd.f32 %v8681, %v8438
      %v8683 = vadd.f32 %v8682, %v8439
      %v8684 = vsel %vm8030, %v8440, 0.0
      %v8685 = vadd.f32 %v8683, %v8684
      %8686 = vadd.xlane.f32.xlu0 %v8685
      %v8687 = vpop.xlane.xlu0 %8686
      %v8688 = vadd.f32 %v8441, %v8442
      %v8689 = vadd.f32 %v8688, %v8443
      %v8690 = vadd.f32 %v8689, %v8444
      %v8691 = vadd.f32 %v8690, %v8445
      %v8692 = vadd.f32 %v8691, %v8446
      %v8693 = vsel %vm8030, %v8447, 0.0
      %v8694 = vadd.f32 %v8692, %v8693
      %8695 = vadd.xlane.f32.xlu0 %v8694
      %v8696 = vpop.xlane.xlu0 %8695
      %v8697 = vadd.f32 %v8448, %v8449
      %v8698 = vadd.f32 %v8697, %v8450
      %v8699 = vadd.f32 %v8698, %v8451
      %v8700 = vadd.f32 %v8699, %v8452
      %v8701 = vadd.f32 %v8700, %v8453
      %v8702 = vsel %vm8030, %v8454, 0.0
      %v8703 = vadd.f32 %v8701, %v8702
      %8704 = vadd.xlane.f32.xlu0 %v8703
      %v8705 = vpop.xlane.xlu0 %8704
      %v8706 = vadd.f32 %v8455, %v8456
      %v8707 = vadd.f32 %v8706, %v8457
      %v8708 = vadd.f32 %v8707, %v8458
      %v8709 = vadd.f32 %v8708, %v8459
      %v8710 = vadd.f32 %v8709, %v8460
      %v8711 = vsel %vm8030, %v8461, 0.0
      %v8712 = vadd.f32 %v8710, %v8711
      %8713 = vadd.xlane.f32.xlu0 %v8712
      %v8714 = vpop.xlane.xlu0 %8713
      %v8715 = vadd.f32 %v8462, %v8463
      %v8716 = vadd.f32 %v8715, %v8464
      %v8717 = vadd.f32 %v8716, %v8465
      %v8718 = vadd.f32 %v8717, %v8466
      %v8719 = vadd.f32 %v8718, %v8467
      %v8720 = vsel %vm8030, %v8468, 0.0
      %v8721 = vadd.f32 %v8719, %v8720
      %8722 = vadd.xlane.f32.xlu0 %v8721
      %v8723 = vpop.xlane.xlu0 %8722
      %v8724 = vadd.f32 %v8469, %v8470
      %v8725 = vadd.f32 %v8724, %v8471
      %v8726 = vadd.f32 %v8725, %v8472
      %v8727 = vadd.f32 %v8726, %v8473
      %v8728 = vadd.f32 %v8727, %v8474
      %v8729 = vsel %vm8030, %v8475, 0.0
      %v8730 = vadd.f32 %v8728, %v8729
      %8731 = vadd.xlane.f32.xlu0 %v8730
      %v8732 = vpop.xlane.xlu0 %8731
      %v8733 = vadd.f32 %v8476, %v8477
      %v8734 = vadd.f32 %v8733, %v8478
      %v8735 = vadd.f32 %v8734, %v8479
      %v8736 = vadd.f32 %v8735, %v8480
      %v8737 = vadd.f32 %v8736, %v8481
      %v8738 = vsel %vm8030, %v8482, 0.0
      %v8739 = vadd.f32 %v8737, %v8738
      %8740 = vadd.xlane.f32.xlu0 %v8739
      %v8741 = vpop.xlane.xlu0 %8740
      %v8742 = vadd.f32 %v8483, %v8484
      %v8743 = vadd.f32 %v8742, %v8485
      %v8744 = vadd.f32 %v8743, %v8486
      %v8745 = vadd.f32 %v8744, %v8487
      %v8746 = vadd.f32 %v8745, %v8488
      %v8747 = vsel %vm8030, %v8489, 0.0
      %v8748 = vadd.f32 %v8746, %v8747
      %8749 = vadd.xlane.f32.xlu0 %v8748
      %v8750 = vpop.xlane.xlu0 %8749
      %v8751 = vmul.f32 %v8034, 0.0012755102
      %v8752 = vmul.f32 %v8043, 0.0012755102
      %v8753 = vmul.f32 %v8052, 0.0012755102
      %v8754 = vmul.f32 %v8061, 0.0012755102
      %v8755 = vmul.f32 %v8070, 0.0012755102
      %v8756 = vmul.f32 %v8079, 0.0012755102
      %v8757 = vmul.f32 %v8088, 0.0012755102
      %v8758 = vmul.f32 %v8097, 0.0012755102
      %v8759 = vmul.f32 %v8106, 0.0012755102
      %v8760 = vmul.f32 %v8115, 0.0012755102
      %v8761 = vmul.f32 %v8124, 0.0012755102
      %v8762 = vmul.f32 %v8133, 0.0012755102
      %v8763 = vmul.f32 %v8142, 0.0012755102
      %v8764 = vmul.f32 %v8151, 0.0012755102
      %v8765 = vmul.f32 %v8160, 0.0012755102
      %v8766 = vmul.f32 %v8169, 0.0012755102
      %v8767 = vmul.f32 %v8178, 0.0012755102
      %v8768 = vmul.f32 %v8187, 0.0012755102
      %v8769 = vmul.f32 %v8196, 0.0012755102
      %v8770 = vmul.f32 %v8205, 0.0012755102
      %v8771 = vmul.f32 %v8214, 0.0012755102
      %v8772 = vmul.f32 %v8223, 0.0012755102
      %v8773 = vmul.f32 %v8232, 0.0012755102
      %v8774 = vmul.f32 %v8241, 0.0012755102
      %v8775 = vmul.f32 %v8250, 0.0012755102
      %v8776 = vmul.f32 %v8259, 0.0012755102
      %v8777 = vmul.f32 %v8268, 0.0012755102
      %v8778 = vmul.f32 %v8277, 0.0012755102
      %v8779 = vmul.f32 %v8286, 0.0012755102
      %v8780 = vmul.f32 %v8498, 0.0012755102
      %v8781 = vmul.f32 %v8507, 0.0012755102
      %v8782 = vmul.f32 %v8516, 0.0012755102
      %v8783 = vmul.f32 %v8525, 0.0012755102
      %v8784 = vmul.f32 %v8534, 0.0012755102
      %v8785 = vmul.f32 %v8543, 0.0012755102
      %v8786 = vmul.f32 %v8552, 0.0012755102
      %v8787 = vmul.f32 %v8561, 0.0012755102
      %v8788 = vmul.f32 %v8570, 0.0012755102
      %v8789 = vmul.f32 %v8579, 0.0012755102
      %v8790 = vmul.f32 %v8588, 0.0012755102
      %v8791 = vmul.f32 %v8597, 0.0012755102
      %v8792 = vmul.f32 %v8606, 0.0012755102
      %v8793 = vmul.f32 %v8615, 0.0012755102
      %v8794 = vmul.f32 %v8624, 0.0012755102
      %v8795 = vmul.f32 %v8633, 0.0012755102
      %v8796 = vmul.f32 %v8642, 0.0012755102
      %v8797 = vmul.f32 %v8651, 0.0012755102
      %v8798 = vmul.f32 %v8660, 0.0012755102
      %v8799 = vmul.f32 %v8669, 0.0012755102
      %v8800 = vmul.f32 %v8678, 0.0012755102
      %v8801 = vmul.f32 %v8687, 0.0012755102
      %v8802 = vmul.f32 %v8696, 0.0012755102
      %v8803 = vmul.f32 %v8705, 0.0012755102
      %v8804 = vmul.f32 %v8714, 0.0012755102
      %v8805 = vmul.f32 %v8723, 0.0012755102
      %v8806 = vmul.f32 %v8732, 0.0012755102
      %v8807 = vmul.f32 %v8741, 0.0012755102
      %v8808 = vmul.f32 %v8750, 0.0012755102
      %v8809 = vmul.f32 %v8751, %v8751
      %v8810 = vmul.f32 %v8752, %v8752
      %v8811 = vmul.f32 %v8753, %v8753
      %v8812 = vmul.f32 %v8754, %v8754
      %v8813 = vmul.f32 %v8755, %v8755
      %v8814 = vmul.f32 %v8756, %v8756
      %v8815 = vmul.f32 %v8757, %v8757
      %v8816 = vmul.f32 %v8758, %v8758
      %v8817 = vmul.f32 %v8759, %v8759
      %v8818 = vmul.f32 %v8760, %v8760
      %v8819 = vmul.f32 %v8761, %v8761
      %v8820 = vmul.f32 %v8762, %v8762
      %v8821 = vmul.f32 %v8763, %v8763
      %v8822 = vmul.f32 %v8764, %v8764
      %v8823 = vmul.f32 %v8765, %v8765
      %v8824 = vmul.f32 %v8766, %v8766
      %v8825 = vmul.f32 %v8767, %v8767
      %v8826 = vmul.f32 %v8768, %v8768
      %v8827 = vmul.f32 %v8769, %v8769
      %v8828 = vmul.f32 %v8770, %v8770
      %v8829 = vmul.f32 %v8771, %v8771
      %v8830 = vmul.f32 %v8772, %v8772
      %v8831 = vmul.f32 %v8773, %v8773
      %v8832 = vmul.f32 %v8774, %v8774
      %v8833 = vmul.f32 %v8775, %v8775
      %v8834 = vmul.f32 %v8776, %v8776
      %v8835 = vmul.f32 %v8777, %v8777
      %v8836 = vmul.f32 %v8778, %v8778
      %v8837 = vmul.f32 %v8779, %v8779
      %v8838 = vsub.f32 %v8780, %v8809
      %v8839 = vsub.f32 %v8781, %v8810
      %v8840 = vsub.f32 %v8782, %v8811
      %v8841 = vsub.f32 %v8783, %v8812
      %v8842 = vsub.f32 %v8784, %v8813
      %v8843 = vsub.f32 %v8785, %v8814
      %v8844 = vsub.f32 %v8786, %v8815
      %v8845 = vsub.f32 %v8787, %v8816
      %v8846 = vsub.f32 %v8788, %v8817
      %v8847 = vsub.f32 %v8789, %v8818
      %v8848 = vsub.f32 %v8790, %v8819
      %v8849 = vsub.f32 %v8791, %v8820
      %v8850 = vsub.f32 %v8792, %v8821
      %v8851 = vsub.f32 %v8793, %v8822
      %v8852 = vsub.f32 %v8794, %v8823
      %v8853 = vsub.f32 %v8795, %v8824
      %v8854 = vsub.f32 %v8796, %v8825
      %v8855 = vsub.f32 %v8797, %v8826
      %v8856 = vsub.f32 %v8798, %v8827
      %v8857 = vsub.f32 %v8799, %v8828
      %v8858 = vsub.f32 %v8800, %v8829
      %v8859 = vsub.f32 %v8801, %v8830
      %v8860 = vsub.f32 %v8802, %v8831
      %v8861 = vsub.f32 %v8803, %v8832
      %v8862 = vsub.f32 %v8804, %v8833
      %v8863 = vsub.f32 %v8805, %v8834
      %v8864 = vsub.f32 %v8806, %v8835
      %v8865 = vsub.f32 %v8807, %v8836
      %v8866 = vsub.f32 %v8808, %v8837
      %v8867 = vld [vmem:[%s192] sm:$0xff]
      %v8868 = vld [vmem:[%s192 + $0x8] sm:$0xff]
      %v8869 = vld [vmem:[%s192 + $0x10] sm:$0xff]
      %v8870 = vld [vmem:[%s192 + $0x18] sm:$0xff]
      %v8871 = vld [vmem:[%s192 + $0x20] sm:$0xff]
      %v8872 = vld [vmem:[%s192 + $0x28] sm:$0xff]
      %v8873 = vld [vmem:[%s192 + $0x30] sm:$0xff]
      %v8874 = vld [vmem:[%s192 + $0x38] sm:$0xff]
      %v8875 = vld [vmem:[%s192 + $0x40] sm:$0xff]
      %v8876 = vld [vmem:[%s192 + $0x48] sm:$0xff]
      %v8877 = vld [vmem:[%s192 + $0x50] sm:$0xff]
      %v8878 = vld [vmem:[%s192 + $0x58] sm:$0xff]
      %v8879 = vld [vmem:[%s192 + $0x60] sm:$0xff]
      %v8880 = vld [vmem:[%s192 + $0x68] sm:$0xff]
      %v8881 = vld [vmem:[%s192 + $0x70] sm:$0xff]
      %v8882 = vld [vmem:[%s192 + $0x78] sm:$0xff]
      %v8883 = vld [vmem:[%s192 + $0x80] sm:$0xff]
      %v8884 = vld [vmem:[%s192 + $0x88] sm:$0xff]
      %v8885 = vld [vmem:[%s192 + $0x90] sm:$0xff]
      %v8886 = vld [vmem:[%s192 + $0x98] sm:$0xff]
      %v8887 = vld [vmem:[%s192 + $0xa0] sm:$0xff]
      %v8888 = vld [vmem:[%s192 + $0xa8] sm:$0xff]
      %v8889 = vld [vmem:[%s192 + $0xb0] sm:$0xff]
      %v8890 = vld [vmem:[%s192 + $0xb8] sm:$0xff]
      %v8891 = vld [vmem:[%s192 + $0xc0] sm:$0xff]
      %v8892 = vld [vmem:[%s192 + $0xc8] sm:$0xff]
      %v8893 = vld [vmem:[%s192 + $0xd0] sm:$0xff]
      %v8894 = vld [vmem:[%s192 + $0xd8] sm:$0xff]
      %v8895 = vld [vmem:[%s192 + $0xe0] sm:$0xff]
      %v8896 = vadd.f32 %v8838, 1e-05
      %v8897 = vadd.f32 %v8839, 1e-05
      %v8898 = vadd.f32 %v8840, 1e-05
      %v8899 = vadd.f32 %v8841, 1e-05
      %v8900 = vadd.f32 %v8842, 1e-05
      %v8901 = vadd.f32 %v8843, 1e-05
      %v8902 = vadd.f32 %v8844, 1e-05
      %v8903 = vadd.f32 %v8845, 1e-05
      %v8904 = vadd.f32 %v8846, 1e-05
      %v8905 = vadd.f32 %v8847, 1e-05
      %v8906 = vadd.f32 %v8848, 1e-05
      %v8907 = vadd.f32 %v8849, 1e-05
      %v8908 = vadd.f32 %v8850, 1e-05
      %v8909 = vadd.f32 %v8851, 1e-05
      %v8910 = vadd.f32 %v8852, 1e-05
      %v8911 = vadd.f32 %v8853, 1e-05
      %v8912 = vadd.f32 %v8854, 1e-05
      %v8913 = vadd.f32 %v8855, 1e-05
      %v8914 = vadd.f32 %v8856, 1e-05
      %v8915 = vadd.f32 %v8857, 1e-05
      %v8916 = vadd.f32 %v8858, 1e-05
      %v8917 = vadd.f32 %v8859, 1e-05
      %v8918 = vadd.f32 %v8860, 1e-05
      %v8919 = vadd.f32 %v8861, 1e-05
      %v8920 = vadd.f32 %v8862, 1e-05
      %v8921 = vadd.f32 %v8863, 1e-05
      %v8922 = vadd.f32 %v8864, 1e-05
      %v8923 = vadd.f32 %v8865, 1e-05
      %v8924 = vadd.f32 %v8866, 1e-05
      %v8925 = vrsqrt.pop %v8896
      %v8926 = vrsqrt.pop %v8897
      %v8927 = vrsqrt.pop %v8898
      %v8928 = vrsqrt.pop %v8899
      %v8929 = vrsqrt.pop %v8900
      %v8930 = vrsqrt.pop %v8901
      %v8931 = vrsqrt.pop %v8902
      %v8932 = vrsqrt.pop %v8903
      %v8933 = vrsqrt.pop %v8904
      %v8934 = vrsqrt.pop %v8905
      %v8935 = vrsqrt.pop %v8906
      %v8936 = vrsqrt.pop %v8907
      %v8937 = vrsqrt.pop %v8908
      %v8938 = vrsqrt.pop %v8909
      %v8939 = vrsqrt.pop %v8910
      %v8940 = vrsqrt.pop %v8911
      %v8941 = vrsqrt.pop %v8912
      %v8942 = vrsqrt.pop %v8913
      %v8943 = vrsqrt.pop %v8914
      %v8944 = vrsqrt.pop %v8915
      %v8945 = vrsqrt.pop %v8916
      %v8946 = vrsqrt.pop %v8917
      %v8947 = vrsqrt.pop %v8918
      %v8948 = vrsqrt.pop %v8919
      %v8949 = vrsqrt.pop %v8920
      %v8950 = vrsqrt.pop %v8921
      %v8951 = vrsqrt.pop %v8922
      %v8952 = vrsqrt.pop %v8923
      %v8953 = vrsqrt.pop %v8924
      %v8954 = vmul.f32 %v8867, %v8925
      %v8955 = vmul.f32 %v8868, %v8926
      %v8956 = vmul.f32 %v8869, %v8927
      %v8957 = vmul.f32 %v8870, %v8928
      %v8958 = vmul.f32 %v8871, %v8929
      %v8959 = vmul.f32 %v8872, %v8930
      %v8960 = vmul.f32 %v8873, %v8931
      %v8961 = vmul.f32 %v8874, %v8932
      %v8962 = vmul.f32 %v8875, %v8933
      %v8963 = vmul.f32 %v8876, %v8934
      %v8964 = vmul.f32 %v8877, %v8935
      %v8965 = vmul.f32 %v8878, %v8936
      %v8966 = vmul.f32 %v8879, %v8937
      %v8967 = vmul.f32 %v8880, %v8938
      %v8968 = vmul.f32 %v8881, %v8939
      %v8969 = vmul.f32 %v8882, %v8940
      %v8970 = vmul.f32 %v8883, %v8941
      %v8971 = vmul.f32 %v8884, %v8942
      %v8972 = vmul.f32 %v8885, %v8943
      %v8973 = vmul.f32 %v8886, %v8944
      %v8974 = vmul.f32 %v8887, %v8945
      %v8975 = vmul.f32 %v8888, %v8946
      %v8976 = vmul.f32 %v8889, %v8947
      %v8977 = vmul.f32 %v8890, %v8948
      %v8978 = vmul.f32 %v8891, %v8949
      %v8979 = vmul.f32 %v8892, %v8950
      %v8980 = vmul.f32 %v8893, %v8951
      %v8981 = vmul.f32 %v8894, %v8952
      %v8982 = vmul.f32 %v8895, %v8953
      %v8983 = vsub.f32 %v6337, %v8751
      %v8984 = vsub.f32 %v6339, %v8751
      %v8985 = vsub.f32 %v6880, %v8751
      %v8986 = vsub.f32 %v6882, %v8751
      %v8987 = vsub.f32 %v7423, %v8751
      %v8988 = vsub.f32 %v7425, %v8751
      %v8989 = vsub.f32 %v7908, %v8751
      %v8990 = vsub.f32 %v6341, %v8752
      %v8991 = vsub.f32 %v6343, %v8752
      %v8992 = vsub.f32 %v6884, %v8752
      %v8993 = vsub.f32 %v6886, %v8752
      %v8994 = vsub.f32 %v7427, %v8752
      %v8995 = vsub.f32 %v7429, %v8752
      %v8996 = vsub.f32 %v7911, %v8752
      %v8997 = vsub.f32 %v6347, %v8753
      %v8998 = vsub.f32 %v6349, %v8753
      %v8999 = vsub.f32 %v6890, %v8753
      %v9000 = vsub.f32 %v6892, %v8753
      %v9001 = vsub.f32 %v7433, %v8753
      %v9002 = vsub.f32 %v7435, %v8753
      %v9003 = vsub.f32 %v7916, %v8753
      %v9004 = vsub.f32 %v6351, %v8754
      %v9005 = vsub.f32 %v6353, %v8754
      %v9006 = vsub.f32 %v6894, %v8754
      %v9007 = vsub.f32 %v6896, %v8754
      %v9008 = vsub.f32 %v7437, %v8754
      %v9009 = vsub.f32 %v7439, %v8754
      %v9010 = vsub.f32 %v7919, %v8754
      %v9011 = vsub.f32 %v6357, %v8755
      %v9012 = vsub.f32 %v6359, %v8755
      %v9013 = vsub.f32 %v6900, %v8755
      %v9014 = vsub.f32 %v6902, %v8755
      %v9015 = vsub.f32 %v7443, %v8755
      %v9016 = vsub.f32 %v7445, %v8755
      %v9017 = vsub.f32 %v7924, %v8755
      %v9018 = vsub.f32 %v6361, %v8756
      %v9019 = vsub.f32 %v6363, %v8756
      %v9020 = vsub.f32 %v6904, %v8756
      %v9021 = vsub.f32 %v6906, %v8756
      %v9022 = vsub.f32 %v7447, %v8756
      %v9023 = vsub.f32 %v7449, %v8756
      %v9024 = vsub.f32 %v7927, %v8756
      %v9025 = vsub.f32 %v6367, %v8757
      %v9026 = vsub.f32 %v6369, %v8757
      %v9027 = vsub.f32 %v6910, %v8757
      %v9028 = vsub.f32 %v6912, %v8757
      %v9029 = vsub.f32 %v7453, %v8757
      %v9030 = vsub.f32 %v7455, %v8757
      %v9031 = vsub.f32 %v7932, %v8757
      %v9032 = vsub.f32 %v6371, %v8758
      %v9033 = vsub.f32 %v6373, %v8758
      %v9034 = vsub.f32 %v6914, %v8758
      %v9035 = vsub.f32 %v6916, %v8758
      %v9036 = vsub.f32 %v7457, %v8758
      %v9037 = vsub.f32 %v7459, %v8758
      %v9038 = vsub.f32 %v7935, %v8758
      %v9039 = vsub.f32 %v6377, %v8759
      %v9040 = vsub.f32 %v6379, %v8759
      %v9041 = vsub.f32 %v6920, %v8759
      %v9042 = vsub.f32 %v6922, %v8759
      %v9043 = vsub.f32 %v7463, %v8759
      %v9044 = vsub.f32 %v7465, %v8759
      %v9045 = vsub.f32 %v7940, %v8759
      %v9046 = vsub.f32 %v6381, %v8760
      %v9047 = vsub.f32 %v6383, %v8760
      %v9048 = vsub.f32 %v6924, %v8760
      %v9049 = vsub.f32 %v6926, %v8760
      %v9050 = vsub.f32 %v7467, %v8760
      %v9051 = vsub.f32 %v7469, %v8760
      %v9052 = vsub.f32 %v7943, %v8760
      %v9053 = vsub.f32 %v6387, %v8761
      %v9054 = vsub.f32 %v6389, %v8761
      %v9055 = vsub.f32 %v6930, %v8761
      %v9056 = vsub.f32 %v6932, %v8761
      %v9057 = vsub.f32 %v7473, %v8761
      %v9058 = vsub.f32 %v7475, %v8761
      %v9059 = vsub.f32 %v7948, %v8761
      %v9060 = vsub.f32 %v6391, %v8762
      %v9061 = vsub.f32 %v6393, %v8762
      %v9062 = vsub.f32 %v6934, %v8762
      %v9063 = vsub.f32 %v6936, %v8762
      %v9064 = vsub.f32 %v7477, %v8762
      %v9065 = vsub.f32 %v7479, %v8762
      %v9066 = vsub.f32 %v7951, %v8762
      %v9067 = vsub.f32 %v6397, %v8763
      %v9068 = vsub.f32 %v6399, %v8763
      %v9069 = vsub.f32 %v6940, %v8763
      %v9070 = vsub.f32 %v6942, %v8763
      %v9071 = vsub.f32 %v7483, %v8763
      %v9072 = vsub.f32 %v7485, %v8763
      %v9073 = vsub.f32 %v7956, %v8763
      %v9074 = vsub.f32 %v6401, %v8764
      %v9075 = vsub.f32 %v6403, %v8764
      %v9076 = vsub.f32 %v6944, %v8764
      %v9077 = vsub.f32 %v6946, %v8764
      %v9078 = vsub.f32 %v7487, %v8764
      %v9079 = vsub.f32 %v7489, %v8764
      %v9080 = vsub.f32 %v7959, %v8764
      %v9081 = vsub.f32 %v6407, %v8765
      %v9082 = vsub.f32 %v6409, %v8765
      %v9083 = vsub.f32 %v6950, %v8765
      %v9084 = vsub.f32 %v6952, %v8765
      %v9085 = vsub.f32 %v7493, %v8765
      %v9086 = vsub.f32 %v7495, %v8765
      %v9087 = vsub.f32 %v7964, %v8765
      %v9088 = vsub.f32 %v6411, %v8766
      %v9089 = vsub.f32 %v6413, %v8766
      %v9090 = vsub.f32 %v6954, %v8766
      %v9091 = vsub.f32 %v6956, %v8766
      %v9092 = vsub.f32 %v7497, %v8766
      %v9093 = vsub.f32 %v7499, %v8766
      %v9094 = vsub.f32 %v7967, %v8766
      %v9095 = vsub.f32 %v6417, %v8767
      %v9096 = vsub.f32 %v6419, %v8767
      %v9097 = vsub.f32 %v6960, %v8767
      %v9098 = vsub.f32 %v6962, %v8767
      %v9099 = vsub.f32 %v7503, %v8767
      %v9100 = vsub.f32 %v7505, %v8767
      %v9101 = vsub.f32 %v7972, %v8767
      %v9102 = vsub.f32 %v6421, %v8768
      %v9103 = vsub.f32 %v6423, %v8768
      %v9104 = vsub.f32 %v6964, %v8768
      %v9105 = vsub.f32 %v6966, %v8768
      %v9106 = vsub.f32 %v7507, %v8768
      %v9107 = vsub.f32 %v7509, %v8768
      %v9108 = vsub.f32 %v7975, %v8768
      %v9109 = vsub.f32 %v6427, %v8769
      %v9110 = vsub.f32 %v6429, %v8769
      %v9111 = vsub.f32 %v6970, %v8769
      %v9112 = vsub.f32 %v6972, %v8769
      %v9113 = vsub.f32 %v7513, %v8769
      %v9114 = vsub.f32 %v7515, %v8769
      %v9115 = vsub.f32 %v7980, %v8769
      %v9116 = vsub.f32 %v6431, %v8770
      %v9117 = vsub.f32 %v6433, %v8770
      %v9118 = vsub.f32 %v6974, %v8770
      %v9119 = vsub.f32 %v6976, %v8770
      %v9120 = vsub.f32 %v7517, %v8770
      %v9121 = vsub.f32 %v7519, %v8770
      %v9122 = vsub.f32 %v7983, %v8770
      %v9123 = vsub.f32 %v6437, %v8771
      %v9124 = vsub.f32 %v6439, %v8771
      %v9125 = vsub.f32 %v6980, %v8771
      %v9126 = vsub.f32 %v6982, %v8771
      %v9127 = vsub.f32 %v7523, %v8771
      %v9128 = vsub.f32 %v7525, %v8771
      %v9129 = vsub.f32 %v7988, %v8771
      %v9130 = vsub.f32 %v6441, %v8772
      %v9131 = vsub.f32 %v6443, %v8772
      %v9132 = vsub.f32 %v6984, %v8772
      %v9133 = vsub.f32 %v6986, %v8772
      %v9134 = vsub.f32 %v7527, %v8772
      %v9135 = vsub.f32 %v7529, %v8772
      %v9136 = vsub.f32 %v7991, %v8772
      %v9137 = vsub.f32 %v6447, %v8773
      %v9138 = vsub.f32 %v6449, %v8773
      %v9139 = vsub.f32 %v6990, %v8773
      %v9140 = vsub.f32 %v6992, %v8773
      %v9141 = vsub.f32 %v7533, %v8773
      %v9142 = vsub.f32 %v7535, %v8773
      %v9143 = vsub.f32 %v7996, %v8773
      %v9144 = vsub.f32 %v6451, %v8774
      %v9145 = vsub.f32 %v6453, %v8774
      %v9146 = vsub.f32 %v6994, %v8774
      %v9147 = vsub.f32 %v6996, %v8774
      %v9148 = vsub.f32 %v7537, %v8774
      %v9149 = vsub.f32 %v7539, %v8774
      %v9150 = vsub.f32 %v7999, %v8774
      %v9151 = vsub.f32 %v6457, %v8775
      %v9152 = vsub.f32 %v6459, %v8775
      %v9153 = vsub.f32 %v7000, %v8775
      %v9154 = vsub.f32 %v7002, %v8775
      %v9155 = vsub.f32 %v7543, %v8775
      %v9156 = vsub.f32 %v7545, %v8775
      %v9157 = vsub.f32 %v8004, %v8775
      %v9158 = vsub.f32 %v6461, %v8776
      %v9159 = vsub.f32 %v6463, %v8776
      %v9160 = vsub.f32 %v7004, %v8776
      %v9161 = vsub.f32 %v7006, %v8776
      %v9162 = vsub.f32 %v7547, %v8776
      %v9163 = vsub.f32 %v7549, %v8776
      %v9164 = vsub.f32 %v8007, %v8776
      %v9165 = vsub.f32 %v6467, %v8777
      %v9166 = vsub.f32 %v6469, %v8777
      %v9167 = vsub.f32 %v7010, %v8777
      %v9168 = vsub.f32 %v7012, %v8777
      %v9169 = vsub.f32 %v7553, %v8777
      %v9170 = vsub.f32 %v7555, %v8777
      %v9171 = vsub.f32 %v8012, %v8777
      %v9172 = vsub.f32 %v6471, %v8778
      %v9173 = vsub.f32 %v6473, %v8778
      %v9174 = vsub.f32 %v7014, %v8778
      %v9175 = vsub.f32 %v7016, %v8778
      %v9176 = vsub.f32 %v7557, %v8778
      %v9177 = vsub.f32 %v7559, %v8778
      %v9178 = vsub.f32 %v8015, %v8778
      %v9179 = vsub.f32 %v6477, %v8779
      %v9180 = vsub.f32 %v6479, %v8779
      %v9181 = vsub.f32 %v7020, %v8779
      %v9182 = vsub.f32 %v7022, %v8779
      %v9183 = vsub.f32 %v7563, %v8779
      %v9184 = vsub.f32 %v7565, %v8779
      %v9185 = vsub.f32 %v8020, %v8779
      %9187 = vset.pattern.permute.xlu0 0
      %9188 = vperm.xlu0 %9187, %v8954
      %v9189 = vpop.permute.xlu0 %9188
      %9192 = vset.pattern.permute.xlu0 0
      %9193 = vperm.xlu0 %9192, %v8955
      %v9194 = vpop.permute.xlu0 %9193
      %9197 = vset.pattern.permute.xlu0 0
      %9198 = vperm.xlu0 %9197, %v8956
      %v9199 = vpop.permute.xlu0 %9198
      %9202 = vset.pattern.permute.xlu0 0
      %9203 = vperm.xlu0 %9202, %v8957
      %v9204 = vpop.permute.xlu0 %9203
      %9207 = vset.pattern.permute.xlu0 0
      %9208 = vperm.xlu0 %9207, %v8958
      %v9209 = vpop.permute.xlu0 %9208
      %9212 = vset.pattern.permute.xlu0 0
      %9213 = vperm.xlu0 %9212, %v8959
      %v9214 = vpop.permute.xlu0 %9213
      %9217 = vset.pattern.permute.xlu0 0
      %9218 = vperm.xlu0 %9217, %v8960
      %v9219 = vpop.permute.xlu0 %9218
      %9222 = vset.pattern.permute.xlu0 0
      %9223 = vperm.xlu0 %9222, %v8961
      %v9224 = vpop.permute.xlu0 %9223
      %9227 = vset.pattern.permute.xlu0 0
      %9228 = vperm.xlu0 %9227, %v8962
      %v9229 = vpop.permute.xlu0 %9228
      %9232 = vset.pattern.permute.xlu0 0
      %9233 = vperm.xlu0 %9232, %v8963
      %v9234 = vpop.permute.xlu0 %9233
      %9237 = vset.pattern.permute.xlu0 0
      %9238 = vperm.xlu0 %9237, %v8964
      %v9239 = vpop.permute.xlu0 %9238
      %9242 = vset.pattern.permute.xlu0 0
      %9243 = vperm.xlu0 %9242, %v8965
      %v9244 = vpop.permute.xlu0 %9243
      %9247 = vset.pattern.permute.xlu0 0
      %9248 = vperm.xlu0 %9247, %v8966
      %v9249 = vpop.permute.xlu0 %9248
      %9252 = vset.pattern.permute.xlu0 0
      %9253 = vperm.xlu0 %9252, %v8967
      %v9254 = vpop.permute.xlu0 %9253
      %9257 = vset.pattern.permute.xlu0 0
      %9258 = vperm.xlu0 %9257, %v8968
      %v9259 = vpop.permute.xlu0 %9258
      %9262 = vset.pattern.permute.xlu0 0
      %9263 = vperm.xlu0 %9262, %v8969
      %v9264 = vpop.permute.xlu0 %9263
      %9267 = vset.pattern.permute.xlu0 0
      %9268 = vperm.xlu0 %9267, %v8970
      %v9269 = vpop.permute.xlu0 %9268
      %9272 = vset.pattern.permute.xlu0 0
      %9273 = vperm.xlu0 %9272, %v8971
      %v9274 = vpop.permute.xlu0 %9273
      %9277 = vset.pattern.permute.xlu0 0
      %9278 = vperm.xlu0 %9277, %v8972
      %v9279 = vpop.permute.xlu0 %9278
      %9282 = vset.pattern.permute.xlu0 0
      %9283 = vperm.xlu0 %9282, %v8973
      %v9284 = vpop.permute.xlu0 %9283
      %9287 = vset.pattern.permute.xlu0 0
      %9288 = vperm.xlu0 %9287, %v8974
      %v9289 = vpop.permute.xlu0 %9288
      %9292 = vset.pattern.permute.xlu0 0
      %9293 = vperm.xlu0 %9292, %v8975
      %v9294 = vpop.permute.xlu0 %9293
      %9297 = vset.pattern.permute.xlu0 0
      %9298 = vperm.xlu0 %9297, %v8976
      %v9299 = vpop.permute.xlu0 %9298
      %9302 = vset.pattern.permute.xlu0 0
      %9303 = vperm.xlu0 %9302, %v8977
      %v9304 = vpop.permute.xlu0 %9303
      %9307 = vset.pattern.permute.xlu0 0
      %9308 = vperm.xlu0 %9307, %v8978
      %v9309 = vpop.permute.xlu0 %9308
      %9312 = vset.pattern.permute.xlu0 0
      %9313 = vperm.xlu0 %9312, %v8979
      %v9314 = vpop.permute.xlu0 %9313
      %9317 = vset.pattern.permute.xlu0 0
      %9318 = vperm.xlu0 %9317, %v8980
      %v9319 = vpop.permute.xlu0 %9318
      %9322 = vset.pattern.permute.xlu0 0
      %9323 = vperm.xlu0 %9322, %v8981
      %v9324 = vpop.permute.xlu0 %9323
      %9327 = vset.pattern.permute.xlu0 0
      %9328 = vperm.xlu0 %9327, %v8982
      %v9329 = vpop.permute.xlu0 %9328
      %v9331 = vmul.f32 %v8983, %v9189
      %v9332 = vmul.f32 %v8984, %v9189
      %v9333 = vmul.f32 %v8985, %v9189
      %v9334 = vmul.f32 %v8986, %v9189
      %v9335 = vmul.f32 %v8987, %v9189
      %v9336 = vmul.f32 %v8988, %v9189
      %v9337 = vmul.f32 %v8989, %v9189
      %v9338 = vmul.f32 %v8990, %v9194
      %v9339 = vmul.f32 %v8991, %v9194
      %v9340 = vmul.f32 %v8992, %v9194
      %v9341 = vmul.f32 %v8993, %v9194
      %v9342 = vmul.f32 %v8994, %v9194
      %v9343 = vmul.f32 %v8995, %v9194
      %v9344 = vmul.f32 %v8996, %v9194
      %v9345 = vmul.f32 %v8997, %v9199
      %v9346 = vmul.f32 %v8998, %v9199
      %v9347 = vmul.f32 %v8999, %v9199
      %v9348 = vmul.f32 %v9000, %v9199
      %v9349 = vmul.f32 %v9001, %v9199
      %v9350 = vmul.f32 %v9002, %v9199
      %v9351 = vmul.f32 %v9003, %v9199
      %v9352 = vmul.f32 %v9004, %v9204
      %v9353 = vmul.f32 %v9005, %v9204
      %v9354 = vmul.f32 %v9006, %v9204
      %v9355 = vmul.f32 %v9007, %v9204
      %v9356 = vmul.f32 %v9008, %v9204
      %v9357 = vmul.f32 %v9009, %v9204
      %v9358 = vmul.f32 %v9010, %v9204
      %v9359 = vmul.f32 %v9011, %v9209
      %v9360 = vmul.f32 %v9012, %v9209
      %v9361 = vmul.f32 %v9013, %v9209
      %v9362 = vmul.f32 %v9014, %v9209
      %v9363 = vmul.f32 %v9015, %v9209
      %v9364 = vmul.f32 %v9016, %v9209
      %v9365 = vmul.f32 %v9017, %v9209
      %v9366 = vmul.f32 %v9018, %v9214
      %v9367 = vmul.f32 %v9019, %v9214
      %v9368 = vmul.f32 %v9020, %v9214
      %v9369 = vmul.f32 %v9021, %v9214
      %v9370 = vmul.f32 %v9022, %v9214
      %v9371 = vmul.f32 %v9023, %v9214
      %v9372 = vmul.f32 %v9024, %v9214
      %v9373 = vmul.f32 %v9025, %v9219
      %v9374 = vmul.f32 %v9026, %v9219
      %v9375 = vmul.f32 %v9027, %v9219
      %v9376 = vmul.f32 %v9028, %v9219
      %v9377 = vmul.f32 %v9029, %v9219
      %v9378 = vmul.f32 %v9030, %v9219
      %v9379 = vmul.f32 %v9031, %v9219
      %v9380 = vmul.f32 %v9032, %v9224
      %v9381 = vmul.f32 %v9033, %v9224
      %v9382 = vmul.f32 %v9034, %v9224
      %v9383 = vmul.f32 %v9035, %v9224
      %v9384 = vmul.f32 %v9036, %v9224
      %v9385 = vmul.f32 %v9037, %v9224
      %v9386 = vmul.f32 %v9038, %v9224
      %v9387 = vmul.f32 %v9039, %v9229
      %v9388 = vmul.f32 %v9040, %v9229
      %v9389 = vmul.f32 %v9041, %v9229
      %v9390 = vmul.f32 %v9042, %v9229
      %v9391 = vmul.f32 %v9043, %v9229
      %v9392 = vmul.f32 %v9044, %v9229
      %v9393 = vmul.f32 %v9045, %v9229
      %v9394 = vmul.f32 %v9046, %v9234
      %v9395 = vmul.f32 %v9047, %v9234
      %v9396 = vmul.f32 %v9048, %v9234
      %v9397 = vmul.f32 %v9049, %v9234
      %v9398 = vmul.f32 %v9050, %v9234
      %v9399 = vmul.f32 %v9051, %v9234
      %v9400 = vmul.f32 %v9052, %v9234
      %v9401 = vmul.f32 %v9053, %v9239
      %v9402 = vmul.f32 %v9054, %v9239
      %v9403 = vmul.f32 %v9055, %v9239
      %v9404 = vmul.f32 %v9056, %v9239
      %v9405 = vmul.f32 %v9057, %v9239
      %v9406 = vmul.f32 %v9058, %v9239
      %v9407 = vmul.f32 %v9059, %v9239
      %v9408 = vmul.f32 %v9060, %v9244
      %v9409 = vmul.f32 %v9061, %v9244
      %v9410 = vmul.f32 %v9062, %v9244
      %v9411 = vmul.f32 %v9063, %v9244
      %v9412 = vmul.f32 %v9064, %v9244
      %v9413 = vmul.f32 %v9065, %v9244
      %v9414 = vmul.f32 %v9066, %v9244
      %v9415 = vmul.f32 %v9067, %v9249
      %v9416 = vmul.f32 %v9068, %v9249
      %v9417 = vmul.f32 %v9069, %v9249
      %v9418 = vmul.f32 %v9070, %v9249
      %v9419 = vmul.f32 %v9071, %v9249
      %v9420 = vmul.f32 %v9072, %v9249
      %v9421 = vmul.f32 %v9073, %v9249
      %v9422 = vmul.f32 %v9074, %v9254
      %v9423 = vmul.f32 %v9075, %v9254
      %v9424 = vmul.f32 %v9076, %v9254
      %v9425 = vmul.f32 %v9077, %v9254
      %v9426 = vmul.f32 %v9078, %v9254
      %v9427 = vmul.f32 %v9079, %v9254
      %v9428 = vmul.f32 %v9080, %v9254
      %v9429 = vmul.f32 %v9081, %v9259
      %v9430 = vmul.f32 %v9082, %v9259
      %v9431 = vmul.f32 %v9083, %v9259
      %v9432 = vmul.f32 %v9084, %v9259
      %v9433 = vmul.f32 %v9085, %v9259
      %v9434 = vmul.f32 %v9086, %v9259
      %v9435 = vmul.f32 %v9087, %v9259
      %v9436 = vmul.f32 %v9088, %v9264
      %v9437 = vmul.f32 %v9089, %v9264
      %v9438 = vmul.f32 %v9090, %v9264
      %v9439 = vmul.f32 %v9091, %v9264
      %v9440 = vmul.f32 %v9092, %v9264
      %v9441 = vmul.f32 %v9093, %v9264
      %v9442 = vmul.f32 %v9094, %v9264
      %v9443 = vmul.f32 %v9095, %v9269
      %v9444 = vmul.f32 %v9096, %v9269
      %v9445 = vmul.f32 %v9097, %v9269
      %v9446 = vmul.f32 %v9098, %v9269
      %v9447 = vmul.f32 %v9099, %v9269
      %v9448 = vmul.f32 %v9100, %v9269
      %v9449 = vmul.f32 %v9101, %v9269
      %v9450 = vmul.f32 %v9102, %v9274
      %v9451 = vmul.f32 %v9103, %v9274
      %v9452 = vmul.f32 %v9104, %v9274
      %v9453 = vmul.f32 %v9105, %v9274
      %v9454 = vmul.f32 %v9106, %v9274
      %v9455 = vmul.f32 %v9107, %v9274
      %v9456 = vmul.f32 %v9108, %v9274
      %v9457 = vmul.f32 %v9109, %v9279
      %v9458 = vmul.f32 %v9110, %v9279
      %v9459 = vmul.f32 %v9111, %v9279
      %v9460 = vmul.f32 %v9112, %v9279
      %v9461 = vmul.f32 %v9113, %v9279
      %v9462 = vmul.f32 %v9114, %v9279
      %v9463 = vmul.f32 %v9115, %v9279
      %v9464 = vmul.f32 %v9116, %v9284
      %v9465 = vmul.f32 %v9117, %v9284
      %v9466 = vmul.f32 %v9118, %v9284
      %v9467 = vmul.f32 %v9119, %v9284
      %v9468 = vmul.f32 %v9120, %v9284
      %v9469 = vmul.f32 %v9121, %v9284
      %v9470 = vmul.f32 %v9122, %v9284
      %v9471 = vmul.f32 %v9123, %v9289
      %v9472 = vmul.f32 %v9124, %v9289
      %v9473 = vmul.f32 %v9125, %v9289
      %v9474 = vmul.f32 %v9126, %v9289
      %v9475 = vmul.f32 %v9127, %v9289
      %v9476 = vmul.f32 %v9128, %v9289
      %v9477 = vmul.f32 %v9129, %v9289
      %v9478 = vmul.f32 %v9130, %v9294
      %v9479 = vmul.f32 %v9131, %v9294
      %v9480 = vmul.f32 %v9132, %v9294
      %v9481 = vmul.f32 %v9133, %v9294
      %v9482 = vmul.f32 %v9134, %v9294
      %v9483 = vmul.f32 %v9135, %v9294
      %v9484 = vmul.f32 %v9136, %v9294
      %v9485 = vmul.f32 %v9137, %v9299
      %v9486 = vmul.f32 %v9138, %v9299
      %v9487 = vmul.f32 %v9139, %v9299
      %v9488 = vmul.f32 %v9140, %v9299
      %v9489 = vmul.f32 %v9141, %v9299
      %v9490 = vmul.f32 %v9142, %v9299
      %v9491 = vmul.f32 %v9143, %v9299
      %v9492 = vmul.f32 %v9144, %v9304
      %v9493 = vmul.f32 %v9145, %v9304
      %v9494 = vmul.f32 %v9146, %v9304
      %v9495 = vmul.f32 %v9147, %v9304
      %v9496 = vmul.f32 %v9148, %v9304
      %v9497 = vmul.f32 %v9149, %v9304
      %v9498 = vmul.f32 %v9150, %v9304
      %v9499 = vmul.f32 %v9151, %v9309
      %v9500 = vmul.f32 %v9152, %v9309
      %v9501 = vmul.f32 %v9153, %v9309
      %v9502 = vmul.f32 %v9154, %v9309
      %v9503 = vmul.f32 %v9155, %v9309
      %v9504 = vmul.f32 %v9156, %v9309
      %v9505 = vmul.f32 %v9157, %v9309
      %v9506 = vmul.f32 %v9158, %v9314
      %v9507 = vmul.f32 %v9159, %v9314
      %v9508 = vmul.f32 %v9160, %v9314
      %v9509 = vmul.f32 %v9161, %v9314
      %v9510 = vmul.f32 %v9162, %v9314
      %v9511 = vmul.f32 %v9163, %v9314
      %v9512 = vmul.f32 %v9164, %v9314
      %v9513 = vmul.f32 %v9165, %v9319
      %v9514 = vmul.f32 %v9166, %v9319
      %v9515 = vmul.f32 %v9167, %v9319
      %v9516 = vmul.f32 %v9168, %v9319
      %v9517 = vmul.f32 %v9169, %v9319
      %v9518 = vmul.f32 %v9170, %v9319
      %v9519 = vmul.f32 %v9171, %v9319
      %v9520 = vmul.f32 %v9172, %v9324
      %v9521 = vmul.f32 %v9173, %v9324
      %v9522 = vmul.f32 %v9174, %v9324
      %v9523 = vmul.f32 %v9175, %v9324
      %v9524 = vmul.f32 %v9176, %v9324
      %v9525 = vmul.f32 %v9177, %v9324
      %v9526 = vmul.f32 %v9178, %v9324
      %v9527 = vmul.f32 %v9179, %v9329
      %v9528 = vmul.f32 %v9180, %v9329
      %v9529 = vmul.f32 %v9181, %v9329
      %v9530 = vmul.f32 %v9182, %v9329
      %v9531 = vmul.f32 %v9183, %v9329
      %v9532 = vmul.f32 %v9184, %v9329
      %v9533 = vmul.f32 %v9185, %v9329
      %9535 = vset.pattern.permute.xlu0 1
      %9536 = vperm.xlu0 %9535, %v8867
      %v9537 = vpop.permute.xlu0 %9536
      %9540 = vset.pattern.permute.xlu0 1
      %9541 = vperm.xlu0 %9540, %v8868
      %v9542 = vpop.permute.xlu0 %9541
      %9545 = vset.pattern.permute.xlu0 1
      %9546 = vperm.xlu0 %9545, %v8869
      %v9547 = vpop.permute.xlu0 %9546
      %9550 = vset.pattern.permute.xlu0 1
      %9551 = vperm.xlu0 %9550, %v8870
      %v9552 = vpop.permute.xlu0 %9551
      %9555 = vset.pattern.permute.xlu0 1
      %9556 = vperm.xlu0 %9555, %v8871
      %v9557 = vpop.permute.xlu0 %9556
      %9560 = vset.pattern.permute.xlu0 1
      %9561 = vperm.xlu0 %9560, %v8872
      %v9562 = vpop.permute.xlu0 %9561
      %9565 = vset.pattern.permute.xlu0 1
      %9566 = vperm.xlu0 %9565, %v8873
      %v9567 = vpop.permute.xlu0 %9566
      %9570 = vset.pattern.permute.xlu0 1
      %9571 = vperm.xlu0 %9570, %v8874
      %v9572 = vpop.permute.xlu0 %9571
      %9575 = vset.pattern.permute.xlu0 1
      %9576 = vperm.xlu0 %9575, %v8875
      %v9577 = vpop.permute.xlu0 %9576
      %9580 = vset.pattern.permute.xlu0 1
      %9581 = vperm.xlu0 %9580, %v8876
      %v9582 = vpop.permute.xlu0 %9581
      %9585 = vset.pattern.permute.xlu0 1
      %9586 = vperm.xlu0 %9585, %v8877
      %v9587 = vpop.permute.xlu0 %9586
      %9590 = vset.pattern.permute.xlu0 1
      %9591 = vperm.xlu0 %9590, %v8878
      %v9592 = vpop.permute.xlu0 %9591
      %9595 = vset.pattern.permute.xlu0 1
      %9596 = vperm.xlu0 %9595, %v8879
      %v9597 = vpop.permute.xlu0 %9596
      %9600 = vset.pattern.permute.xlu0 1
      %9601 = vperm.xlu0 %9600, %v8880
      %v9602 = vpop.permute.xlu0 %9601
      %9605 = vset.pattern.permute.xlu0 1
      %9606 = vperm.xlu0 %9605, %v8881
      %v9607 = vpop.permute.xlu0 %9606
      %9610 = vset.pattern.permute.xlu0 1
      %9611 = vperm.xlu0 %9610, %v8882
      %v9612 = vpop.permute.xlu0 %9611
      %9615 = vset.pattern.permute.xlu0 1
      %9616 = vperm.xlu0 %9615, %v8883
      %v9617 = vpop.permute.xlu0 %9616
      %9620 = vset.pattern.permute.xlu0 1
      %9621 = vperm.xlu0 %9620, %v8884
      %v9622 = vpop.permute.xlu0 %9621
      %9625 = vset.pattern.permute.xlu0 1
      %9626 = vperm.xlu0 %9625, %v8885
      %v9627 = vpop.permute.xlu0 %9626
      %9630 = vset.pattern.permute.xlu0 1
      %9631 = vperm.xlu0 %9630, %v8886
      %v9632 = vpop.permute.xlu0 %9631
      %9635 = vset.pattern.permute.xlu0 1
      %9636 = vperm.xlu0 %9635, %v8887
      %v9637 = vpop.permute.xlu0 %9636
      %9640 = vset.pattern.permute.xlu0 1
      %9641 = vperm.xlu0 %9640, %v8888
      %v9642 = vpop.permute.xlu0 %9641
      %9645 = vset.pattern.permute.xlu0 1
      %9646 = vperm.xlu0 %9645, %v8889
      %v9647 = vpop.permute.xlu0 %9646
      %9650 = vset.pattern.permute.xlu0 1
      %9651 = vperm.xlu0 %9650, %v8890
      %v9652 = vpop.permute.xlu0 %9651
      %9655 = vset.pattern.permute.xlu0 1
      %9656 = vperm.xlu0 %9655, %v8891
      %v9657 = vpop.permute.xlu0 %9656
      %9660 = vset.pattern.permute.xlu0 1
      %9661 = vperm.xlu0 %9660, %v8892
      %v9662 = vpop.permute.xlu0 %9661
      %9665 = vset.pattern.permute.xlu0 1
      %9666 = vperm.xlu0 %9665, %v8893
      %v9667 = vpop.permute.xlu0 %9666
      %9670 = vset.pattern.permute.xlu0 1
      %9671 = vperm.xlu0 %9670, %v8894
      %v9672 = vpop.permute.xlu0 %9671
      %9675 = vset.pattern.permute.xlu0 1
      %9676 = vperm.xlu0 %9675, %v8895
      %v9677 = vpop.permute.xlu0 %9676
      %v9679 = vadd.f32 %v9331, %v9537
      %v9680 = vadd.f32 %v9332, %v9537
      %v9681 = vadd.f32 %v9333, %v9537
      %v9682 = vadd.f32 %v9334, %v9537
      %v9683 = vadd.f32 %v9335, %v9537
      %v9684 = vadd.f32 %v9336, %v9537
      %v9685 = vadd.f32 %v9337, %v9537
      %v9686 = vadd.f32 %v9338, %v9542
      %v9687 = vadd.f32 %v9339, %v9542
      %v9688 = vadd.f32 %v9340, %v9542
      %v9689 = vadd.f32 %v9341, %v9542
      %v9690 = vadd.f32 %v9342, %v9542
      %v9691 = vadd.f32 %v9343, %v9542
      %v9692 = vadd.f32 %v9344, %v9542
      %v9693 = vadd.f32 %v9345, %v9547
      %v9694 = vadd.f32 %v9346, %v9547
      %v9695 = vadd.f32 %v9347, %v9547
      %v9696 = vadd.f32 %v9348, %v9547
      %v9697 = vadd.f32 %v9349, %v9547
      %v9698 = vadd.f32 %v9350, %v9547
      %v9699 = vadd.f32 %v9351, %v9547
      %v9700 = vadd.f32 %v9352, %v9552
      %v9701 = vadd.f32 %v9353, %v9552
      %v9702 = vadd.f32 %v9354, %v9552
      %v9703 = vadd.f32 %v9355, %v9552
      %v9704 = vadd.f32 %v9356, %v9552
      %v9705 = vadd.f32 %v9357, %v9552
      %v9706 = vadd.f32 %v9358, %v9552
      %v9707 = vadd.f32 %v9359, %v9557
      %v9708 = vadd.f32 %v9360, %v9557
      %v9709 = vadd.f32 %v9361, %v9557
      %v9710 = vadd.f32 %v9362, %v9557
      %v9711 = vadd.f32 %v9363, %v9557
      %v9712 = vadd.f32 %v9364, %v9557
      %v9713 = vadd.f32 %v9365, %v9557
      %v9714 = vadd.f32 %v9366, %v9562
      %v9715 = vadd.f32 %v9367, %v9562
      %v9716 = vadd.f32 %v9368, %v9562
      %v9717 = vadd.f32 %v9369, %v9562
      %v9718 = vadd.f32 %v9370, %v9562
      %v9719 = vadd.f32 %v9371, %v9562
      %v9720 = vadd.f32 %v9372, %v9562
      %v9721 = vadd.f32 %v9373, %v9567
      %v9722 = vadd.f32 %v9374, %v9567
      %v9723 = vadd.f32 %v9375, %v9567
      %v9724 = vadd.f32 %v9376, %v9567
      %v9725 = vadd.f32 %v9377, %v9567
      %v9726 = vadd.f32 %v9378, %v9567
      %v9727 = vadd.f32 %v9379, %v9567
      %v9728 = vadd.f32 %v9380, %v9572
      %v9729 = vadd.f32 %v9381, %v9572
      %v9730 = vadd.f32 %v9382, %v9572
      %v9731 = vadd.f32 %v9383, %v9572
      %v9732 = vadd.f32 %v9384, %v9572
      %v9733 = vadd.f32 %v9385, %v9572
      %v9734 = vadd.f32 %v9386, %v9572
      %v9735 = vadd.f32 %v9387, %v9577
      %v9736 = vadd.f32 %v9388, %v9577
      %v9737 = vadd.f32 %v9389, %v9577
      %v9738 = vadd.f32 %v9390, %v9577
      %v9739 = vadd.f32 %v9391, %v9577
      %v9740 = vadd.f32 %v9392, %v9577
      %v9741 = vadd.f32 %v9393, %v9577
      %v9742 = vadd.f32 %v9394, %v9582
      %v9743 = vadd.f32 %v9395, %v9582
      %v9744 = vadd.f32 %v9396, %v9582
      %v9745 = vadd.f32 %v9397, %v9582
      %v9746 = vadd.f32 %v9398, %v9582
      %v9747 = vadd.f32 %v9399, %v9582
      %v9748 = vadd.f32 %v9400, %v9582
      %v9749 = vadd.f32 %v9401, %v9587
      %v9750 = vadd.f32 %v9402, %v9587
      %v9751 = vadd.f32 %v9403, %v9587
      %v9752 = vadd.f32 %v9404, %v9587
      %v9753 = vadd.f32 %v9405, %v9587
      %v9754 = vadd.f32 %v9406, %v9587
      %v9755 = vadd.f32 %v9407, %v9587
      %v9756 = vadd.f32 %v9408, %v9592
      %v9757 = vadd.f32 %v9409, %v9592
      %v9758 = vadd.f32 %v9410, %v9592
      %v9759 = vadd.f32 %v9411, %v9592
      %v9760 = vadd.f32 %v9412, %v9592
      %v9761 = vadd.f32 %v9413, %v9592
      %v9762 = vadd.f32 %v9414, %v9592
      %v9763 = vadd.f32 %v9415, %v9597
      %v9764 = vadd.f32 %v9416, %v9597
      %v9765 = vadd.f32 %v9417, %v9597
      %v9766 = vadd.f32 %v9418, %v9597
      %v9767 = vadd.f32 %v9419, %v9597
      %v9768 = vadd.f32 %v9420, %v9597
      %v9769 = vadd.f32 %v9421, %v9597
      %v9770 = vadd.f32 %v9422, %v9602
      %v9771 = vadd.f32 %v9423, %v9602
      %v9772 = vadd.f32 %v9424, %v9602
      %v9773 = vadd.f32 %v9425, %v9602
      %v9774 = vadd.f32 %v9426, %v9602
      %v9775 = vadd.f32 %v9427, %v9602
      %v9776 = vadd.f32 %v9428, %v9602
      %v9777 = vadd.f32 %v9429, %v9607
      %v9778 = vadd.f32 %v9430, %v9607
      %v9779 = vadd.f32 %v9431, %v9607
      %v9780 = vadd.f32 %v9432, %v9607
      %v9781 = vadd.f32 %v9433, %v9607
      %v9782 = vadd.f32 %v9434, %v9607
      %v9783 = vadd.f32 %v9435, %v9607
      %v9784 = vadd.f32 %v9436, %v9612
      %v9785 = vadd.f32 %v9437, %v9612
      %v9786 = vadd.f32 %v9438, %v9612
      %v9787 = vadd.f32 %v9439, %v9612
      %v9788 = vadd.f32 %v9440, %v9612
      %v9789 = vadd.f32 %v9441, %v9612
      %v9790 = vadd.f32 %v9442, %v9612
      %v9791 = vadd.f32 %v9443, %v9617
      %v9792 = vadd.f32 %v9444, %v9617
      %v9793 = vadd.f32 %v9445, %v9617
      %v9794 = vadd.f32 %v9446, %v9617
      %v9795 = vadd.f32 %v9447, %v9617
      %v9796 = vadd.f32 %v9448, %v9617
      %v9797 = vadd.f32 %v9449, %v9617
      %v9798 = vadd.f32 %v9450, %v9622
      %v9799 = vadd.f32 %v9451, %v9622
      %v9800 = vadd.f32 %v9452, %v9622
      %v9801 = vadd.f32 %v9453, %v9622
      %v9802 = vadd.f32 %v9454, %v9622
      %v9803 = vadd.f32 %v9455, %v9622
      %v9804 = vadd.f32 %v9456, %v9622
      %v9805 = vadd.f32 %v9457, %v9627
      %v9806 = vadd.f32 %v9458, %v9627
      %v9807 = vadd.f32 %v9459, %v9627
      %v9808 = vadd.f32 %v9460, %v9627
      %v9809 = vadd.f32 %v9461, %v9627
      %v9810 = vadd.f32 %v9462, %v9627
      %v9811 = vadd.f32 %v9463, %v9627
      %v9812 = vadd.f32 %v9464, %v9632
      %v9813 = vadd.f32 %v9465, %v9632
      %v9814 = vadd.f32 %v9466, %v9632
      %v9815 = vadd.f32 %v9467, %v9632
      %v9816 = vadd.f32 %v9468, %v9632
      %v9817 = vadd.f32 %v9469, %v9632
      %v9818 = vadd.f32 %v9470, %v9632
      %v9819 = vadd.f32 %v9471, %v9637
      %v9820 = vadd.f32 %v9472, %v9637
      %v9821 = vadd.f32 %v9473, %v9637
      %v9822 = vadd.f32 %v9474, %v9637
      %v9823 = vadd.f32 %v9475, %v9637
      %v9824 = vadd.f32 %v9476, %v9637
      %v9825 = vadd.f32 %v9477, %v9637
      %v9826 = vadd.f32 %v9478, %v9642
      %v9827 = vadd.f32 %v9479, %v9642
      %v9828 = vadd.f32 %v9480, %v9642
      %v9829 = vadd.f32 %v9481, %v9642
      %v9830 = vadd.f32 %v9482, %v9642
      %v9831 = vadd.f32 %v9483, %v9642
      %v9832 = vadd.f32 %v9484, %v9642
      %v9833 = vadd.f32 %v9485, %v9647
      %v9834 = vadd.f32 %v9486, %v9647
      %v9835 = vadd.f32 %v9487, %v9647
      %v9836 = vadd.f32 %v9488, %v9647
      %v9837 = vadd.f32 %v9489, %v9647
      %v9838 = vadd.f32 %v9490, %v9647
      %v9839 = vadd.f32 %v9491, %v9647
      %v9840 = vadd.f32 %v9492, %v9652
      %v9841 = vadd.f32 %v9493, %v9652
      %v9842 = vadd.f32 %v9494, %v9652
      %v9843 = vadd.f32 %v9495, %v9652
      %v9844 = vadd.f32 %v9496, %v9652
      %v9845 = vadd.f32 %v9497, %v9652
      %v9846 = vadd.f32 %v9498, %v9652
      %v9847 = vadd.f32 %v9499, %v9657
      %v9848 = vadd.f32 %v9500, %v9657
      %v9849 = vadd.f32 %v9501, %v9657
      %v9850 = vadd.f32 %v9502, %v9657
      %v9851 = vadd.f32 %v9503, %v9657
      %v9852 = vadd.f32 %v9504, %v9657
      %v9853 = vadd.f32 %v9505, %v9657
      %v9854 = vadd.f32 %v9506, %v9662
      %v9855 = vadd.f32 %v9507, %v9662
      %v9856 = vadd.f32 %v9508, %v9662
      %v9857 = vadd.f32 %v9509, %v9662
      %v9858 = vadd.f32 %v9510, %v9662
      %v9859 = vadd.f32 %v9511, %v9662
      %v9860 = vadd.f32 %v9512, %v9662
      %v9861 = vadd.f32 %v9513, %v9667
      %v9862 = vadd.f32 %v9514, %v9667
      %v9863 = vadd.f32 %v9515, %v9667
      %v9864 = vadd.f32 %v9516, %v9667
      %v9865 = vadd.f32 %v9517, %v9667
      %v9866 = vadd.f32 %v9518, %v9667
      %v9867 = vadd.f32 %v9519, %v9667
      %v9868 = vadd.f32 %v9520, %v9672
      %v9869 = vadd.f32 %v9521, %v9672
      %v9870 = vadd.f32 %v9522, %v9672
      %v9871 = vadd.f32 %v9523, %v9672
      %v9872 = vadd.f32 %v9524, %v9672
      %v9873 = vadd.f32 %v9525, %v9672
      %v9874 = vadd.f32 %v9526, %v9672
      %v9875 = vadd.f32 %v9527, %v9677
      %v9876 = vadd.f32 %v9528, %v9677
      %v9877 = vadd.f32 %v9529, %v9677
      %v9878 = vadd.f32 %v9530, %v9677
      %v9879 = vadd.f32 %v9531, %v9677
      %v9880 = vadd.f32 %v9532, %v9677
      %v9881 = vadd.f32 %v9533, %v9677
      %v9882 = vmax.f32 %v9679, 0.0
      %v9883 = vmax.f32 %v9680, 0.0
      %v9884 = vmax.f32 %v9681, 0.0
      %v9885 = vmax.f32 %v9682, 0.0
      %v9886 = vmax.f32 %v9683, 0.0
      %v9887 = vmax.f32 %v9684, 0.0
      %v9888 = vmax.f32 %v9685, 0.0
      %v9889 = vmax.f32 %v9686, 0.0
      %v9890 = vmax.f32 %v9687, 0.0
      %v9891 = vmax.f32 %v9688, 0.0
      %v9892 = vmax.f32 %v9689, 0.0
      %v9893 = vmax.f32 %v9690, 0.0
      %v9894 = vmax.f32 %v9691, 0.0
      %v9895 = vmax.f32 %v9692, 0.0
      %v9896 = vmax.f32 %v9693, 0.0
      %v9897 = vmax.f32 %v9694, 0.0
      %v9898 = vmax.f32 %v9695, 0.0
      %v9899 = vmax.f32 %v9696, 0.0
      %v9900 = vmax.f32 %v9697, 0.0
      %v9901 = vmax.f32 %v9698, 0.0
      %v9902 = vmax.f32 %v9699, 0.0
      %v9903 = vmax.f32 %v9700, 0.0
      %v9904 = vmax.f32 %v9701, 0.0
      %v9905 = vmax.f32 %v9702, 0.0
      %v9906 = vmax.f32 %v9703, 0.0
      %v9907 = vmax.f32 %v9704, 0.0
      %v9908 = vmax.f32 %v9705, 0.0
      %v9909 = vmax.f32 %v9706, 0.0
      %v9910 = vmax.f32 %v9707, 0.0
      %v9911 = vmax.f32 %v9708, 0.0
      %v9912 = vmax.f32 %v9709, 0.0
      %v9913 = vmax.f32 %v9710, 0.0
      %v9914 = vmax.f32 %v9711, 0.0
      %v9915 = vmax.f32 %v9712, 0.0
      %v9916 = vmax.f32 %v9713, 0.0
      %v9917 = vmax.f32 %v9714, 0.0
      %v9918 = vmax.f32 %v9715, 0.0
      %v9919 = vmax.f32 %v9716, 0.0
      %v9920 = vmax.f32 %v9717, 0.0
      %v9921 = vmax.f32 %v9718, 0.0
      %v9922 = vmax.f32 %v9719, 0.0
      %v9923 = vmax.f32 %v9720, 0.0
      %v9924 = vmax.f32 %v9721, 0.0
      %v9925 = vmax.f32 %v9722, 0.0
      %v9926 = vmax.f32 %v9723, 0.0
      %v9927 = vmax.f32 %v9724, 0.0
      %v9928 = vmax.f32 %v9725, 0.0
      %v9929 = vmax.f32 %v9726, 0.0
      %v9930 = vmax.f32 %v9727, 0.0
      %v9931 = vmax.f32 %v9728, 0.0
      %v9932 = vmax.f32 %v9729, 0.0
      %v9933 = vmax.f32 %v9730, 0.0
      %v9934 = vmax.f32 %v9731, 0.0
      %v9935 = vmax.f32 %v9732, 0.0
      %v9936 = vmax.f32 %v9733, 0.0
      %v9937 = vmax.f32 %v9734, 0.0
      %v9938 = vmax.f32 %v9735, 0.0
      %v9939 = vmax.f32 %v9736, 0.0
      %v9940 = vmax.f32 %v9737, 0.0
      %v9941 = vmax.f32 %v9738, 0.0
      %v9942 = vmax.f32 %v9739, 0.0
      %v9943 = vmax.f32 %v9740, 0.0
      %v9944 = vmax.f32 %v9741, 0.0
      %v9945 = vmax.f32 %v9742, 0.0
      %v9946 = vmax.f32 %v9743, 0.0
      %v9947 = vmax.f32 %v9744, 0.0
      %v9948 = vmax.f32 %v9745, 0.0
      %v9949 = vmax.f32 %v9746, 0.0
      %v9950 = vmax.f32 %v9747, 0.0
      %v9951 = vmax.f32 %v9748, 0.0
      %v9952 = vmax.f32 %v9749, 0.0
      %v9953 = vmax.f32 %v9750, 0.0
      %v9954 = vmax.f32 %v9751, 0.0
      %v9955 = vmax.f32 %v9752, 0.0
      %v9956 = vmax.f32 %v9753, 0.0
      %v9957 = vmax.f32 %v9754, 0.0
      %v9958 = vmax.f32 %v9755, 0.0
      %v9959 = vmax.f32 %v9756, 0.0
      %v9960 = vmax.f32 %v9757, 0.0
      %v9961 = vmax.f32 %v9758, 0.0
      %v9962 = vmax.f32 %v9759, 0.0
      %v9963 = vmax.f32 %v9760, 0.0
      %v9964 = vmax.f32 %v9761, 0.0
      %v9965 = vmax.f32 %v9762, 0.0
      %v9966 = vmax.f32 %v9763, 0.0
      %v9967 = vmax.f32 %v9764, 0.0
      %v9968 = vmax.f32 %v9765, 0.0
      %v9969 = vmax.f32 %v9766, 0.0
      %v9970 = vmax.f32 %v9767, 0.0
      %v9971 = vmax.f32 %v9768, 0.0
      %v9972 = vmax.f32 %v9769, 0.0
      %v9973 = vmax.f32 %v9770, 0.0
      %v9974 = vmax.f32 %v9771, 0.0
      %v9975 = vmax.f32 %v9772, 0.0
      %v9976 = vmax.f32 %v9773, 0.0
      %v9977 = vmax.f32 %v9774, 0.0
      %v9978 = vmax.f32 %v9775, 0.0
      %v9979 = vmax.f32 %v9776, 0.0
      %v9980 = vmax.f32 %v9777, 0.0
      %v9981 = vmax.f32 %v9778, 0.0
      %v9982 = vmax.f32 %v9779, 0.0
      %v9983 = vmax.f32 %v9780, 0.0
      %v9984 = vmax.f32 %v9781, 0.0
      %v9985 = vmax.f32 %v9782, 0.0
      %v9986 = vmax.f32 %v9783, 0.0
      %v9987 = vmax.f32 %v9784, 0.0
      %v9988 = vmax.f32 %v9785, 0.0
      %v9989 = vmax.f32 %v9786, 0.0
      %v9990 = vmax.f32 %v9787, 0.0
      %v9991 = vmax.f32 %v9788, 0.0
      %v9992 = vmax.f32 %v9789, 0.0
      %v9993 = vmax.f32 %v9790, 0.0
      %v9994 = vmax.f32 %v9791, 0.0
      %v9995 = vmax.f32 %v9792, 0.0
      %v9996 = vmax.f32 %v9793, 0.0
      %v9997 = vmax.f32 %v9794, 0.0
      %v9998 = vmax.f32 %v9795, 0.0
      %v9999 = vmax.f32 %v9796, 0.0
      %v10000 = vmax.f32 %v9797, 0.0
      %v10001 = vmax.f32 %v9798, 0.0
      %v10002 = vmax.f32 %v9799, 0.0
      %v10003 = vmax.f32 %v9800, 0.0
      %v10004 = vmax.f32 %v9801, 0.0
      %v10005 = vmax.f32 %v9802, 0.0
      %v10006 = vmax.f32 %v9803, 0.0
      %v10007 = vmax.f32 %v9804, 0.0
      %v10008 = vmax.f32 %v9805, 0.0
      %v10009 = vmax.f32 %v9806, 0.0
      %v10010 = vmax.f32 %v9807, 0.0
      %v10011 = vmax.f32 %v9808, 0.0
      %v10012 = vmax.f32 %v9809, 0.0
      %v10013 = vmax.f32 %v9810, 0.0
      %v10014 = vmax.f32 %v9811, 0.0
      %v10015 = vmax.f32 %v9812, 0.0
      %v10016 = vmax.f32 %v9813, 0.0
      %v10017 = vmax.f32 %v9814, 0.0
      %v10018 = vmax.f32 %v9815, 0.0
      %v10019 = vmax.f32 %v9816, 0.0
      %v10020 = vmax.f32 %v9817, 0.0
      %v10021 = vmax.f32 %v9818, 0.0
      %v10022 = vmax.f32 %v9819, 0.0
      %v10023 = vmax.f32 %v9820, 0.0
      %v10024 = vmax.f32 %v9821, 0.0
      %v10025 = vmax.f32 %v9822, 0.0
      %v10026 = vmax.f32 %v9823, 0.0
      %v10027 = vmax.f32 %v9824, 0.0
      %v10028 = vmax.f32 %v9825, 0.0
      %v10029 = vmax.f32 %v9826, 0.0
      %v10030 = vmax.f32 %v9827, 0.0
      %v10031 = vmax.f32 %v9828, 0.0
      %v10032 = vmax.f32 %v9829, 0.0
      %v10033 = vmax.f32 %v9830, 0.0
      %v10034 = vmax.f32 %v9831, 0.0
      %v10035 = vmax.f32 %v9832, 0.0
      %v10036 = vmax.f32 %v9833, 0.0
      %v10037 = vmax.f32 %v9834, 0.0
      %v10038 = vmax.f32 %v9835, 0.0
      %v10039 = vmax.f32 %v9836, 0.0
      %v10040 = vmax.f32 %v9837, 0.0
      %v10041 = vmax.f32 %v9838, 0.0
      %v10042 = vmax.f32 %v9839, 0.0
      %v10043 = vmax.f32 %v9840, 0.0
      %v10044 = vmax.f32 %v9841, 0.0
      %v10045 = vmax.f32 %v9842, 0.0
      %v10046 = vmax.f32 %v9843, 0.0
      %v10047 = vmax.f32 %v9844, 0.0
      %v10048 = vmax.f32 %v9845, 0.0
      %v10049 = vmax.f32 %v9846, 0.0
      %v10050 = vmax.f32 %v9847, 0.0
      %v10051 = vmax.f32 %v9848, 0.0
      %v10052 = vmax.f32 %v9849, 0.0
      %v10053 = vmax.f32 %v9850, 0.0
      %v10054 = vmax.f32 %v9851, 0.0
      %v10055 = vmax.f32 %v9852, 0.0
      %v10056 = vmax.f32 %v9853, 0.0
      %v10057 = vmax.f32 %v9854, 0.0
      %v10058 = vmax.f32 %v9855, 0.0
      %v10059 = vmax.f32 %v9856, 0.0
      %v10060 = vmax.f32 %v9857, 0.0
      %v10061 = vmax.f32 %v9858, 0.0
      %v10062 = vmax.f32 %v9859, 0.0
      %v10063 = vmax.f32 %v9860, 0.0
      %v10064 = vmax.f32 %v9861, 0.0
      %v10065 = vmax.f32 %v9862, 0.0
      %v10066 = vmax.f32 %v9863, 0.0
      %v10067 = vmax.f32 %v9864, 0.0
      %v10068 = vmax.f32 %v9865, 0.0
      %v10069 = vmax.f32 %v9866, 0.0
      %v10070 = vmax.f32 %v9867, 0.0
      %v10071 = vmax.f32 %v9868, 0.0
      %v10072 = vmax.f32 %v9869, 0.0
      %v10073 = vmax.f32 %v9870, 0.0
      %v10074 = vmax.f32 %v9871, 0.0
      %v10075 = vmax.f32 %v9872, 0.0
      %v10076 = vmax.f32 %v9873, 0.0
      %v10077 = vmax.f32 %v9874, 0.0
      %v10078 = vmax.f32 %v9875, 0.0
      %v10079 = vmax.f32 %v9876, 0.0
      %v10080 = vmax.f32 %v9877, 0.0
      %v10081 = vmax.f32 %v9878, 0.0
      %v10082 = vmax.f32 %v9879, 0.0
      %v10083 = vmax.f32 %v9880, 0.0
      %v10084 = vmax.f32 %v9881, 0.0
      %10085 = vst [vmem:[%s199] sm:$0xff] %v9882
      %10086 = vst [vmem:[%s199 + $0x8] sm:$0xff] %v9883
      %10087 = vst [vmem:[%s199 + $0x10] sm:$0xff] %v9884
      %10088 = vst [vmem:[%s199 + $0x18] sm:$0xff] %v9885
      %10089 = vst [vmem:[%s199 + $0x20] sm:$0xff] %v9886
      %10090 = vst [vmem:[%s199 + $0x28] sm:$0xff] %v9887
      %10091 = vst.msk [vmem:[%s199 + $0x30] sm:$0xff] %vm8030, %v9888
      %10092 = vst [vmem:[%s199 + $0x38] sm:$0xff] %v9889
      %10093 = vst [vmem:[%s199 + $0x40] sm:$0xff] %v9890
      %10094 = vst [vmem:[%s199 + $0x48] sm:$0xff] %v9891
      %10095 = vst [vmem:[%s199 + $0x50] sm:$0xff] %v9892
      %10096 = vst [vmem:[%s199 + $0x58] sm:$0xff] %v9893
      %10097 = vst [vmem:[%s199 + $0x60] sm:$0xff] %v9894
      %10098 = vst.msk [vmem:[%s199 + $0x68] sm:$0xff] %vm8030, %v9895
      %10099 = vst [vmem:[%s199 + $0x70] sm:$0xff] %v9896
      %10100 = vst [vmem:[%s199 + $0x78] sm:$0xff] %v9897
      %10101 = vst [vmem:[%s199 + $0x80] sm:$0xff] %v9898
      %10102 = vst [vmem:[%s199 + $0x88] sm:$0xff] %v9899
      %10103 = vst [vmem:[%s199 + $0x90] sm:$0xff] %v9900
      %10104 = vst [vmem:[%s199 + $0x98] sm:$0xff] %v9901
      %10105 = vst.msk [vmem:[%s199 + $0xa0] sm:$0xff] %vm8030, %v9902
      %10106 = vst [vmem:[%s199 + $0xa8] sm:$0xff] %v9903
      %10107 = vst [vmem:[%s199 + $0xb0] sm:$0xff] %v9904
      %10108 = vst [vmem:[%s199 + $0xb8] sm:$0xff] %v9905
      %10109 = vst [vmem:[%s199 + $0xc0] sm:$0xff] %v9906
      %10110 = vst [vmem:[%s199 + $0xc8] sm:$0xff] %v9907
      %10111 = vst [vmem:[%s199 + $0xd0] sm:$0xff] %v9908
      %10112 = vst.msk [vmem:[%s199 + $0xd8] sm:$0xff] %vm8030, %v9909
      %10113 = vst [vmem:[%s199 + $0xe0] sm:$0xff] %v9910
      %10114 = vst [vmem:[%s199 + $0xe8] sm:$0xff] %v9911
      %10115 = vst [vmem:[%s199 + $0xf0] sm:$0xff] %v9912
      %10116 = vst [vmem:[%s199 + $0xf8] sm:$0xff] %v9913
      %10117 = vst [vmem:[%s199 + $0x100] sm:$0xff] %v9914
      %10118 = vst [vmem:[%s199 + $0x108] sm:$0xff] %v9915
      %10119 = vst.msk [vmem:[%s199 + $0x110] sm:$0xff] %vm8030, %v9916
      %10120 = vst [vmem:[%s199 + $0x118] sm:$0xff] %v9917
      %10121 = vst [vmem:[%s199 + $0x120] sm:$0xff] %v9918
      %10122 = vst [vmem:[%s199 + $0x128] sm:$0xff] %v9919
      %10123 = vst [vmem:[%s199 + $0x130] sm:$0xff] %v9920
      %10124 = vst [vmem:[%s199 + $0x138] sm:$0xff] %v9921
      %10125 = vst [vmem:[%s199 + $0x140] sm:$0xff] %v9922
      %10126 = vst.msk [vmem:[%s199 + $0x148] sm:$0xff] %vm8030, %v9923
      %10127 = vst [vmem:[%s199 + $0x150] sm:$0xff] %v9924
      %10128 = vst [vmem:[%s199 + $0x158] sm:$0xff] %v9925
      %10129 = vst [vmem:[%s199 + $0x160] sm:$0xff] %v9926
      %10130 = vst [vmem:[%s199 + $0x168] sm:$0xff] %v9927
      %10131 = vst [vmem:[%s199 + $0x170] sm:$0xff] %v9928
      %10132 = vst [vmem:[%s199 + $0x178] sm:$0xff] %v9929
      %10133 = vst.msk [vmem:[%s199 + $0x180] sm:$0xff] %vm8030, %v9930
      %10134 = vst [vmem:[%s199 + $0x188] sm:$0xff] %v9931
      %10135 = vst [vmem:[%s199 + $0x190] sm:$0xff] %v9932
      %10136 = vst [vmem:[%s199 + $0x198] sm:$0xff] %v9933
      %10137 = vst [vmem:[%s199 + $0x1a0] sm:$0xff] %v9934
      %10138 = vst [vmem:[%s199 + $0x1a8] sm:$0xff] %v9935
      %10139 = vst [vmem:[%s199 + $0x1b0] sm:$0xff] %v9936
      %10140 = vst.msk [vmem:[%s199 + $0x1b8] sm:$0xff] %vm8030, %v9937
      %10141 = vst [vmem:[%s199 + $0x1c0] sm:$0xff] %v9938
      %10142 = vst [vmem:[%s199 + $0x1c8] sm:$0xff] %v9939
      %10143 = vst [vmem:[%s199 + $0x1d0] sm:$0xff] %v9940
      %10144 = vst [vmem:[%s199 + $0x1d8] sm:$0xff] %v9941
      %10145 = vst [vmem:[%s199 + $0x1e0] sm:$0xff] %v9942
      %10146 = vst [vmem:[%s199 + $0x1e8] sm:$0xff] %v9943
      %10147 = vst.msk [vmem:[%s199 + $0x1f0] sm:$0xff] %vm8030, %v9944
      %10148 = vst [vmem:[%s199 + $0x1f8] sm:$0xff] %v9945
      %10149 = vst [vmem:[%s199 + $0x200] sm:$0xff] %v9946
      %10150 = vst [vmem:[%s199 + $0x208] sm:$0xff] %v9947
      %10151 = vst [vmem:[%s199 + $0x210] sm:$0xff] %v9948
      %10152 = vst [vmem:[%s199 + $0x218] sm:$0xff] %v9949
      %10153 = vst [vmem:[%s199 + $0x220] sm:$0xff] %v9950
      %10154 = vst.msk [vmem:[%s199 + $0x228] sm:$0xff] %vm8030, %v9951
      %10155 = vst [vmem:[%s199 + $0x230] sm:$0xff] %v9952
      %10156 = vst [vmem:[%s199 + $0x238] sm:$0xff] %v9953
      %10157 = vst [vmem:[%s199 + $0x240] sm:$0xff] %v9954
      %10158 = vst [vmem:[%s199 + $0x248] sm:$0xff] %v9955
      %10159 = vst [vmem:[%s199 + $0x250] sm:$0xff] %v9956
      %10160 = vst [vmem:[%s199 + $0x258] sm:$0xff] %v9957
      %10161 = vst.msk [vmem:[%s199 + $0x260] sm:$0xff] %vm8030, %v9958
      %10162 = vst [vmem:[%s199 + $0x268] sm:$0xff] %v9959
      %10163 = vst [vmem:[%s199 + $0x270] sm:$0xff] %v9960
      %10164 = vst [vmem:[%s199 + $0x278] sm:$0xff] %v9961
      %10165 = vst [vmem:[%s199 + $0x280] sm:$0xff] %v9962
      %10166 = vst [vmem:[%s199 + $0x288] sm:$0xff] %v9963
      %10167 = vst [vmem:[%s199 + $0x290] sm:$0xff] %v9964
      %10168 = vst.msk [vmem:[%s199 + $0x298] sm:$0xff] %vm8030, %v9965
      %10169 = vst [vmem:[%s199 + $0x2a0] sm:$0xff] %v9966
      %10170 = vst [vmem:[%s199 + $0x2a8] sm:$0xff] %v9967
      %10171 = vst [vmem:[%s199 + $0x2b0] sm:$0xff] %v9968
      %10172 = vst [vmem:[%s199 + $0x2b8] sm:$0xff] %v9969
      %10173 = vst [vmem:[%s199 + $0x2c0] sm:$0xff] %v9970
      %10174 = vst [vmem:[%s199 + $0x2c8] sm:$0xff] %v9971
      %10175 = vst.msk [vmem:[%s199 + $0x2d0] sm:$0xff] %vm8030, %v9972
      %10176 = vst [vmem:[%s199 + $0x2d8] sm:$0xff] %v9973
      %10177 = vst [vmem:[%s199 + $0x2e0] sm:$0xff] %v9974
      %10178 = vst [vmem:[%s199 + $0x2e8] sm:$0xff] %v9975
      %10179 = vst [vmem:[%s199 + $0x2f0] sm:$0xff] %v9976
      %10180 = vst [vmem:[%s199 + $0x2f8] sm:$0xff] %v9977
      %10181 = vst [vmem:[%s199 + $0x300] sm:$0xff] %v9978
      %10182 = vst.msk [vmem:[%s199 + $0x308] sm:$0xff] %vm8030, %v9979
      %10183 = vst [vmem:[%s199 + $0x310] sm:$0xff] %v9980
      %10184 = vst [vmem:[%s199 + $0x318] sm:$0xff] %v9981
      %10185 = vst [vmem:[%s199 + $0x320] sm:$0xff] %v9982
      %10186 = vst [vmem:[%s199 + $0x328] sm:$0xff] %v9983
      %10187 = vst [vmem:[%s199 + $0x330] sm:$0xff] %v9984
      %10188 = vst [vmem:[%s199 + $0x338] sm:$0xff] %v9985
      %10189 = vst.msk [vmem:[%s199 + $0x340] sm:$0xff] %vm8030, %v9986
      %10190 = vst [vmem:[%s199 + $0x348] sm:$0xff] %v9987
      %10191 = vst [vmem:[%s199 + $0x350] sm:$0xff] %v9988
      %10192 = vst [vmem:[%s199 + $0x358] sm:$0xff] %v9989
      %10193 = vst [vmem:[%s199 + $0x360] sm:$0xff] %v9990
      %10194 = vst [vmem:[%s199 + $0x368] sm:$0xff] %v9991
      %10195 = vst [vmem:[%s199 + $0x370] sm:$0xff] %v9992
      %10196 = vst.msk [vmem:[%s199 + $0x378] sm:$0xff] %vm8030, %v9993
      %10197 = vst [vmem:[%s199 + $0x380] sm:$0xff] %v9994
      %10198 = vst [vmem:[%s199 + $0x388] sm:$0xff] %v9995
      %10199 = vst [vmem:[%s199 + $0x390] sm:$0xff] %v9996
      %10200 = vst [vmem:[%s199 + $0x398] sm:$0xff] %v9997
      %10201 = vst [vmem:[%s199 + $0x3a0] sm:$0xff] %v9998
      %10202 = vst [vmem:[%s199 + $0x3a8] sm:$0xff] %v9999
      %10203 = vst.msk [vmem:[%s199 + $0x3b0] sm:$0xff] %vm8030, %v10000
      %10204 = vst [vmem:[%s199 + $0x3b8] sm:$0xff] %v10001
      %10205 = vst [vmem:[%s199 + $0x3c0] sm:$0xff] %v10002
      %10206 = vst [vmem:[%s199 + $0x3c8] sm:$0xff] %v10003
      %10207 = vst [vmem:[%s199 + $0x3d0] sm:$0xff] %v10004
      %10208 = vst [vmem:[%s199 + $0x3d8] sm:$0xff] %v10005
      %10209 = vst [vmem:[%s199 + $0x3e0] sm:$0xff] %v10006
      %10210 = vst.msk [vmem:[%s199 + $0x3e8] sm:$0xff] %vm8030, %v10007
      %10211 = vst [vmem:[%s199 + $0x3f0] sm:$0xff] %v10008
      %10212 = vst [vmem:[%s199 + $0x3f8] sm:$0xff] %v10009
      %10213 = vst [vmem:[%s199 + $0x400] sm:$0xff] %v10010
      %10214 = vst [vmem:[%s199 + $0x408] sm:$0xff] %v10011
      %10215 = vst [vmem:[%s199 + $0x410] sm:$0xff] %v10012
      %10216 = vst [vmem:[%s199 + $0x418] sm:$0xff] %v10013
      %10217 = vst.msk [vmem:[%s199 + $0x420] sm:$0xff] %vm8030, %v10014
      %10218 = vst [vmem:[%s199 + $0x428] sm:$0xff] %v10015
      %10219 = vst [vmem:[%s199 + $0x430] sm:$0xff] %v10016
      %10220 = vst [vmem:[%s199 + $0x438] sm:$0xff] %v10017
      %10221 = vst [vmem:[%s199 + $0x440] sm:$0xff] %v10018
      %10222 = vst [vmem:[%s199 + $0x448] sm:$0xff] %v10019
      %10223 = vst [vmem:[%s199 + $0x450] sm:$0xff] %v10020
      %10224 = vst.msk [vmem:[%s199 + $0x458] sm:$0xff] %vm8030, %v10021
      %10225 = vst [vmem:[%s199 + $0x460] sm:$0xff] %v10022
      %10226 = vst [vmem:[%s199 + $0x468] sm:$0xff] %v10023
      %10227 = vst [vmem:[%s199 + $0x470] sm:$0xff] %v10024
      %10228 = vst [vmem:[%s199 + $0x478] sm:$0xff] %v10025
      %10229 = vst [vmem:[%s199 + $0x480] sm:$0xff] %v10026
      %10230 = vst [vmem:[%s199 + $0x488] sm:$0xff] %v10027
      %10231 = vst.msk [vmem:[%s199 + $0x490] sm:$0xff] %vm8030, %v10028
      %10232 = vst [vmem:[%s199 + $0x498] sm:$0xff] %v10029
      %10233 = vst [vmem:[%s199 + $0x4a0] sm:$0xff] %v10030
      %10234 = vst [vmem:[%s199 + $0x4a8] sm:$0xff] %v10031
      %10235 = vst [vmem:[%s199 + $0x4b0] sm:$0xff] %v10032
      %10236 = vst [vmem:[%s199 + $0x4b8] sm:$0xff] %v10033
      %10237 = vst [vmem:[%s199 + $0x4c0] sm:$0xff] %v10034
      %10238 = vst.msk [vmem:[%s199 + $0x4c8] sm:$0xff] %vm8030, %v10035
      %10239 = vst [vmem:[%s199 + $0x4d0] sm:$0xff] %v10036
      %10240 = vst [vmem:[%s199 + $0x4d8] sm:$0xff] %v10037
      %10241 = vst [vmem:[%s199 + $0x4e0] sm:$0xff] %v10038
      %10242 = vst [vmem:[%s199 + $0x4e8] sm:$0xff] %v10039
      %10243 = vst [vmem:[%s199 + $0x4f0] sm:$0xff] %v10040
      %10244 = vst [vmem:[%s199 + $0x4f8] sm:$0xff] %v10041
      %10245 = vst.msk [vmem:[%s199 + $0x500] sm:$0xff] %vm8030, %v10042
      %10246 = vst [vmem:[%s199 + $0x508] sm:$0xff] %v10043
      %10247 = vst [vmem:[%s199 + $0x510] sm:$0xff] %v10044
      %10248 = vst [vmem:[%s199 + $0x518] sm:$0xff] %v10045
      %10249 = vst [vmem:[%s199 + $0x520] sm:$0xff] %v10046
      %10250 = vst [vmem:[%s199 + $0x528] sm:$0xff] %v10047
      %10251 = vst [vmem:[%s199 + $0x530] sm:$0xff] %v10048
      %10252 = vst.msk [vmem:[%s199 + $0x538] sm:$0xff] %vm8030, %v10049
      %10253 = vst [vmem:[%s199 + $0x540] sm:$0xff] %v10050
      %10254 = vst [vmem:[%s199 + $0x548] sm:$0xff] %v10051
      %10255 = vst [vmem:[%s199 + $0x550] sm:$0xff] %v10052
      %10256 = vst [vmem:[%s199 + $0x558] sm:$0xff] %v10053
      %10257 = vst [vmem:[%s199 + $0x560] sm:$0xff] %v10054
      %10258 = vst [vmem:[%s199 + $0x568] sm:$0xff] %v10055
      %10259 = vst.msk [vmem:[%s199 + $0x570] sm:$0xff] %vm8030, %v10056
      %10260 = vst [vmem:[%s199 + $0x578] sm:$0xff] %v10057
      %10261 = vst [vmem:[%s199 + $0x580] sm:$0xff] %v10058
      %10262 = vst [vmem:[%s199 + $0x588] sm:$0xff] %v10059
      %10263 = vst [vmem:[%s199 + $0x590] sm:$0xff] %v10060
      %10264 = vst [vmem:[%s199 + $0x598] sm:$0xff] %v10061
      %10265 = vst [vmem:[%s199 + $0x5a0] sm:$0xff] %v10062
      %10266 = vst.msk [vmem:[%s199 + $0x5a8] sm:$0xff] %vm8030, %v10063
      %10267 = vst [vmem:[%s199 + $0x5b0] sm:$0xff] %v10064
      %10268 = vst [vmem:[%s199 + $0x5b8] sm:$0xff] %v10065
      %10269 = vst [vmem:[%s199 + $0x5c0] sm:$0xff] %v10066
      %10270 = vst [vmem:[%s199 + $0x5c8] sm:$0xff] %v10067
      %10271 = vst [vmem:[%s199 + $0x5d0] sm:$0xff] %v10068
      %10272 = vst [vmem:[%s199 + $0x5d8] sm:$0xff] %v10069
      %10273 = vst.msk [vmem:[%s199 + $0x5e0] sm:$0xff] %vm8030, %v10070
      %10274 = vst [vmem:[%s199 + $0x5e8] sm:$0xff] %v10071
      %10275 = vst [vmem:[%s199 + $0x5f0] sm:$0xff] %v10072
      %10276 = vst [vmem:[%s199 + $0x5f8] sm:$0xff] %v10073
      %10277 = vst [vmem:[%s199 + $0x600] sm:$0xff] %v10074
      %10278 = vst [vmem:[%s199 + $0x608] sm:$0xff] %v10075
      %10279 = vst [vmem:[%s199 + $0x610] sm:$0xff] %v10076
      %10280 = vst.msk [vmem:[%s199 + $0x618] sm:$0xff] %vm8030, %v10077
      %10281 = vst [vmem:[%s199 + $0x620] sm:$0xff] %v10078
      %10282 = vst [vmem:[%s199 + $0x628] sm:$0xff] %v10079
      %10283 = vst [vmem:[%s199 + $0x630] sm:$0xff] %v10080
      %10284 = vst [vmem:[%s199 + $0x638] sm:$0xff] %v10081
      %10285 = vst [vmem:[%s199 + $0x640] sm:$0xff] %v10082
      %10286 = vst [vmem:[%s199 + $0x648] sm:$0xff] %v10083
      %10287 = vst.msk [vmem:[%s199 + $0x650] sm:$0xff] %vm8030, %v10084
      %s10288 = smul.u32 29, %s14
      %p10289 = scmp.lt.s32.totalorder %s10288, 86
      %s10290 = scalar_select %p10289, %s10288, 86
      %s10291 = smul.addr %s10290, 7
      %s10292 = smul.addr %s10291, 8
      %s10293 = scalar_lea.vmem %s3, %s10292
      // Predicated region
      $region37: #{tpu_custom_call.1} parent=31 // pred_check
        %p10294 = pneg %p105
      $region38: #{tpu_custom_call.1} parent=31 // pred_check_branch
        %10296 = sbr.rel (%p10294) target = $region40
      $region39: #{tpu_custom_call.1} parent=31 // pred_region
        %s10297 = smul.u32 29, %s14
      $region40: #{tpu_custom_call.1} parent=31 // pred_fallthru
        _
    $region32: #{tpu_custom_call.1} parent=5 // pred_fallthru
      _
    %p10298 = scmp.le.s32.totalorder 2, %s9
    // Predicated region
    $region41: #{tpu_custom_call.1} parent=5 // pred_check
      %p10299 = pneg %p10298
    $region42: #{tpu_custom_call.1} parent=5 // pred_check_branch
      %10301 = sbr.rel (%p10299) target = $region44
    $region43: #{tpu_custom_call.1} parent=5 // pred_region
      %s10302 = ssub.s32 %s9, 2
      // Predicated region
      $region45: #{tpu_custom_call.1} parent=43 // pred_check
        %p10303 = pneg %p111
      $region46: #{tpu_custom_call.1} parent=43 // pred_check_branch
        %10305 = sbr.rel (%p10303) target = $region48
      $region47: #{tpu_custom_call.1} parent=43 // pred_region
        %s10306 = smul.u32 29, %s15
        %p10307 = scmp.lt.s32.totalorder %s10306, 86
        %s10308 = scalar_select %p10307, %s10306, 86
        %s10309 = smul.addr %s10308, 7
        %s10310 = smul.addr %s10309, 8
        %s10311 = scalar_lea.vmem %s3, %s10310
      $region48: #{tpu_custom_call.1} parent=43 // pred_fallthru
        _
    $region44: #{tpu_custom_call.1} parent=5 // pred_fallthru
      _
  $region6: #{tpu_custom_call.1} parent=0 // loop_footer
    %s13 = sadd.s32 1, %s9
  $region7: #{tpu_custom_call.1} parent=0 // loop_footer_branch
    %8 = sbr.rel target = $region3
  $region8: #{tpu_custom_call.1} parent=0 // loop_exit
    _

</llo_original>
